<compile_context>
chip_gen: v6e
topology: v6e:2x2x1
jax: 0.10.0
libtpu: 0.0.40
codegen_flags: <defaults>
</compile_context>

<pallas_src>
import functools

import jax
import jax.numpy as jnp
import numpy as np
from jax.experimental import pallas as pl
from jax.experimental.pallas import tpu as pltpu

_LANE = 128


def _round_up(x, m):
    return (x + m - 1) // m * m


# ----------------------------------------------------------------------------
# The single fused kernel: conv1 -> res block -> conv2 + ReLU + GAP -> decoder.
# ----------------------------------------------------------------------------
def _coarsenet_kernel(*refs, n_dec_layers):
    (p1_ref, w1_ref, b1_ref, s_ref,
     wra_ref, bra_ref, wrb_ref, brb_ref,
     w2_ref, b2_ref, g_ref) = refs[:11]
    dec_refs = refs[11:11 + 4 * n_dec_layers]
    o_ref = refs[11 + 4 * n_dec_layers]

    def conv3x3(x_f32, w_tap_ref, b_ref):
        """3x3 / stride-1 / pad-1 conv over the (rows=B*H*W, 128) activation.

        Each spatial tap is a row-gather matmul with a precomputed 0/1 shift
        matrix (s_ref[t]) followed by a (128,128) channel matmul -- everything
        is a lane-dense 2-D MXU op, no reshapes / unaligned slices needed.
        """
        xb = x_f32.astype(jnp.bfloat16)
        acc = None
        for t in range(9):
            xt = jnp.dot(s_ref[t], xb, preferred_element_type=jnp.float32)
            xt = xt.astype(jnp.bfloat16)  # exact: pure gather of bf16 values
            c = jnp.dot(xt, w_tap_ref[t], preferred_element_type=jnp.float32)
            acc = c if acc is None else acc + c
        return acc + b_ref[...]

    # ---- conv1 (stride 2): one dense matmul over the im2col'd patches ------
    h1 = jnp.dot(p1_ref[...], w1_ref[...], preferred_element_type=jnp.float32)
    h1 = jnp.maximum(h1 + b1_ref[...], 0.0)              # (rows, 128) f32

    # ---- residual block; add + ReLU fused into the 2nd conv's epilogue -----
    r = jnp.maximum(conv3x3(h1, wra_ref, bra_ref), 0.0)
    h2 = jnp.maximum(conv3x3(r, wrb_ref, brb_ref) + h1, 0.0)

    # ---- conv2 (stride 2) + ReLU + global-average-pool ----------------------
    # conv2 is evaluated on the stride-1 grid; the stride-2 position selection,
    # the per-batch sum and the 1/(Ho*Wo) scale are all folded into g_ref.
    y = jnp.maximum(conv3x3(h2, w2_ref, b2_ref), 0.0)     # (rows, 128)
    feat = jnp.dot(g_ref[...], y, preferred_element_type=jnp.float32)  # (B, 128)

    # ---- TreeGCN-style decoder: pre-widened block-diagonal matmuls ----------
    x = feat
    for l in range(n_dec_layers):
        wb, bb, wn, bn = dec_refs[4 * l:4 * l + 4]
        x = jnp.dot(x.astype(jnp.bfloat16), wb[...],
                    preferred_element_type=jnp.float32) + bb[...]
        x = jnp.dot(x.astype(jnp.bfloat16), wn[...],
                    preferred_element_type=jnp.float32) + bn[...]
        if l < n_dec_layers - 1:
            # TODO(synk): verify LeakyReLU slope (TreeGCN papers use 0.2;
            #             nn.LeakyReLU default is 0.01).
            x = jnp.where(x > 0.0, x, 0.2 * x)
    o_ref[...] = x.astype(o_ref.dtype)


# ----------------------------------------------------------------------------
# Wrapper-side helpers (cheap XLA glue, run once per forward / once at init)
# ----------------------------------------------------------------------------
def _im2col_nhwc(x, kh, kw, stride, padding):
    """x: (B, H, W, C) -> patches (B, Ho, Wo, kh*kw*C), flatten order (dy, dx, C)."""
    B, H, W_, C = x.shape
    xp = jnp.pad(x, ((0, 0), (padding, padding), (padding, padding), (0, 0)))
    Ho = (H + 2 * padding - kh) // stride + 1
    Wo = (W_ + 2 * padding - kw) // stride + 1
    cols = []
    for dy in range(kh):
        for dx in range(kw):
            cols.append(xp[:, dy:dy + Ho * stride:stride,
                           dx:dx + Wo * stride:stride, :])
    return jnp.concatenate(cols, axis=-1), Ho, Wo


def _shift_matrices(B, H, W):
    """S[t, r_out, r_in] = 1 where tap t=(dy*3+dx) of a pad-1 3x3 conv reads an
    in-bounds input position (per-batch, row index = b*H*W + h*W + w)."""
    rows = B * H * W
    s = np.zeros((9, rows, rows), np.float32)
    for dy in range(3):
        for dx in range(3):
            t = dy * 3 + dx
            for b in range(B):
                for h in range(H):
                    for w in range(W):
                        hi, wi = h + dy - 1, w + dx - 1
                        if 0 <= hi < H and 0 <= wi < W:
                            s[t, b * H * W + h * W + w,
                              b * H * W + hi * W + wi] = 1.0
    return jnp.asarray(s, dtype=jnp.bfloat16)


def _gap_matrix(B, H, W, stride):
    """G[b, r] selects the stride-2 conv output positions of batch b and scales
    by 1/(Ho*Wo): GAP(relu(conv2)) becomes a single (B, rows) @ (rows, C) matmul."""
    rows = B * H * W
    n_sel = (H // stride) * (W // stride)
    g = np.zeros((B, rows), np.float32)
    for b in range(B):
        for h in range(0, H, stride):
            for w in range(0, W, stride):
                g[b, b * H * W + h * W + w] = 1.0 / n_sel
    return jnp.asarray(g)


def preprocess_params(params, *, batch, in_hw, degrees):
    """One-time parameter preprocessing (hoisted off the forward critical path):
      * conv weights -> tap-major (9, 128, 128) bf16, channels zero-padded to 128
      * conv1 -> im2col weight matrix (K=3*3*Cin -> 128, Cout -> 128) bf16
      * 0/1 tap-shift matrices + strided-GAP matrix for the in-kernel convs
      * decoder branch/node linears pre-widened into block-diagonal bf16 matrices
    """
    C = _LANE
    enc = params["encoder"]
    H1 = in_hw // 2                     # spatial extent after the stride-2 conv1

    def conv_taps(w):                   # (Cout, Cin, 3, 3) -> (9, 128, 128) bf16
        Cout, Cin, kh, kw = w.shape
        wt = jnp.transpose(w, (2, 3, 1, 0)).reshape(kh * kw, Cin, Cout)
        wt = jnp.pad(wt, ((0, 0), (0, C - Cin), (0, C - Cout)))
        return wt.astype(jnp.bfloat16)

    def bias_row(b):
        return jnp.pad(b.astype(jnp.float32), (0, C - b.shape[0])).reshape(1, C)

    w1 = enc["conv1_w"]
    _, Cin1, kh, kw = w1.shape
    K1 = kh * kw * Cin1
    assert K1 <= C
    w1m = jnp.transpose(w1, (2, 3, 1, 0)).reshape(K1, -1)
    w1m = jnp.pad(w1m, ((0, C - K1), (0, C - w1m.shape[1]))).astype(jnp.bfloat16)

    pe = {
        "w1": w1m, "b1": bias_row(enc["conv1_b"]),
        "shift": _shift_matrices(batch, H1, H1),
        "wra": conv_taps(enc["res1a_w"]), "bra": bias_row(enc["res1a_b"]),
        "wrb": conv_taps(enc["res1b_w"]), "brb": bias_row(enc["res1b_b"]),
        "w2": conv_taps(enc["conv2_w"]), "b2": bias_row(enc["conv2_b"]),
        "gap": _gap_matrix(batch, H1, H1, stride=2),
    }

    dec = []
    n_nodes = 1
    for l, d in enumerate(degrees):
        p = params["decoder"][l]
        wb = jnp.kron(jnp.eye(n_nodes, dtype=jnp.float32),
                      p["branch_w"].astype(jnp.float32))
        bb = jnp.tile(p["branch_b"].astype(jnp.float32).reshape(1, -1), (1, n_nodes))
        wn = jnp.kron(jnp.eye(n_nodes * d, dtype=jnp.float32),
                      p["node_w"].astype(jnp.float32))
        bn = jnp.tile(p["node_b"].astype(jnp.float32).reshape(1, -1), (1, n_nodes * d))
        if l == 0:
            # first layer consumes the 128-lane padded featvec directly
            assert wb.shape[0] <= C
            wb = jnp.pad(wb, ((0, C - wb.shape[0]), (0, 0)))
        if l == len(degrees) - 1:
            pad_n = _round_up(wn.shape[1], C) - wn.shape[1]   # lane-dense final store
            wn = jnp.pad(wn, ((0, 0), (0, pad_n)))
            bn = jnp.pad(bn, ((0, 0), (0, pad_n)))
        n_nodes *= d
        dec.append({"wb": wb.astype(jnp.bfloat16), "bb": bb,
                    "wn": wn.astype(jnp.bfloat16), "bn": bn})
    return {"enc": pe, "dec": dec}


# ----------------------------------------------------------------------------
# CoarseNet forward: one pallas_call
# ----------------------------------------------------------------------------
@functools.partial(jax.jit, static_argnames=("degrees", "f_last"))
def coarse_net_forward(pp, rgba, *, degrees, f_last):
    B = rgba.shape[0]
    x = jnp.transpose(rgba, (0, 2, 3, 1))         # single NCHW->NHWC at the entry
    # conv1 im2col only (Cin=4 -> K=36): 32 KiB of bf16 patches, less HBM traffic
    # than a lane-padded NHWC input; all other convs are computed in-kernel.
    patches, Ho, Wo = _im2col_nhwc(x, 3, 3, stride=2, padding=1)
    rows = B * Ho * Wo
    K1 = patches.shape[-1]
    assert K1 <= _LANE
    p1 = patches.reshape(rows, K1).astype(jnp.bfloat16)
    p1 = jnp.pad(p1, ((0, 0), (0, _LANE - K1)))

    enc = pp["enc"]
    assert rows == enc["shift"].shape[1], (rows, enc["shift"].shape)
    args = [p1, enc["w1"], enc["b1"], enc["shift"], enc["wra"], enc["bra"],
            enc["wrb"], enc["brb"], enc["w2"], enc["b2"], enc["gap"]]
    for lyr in pp["dec"]:
        args += [lyr["wb"], lyr["bb"], lyr["wn"], lyr["bn"]]

    out_cols = pp["dec"][-1]["wn"].shape[1]

    def full_spec(a):
        nd = a.ndim
        return pl.BlockSpec(a.shape, lambda i, _nd=nd: (0,) * _nd)

    out = pl.pallas_call(
        functools.partial(_coarsenet_kernel, n_dec_layers=len(pp["dec"])),
        out_shape=jax.ShapeDtypeStruct((B, out_cols), jnp.float32),
        grid=(1,),
        in_specs=[full_spec(a) for a in args],
        out_specs=pl.BlockSpec((B, out_cols), lambda i: (0, 0)),
        compiler_params=pltpu.CompilerParams(dimension_semantics=("arbitrary",)),
    )(*args)

    n_pts = 1
    for d in degrees:
        n_pts *= d
    return out[:, :n_pts * f_last].reshape(B, n_pts, f_last)


# ----------------------------------------------------------------------------
# Pure-JAX f32 reference (for a loose correctness cross-check)
# ----------------------------------------------------------------------------
def _reference_forward(params, rgba, degrees):
    x = jnp.transpose(rgba, (0, 2, 3, 1))
    p = params["encoder"]

    def conv(x, w, b, stride):
        w_hwio = jnp.transpose(w, (2, 3, 1, 0))
        y = jax.lax.conv_general_dilated(
            x, w_hwio, window_strides=(stride, stride), padding=((1, 1), (1, 1)),
            dimension_numbers=("NHWC", "HWIO", "NHWC"))
        return y + b.reshape(1, 1, 1, -1)

    h = jnp.maximum(conv(x, p["conv1_w"], p["conv1_b"], 2), 0.0)
    r = jnp.maximum(conv(h, p["res1a_w"], p["res1a_b"], 1), 0.0)
    h = jnp.maximum(conv(r, p["res1b_w"], p["res1b_b"], 1) + h, 0.0)
    y = jnp.maximum(conv(h, p["conv2_w"], p["conv2_b"], 2), 0.0)
    feat = jnp.mean(y, axis=(1, 2))

    B = feat.shape[0]
    xdec = feat.reshape(B, 1, -1)
    for l, d in enumerate(degrees):
        lp = params["decoder"][l]
        _, N, F = xdec.shape
        h2 = xdec.reshape(B * N, F) @ lp["branch_w"] + lp["branch_b"]
        h2 = h2.reshape(B * N * d, F)
        h2 = h2 @ lp["node_w"] + lp["node_b"]
        if l < len(degrees) - 1:
            h2 = jnp.where(h2 > 0.0, h2, 0.2 * h2)
        xdec = h2.reshape(B, N * d, -1)
    return xdec


# ----------------------------------------------------------------------------
# Deterministic parameter init
# ----------------------------------------------------------------------------
def init_params(key, in_ch=4, c1=32, point_feat=64, degrees=(2, 2, 2)):
    ks = jax.random.split(key, 16)
    scale = 0.1

    def nrm(k, shape):
        return scale * jax.random.normal(k, shape, dtype=jnp.float32)

    enc = {
        "conv1_w": nrm(ks[0], (c1, in_ch, 3, 3)),
        "conv1_b": jnp.zeros((c1,), jnp.float32),
        "res1a_w": nrm(ks[1], (c1, c1, 3, 3)),
        "res1a_b": jnp.zeros((c1,), jnp.float32),
        "res1b_w": nrm(ks[2], (c1, c1, 3, 3)),
        "res1b_b": jnp.zeros((c1,), jnp.float32),
        "conv2_w": nrm(ks[3], (point_feat, c1, 3, 3)),
        "conv2_b": jnp.zeros((point_feat,), jnp.float32),
    }

    dec = []
    kidx = 4
    for l, d in enumerate(degrees):
        f_out = 3 if l == len(degrees) - 1 else point_feat
        dec.append({
            "branch_w": nrm(ks[kidx], (point_feat, d * point_feat)),
            "branch_b": jnp.zeros((d * point_feat,), jnp.float32),
            "node_w": nrm(ks[kidx + 1], (point_feat, f_out)),
            "node_b": jnp.zeros((f_out,), jnp.float32),
        })
        kidx += 2
    return {"encoder": enc, "decoder": dec}


# ----------------------------------------------------------------------------
if __name__ == "__main__":
    # config: train_batch_size=2, point_feat=64, point_degree=[2, 2, 2]
    degrees = (2, 2, 2)
    point_feat = 64
    batch = 2

    key = jax.random.PRNGKey(0)
    k_in, k_par = jax.random.split(key)
    rgba = jax.random.normal(k_in, (batch, 4, 16, 16), dtype=jnp.float32)  # NCHW RGBA

    params = init_params(k_par, in_ch=4, c1=32, point_feat=point_feat, degrees=degrees)
    pp = preprocess_params(params, batch=batch, in_hw=16, degrees=degrees)

    feat = coarse_net_forward(pp, rgba, degrees=degrees, f_last=3)
    feat = jax.block_until_ready(feat)

    expected_points = 1
    for d in degrees:
        expected_points *= d
    assert feat.shape == (batch, expected_points, 3), feat.shape
    assert feat.dtype == jnp.float32
    assert bool(jnp.all(jnp.isfinite(feat)))

    # loose cross-check vs a pure-JAX f32 reference (kernel uses bf16 MXU operands)
    ref = _reference_forward(params, rgba, degrees)
    np.testing.assert_allclose(np.asarray(feat), np.asarray(ref), rtol=0.1, atol=0.02)

    print("KERNEL_OK")
</pallas_src>

<mosaic_0001>
module attributes {stable_mosaic.version = 11 : i64} {
  func.func @_coarsenet_kernel(%arg0: i32, %arg1: memref<128x128xbf16, #tpu.memory_space<vmem>>, %arg2: memref<128x128xbf16, #tpu.memory_space<vmem>>, %arg3: memref<1x128xf32, #tpu.memory_space<vmem>>, %arg4: memref<9x128x128xbf16, #tpu.memory_space<vmem>>, %arg5: memref<9x128x128xbf16, #tpu.memory_space<vmem>>, %arg6: memref<1x128xf32, #tpu.memory_space<vmem>>, %arg7: memref<9x128x128xbf16, #tpu.memory_space<vmem>>, %arg8: memref<1x128xf32, #tpu.memory_space<vmem>>, %arg9: memref<9x128x128xbf16, #tpu.memory_space<vmem>>, %arg10: memref<1x128xf32, #tpu.memory_space<vmem>>, %arg11: memref<2x128xf32, #tpu.memory_space<vmem>>, %arg12: memref<128x128xbf16, #tpu.memory_space<vmem>>, %arg13: memref<1x128xf32, #tpu.memory_space<vmem>>, %arg14: memref<128x128xbf16, #tpu.memory_space<vmem>>, %arg15: memref<1x128xf32, #tpu.memory_space<vmem>>, %arg16: memref<128x256xbf16, #tpu.memory_space<vmem>>, %arg17: memref<1x256xf32, #tpu.memory_space<vmem>>, %arg18: memref<256x256xbf16, #tpu.memory_space<vmem>>, %arg19: memref<1x256xf32, #tpu.memory_space<vmem>>, %arg20: memref<256x512xbf16, #tpu.memory_space<vmem>>, %arg21: memref<1x512xf32, #tpu.memory_space<vmem>>, %arg22: memref<512x128xbf16, #tpu.memory_space<vmem>>, %arg23: memref<1x128xf32, #tpu.memory_space<vmem>>, %arg24: memref<2x128xf32, #tpu.memory_space<vmem>>) attributes {dimension_semantics = [#tpu.dimension_semantics<arbitrary>], iteration_bounds = array<i64: 1>, scalar_prefetch = 0 : i64, scratch_operands = 0 : i64, tpu.core_type = #tpu.core_type<tc>, window_params = [{pipeline_mode = #tpu.pipeline_mode<synchronous>, transform_indices = @transform_0, window_bounds = array<i64: 128, 128>}, {pipeline_mode = #tpu.pipeline_mode<synchronous>, transform_indices = @transform_1, window_bounds = array<i64: 128, 128>}, {pipeline_mode = #tpu.pipeline_mode<synchronous>, transform_indices = @transform_2, window_bounds = array<i64: 1, 128>}, {pipeline_mode = #tpu.pipeline_mode<synchronous>, transform_indices = @transform_3, window_bounds = array<i64: 9, 128, 128>}, {pipeline_mode = #tpu.pipeline_mode<synchronous>, transform_indices = @transform_4, window_bounds = array<i64: 9, 128, 128>}, {pipeline_mode = #tpu.pipeline_mode<synchronous>, transform_indices = @transform_5, window_bounds = array<i64: 1, 128>}, {pipeline_mode = #tpu.pipeline_mode<synchronous>, transform_indices = @transform_6, window_bounds = array<i64: 9, 128, 128>}, {pipeline_mode = #tpu.pipeline_mode<synchronous>, transform_indices = @transform_7, window_bounds = array<i64: 1, 128>}, {pipeline_mode = #tpu.pipeline_mode<synchronous>, transform_indices = @transform_8, window_bounds = array<i64: 9, 128, 128>}, {pipeline_mode = #tpu.pipeline_mode<synchronous>, transform_indices = @transform_9, window_bounds = array<i64: 1, 128>}, {pipeline_mode = #tpu.pipeline_mode<synchronous>, transform_indices = @transform_10, window_bounds = array<i64: 2, 128>}, {pipeline_mode = #tpu.pipeline_mode<synchronous>, transform_indices = @transform_11, window_bounds = array<i64: 128, 128>}, {pipeline_mode = #tpu.pipeline_mode<synchronous>, transform_indices = @transform_12, window_bounds = array<i64: 1, 128>}, {pipeline_mode = #tpu.pipeline_mode<synchronous>, transform_indices = @transform_13, window_bounds = array<i64: 128, 128>}, {pipeline_mode = #tpu.pipeline_mode<synchronous>, transform_indices = @transform_14, window_bounds = array<i64: 1, 128>}, {pipeline_mode = #tpu.pipeline_mode<synchronous>, transform_indices = @transform_15, window_bounds = array<i64: 128, 256>}, {pipeline_mode = #tpu.pipeline_mode<synchronous>, transform_indices = @transform_16, window_bounds = array<i64: 1, 256>}, {pipeline_mode = #tpu.pipeline_mode<synchronous>, transform_indices = @transform_17, window_bounds = array<i64: 256, 256>}, {pipeline_mode = #tpu.pipeline_mode<synchronous>, transform_indices = @transform_18, window_bounds = array<i64: 1, 256>}, {pipeline_mode = #tpu.pipeline_mode<synchronous>, transform_indices = @transform_19, window_bounds = array<i64: 256, 512>}, {pipeline_mode = #tpu.pipeline_mode<synchronous>, transform_indices = @transform_20, window_bounds = array<i64: 1, 512>}, {pipeline_mode = #tpu.pipeline_mode<synchronous>, transform_indices = @transform_21, window_bounds = array<i64: 512, 128>}, {pipeline_mode = #tpu.pipeline_mode<synchronous>, transform_indices = @transform_22, window_bounds = array<i64: 1, 128>}, {pipeline_mode = #tpu.pipeline_mode<synchronous>, transform_indices = @transform_23, window_bounds = array<i64: 2, 128>}]} {
    %c0 = arith.constant 0 : index
    %c0_0 = arith.constant 0 : index
    %0 = vector.load %arg1[%c0, %c0_0] : memref<128x128xbf16, #tpu.memory_space<vmem>>, vector<128x128xbf16>
    %c0_1 = arith.constant 0 : index
    %c0_2 = arith.constant 0 : index
    %1 = vector.load %arg2[%c0_1, %c0_2] : memref<128x128xbf16, #tpu.memory_space<vmem>>, vector<128x128xbf16>
    %cst = arith.constant dense<0.000000e+00> : vector<128x128xf32>
    %2 = tpu.matmul %0, %1, %cst {dimension_numbers = #tpu.dot_dimension_numbers<[1], [0], [0], [1], [0, 0, 1, 1], [], []>} : vector<128x128xbf16>, vector<128x128xbf16>, vector<128x128xf32> -> vector<128x128xf32>
    %c0_3 = arith.constant 0 : index
    %c0_4 = arith.constant 0 : index
    %3 = vector.load %arg3[%c0_3, %c0_4] : memref<1x128xf32, #tpu.memory_space<vmem>>, vector<1x128xf32>
    %4 = vector.broadcast %3 : vector<1x128xf32> to vector<128x128xf32>
    %5 = arith.addf %2, %4 : vector<128x128xf32>
    %cst_5 = arith.constant 0.000000e+00 : f32
    %6 = vector.broadcast %cst_5 : f32 to vector<128x128xf32>
    %7 = arith.maximumf %5, %6 : vector<128x128xf32>
    %8 = arith.truncf %7 : vector<128x128xf32> to vector<128x128xbf16>
    %c0_6 = arith.constant 0 : index
    %c0_7 = arith.constant 0 : index
    %c0_8 = arith.constant 0 : index
    %9 = vector.load %arg4[%c0_6, %c0_7, %c0_8] : memref<9x128x128xbf16, #tpu.memory_space<vmem>>, vector<1x128x128xbf16>
    %10 = vector.shape_cast %9 : vector<1x128x128xbf16> to vector<128x128xbf16>
    %cst_9 = arith.constant dense<0.000000e+00> : vector<128x128xf32>
    %11 = tpu.matmul %10, %8, %cst_9 {dimension_numbers = #tpu.dot_dimension_numbers<[1], [0], [0], [1], [0, 0, 1, 1], [], []>} : vector<128x128xbf16>, vector<128x128xbf16>, vector<128x128xf32> -> vector<128x128xf32>
    %12 = arith.truncf %11 : vector<128x128xf32> to vector<128x128xbf16>
    %c0_10 = arith.constant 0 : index
    %c0_11 = arith.constant 0 : index
    %c0_12 = arith.constant 0 : index
    %13 = vector.load %arg5[%c0_10, %c0_11, %c0_12] : memref<9x128x128xbf16, #tpu.memory_space<vmem>>, vector<1x128x128xbf16>
    %14 = vector.shape_cast %13 : vector<1x128x128xbf16> to vector<128x128xbf16>
    %cst_13 = arith.constant dense<0.000000e+00> : vector<128x128xf32>
    %15 = tpu.matmul %12, %14, %cst_13 {dimension_numbers = #tpu.dot_dimension_numbers<[1], [0], [0], [1], [0, 0, 1, 1], [], []>} : vector<128x128xbf16>, vector<128x128xbf16>, vector<128x128xf32> -> vector<128x128xf32>
    %c1 = arith.constant 1 : index
    %c0_14 = arith.constant 0 : index
    %c0_15 = arith.constant 0 : index
    %16 = vector.load %arg4[%c1, %c0_14, %c0_15] : memref<9x128x128xbf16, #tpu.memory_space<vmem>>, vector<1x128x128xbf16>
    %17 = vector.shape_cast %16 : vector<1x128x128xbf16> to vector<128x128xbf16>
    %cst_16 = arith.constant dense<0.000000e+00> : vector<128x128xf32>
    %18 = tpu.matmul %17, %8, %cst_16 {dimension_numbers = #tpu.dot_dimension_numbers<[1], [0], [0], [1], [0, 0, 1, 1], [], []>} : vector<128x128xbf16>, vector<128x128xbf16>, vector<128x128xf32> -> vector<128x128xf32>
    %19 = arith.truncf %18 : vector<128x128xf32> to vector<128x128xbf16>
    %c1_17 = arith.constant 1 : index
    %c0_18 = arith.constant 0 : index
    %c0_19 = arith.constant 0 : index
    %20 = vector.load %arg5[%c1_17, %c0_18, %c0_19] : memref<9x128x128xbf16, #tpu.memory_space<vmem>>, vector<1x128x128xbf16>
    %21 = vector.shape_cast %20 : vector<1x128x128xbf16> to vector<128x128xbf16>
    %cst_20 = arith.constant dense<0.000000e+00> : vector<128x128xf32>
    %22 = tpu.matmul %19, %21, %cst_20 {dimension_numbers = #tpu.dot_dimension_numbers<[1], [0], [0], [1], [0, 0, 1, 1], [], []>} : vector<128x128xbf16>, vector<128x128xbf16>, vector<128x128xf32> -> vector<128x128xf32>
    %23 = arith.addf %15, %22 : vector<128x128xf32>
    %c2 = arith.constant 2 : index
    %c0_21 = arith.constant 0 : index
    %c0_22 = arith.constant 0 : index
    %24 = vector.load %arg4[%c2, %c0_21, %c0_22] : memref<9x128x128xbf16, #tpu.memory_space<vmem>>, vector<1x128x128xbf16>
    %25 = vector.shape_cast %24 : vector<1x128x128xbf16> to vector<128x128xbf16>
    %cst_23 = arith.constant dense<0.000000e+00> : vector<128x128xf32>
    %26 = tpu.matmul %25, %8, %cst_23 {dimension_numbers = #tpu.dot_dimension_numbers<[1], [0], [0], [1], [0, 0, 1, 1], [], []>} : vector<128x128xbf16>, vector<128x128xbf16>, vector<128x128xf32> -> vector<128x128xf32>
    %27 = arith.truncf %26 : vector<128x128xf32> to vector<128x128xbf16>
    %c2_24 = arith.constant 2 : index
    %c0_25 = arith.constant 0 : index
    %c0_26 = arith.constant 0 : index
    %28 = vector.load %arg5[%c2_24, %c0_25, %c0_26] : memref<9x128x128xbf16, #tpu.memory_space<vmem>>, vector<1x128x128xbf16>
    %29 = vector.shape_cast %28 : vector<1x128x128xbf16> to vector<128x128xbf16>
    %cst_27 = arith.constant dense<0.000000e+00> : vector<128x128xf32>
    %30 = tpu.matmul %27, %29, %cst_27 {dimension_numbers = #tpu.dot_dimension_numbers<[1], [0], [0], [1], [0, 0, 1, 1], [], []>} : vector<128x128xbf16>, vector<128x128xbf16>, vector<128x128xf32> -> vector<128x128xf32>
    %31 = arith.addf %23, %30 : vector<128x128xf32>
    %c3 = arith.constant 3 : index
    %c0_28 = arith.constant 0 : index
    %c0_29 = arith.constant 0 : index
    %32 = vector.load %arg4[%c3, %c0_28, %c0_29] : memref<9x128x128xbf16, #tpu.memory_space<vmem>>, vector<1x128x128xbf16>
    %33 = vector.shape_cast %32 : vector<1x128x128xbf16> to vector<128x128xbf16>
    %cst_30 = arith.constant dense<0.000000e+00> : vector<128x128xf32>
    %34 = tpu.matmul %33, %8, %cst_30 {dimension_numbers = #tpu.dot_dimension_numbers<[1], [0], [0], [1], [0, 0, 1, 1], [], []>} : vector<128x128xbf16>, vector<128x128xbf16>, vector<128x128xf32> -> vector<128x128xf32>
    %35 = arith.truncf %34 : vector<128x128xf32> to vector<128x128xbf16>
    %c3_31 = arith.constant 3 : index
    %c0_32 = arith.constant 0 : index
    %c0_33 = arith.constant 0 : index
    %36 = vector.load %arg5[%c3_31, %c0_32, %c0_33] : memref<9x128x128xbf16, #tpu.memory_space<vmem>>, vector<1x128x128xbf16>
    %37 = vector.shape_cast %36 : vector<1x128x128xbf16> to vector<128x128xbf16>
    %cst_34 = arith.constant dense<0.000000e+00> : vector<128x128xf32>
    %38 = tpu.matmul %35, %37, %cst_34 {dimension_numbers = #tpu.dot_dimension_numbers<[1], [0], [0], [1], [0, 0, 1, 1], [], []>} : vector<128x128xbf16>, vector<128x128xbf16>, vector<128x128xf32> -> vector<128x128xf32>
    %39 = arith.addf %31, %38 : vector<128x128xf32>
    %c4 = arith.constant 4 : index
    %c0_35 = arith.constant 0 : index
    %c0_36 = arith.constant 0 : index
    %40 = vector.load %arg4[%c4, %c0_35, %c0_36] : memref<9x128x128xbf16, #tpu.memory_space<vmem>>, vector<1x128x128xbf16>
    %41 = vector.shape_cast %40 : vector<1x128x128xbf16> to vector<128x128xbf16>
    %cst_37 = arith.constant dense<0.000000e+00> : vector<128x128xf32>
    %42 = tpu.matmul %41, %8, %cst_37 {dimension_numbers = #tpu.dot_dimension_numbers<[1], [0], [0], [1], [0, 0, 1, 1], [], []>} : vector<128x128xbf16>, vector<128x128xbf16>, vector<128x128xf32> -> vector<128x128xf32>
    %43 = arith.truncf %42 : vector<128x128xf32> to vector<128x128xbf16>
    %c4_38 = arith.constant 4 : index
    %c0_39 = arith.constant 0 : index
    %c0_40 = arith.constant 0 : index
    %44 = vector.load %arg5[%c4_38, %c0_39, %c0_40] : memref<9x128x128xbf16, #tpu.memory_space<vmem>>, vector<1x128x128xbf16>
    %45 = vector.shape_cast %44 : vector<1x128x128xbf16> to vector<128x128xbf16>
    %cst_41 = arith.constant dense<0.000000e+00> : vector<128x128xf32>
    %46 = tpu.matmul %43, %45, %cst_41 {dimension_numbers = #tpu.dot_dimension_numbers<[1], [0], [0], [1], [0, 0, 1, 1], [], []>} : vector<128x128xbf16>, vector<128x128xbf16>, vector<128x128xf32> -> vector<128x128xf32>
    %47 = arith.addf %39, %46 : vector<128x128xf32>
    %c5 = arith.constant 5 : index
    %c0_42 = arith.constant 0 : index
    %c0_43 = arith.constant 0 : index
    %48 = vector.load %arg4[%c5, %c0_42, %c0_43] : memref<9x128x128xbf16, #tpu.memory_space<vmem>>, vector<1x128x128xbf16>
    %49 = vector.shape_cast %48 : vector<1x128x128xbf16> to vector<128x128xbf16>
    %cst_44 = arith.constant dense<0.000000e+00> : vector<128x128xf32>
    %50 = tpu.matmul %49, %8, %cst_44 {dimension_numbers = #tpu.dot_dimension_numbers<[1], [0], [0], [1], [0, 0, 1, 1], [], []>} : vector<128x128xbf16>, vector<128x128xbf16>, vector<128x128xf32> -> vector<128x128xf32>
    %51 = arith.truncf %50 : vector<128x128xf32> to vector<128x128xbf16>
    %c5_45 = arith.constant 5 : index
    %c0_46 = arith.constant 0 : index
    %c0_47 = arith.constant 0 : index
    %52 = vector.load %arg5[%c5_45, %c0_46, %c0_47] : memref<9x128x128xbf16, #tpu.memory_space<vmem>>, vector<1x128x128xbf16>
    %53 = vector.shape_cast %52 : vector<1x128x128xbf16> to vector<128x128xbf16>
    %cst_48 = arith.constant dense<0.000000e+00> : vector<128x128xf32>
    %54 = tpu.matmul %51, %53, %cst_48 {dimension_numbers = #tpu.dot_dimension_numbers<[1], [0], [0], [1], [0, 0, 1, 1], [], []>} : vector<128x128xbf16>, vector<128x128xbf16>, vector<128x128xf32> -> vector<128x128xf32>
    %55 = arith.addf %47, %54 : vector<128x128xf32>
    %c6 = arith.constant 6 : index
    %c0_49 = arith.constant 0 : index
    %c0_50 = arith.constant 0 : index
    %56 = vector.load %arg4[%c6, %c0_49, %c0_50] : memref<9x128x128xbf16, #tpu.memory_space<vmem>>, vector<1x128x128xbf16>
    %57 = vector.shape_cast %56 : vector<1x128x128xbf16> to vector<128x128xbf16>
    %cst_51 = arith.constant dense<0.000000e+00> : vector<128x128xf32>
    %58 = tpu.matmul %57, %8, %cst_51 {dimension_numbers = #tpu.dot_dimension_numbers<[1], [0], [0], [1], [0, 0, 1, 1], [], []>} : vector<128x128xbf16>, vector<128x128xbf16>, vector<128x128xf32> -> vector<128x128xf32>
    %59 = arith.truncf %58 : vector<128x128xf32> to vector<128x128xbf16>
    %c6_52 = arith.constant 6 : index
    %c0_53 = arith.constant 0 : index
    %c0_54 = arith.constant 0 : index
    %60 = vector.load %arg5[%c6_52, %c0_53, %c0_54] : memref<9x128x128xbf16, #tpu.memory_space<vmem>>, vector<1x128x128xbf16>
    %61 = vector.shape_cast %60 : vector<1x128x128xbf16> to vector<128x128xbf16>
    %cst_55 = arith.constant dense<0.000000e+00> : vector<128x128xf32>
    %62 = tpu.matmul %59, %61, %cst_55 {dimension_numbers = #tpu.dot_dimension_numbers<[1], [0], [0], [1], [0, 0, 1, 1], [], []>} : vector<128x128xbf16>, vector<128x128xbf16>, vector<128x128xf32> -> vector<128x128xf32>
    %63 = arith.addf %55, %62 : vector<128x128xf32>
    %c7 = arith.constant 7 : index
    %c0_56 = arith.constant 0 : index
    %c0_57 = arith.constant 0 : index
    %64 = vector.load %arg4[%c7, %c0_56, %c0_57] : memref<9x128x128xbf16, #tpu.memory_space<vmem>>, vector<1x128x128xbf16>
    %65 = vector.shape_cast %64 : vector<1x128x128xbf16> to vector<128x128xbf16>
    %cst_58 = arith.constant dense<0.000000e+00> : vector<128x128xf32>
    %66 = tpu.matmul %65, %8, %cst_58 {dimension_numbers = #tpu.dot_dimension_numbers<[1], [0], [0], [1], [0, 0, 1, 1], [], []>} : vector<128x128xbf16>, vector<128x128xbf16>, vector<128x128xf32> -> vector<128x128xf32>
    %67 = arith.truncf %66 : vector<128x128xf32> to vector<128x128xbf16>
    %c7_59 = arith.constant 7 : index
    %c0_60 = arith.constant 0 : index
    %c0_61 = arith.constant 0 : index
    %68 = vector.load %arg5[%c7_59, %c0_60, %c0_61] : memref<9x128x128xbf16, #tpu.memory_space<vmem>>, vector<1x128x128xbf16>
    %69 = vector.shape_cast %68 : vector<1x128x128xbf16> to vector<128x128xbf16>
    %cst_62 = arith.constant dense<0.000000e+00> : vector<128x128xf32>
    %70 = tpu.matmul %67, %69, %cst_62 {dimension_numbers = #tpu.dot_dimension_numbers<[1], [0], [0], [1], [0, 0, 1, 1], [], []>} : vector<128x128xbf16>, vector<128x128xbf16>, vector<128x128xf32> -> vector<128x128xf32>
    %71 = arith.addf %63, %70 : vector<128x128xf32>
    %c8 = arith.constant 8 : index
    %c0_63 = arith.constant 0 : index
    %c0_64 = arith.constant 0 : index
    %72 = vector.load %arg4[%c8, %c0_63, %c0_64] : memref<9x128x128xbf16, #tpu.memory_space<vmem>>, vector<1x128x128xbf16>
    %73 = vector.shape_cast %72 : vector<1x128x128xbf16> to vector<128x128xbf16>
    %cst_65 = arith.constant dense<0.000000e+00> : vector<128x128xf32>
    %74 = tpu.matmul %73, %8, %cst_65 {dimension_numbers = #tpu.dot_dimension_numbers<[1], [0], [0], [1], [0, 0, 1, 1], [], []>} : vector<128x128xbf16>, vector<128x128xbf16>, vector<128x128xf32> -> vector<128x128xf32>
    %75 = arith.truncf %74 : vector<128x128xf32> to vector<128x128xbf16>
    %c8_66 = arith.constant 8 : index
    %c0_67 = arith.constant 0 : index
    %c0_68 = arith.constant 0 : index
    %76 = vector.load %arg5[%c8_66, %c0_67, %c0_68] : memref<9x128x128xbf16, #tpu.memory_space<vmem>>, vector<1x128x128xbf16>
    %77 = vector.shape_cast %76 : vector<1x128x128xbf16> to vector<128x128xbf16>
    %cst_69 = arith.constant dense<0.000000e+00> : vector<128x128xf32>
    %78 = tpu.matmul %75, %77, %cst_69 {dimension_numbers = #tpu.dot_dimension_numbers<[1], [0], [0], [1], [0, 0, 1, 1], [], []>} : vector<128x128xbf16>, vector<128x128xbf16>, vector<128x128xf32> -> vector<128x128xf32>
    %79 = arith.addf %71, %78 : vector<128x128xf32>
    %c0_70 = arith.constant 0 : index
    %c0_71 = arith.constant 0 : index
    %80 = vector.load %arg6[%c0_70, %c0_71] : memref<1x128xf32, #tpu.memory_space<vmem>>, vector<1x128xf32>
    %81 = vector.broadcast %80 : vector<1x128xf32> to vector<128x128xf32>
    %82 = arith.addf %79, %81 : vector<128x128xf32>
    %cst_72 = arith.constant 0.000000e+00 : f32
    %83 = vector.broadcast %cst_72 : f32 to vector<128x128xf32>
    %84 = arith.maximumf %82, %83 : vector<128x128xf32>
    %85 = arith.truncf %84 : vector<128x128xf32> to vector<128x128xbf16>
    %c0_73 = arith.constant 0 : index
    %c0_74 = arith.constant 0 : index
    %c0_75 = arith.constant 0 : index
    %86 = vector.load %arg4[%c0_73, %c0_74, %c0_75] : memref<9x128x128xbf16, #tpu.memory_space<vmem>>, vector<1x128x128xbf16>
    %87 = vector.shape_cast %86 : vector<1x128x128xbf16> to vector<128x128xbf16>
    %cst_76 = arith.constant dense<0.000000e+00> : vector<128x128xf32>
    %88 = tpu.matmul %87, %85, %cst_76 {dimension_numbers = #tpu.dot_dimension_numbers<[1], [0], [0], [1], [0, 0, 1, 1], [], []>} : vector<128x128xbf16>, vector<128x128xbf16>, vector<128x128xf32> -> vector<128x128xf32>
    %89 = arith.truncf %88 : vector<128x128xf32> to vector<128x128xbf16>
    %c0_77 = arith.constant 0 : index
    %c0_78 = arith.constant 0 : index
    %c0_79 = arith.constant 0 : index
    %90 = vector.load %arg7[%c0_77, %c0_78, %c0_79] : memref<9x128x128xbf16, #tpu.memory_space<vmem>>, vector<1x128x128xbf16>
    %91 = vector.shape_cast %90 : vector<1x128x128xbf16> to vector<128x128xbf16>
    %cst_80 = arith.constant dense<0.000000e+00> : vector<128x128xf32>
    %92 = tpu.matmul %89, %91, %cst_80 {dimension_numbers = #tpu.dot_dimension_numbers<[1], [0], [0], [1], [0, 0, 1, 1], [], []>} : vector<128x128xbf16>, vector<128x128xbf16>, vector<128x128xf32> -> vector<128x128xf32>
    %c1_81 = arith.constant 1 : index
    %c0_82 = arith.constant 0 : index
    %c0_83 = arith.constant 0 : index
    %93 = vector.load %arg4[%c1_81, %c0_82, %c0_83] : memref<9x128x128xbf16, #tpu.memory_space<vmem>>, vector<1x128x128xbf16>
    %94 = vector.shape_cast %93 : vector<1x128x128xbf16> to vector<128x128xbf16>
    %cst_84 = arith.constant dense<0.000000e+00> : vector<128x128xf32>
    %95 = tpu.matmul %94, %85, %cst_84 {dimension_numbers = #tpu.dot_dimension_numbers<[1], [0], [0], [1], [0, 0, 1, 1], [], []>} : vector<128x128xbf16>, vector<128x128xbf16>, vector<128x128xf32> -> vector<128x128xf32>
    %96 = arith.truncf %95 : vector<128x128xf32> to vector<128x128xbf16>
    %c1_85 = arith.constant 1 : index
    %c0_86 = arith.constant 0 : index
    %c0_87 = arith.constant 0 : index
    %97 = vector.load %arg7[%c1_85, %c0_86, %c0_87] : memref<9x128x128xbf16, #tpu.memory_space<vmem>>, vector<1x128x128xbf16>
    %98 = vector.shape_cast %97 : vector<1x128x128xbf16> to vector<128x128xbf16>
    %cst_88 = arith.constant dense<0.000000e+00> : vector<128x128xf32>
    %99 = tpu.matmul %96, %98, %cst_88 {dimension_numbers = #tpu.dot_dimension_numbers<[1], [0], [0], [1], [0, 0, 1, 1], [], []>} : vector<128x128xbf16>, vector<128x128xbf16>, vector<128x128xf32> -> vector<128x128xf32>
    %100 = arith.addf %92, %99 : vector<128x128xf32>
    %c2_89 = arith.constant 2 : index
    %c0_90 = arith.constant 0 : index
    %c0_91 = arith.constant 0 : index
    %101 = vector.load %arg4[%c2_89, %c0_90, %c0_91] : memref<9x128x128xbf16, #tpu.memory_space<vmem>>, vector<1x128x128xbf16>
    %102 = vector.shape_cast %101 : vector<1x128x128xbf16> to vector<128x128xbf16>
    %cst_92 = arith.constant dense<0.000000e+00> : vector<128x128xf32>
    %103 = tpu.matmul %102, %85, %cst_92 {dimension_numbers = #tpu.dot_dimension_numbers<[1], [0], [0], [1], [0, 0, 1, 1], [], []>} : vector<128x128xbf16>, vector<128x128xbf16>, vector<128x128xf32> -> vector<128x128xf32>
    %104 = arith.truncf %103 : vector<128x128xf32> to vector<128x128xbf16>
    %c2_93 = arith.constant 2 : index
    %c0_94 = arith.constant 0 : index
    %c0_95 = arith.constant 0 : index
    %105 = vector.load %arg7[%c2_93, %c0_94, %c0_95] : memref<9x128x128xbf16, #tpu.memory_space<vmem>>, vector<1x128x128xbf16>
    %106 = vector.shape_cast %105 : vector<1x128x128xbf16> to vector<128x128xbf16>
    %cst_96 = arith.constant dense<0.000000e+00> : vector<128x128xf32>
    %107 = tpu.matmul %104, %106, %cst_96 {dimension_numbers = #tpu.dot_dimension_numbers<[1], [0], [0], [1], [0, 0, 1, 1], [], []>} : vector<128x128xbf16>, vector<128x128xbf16>, vector<128x128xf32> -> vector<128x128xf32>
    %108 = arith.addf %100, %107 : vector<128x128xf32>
    %c3_97 = arith.constant 3 : index
    %c0_98 = arith.constant 0 : index
    %c0_99 = arith.constant 0 : index
    %109 = vector.load %arg4[%c3_97, %c0_98, %c0_99] : memref<9x128x128xbf16, #tpu.memory_space<vmem>>, vector<1x128x128xbf16>
    %110 = vector.shape_cast %109 : vector<1x128x128xbf16> to vector<128x128xbf16>
    %cst_100 = arith.constant dense<0.000000e+00> : vector<128x128xf32>
    %111 = tpu.matmul %110, %85, %cst_100 {dimension_numbers = #tpu.dot_dimension_numbers<[1], [0], [0], [1], [0, 0, 1, 1], [], []>} : vector<128x128xbf16>, vector<128x128xbf16>, vector<128x128xf32> -> vector<128x128xf32>
    %112 = arith.truncf %111 : vector<128x128xf32> to vector<128x128xbf16>
    %c3_101 = arith.constant 3 : index
    %c0_102 = arith.constant 0 : index
    %c0_103 = arith.constant 0 : index
    %113 = vector.load %arg7[%c3_101, %c0_102, %c0_103] : memref<9x128x128xbf16, #tpu.memory_space<vmem>>, vector<1x128x128xbf16>
    %114 = vector.shape_cast %113 : vector<1x128x128xbf16> to vector<128x128xbf16>
    %cst_104 = arith.constant dense<0.000000e+00> : vector<128x128xf32>
    %115 = tpu.matmul %112, %114, %cst_104 {dimension_numbers = #tpu.dot_dimension_numbers<[1], [0], [0], [1], [0, 0, 1, 1], [], []>} : vector<128x128xbf16>, vector<128x128xbf16>, vector<128x128xf32> -> vector<128x128xf32>
    %116 = arith.addf %108, %115 : vector<128x128xf32>
    %c4_105 = arith.constant 4 : index
    %c0_106 = arith.constant 0 : index
    %c0_107 = arith.constant 0 : index
    %117 = vector.load %arg4[%c4_105, %c0_106, %c0_107] : memref<9x128x128xbf16, #tpu.memory_space<vmem>>, vector<1x128x128xbf16>
    %118 = vector.shape_cast %117 : vector<1x128x128xbf16> to vector<128x128xbf16>
    %cst_108 = arith.constant dense<0.000000e+00> : vector<128x128xf32>
    %119 = tpu.matmul %118, %85, %cst_108 {dimension_numbers = #tpu.dot_dimension_numbers<[1], [0], [0], [1], [0, 0, 1, 1], [], []>} : vector<128x128xbf16>, vector<128x128xbf16>, vector<128x128xf32> -> vector<128x128xf32>
    %120 = arith.truncf %119 : vector<128x128xf32> to vector<128x128xbf16>
    %c4_109 = arith.constant 4 : index
    %c0_110 = arith.constant 0 : index
    %c0_111 = arith.constant 0 : index
    %121 = vector.load %arg7[%c4_109, %c0_110, %c0_111] : memref<9x128x128xbf16, #tpu.memory_space<vmem>>, vector<1x128x128xbf16>
    %122 = vector.shape_cast %121 : vector<1x128x128xbf16> to vector<128x128xbf16>
    %cst_112 = arith.constant dense<0.000000e+00> : vector<128x128xf32>
    %123 = tpu.matmul %120, %122, %cst_112 {dimension_numbers = #tpu.dot_dimension_numbers<[1], [0], [0], [1], [0, 0, 1, 1], [], []>} : vector<128x128xbf16>, vector<128x128xbf16>, vector<128x128xf32> -> vector<128x128xf32>
    %124 = arith.addf %116, %123 : vector<128x128xf32>
    %c5_113 = arith.constant 5 : index
    %c0_114 = arith.constant 0 : index
    %c0_115 = arith.constant 0 : index
    %125 = vector.load %arg4[%c5_113, %c0_114, %c0_115] : memref<9x128x128xbf16, #tpu.memory_space<vmem>>, vector<1x128x128xbf16>
    %126 = vector.shape_cast %125 : vector<1x128x128xbf16> to vector<128x128xbf16>
    %cst_116 = arith.constant dense<0.000000e+00> : vector<128x128xf32>
    %127 = tpu.matmul %126, %85, %cst_116 {dimension_numbers = #tpu.dot_dimension_numbers<[1], [0], [0], [1], [0, 0, 1, 1], [], []>} : vector<128x128xbf16>, vector<128x128xbf16>, vector<128x128xf32> -> vector<128x128xf32>
    %128 = arith.truncf %127 : vector<128x128xf32> to vector<128x128xbf16>
    %c5_117 = arith.constant 5 : index
    %c0_118 = arith.constant 0 : index
    %c0_119 = arith.constant 0 : index
    %129 = vector.load %arg7[%c5_117, %c0_118, %c0_119] : memref<9x128x128xbf16, #tpu.memory_space<vmem>>, vector<1x128x128xbf16>
    %130 = vector.shape_cast %129 : vector<1x128x128xbf16> to vector<128x128xbf16>
    %cst_120 = arith.constant dense<0.000000e+00> : vector<128x128xf32>
    %131 = tpu.matmul %128, %130, %cst_120 {dimension_numbers = #tpu.dot_dimension_numbers<[1], [0], [0], [1], [0, 0, 1, 1], [], []>} : vector<128x128xbf16>, vector<128x128xbf16>, vector<128x128xf32> -> vector<128x128xf32>
    %132 = arith.addf %124, %131 : vector<128x128xf32>
    %c6_121 = arith.constant 6 : index
    %c0_122 = arith.constant 0 : index
    %c0_123 = arith.constant 0 : index
    %133 = vector.load %arg4[%c6_121, %c0_122, %c0_123] : memref<9x128x128xbf16, #tpu.memory_space<vmem>>, vector<1x128x128xbf16>
    %134 = vector.shape_cast %133 : vector<1x128x128xbf16> to vector<128x128xbf16>
    %cst_124 = arith.constant dense<0.000000e+00> : vector<128x128xf32>
    %135 = tpu.matmul %134, %85, %cst_124 {dimension_numbers = #tpu.dot_dimension_numbers<[1], [0], [0], [1], [0, 0, 1, 1], [], []>} : vector<128x128xbf16>, vector<128x128xbf16>, vector<128x128xf32> -> vector<128x128xf32>
    %136 = arith.truncf %135 : vector<128x128xf32> to vector<128x128xbf16>
    %c6_125 = arith.constant 6 : index
    %c0_126 = arith.constant 0 : index
    %c0_127 = arith.constant 0 : index
    %137 = vector.load %arg7[%c6_125, %c0_126, %c0_127] : memref<9x128x128xbf16, #tpu.memory_space<vmem>>, vector<1x128x128xbf16>
    %138 = vector.shape_cast %137 : vector<1x128x128xbf16> to vector<128x128xbf16>
    %cst_128 = arith.constant dense<0.000000e+00> : vector<128x128xf32>
    %139 = tpu.matmul %136, %138, %cst_128 {dimension_numbers = #tpu.dot_dimension_numbers<[1], [0], [0], [1], [0, 0, 1, 1], [], []>} : vector<128x128xbf16>, vector<128x128xbf16>, vector<128x128xf32> -> vector<128x128xf32>
    %140 = arith.addf %132, %139 : vector<128x128xf32>
    %c7_129 = arith.constant 7 : index
    %c0_130 = arith.constant 0 : index
    %c0_131 = arith.constant 0 : index
    %141 = vector.load %arg4[%c7_129, %c0_130, %c0_131] : memref<9x128x128xbf16, #tpu.memory_space<vmem>>, vector<1x128x128xbf16>
    %142 = vector.shape_cast %141 : vector<1x128x128xbf16> to vector<128x128xbf16>
    %cst_132 = arith.constant dense<0.000000e+00> : vector<128x128xf32>
    %143 = tpu.matmul %142, %85, %cst_132 {dimension_numbers = #tpu.dot_dimension_numbers<[1], [0], [0], [1], [0, 0, 1, 1], [], []>} : vector<128x128xbf16>, vector<128x128xbf16>, vector<128x128xf32> -> vector<128x128xf32>
    %144 = arith.truncf %143 : vector<128x128xf32> to vector<128x128xbf16>
    %c7_133 = arith.constant 7 : index
    %c0_134 = arith.constant 0 : index
    %c0_135 = arith.constant 0 : index
    %145 = vector.load %arg7[%c7_133, %c0_134, %c0_135] : memref<9x128x128xbf16, #tpu.memory_space<vmem>>, vector<1x128x128xbf16>
    %146 = vector.shape_cast %145 : vector<1x128x128xbf16> to vector<128x128xbf16>
    %cst_136 = arith.constant dense<0.000000e+00> : vector<128x128xf32>
    %147 = tpu.matmul %144, %146, %cst_136 {dimension_numbers = #tpu.dot_dimension_numbers<[1], [0], [0], [1], [0, 0, 1, 1], [], []>} : vector<128x128xbf16>, vector<128x128xbf16>, vector<128x128xf32> -> vector<128x128xf32>
    %148 = arith.addf %140, %147 : vector<128x128xf32>
    %c8_137 = arith.constant 8 : index
    %c0_138 = arith.constant 0 : index
    %c0_139 = arith.constant 0 : index
    %149 = vector.load %arg4[%c8_137, %c0_138, %c0_139] : memref<9x128x128xbf16, #tpu.memory_space<vmem>>, vector<1x128x128xbf16>
    %150 = vector.shape_cast %149 : vector<1x128x128xbf16> to vector<128x128xbf16>
    %cst_140 = arith.constant dense<0.000000e+00> : vector<128x128xf32>
    %151 = tpu.matmul %150, %85, %cst_140 {dimension_numbers = #tpu.dot_dimension_numbers<[1], [0], [0], [1], [0, 0, 1, 1], [], []>} : vector<128x128xbf16>, vector<128x128xbf16>, vector<128x128xf32> -> vector<128x128xf32>
    %152 = arith.truncf %151 : vector<128x128xf32> to vector<128x128xbf16>
    %c8_141 = arith.constant 8 : index
    %c0_142 = arith.constant 0 : index
    %c0_143 = arith.constant 0 : index
    %153 = vector.load %arg7[%c8_141, %c0_142, %c0_143] : memref<9x128x128xbf16, #tpu.memory_space<vmem>>, vector<1x128x128xbf16>
    %154 = vector.shape_cast %153 : vector<1x128x128xbf16> to vector<128x128xbf16>
    %cst_144 = arith.constant dense<0.000000e+00> : vector<128x128xf32>
    %155 = tpu.matmul %152, %154, %cst_144 {dimension_numbers = #tpu.dot_dimension_numbers<[1], [0], [0], [1], [0, 0, 1, 1], [], []>} : vector<128x128xbf16>, vector<128x128xbf16>, vector<128x128xf32> -> vector<128x128xf32>
    %156 = arith.addf %148, %155 : vector<128x128xf32>
    %c0_145 = arith.constant 0 : index
    %c0_146 = arith.constant 0 : index
    %157 = vector.load %arg8[%c0_145, %c0_146] : memref<1x128xf32, #tpu.memory_space<vmem>>, vector<1x128xf32>
    %158 = vector.broadcast %157 : vector<1x128xf32> to vector<128x128xf32>
    %159 = arith.addf %156, %158 : vector<128x128xf32>
    %160 = arith.addf %159, %7 : vector<128x128xf32>
    %cst_147 = arith.constant 0.000000e+00 : f32
    %161 = vector.broadcast %cst_147 : f32 to vector<128x128xf32>
    %162 = arith.maximumf %160, %161 : vector<128x128xf32>
    %163 = arith.truncf %162 : vector<128x128xf32> to vector<128x128xbf16>
    %c0_148 = arith.constant 0 : index
    %c0_149 = arith.constant 0 : index
    %c0_150 = arith.constant 0 : index
    %164 = vector.load %arg4[%c0_148, %c0_149, %c0_150] : memref<9x128x128xbf16, #tpu.memory_space<vmem>>, vector<1x128x128xbf16>
    %165 = vector.shape_cast %164 : vector<1x128x128xbf16> to vector<128x128xbf16>
    %cst_151 = arith.constant dense<0.000000e+00> : vector<128x128xf32>
    %166 = tpu.matmul %165, %163, %cst_151 {dimension_numbers = #tpu.dot_dimension_numbers<[1], [0], [0], [1], [0, 0, 1, 1], [], []>} : vector<128x128xbf16>, vector<128x128xbf16>, vector<128x128xf32> -> vector<128x128xf32>
    %167 = arith.truncf %166 : vector<128x128xf32> to vector<128x128xbf16>
    %c0_152 = arith.constant 0 : index
    %c0_153 = arith.constant 0 : index
    %c0_154 = arith.constant 0 : index
    %168 = vector.load %arg9[%c0_152, %c0_153, %c0_154] : memref<9x128x128xbf16, #tpu.memory_space<vmem>>, vector<1x128x128xbf16>
    %169 = vector.shape_cast %168 : vector<1x128x128xbf16> to vector<128x128xbf16>
    %cst_155 = arith.constant dense<0.000000e+00> : vector<128x128xf32>
    %170 = tpu.matmul %167, %169, %cst_155 {dimension_numbers = #tpu.dot_dimension_numbers<[1], [0], [0], [1], [0, 0, 1, 1], [], []>} : vector<128x128xbf16>, vector<128x128xbf16>, vector<128x128xf32> -> vector<128x128xf32>
    %c1_156 = arith.constant 1 : index
    %c0_157 = arith.constant 0 : index
    %c0_158 = arith.constant 0 : index
    %171 = vector.load %arg4[%c1_156, %c0_157, %c0_158] : memref<9x128x128xbf16, #tpu.memory_space<vmem>>, vector<1x128x128xbf16>
    %172 = vector.shape_cast %171 : vector<1x128x128xbf16> to vector<128x128xbf16>
    %cst_159 = arith.constant dense<0.000000e+00> : vector<128x128xf32>
    %173 = tpu.matmul %172, %163, %cst_159 {dimension_numbers = #tpu.dot_dimension_numbers<[1], [0], [0], [1], [0, 0, 1, 1], [], []>} : vector<128x128xbf16>, vector<128x128xbf16>, vector<128x128xf32> -> vector<128x128xf32>
    %174 = arith.truncf %173 : vector<128x128xf32> to vector<128x128xbf16>
    %c1_160 = arith.constant 1 : index
    %c0_161 = arith.constant 0 : index
    %c0_162 = arith.constant 0 : index
    %175 = vector.load %arg9[%c1_160, %c0_161, %c0_162] : memref<9x128x128xbf16, #tpu.memory_space<vmem>>, vector<1x128x128xbf16>
    %176 = vector.shape_cast %175 : vector<1x128x128xbf16> to vector<128x128xbf16>
    %cst_163 = arith.constant dense<0.000000e+00> : vector<128x128xf32>
    %177 = tpu.matmul %174, %176, %cst_163 {dimension_numbers = #tpu.dot_dimension_numbers<[1], [0], [0], [1], [0, 0, 1, 1], [], []>} : vector<128x128xbf16>, vector<128x128xbf16>, vector<128x128xf32> -> vector<128x128xf32>
    %178 = arith.addf %170, %177 : vector<128x128xf32>
    %c2_164 = arith.constant 2 : index
    %c0_165 = arith.constant 0 : index
    %c0_166 = arith.constant 0 : index
    %179 = vector.load %arg4[%c2_164, %c0_165, %c0_166] : memref<9x128x128xbf16, #tpu.memory_space<vmem>>, vector<1x128x128xbf16>
    %180 = vector.shape_cast %179 : vector<1x128x128xbf16> to vector<128x128xbf16>
    %cst_167 = arith.constant dense<0.000000e+00> : vector<128x128xf32>
    %181 = tpu.matmul %180, %163, %cst_167 {dimension_numbers = #tpu.dot_dimension_numbers<[1], [0], [0], [1], [0, 0, 1, 1], [], []>} : vector<128x128xbf16>, vector<128x128xbf16>, vector<128x128xf32> -> vector<128x128xf32>
    %182 = arith.truncf %181 : vector<128x128xf32> to vector<128x128xbf16>
    %c2_168 = arith.constant 2 : index
    %c0_169 = arith.constant 0 : index
    %c0_170 = arith.constant 0 : index
    %183 = vector.load %arg9[%c2_168, %c0_169, %c0_170] : memref<9x128x128xbf16, #tpu.memory_space<vmem>>, vector<1x128x128xbf16>
    %184 = vector.shape_cast %183 : vector<1x128x128xbf16> to vector<128x128xbf16>
    %cst_171 = arith.constant dense<0.000000e+00> : vector<128x128xf32>
    %185 = tpu.matmul %182, %184, %cst_171 {dimension_numbers = #tpu.dot_dimension_numbers<[1], [0], [0], [1], [0, 0, 1, 1], [], []>} : vector<128x128xbf16>, vector<128x128xbf16>, vector<128x128xf32> -> vector<128x128xf32>
    %186 = arith.addf %178, %185 : vector<128x128xf32>
    %c3_172 = arith.constant 3 : index
    %c0_173 = arith.constant 0 : index
    %c0_174 = arith.constant 0 : index
    %187 = vector.load %arg4[%c3_172, %c0_173, %c0_174] : memref<9x128x128xbf16, #tpu.memory_space<vmem>>, vector<1x128x128xbf16>
    %188 = vector.shape_cast %187 : vector<1x128x128xbf16> to vector<128x128xbf16>
    %cst_175 = arith.constant dense<0.000000e+00> : vector<128x128xf32>
    %189 = tpu.matmul %188, %163, %cst_175 {dimension_numbers = #tpu.dot_dimension_numbers<[1], [0], [0], [1], [0, 0, 1, 1], [], []>} : vector<128x128xbf16>, vector<128x128xbf16>, vector<128x128xf32> -> vector<128x128xf32>
    %190 = arith.truncf %189 : vector<128x128xf32> to vector<128x128xbf16>
    %c3_176 = arith.constant 3 : index
    %c0_177 = arith.constant 0 : index
    %c0_178 = arith.constant 0 : index
    %191 = vector.load %arg9[%c3_176, %c0_177, %c0_178] : memref<9x128x128xbf16, #tpu.memory_space<vmem>>, vector<1x128x128xbf16>
    %192 = vector.shape_cast %191 : vector<1x128x128xbf16> to vector<128x128xbf16>
    %cst_179 = arith.constant dense<0.000000e+00> : vector<128x128xf32>
    %193 = tpu.matmul %190, %192, %cst_179 {dimension_numbers = #tpu.dot_dimension_numbers<[1], [0], [0], [1], [0, 0, 1, 1], [], []>} : vector<128x128xbf16>, vector<128x128xbf16>, vector<128x128xf32> -> vector<128x128xf32>
    %194 = arith.addf %186, %193 : vector<128x128xf32>
    %c4_180 = arith.constant 4 : index
    %c0_181 = arith.constant 0 : index
    %c0_182 = arith.constant 0 : index
    %195 = vector.load %arg4[%c4_180, %c0_181, %c0_182] : memref<9x128x128xbf16, #tpu.memory_space<vmem>>, vector<1x128x128xbf16>
    %196 = vector.shape_cast %195 : vector<1x128x128xbf16> to vector<128x128xbf16>
    %cst_183 = arith.constant dense<0.000000e+00> : vector<128x128xf32>
    %197 = tpu.matmul %196, %163, %cst_183 {dimension_numbers = #tpu.dot_dimension_numbers<[1], [0], [0], [1], [0, 0, 1, 1], [], []>} : vector<128x128xbf16>, vector<128x128xbf16>, vector<128x128xf32> -> vector<128x128xf32>
    %198 = arith.truncf %197 : vector<128x128xf32> to vector<128x128xbf16>
    %c4_184 = arith.constant 4 : index
    %c0_185 = arith.constant 0 : index
    %c0_186 = arith.constant 0 : index
    %199 = vector.load %arg9[%c4_184, %c0_185, %c0_186] : memref<9x128x128xbf16, #tpu.memory_space<vmem>>, vector<1x128x128xbf16>
    %200 = vector.shape_cast %199 : vector<1x128x128xbf16> to vector<128x128xbf16>
    %cst_187 = arith.constant dense<0.000000e+00> : vector<128x128xf32>
    %201 = tpu.matmul %198, %200, %cst_187 {dimension_numbers = #tpu.dot_dimension_numbers<[1], [0], [0], [1], [0, 0, 1, 1], [], []>} : vector<128x128xbf16>, vector<128x128xbf16>, vector<128x128xf32> -> vector<128x128xf32>
    %202 = arith.addf %194, %201 : vector<128x128xf32>
    %c5_188 = arith.constant 5 : index
    %c0_189 = arith.constant 0 : index
    %c0_190 = arith.constant 0 : index
    %203 = vector.load %arg4[%c5_188, %c0_189, %c0_190] : memref<9x128x128xbf16, #tpu.memory_space<vmem>>, vector<1x128x128xbf16>
    %204 = vector.shape_cast %203 : vector<1x128x128xbf16> to vector<128x128xbf16>
    %cst_191 = arith.constant dense<0.000000e+00> : vector<128x128xf32>
    %205 = tpu.matmul %204, %163, %cst_191 {dimension_numbers = #tpu.dot_dimension_numbers<[1], [0], [0], [1], [0, 0, 1, 1], [], []>} : vector<128x128xbf16>, vector<128x128xbf16>, vector<128x128xf32> -> vector<128x128xf32>
    %206 = arith.truncf %205 : vector<128x128xf32> to vector<128x128xbf16>
    %c5_192 = arith.constant 5 : index
    %c0_193 = arith.constant 0 : index
    %c0_194 = arith.constant 0 : index
    %207 = vector.load %arg9[%c5_192, %c0_193, %c0_194] : memref<9x128x128xbf16, #tpu.memory_space<vmem>>, vector<1x128x128xbf16>
    %208 = vector.shape_cast %207 : vector<1x128x128xbf16> to vector<128x128xbf16>
    %cst_195 = arith.constant dense<0.000000e+00> : vector<128x128xf32>
    %209 = tpu.matmul %206, %208, %cst_195 {dimension_numbers = #tpu.dot_dimension_numbers<[1], [0], [0], [1], [0, 0, 1, 1], [], []>} : vector<128x128xbf16>, vector<128x128xbf16>, vector<128x128xf32> -> vector<128x128xf32>
    %210 = arith.addf %202, %209 : vector<128x128xf32>
    %c6_196 = arith.constant 6 : index
    %c0_197 = arith.constant 0 : index
    %c0_198 = arith.constant 0 : index
    %211 = vector.load %arg4[%c6_196, %c0_197, %c0_198] : memref<9x128x128xbf16, #tpu.memory_space<vmem>>, vector<1x128x128xbf16>
    %212 = vector.shape_cast %211 : vector<1x128x128xbf16> to vector<128x128xbf16>
    %cst_199 = arith.constant dense<0.000000e+00> : vector<128x128xf32>
    %213 = tpu.matmul %212, %163, %cst_199 {dimension_numbers = #tpu.dot_dimension_numbers<[1], [0], [0], [1], [0, 0, 1, 1], [], []>} : vector<128x128xbf16>, vector<128x128xbf16>, vector<128x128xf32> -> vector<128x128xf32>
    %214 = arith.truncf %213 : vector<128x128xf32> to vector<128x128xbf16>
    %c6_200 = arith.constant 6 : index
    %c0_201 = arith.constant 0 : index
    %c0_202 = arith.constant 0 : index
    %215 = vector.load %arg9[%c6_200, %c0_201, %c0_202] : memref<9x128x128xbf16, #tpu.memory_space<vmem>>, vector<1x128x128xbf16>
    %216 = vector.shape_cast %215 : vector<1x128x128xbf16> to vector<128x128xbf16>
    %cst_203 = arith.constant dense<0.000000e+00> : vector<128x128xf32>
    %217 = tpu.matmul %214, %216, %cst_203 {dimension_numbers = #tpu.dot_dimension_numbers<[1], [0], [0], [1], [0, 0, 1, 1], [], []>} : vector<128x128xbf16>, vector<128x128xbf16>, vector<128x128xf32> -> vector<128x128xf32>
    %218 = arith.addf %210, %217 : vector<128x128xf32>
    %c7_204 = arith.constant 7 : index
    %c0_205 = arith.constant 0 : index
    %c0_206 = arith.constant 0 : index
    %219 = vector.load %arg4[%c7_204, %c0_205, %c0_206] : memref<9x128x128xbf16, #tpu.memory_space<vmem>>, vector<1x128x128xbf16>
    %220 = vector.shape_cast %219 : vector<1x128x128xbf16> to vector<128x128xbf16>
    %cst_207 = arith.constant dense<0.000000e+00> : vector<128x128xf32>
    %221 = tpu.matmul %220, %163, %cst_207 {dimension_numbers = #tpu.dot_dimension_numbers<[1], [0], [0], [1], [0, 0, 1, 1], [], []>} : vector<128x128xbf16>, vector<128x128xbf16>, vector<128x128xf32> -> vector<128x128xf32>
    %222 = arith.truncf %221 : vector<128x128xf32> to vector<128x128xbf16>
    %c7_208 = arith.constant 7 : index
    %c0_209 = arith.constant 0 : index
    %c0_210 = arith.constant 0 : index
    %223 = vector.load %arg9[%c7_208, %c0_209, %c0_210] : memref<9x128x128xbf16, #tpu.memory_space<vmem>>, vector<1x128x128xbf16>
    %224 = vector.shape_cast %223 : vector<1x128x128xbf16> to vector<128x128xbf16>
    %cst_211 = arith.constant dense<0.000000e+00> : vector<128x128xf32>
    %225 = tpu.matmul %222, %224, %cst_211 {dimension_numbers = #tpu.dot_dimension_numbers<[1], [0], [0], [1], [0, 0, 1, 1], [], []>} : vector<128x128xbf16>, vector<128x128xbf16>, vector<128x128xf32> -> vector<128x128xf32>
    %226 = arith.addf %218, %225 : vector<128x128xf32>
    %c8_212 = arith.constant 8 : index
    %c0_213 = arith.constant 0 : index
    %c0_214 = arith.constant 0 : index
    %227 = vector.load %arg4[%c8_212, %c0_213, %c0_214] : memref<9x128x128xbf16, #tpu.memory_space<vmem>>, vector<1x128x128xbf16>
    %228 = vector.shape_cast %227 : vector<1x128x128xbf16> to vector<128x128xbf16>
    %cst_215 = arith.constant dense<0.000000e+00> : vector<128x128xf32>
    %229 = tpu.matmul %228, %163, %cst_215 {dimension_numbers = #tpu.dot_dimension_numbers<[1], [0], [0], [1], [0, 0, 1, 1], [], []>} : vector<128x128xbf16>, vector<128x128xbf16>, vector<128x128xf32> -> vector<128x128xf32>
    %230 = arith.truncf %229 : vector<128x128xf32> to vector<128x128xbf16>
    %c8_216 = arith.constant 8 : index
    %c0_217 = arith.constant 0 : index
    %c0_218 = arith.constant 0 : index
    %231 = vector.load %arg9[%c8_216, %c0_217, %c0_218] : memref<9x128x128xbf16, #tpu.memory_space<vmem>>, vector<1x128x128xbf16>
    %232 = vector.shape_cast %231 : vector<1x128x128xbf16> to vector<128x128xbf16>
    %cst_219 = arith.constant dense<0.000000e+00> : vector<128x128xf32>
    %233 = tpu.matmul %230, %232, %cst_219 {dimension_numbers = #tpu.dot_dimension_numbers<[1], [0], [0], [1], [0, 0, 1, 1], [], []>} : vector<128x128xbf16>, vector<128x128xbf16>, vector<128x128xf32> -> vector<128x128xf32>
    %234 = arith.addf %226, %233 : vector<128x128xf32>
    %c0_220 = arith.constant 0 : index
    %c0_221 = arith.constant 0 : index
    %235 = vector.load %arg10[%c0_220, %c0_221] : memref<1x128xf32, #tpu.memory_space<vmem>>, vector<1x128xf32>
    %236 = vector.broadcast %235 : vector<1x128xf32> to vector<128x128xf32>
    %237 = arith.addf %234, %236 : vector<128x128xf32>
    %cst_222 = arith.constant 0.000000e+00 : f32
    %238 = vector.broadcast %cst_222 : f32 to vector<128x128xf32>
    %239 = arith.maximumf %237, %238 : vector<128x128xf32>
    %c0_223 = arith.constant 0 : index
    %c0_224 = arith.constant 0 : index
    %240 = vector.load %arg11[%c0_223, %c0_224] : memref<2x128xf32, #tpu.memory_space<vmem>>, vector<2x128xf32>
    %cst_225 = arith.constant dense<0.000000e+00> : vector<2x128xf32>
    %241 = tpu.matmul %240, %239, %cst_225 {dimension_numbers = #tpu.dot_dimension_numbers<[1], [0], [0], [1], [0, 0, 1, 1], [], []>} : vector<2x128xf32>, vector<128x128xf32>, vector<2x128xf32> -> vector<2x128xf32>
    %242 = arith.truncf %241 : vector<2x128xf32> to vector<2x128xbf16>
    %c0_226 = arith.constant 0 : index
    %c0_227 = arith.constant 0 : index
    %243 = vector.load %arg12[%c0_226, %c0_227] : memref<128x128xbf16, #tpu.memory_space<vmem>>, vector<128x128xbf16>
    %cst_228 = arith.constant dense<0.000000e+00> : vector<2x128xf32>
    %244 = tpu.matmul %242, %243, %cst_228 {dimension_numbers = #tpu.dot_dimension_numbers<[1], [0], [0], [1], [0, 0, 1, 1], [], []>} : vector<2x128xbf16>, vector<128x128xbf16>, vector<2x128xf32> -> vector<2x128xf32>
    %c0_229 = arith.constant 0 : index
    %c0_230 = arith.constant 0 : index
    %245 = vector.load %arg13[%c0_229, %c0_230] : memref<1x128xf32, #tpu.memory_space<vmem>>, vector<1x128xf32>
    %246 = vector.broadcast %245 : vector<1x128xf32> to vector<2x128xf32>
    %247 = arith.addf %244, %246 : vector<2x128xf32>
    %248 = arith.truncf %247 : vector<2x128xf32> to vector<2x128xbf16>
    %c0_231 = arith.constant 0 : index
    %c0_232 = arith.constant 0 : index
    %249 = vector.load %arg14[%c0_231, %c0_232] : memref<128x128xbf16, #tpu.memory_space<vmem>>, vector<128x128xbf16>
    %cst_233 = arith.constant dense<0.000000e+00> : vector<2x128xf32>
    %250 = tpu.matmul %248, %249, %cst_233 {dimension_numbers = #tpu.dot_dimension_numbers<[1], [0], [0], [1], [0, 0, 1, 1], [], []>} : vector<2x128xbf16>, vector<128x128xbf16>, vector<2x128xf32> -> vector<2x128xf32>
    %c0_234 = arith.constant 0 : index
    %c0_235 = arith.constant 0 : index
    %251 = vector.load %arg15[%c0_234, %c0_235] : memref<1x128xf32, #tpu.memory_space<vmem>>, vector<1x128xf32>
    %252 = vector.broadcast %251 : vector<1x128xf32> to vector<2x128xf32>
    %253 = arith.addf %250, %252 : vector<2x128xf32>
    %cst_236 = arith.constant 0.000000e+00 : f32
    %254 = vector.broadcast %cst_236 : f32 to vector<2x128xf32>
    %255 = arith.cmpf ogt, %253, %254 : vector<2x128xf32>
    %cst_237 = arith.constant 2.000000e-01 : f32
    %256 = vector.broadcast %cst_237 : f32 to vector<2x128xf32>
    %257 = arith.mulf %256, %253 : vector<2x128xf32>
    %258 = arith.select %255, %253, %257 : vector<2x128xi1>, vector<2x128xf32>
    %259 = arith.truncf %258 : vector<2x128xf32> to vector<2x128xbf16>
    %c0_238 = arith.constant 0 : index
    %c0_239 = arith.constant 0 : index
    %260 = vector.load %arg16[%c0_238, %c0_239] : memref<128x256xbf16, #tpu.memory_space<vmem>>, vector<128x256xbf16>
    %cst_240 = arith.constant dense<0.000000e+00> : vector<2x256xf32>
    %261 = tpu.matmul %259, %260, %cst_240 {dimension_numbers = #tpu.dot_dimension_numbers<[1], [0], [0], [1], [0, 0, 1, 1], [], []>} : vector<2x128xbf16>, vector<128x256xbf16>, vector<2x256xf32> -> vector<2x256xf32>
    %c0_241 = arith.constant 0 : index
    %c0_242 = arith.constant 0 : index
    %262 = vector.load %arg17[%c0_241, %c0_242] : memref<1x256xf32, #tpu.memory_space<vmem>>, vector<1x256xf32>
    %263 = vector.broadcast %262 : vector<1x256xf32> to vector<2x256xf32>
    %264 = arith.addf %261, %263 : vector<2x256xf32>
    %265 = arith.truncf %264 : vector<2x256xf32> to vector<2x256xbf16>
    %c0_243 = arith.constant 0 : index
    %c0_244 = arith.constant 0 : index
    %266 = vector.load %arg18[%c0_243, %c0_244] : memref<256x256xbf16, #tpu.memory_space<vmem>>, vector<256x256xbf16>
    %cst_245 = arith.constant dense<0.000000e+00> : vector<2x256xf32>
    %267 = tpu.matmul %265, %266, %cst_245 {dimension_numbers = #tpu.dot_dimension_numbers<[1], [0], [0], [1], [0, 0, 1, 1], [], []>} : vector<2x256xbf16>, vector<256x256xbf16>, vector<2x256xf32> -> vector<2x256xf32>
    %c0_246 = arith.constant 0 : index
    %c0_247 = arith.constant 0 : index
    %268 = vector.load %arg19[%c0_246, %c0_247] : memref<1x256xf32, #tpu.memory_space<vmem>>, vector<1x256xf32>
    %269 = vector.broadcast %268 : vector<1x256xf32> to vector<2x256xf32>
    %270 = arith.addf %267, %269 : vector<2x256xf32>
    %cst_248 = arith.constant 0.000000e+00 : f32
    %271 = vector.broadcast %cst_248 : f32 to vector<2x256xf32>
    %272 = arith.cmpf ogt, %270, %271 : vector<2x256xf32>
    %cst_249 = arith.constant 2.000000e-01 : f32
    %273 = vector.broadcast %cst_249 : f32 to vector<2x256xf32>
    %274 = arith.mulf %273, %270 : vector<2x256xf32>
    %275 = arith.select %272, %270, %274 : vector<2x256xi1>, vector<2x256xf32>
    %276 = arith.truncf %275 : vector<2x256xf32> to vector<2x256xbf16>
    %c0_250 = arith.constant 0 : index
    %c0_251 = arith.constant 0 : index
    %277 = vector.load %arg20[%c0_250, %c0_251] : memref<256x512xbf16, #tpu.memory_space<vmem>>, vector<256x512xbf16>
    %cst_252 = arith.constant dense<0.000000e+00> : vector<2x512xf32>
    %278 = tpu.matmul %276, %277, %cst_252 {dimension_numbers = #tpu.dot_dimension_numbers<[1], [0], [0], [1], [0, 0, 1, 1], [], []>} : vector<2x256xbf16>, vector<256x512xbf16>, vector<2x512xf32> -> vector<2x512xf32>
    %c0_253 = arith.constant 0 : index
    %c0_254 = arith.constant 0 : index
    %279 = vector.load %arg21[%c0_253, %c0_254] : memref<1x512xf32, #tpu.memory_space<vmem>>, vector<1x512xf32>
    %280 = vector.broadcast %279 : vector<1x512xf32> to vector<2x512xf32>
    %281 = arith.addf %278, %280 : vector<2x512xf32>
    %282 = arith.truncf %281 : vector<2x512xf32> to vector<2x512xbf16>
    %c0_255 = arith.constant 0 : index
    %c0_256 = arith.constant 0 : index
    %283 = vector.load %arg22[%c0_255, %c0_256] : memref<512x128xbf16, #tpu.memory_space<vmem>>, vector<512x128xbf16>
    %cst_257 = arith.constant dense<0.000000e+00> : vector<2x128xf32>
    %284 = tpu.matmul %282, %283, %cst_257 {dimension_numbers = #tpu.dot_dimension_numbers<[1], [0], [0], [1], [0, 0, 1, 1], [], []>} : vector<2x512xbf16>, vector<512x128xbf16>, vector<2x128xf32> -> vector<2x128xf32>
    %c0_258 = arith.constant 0 : index
    %c0_259 = arith.constant 0 : index
    %285 = vector.load %arg23[%c0_258, %c0_259] : memref<1x128xf32, #tpu.memory_space<vmem>>, vector<1x128xf32>
    %286 = vector.broadcast %285 : vector<1x128xf32> to vector<2x128xf32>
    %287 = arith.addf %284, %286 : vector<2x128xf32>
    %c0_260 = arith.constant 0 : index
    %c0_261 = arith.constant 0 : index
    %288 = vector.load %arg24[%c0_260, %c0_261] : memref<2x128xf32, #tpu.memory_space<vmem>>, vector<2x128xf32>
    tpu.vector_store %arg24[%c0_260, %c0_261], %287 {strides = array<i32>} : memref<2x128xf32, #tpu.memory_space<vmem>>, vector<2x128xf32>,
    return
  }
  func.func @transform_0(%arg0: i32) -> (i32, i32) {
    %c0_i32 = arith.constant 0 : i32
    %c0_i32_0 = arith.constant 0 : i32
    %c0_i32_1 = arith.constant 0 : i32
    return %c0_i32, %c0_i32_0 : i32, i32
  }
  func.func @transform_1(%arg0: i32) -> (i32, i32) {
    %c0_i32 = arith.constant 0 : i32
    %c0_i32_0 = arith.constant 0 : i32
    %c0_i32_1 = arith.constant 0 : i32
    return %c0_i32, %c0_i32_0 : i32, i32
  }
  func.func @transform_2(%arg0: i32) -> (i32, i32) {
    %c0_i32 = arith.constant 0 : i32
    %c0_i32_0 = arith.constant 0 : i32
    %c0_i32_1 = arith.constant 0 : i32
    return %c0_i32, %c0_i32_0 : i32, i32
  }
  func.func @transform_3(%arg0: i32) -> (i32, i32, i32) {
    %c0_i32 = arith.constant 0 : i32
    %c0_i32_0 = arith.constant 0 : i32
    %c0_i32_1 = arith.constant 0 : i32
    %c0_i32_2 = arith.constant 0 : i32
    return %c0_i32, %c0_i32_0, %c0_i32_1 : i32, i32, i32
  }
  func.func @transform_4(%arg0: i32) -> (i32, i32, i32) {
    %c0_i32 = arith.constant 0 : i32
    %c0_i32_0 = arith.constant 0 : i32
    %c0_i32_1 = arith.constant 0 : i32
    %c0_i32_2 = arith.constant 0 : i32
    return %c0_i32, %c0_i32_0, %c0_i32_1 : i32, i32, i32
  }
  func.func @transform_5(%arg0: i32) -> (i32, i32) {
    %c0_i32 = arith.constant 0 : i32
    %c0_i32_0 = arith.constant 0 : i32
    %c0_i32_1 = arith.constant 0 : i32
    return %c0_i32, %c0_i32_0 : i32, i32
  }
  func.func @transform_6(%arg0: i32) -> (i32, i32, i32) {
    %c0_i32 = arith.constant 0 : i32
    %c0_i32_0 = arith.constant 0 : i32
    %c0_i32_1 = arith.constant 0 : i32
    %c0_i32_2 = arith.constant 0 : i32
    return %c0_i32, %c0_i32_0, %c0_i32_1 : i32, i32, i32
  }
  func.func @transform_7(%arg0: i32) -> (i32, i32) {
    %c0_i32 = arith.constant 0 : i32
    %c0_i32_0 = arith.constant 0 : i32
    %c0_i32_1 = arith.constant 0 : i32
    return %c0_i32, %c0_i32_0 : i32, i32
  }
  func.func @transform_8(%arg0: i32) -> (i32, i32, i32) {
    %c0_i32 = arith.constant 0 : i32
    %c0_i32_0 = arith.constant 0 : i32
    %c0_i32_1 = arith.constant 0 : i32
    %c0_i32_2 = arith.constant 0 : i32
    return %c0_i32, %c0_i32_0, %c0_i32_1 : i32, i32, i32
  }
  func.func @transform_9(%arg0: i32) -> (i32, i32) {
    %c0_i32 = arith.constant 0 : i32
    %c0_i32_0 = arith.constant 0 : i32
    %c0_i32_1 = arith.constant 0 : i32
    return %c0_i32, %c0_i32_0 : i32, i32
  }
  func.func @transform_10(%arg0: i32) -> (i32, i32) {
    %c0_i32 = arith.constant 0 : i32
    %c0_i32_0 = arith.constant 0 : i32
    %c0_i32_1 = arith.constant 0 : i32
    return %c0_i32, %c0_i32_0 : i32, i32
  }
  func.func @transform_11(%arg0: i32) -> (i32, i32) {
    %c0_i32 = arith.constant 0 : i32
    %c0_i32_0 = arith.constant 0 : i32
    %c0_i32_1 = arith.constant 0 : i32
    return %c0_i32, %c0_i32_0 : i32, i32
  }
  func.func @transform_12(%arg0: i32) -> (i32, i32) {
    %c0_i32 = arith.constant 0 : i32
    %c0_i32_0 = arith.constant 0 : i32
    %c0_i32_1 = arith.constant 0 : i32
    return %c0_i32, %c0_i32_0 : i32, i32
  }
  func.func @transform_13(%arg0: i32) -> (i32, i32) {
    %c0_i32 = arith.constant 0 : i32
    %c0_i32_0 = arith.constant 0 : i32
    %c0_i32_1 = arith.constant 0 : i32
    return %c0_i32, %c0_i32_0 : i32, i32
  }
  func.func @transform_14(%arg0: i32) -> (i32, i32) {
    %c0_i32 = arith.constant 0 : i32
    %c0_i32_0 = arith.constant 0 : i32
    %c0_i32_1 = arith.constant 0 : i32
    return %c0_i32, %c0_i32_0 : i32, i32
  }
  func.func @transform_15(%arg0: i32) -> (i32, i32) {
    %c0_i32 = arith.constant 0 : i32
    %c0_i32_0 = arith.constant 0 : i32
    %c0_i32_1 = arith.constant 0 : i32
    return %c0_i32, %c0_i32_0 : i32, i32
  }
  func.func @transform_16(%arg0: i32) -> (i32, i32) {
    %c0_i32 = arith.constant 0 : i32
    %c0_i32_0 = arith.constant 0 : i32
    %c0_i32_1 = arith.constant 0 : i32
    return %c0_i32, %c0_i32_0 : i32, i32
  }
  func.func @transform_17(%arg0: i32) -> (i32, i32) {
    %c0_i32 = arith.constant 0 : i32
    %c0_i32_0 = arith.constant 0 : i32
    %c0_i32_1 = arith.constant 0 : i32
    return %c0_i32, %c0_i32_0 : i32, i32
  }
  func.func @transform_18(%arg0: i32) -> (i32, i32) {
    %c0_i32 = arith.constant 0 : i32
    %c0_i32_0 = arith.constant 0 : i32
    %c0_i32_1 = arith.constant 0 : i32
    return %c0_i32, %c0_i32_0 : i32, i32
  }
  func.func @transform_19(%arg0: i32) -> (i32, i32) {
    %c0_i32 = arith.constant 0 : i32
    %c0_i32_0 = arith.constant 0 : i32
    %c0_i32_1 = arith.constant 0 : i32
    return %c0_i32, %c0_i32_0 : i32, i32
  }
  func.func @transform_20(%arg0: i32) -> (i32, i32) {
    %c0_i32 = arith.constant 0 : i32
    %c0_i32_0 = arith.constant 0 : i32
    %c0_i32_1 = arith.constant 0 : i32
    return %c0_i32, %c0_i32_0 : i32, i32
  }
  func.func @transform_21(%arg0: i32) -> (i32, i32) {
    %c0_i32 = arith.constant 0 : i32
    %c0_i32_0 = arith.constant 0 : i32
    %c0_i32_1 = arith.constant 0 : i32
    return %c0_i32, %c0_i32_0 : i32, i32
  }
  func.func @transform_22(%arg0: i32) -> (i32, i32) {
    %c0_i32 = arith.constant 0 : i32
    %c0_i32_0 = arith.constant 0 : i32
    %c0_i32_1 = arith.constant 0 : i32
    return %c0_i32, %c0_i32_0 : i32, i32
  }
  func.func @transform_23(%arg0: i32) -> (i32, i32) {
    %c0_i32 = arith.constant 0 : i32
    %c0_i32_0 = arith.constant 0 : i32
    %c0_i32_1 = arith.constant 0 : i32
    return %c0_i32, %c0_i32_0 : i32, i32
  }
}

</mosaic_0001>

<llo_original>
// kernel: coarse_net_forward.1
$region0: #{coarse_net_forward.1}
  #allocation0 [shape = 'u32[]', space=smem, size = 0x4, offset = 0x4, fixed_abs, tag = 'smem constant byte address 0x4 - core index']
  #allocation1 [shape = 'u32[144,128]{1,0:T(1,128)}', space=vmem, size = 0x12000, scoped, tag = 'internal scratch']
  %s0 = inlined_call_operand.vmem [shape: bf16[128,128], index: 0, kind: input, shape index: {}]
  %s1 = inlined_call_operand.vmem [shape: bf16[128,128], index: 1, kind: input, shape index: {}]
  %s2 = inlined_call_operand.vmem [shape: f32[1,128], index: 2, kind: input, shape index: {}]
  %s3 = inlined_call_operand.vmem [shape: bf16[9,128,128], index: 3, kind: input, shape index: {}]
  %s4 = inlined_call_operand.vmem [shape: bf16[9,128,128], index: 4, kind: input, shape index: {}]
  %s5 = inlined_call_operand.vmem [shape: f32[1,128], index: 5, kind: input, shape index: {}]
  %s6 = inlined_call_operand.vmem [shape: bf16[9,128,128], index: 6, kind: input, shape index: {}]
  %s7 = inlined_call_operand.vmem [shape: f32[1,128], index: 7, kind: input, shape index: {}]
  %s8 = inlined_call_operand.vmem [shape: bf16[9,128,128], index: 8, kind: input, shape index: {}]
  %s9 = inlined_call_operand.vmem [shape: f32[1,128], index: 9, kind: input, shape index: {}]
  %s10 = inlined_call_operand.vmem [shape: f32[2,128], index: 10, kind: input, shape index: {}]
  %s11 = inlined_call_operand.hbm [shape: bf16[128,128], index: 11, kind: input, shape index: {}]
  %s12 = inlined_call_operand.vmem [shape: f32[1,128], index: 12, kind: input, shape index: {}]
  %s13 = inlined_call_operand.hbm [shape: bf16[128,128], index: 13, kind: input, shape index: {}]
  %s14 = inlined_call_operand.vmem [shape: f32[1,128], index: 14, kind: input, shape index: {}]
  %s15 = inlined_call_operand.vmem [shape: bf16[128,256], index: 15, kind: input, shape index: {}]
  %s16 = inlined_call_operand.vmem [shape: f32[1,256], index: 16, kind: input, shape index: {}]
  %s17 = inlined_call_operand.hbm [shape: bf16[256,256], index: 17, kind: input, shape index: {}]
  %s18 = inlined_call_operand.vmem [shape: f32[1,256], index: 18, kind: input, shape index: {}]
  %s19 = inlined_call_operand.vmem [shape: bf16[256,512], index: 19, kind: input, shape index: {}]
  %s20 = inlined_call_operand.vmem [shape: f32[1,512], index: 20, kind: input, shape index: {}]
  %s21 = inlined_call_operand.hbm [shape: bf16[512,128], index: 21, kind: input, shape index: {}]
  %s22 = inlined_call_operand.vmem [shape: f32[1,128], index: 22, kind: input, shape index: {}]
  %s23 = inlined_call_operand.vmem [shape: f32[2,128], index: 23, kind: output, shape index: {}]
  %s24 = sld [smem:[#allocation0]]
  $region118: #{coarse_net_forward.1} parent=0
    _
  %s26 = ssub.s32 1, %s24
  %s27 = scalar_select 0, %s26, %s24
  $region1: #{coarse_net_forward.1} parent=0
    #allocation2 [shape = 'u8[32768]{0}', space=vmem, size = 0x8000, scoped, tag = 'input window, operand 11, single buffered']
    #allocation3 [shape = 's32[1]{0}', space=sflag, size = 0x4, scoped, tag = 'scoped memory for coarse_net_forward.1']
    #allocation4 [shape = 'u8[32768]{0}', space=vmem, size = 0x8000, scoped, tag = 'input window, operand 13, single buffered']
    #allocation5 [shape = 's32[1]{0}', space=sflag, size = 0x4, scoped, tag = 'scoped memory for coarse_net_forward.1']
    #allocation6 [shape = 'u8[131072]{0}', space=vmem, size = 0x20000, scoped, tag = 'input window, operand 17, single buffered']
    #allocation7 [shape = 'u8[131072]{0}', space=vmem, size = 0x20000, scoped, tag = 'input window, operand 21, single buffered']
    #allocation8 [shape = 's32[1]{0}', space=sflag, size = 0x4, scoped, tag = 'scoped memory for coarse_net_forward.1']
    %28 = vsyncpa [#allocation3], 0
    %29 = vsyncpa [#allocation5], 0
    %30 = vsyncpa [#allocation8], 0
    // Predicated region
    $region2: #{coarse_net_forward.1} parent=1 // pred_check
      _
    $region3: #{coarse_net_forward.1} parent=1 // pred_check_branch
      %32 = sbr.rel (0) target = $region5
    $region4: #{coarse_net_forward.1} parent=1 // pred_region
      _
    $region5: #{coarse_net_forward.1} parent=1 // pred_fallthru
      _
    // Predicated region
    $region6: #{coarse_net_forward.1} parent=1 // pred_check
      _
    $region7: #{coarse_net_forward.1} parent=1 // pred_check_branch
      %34 = sbr.rel (0) target = $region9
    $region8: #{coarse_net_forward.1} parent=1 // pred_region
      _
    $region9: #{coarse_net_forward.1} parent=1 // pred_fallthru
      _
    // Predicated region
    $region10: #{coarse_net_forward.1} parent=1 // pred_check
      _
    $region11: #{coarse_net_forward.1} parent=1 // pred_check_branch
      %36 = sbr.rel (0) target = $region13
    $region12: #{coarse_net_forward.1} parent=1 // pred_region
      _
    $region13: #{coarse_net_forward.1} parent=1 // pred_fallthru
      _
    // Predicated region
    $region14: #{coarse_net_forward.1} parent=1 // pred_check
      _
    $region15: #{coarse_net_forward.1} parent=1 // pred_check_branch
      %38 = sbr.rel (0) target = $region17
    $region16: #{coarse_net_forward.1} parent=1 // pred_region
      _
    $region17: #{coarse_net_forward.1} parent=1 // pred_fallthru
      _
    // Predicated region
    $region18: #{coarse_net_forward.1} parent=1 // pred_check
      _
    $region19: #{coarse_net_forward.1} parent=1 // pred_check_branch
      %40 = sbr.rel (0) target = $region21
    $region20: #{coarse_net_forward.1} parent=1 // pred_region
      _
    $region21: #{coarse_net_forward.1} parent=1 // pred_fallthru
      _
    // Predicated region
    $region22: #{coarse_net_forward.1} parent=1 // pred_check
      _
    $region23: #{coarse_net_forward.1} parent=1 // pred_check_branch
      %42 = sbr.rel (0) target = $region25
    $region24: #{coarse_net_forward.1} parent=1 // pred_region
      _
    $region25: #{coarse_net_forward.1} parent=1 // pred_fallthru
      _
    // Predicated region
    $region26: #{coarse_net_forward.1} parent=1 // pred_check
      _
    $region27: #{coarse_net_forward.1} parent=1 // pred_check_branch
      %44 = sbr.rel (0) target = $region29
    $region28: #{coarse_net_forward.1} parent=1 // pred_region
      _
    $region29: #{coarse_net_forward.1} parent=1 // pred_fallthru
      _
    // Predicated region
    $region30: #{coarse_net_forward.1} parent=1 // pred_check
      _
    $region31: #{coarse_net_forward.1} parent=1 // pred_check_branch
      %46 = sbr.rel (0) target = $region33
    $region32: #{coarse_net_forward.1} parent=1 // pred_region
      _
    $region33: #{coarse_net_forward.1} parent=1 // pred_fallthru
      _
    // Predicated region
    $region34: #{coarse_net_forward.1} parent=1 // pred_check
      _
    $region35: #{coarse_net_forward.1} parent=1 // pred_check_branch
      %48 = sbr.rel (0) target = $region37
    $region36: #{coarse_net_forward.1} parent=1 // pred_region
      _
    $region37: #{coarse_net_forward.1} parent=1 // pred_fallthru
      _
    // Predicated region
    $region38: #{coarse_net_forward.1} parent=1 // pred_check
      _
    $region39: #{coarse_net_forward.1} parent=1 // pred_check_branch
      %50 = sbr.rel (0) target = $region41
    $region40: #{coarse_net_forward.1} parent=1 // pred_region
      _
    $region41: #{coarse_net_forward.1} parent=1 // pred_fallthru
      _
    // Predicated region
    $region42: #{coarse_net_forward.1} parent=1 // pred_check
      _
    $region43: #{coarse_net_forward.1} parent=1 // pred_check_branch
      %52 = sbr.rel (0) target = $region45
    $region44: #{coarse_net_forward.1} parent=1 // pred_region
      _
    $region45: #{coarse_net_forward.1} parent=1 // pred_fallthru
      _
    // Predicated region
    $region46: #{coarse_net_forward.1} parent=1 // pred_check
      _
    $region47: #{coarse_net_forward.1} parent=1 // pred_check_branch
      %54 = sbr.rel (0) target = $region49
    $region48: #{coarse_net_forward.1} parent=1 // pred_region
      %s56 = ssub.s32 1024, 1024
      %57 = vsyncadd [#allocation3], %s56
      %s58 = sshll.u32 [#allocation2], 4
      %s59 = int_to_ptr.vmem [resolvable:$true] %s58
      %64 = dma.hbm_to_vmem [thread:$0]  %s11, 1024, %s59, [#allocation3], 64, 64, 4
    $region49: #{coarse_net_forward.1} parent=1 // pred_fallthru
      _
    // Predicated region
    $region50: #{coarse_net_forward.1} parent=1 // pred_check
      _
    $region51: #{coarse_net_forward.1} parent=1 // pred_check_branch
      %66 = sbr.rel (0) target = $region53
    $region52: #{coarse_net_forward.1} parent=1 // pred_region
      _
    $region53: #{coarse_net_forward.1} parent=1 // pred_fallthru
      _
    // Predicated region
    $region54: #{coarse_net_forward.1} parent=1 // pred_check
      _
    $region55: #{coarse_net_forward.1} parent=1 // pred_check_branch
      %68 = sbr.rel (0) target = $region57
    $region56: #{coarse_net_forward.1} parent=1 // pred_region
      %s70 = ssub.s32 1024, 1024
      %71 = vsyncadd [#allocation5], %s70
      %s72 = sshll.u32 [#allocation4], 4
      %s73 = int_to_ptr.vmem [resolvable:$true] %s72
      %78 = dma.hbm_to_vmem [thread:$0]  %s13, 1024, %s73, [#allocation5], 64, 64, 4
    $region57: #{coarse_net_forward.1} parent=1 // pred_fallthru
      _
    // Predicated region
    $region58: #{coarse_net_forward.1} parent=1 // pred_check
      _
    $region59: #{coarse_net_forward.1} parent=1 // pred_check_branch
      %80 = sbr.rel (0) target = $region61
    $region60: #{coarse_net_forward.1} parent=1 // pred_region
      _
    $region61: #{coarse_net_forward.1} parent=1 // pred_fallthru
      _
    // Predicated region
    $region62: #{coarse_net_forward.1} parent=1 // pred_check
      _
    $region63: #{coarse_net_forward.1} parent=1 // pred_check_branch
      %82 = sbr.rel (0) target = $region65
    $region64: #{coarse_net_forward.1} parent=1 // pred_region
      _
    $region65: #{coarse_net_forward.1} parent=1 // pred_fallthru
      _
    // Predicated region
    $region66: #{coarse_net_forward.1} parent=1 // pred_check
      _
    $region67: #{coarse_net_forward.1} parent=1 // pred_check_branch
      %84 = sbr.rel (0) target = $region69
    $region68: #{coarse_net_forward.1} parent=1 // pred_region
      _
    $region69: #{coarse_net_forward.1} parent=1 // pred_fallthru
      _
    // Predicated region
    $region70: #{coarse_net_forward.1} parent=1 // pred_check
      _
    $region71: #{coarse_net_forward.1} parent=1 // pred_check_branch
      %86 = sbr.rel (0) target = $region73
    $region72: #{coarse_net_forward.1} parent=1 // pred_region
      %s88 = ssub.s32 4096, 4096
      %89 = vsyncadd [#allocation5], %s88
      %s90 = sshll.u32 [#allocation6], 4
      %s91 = int_to_ptr.vmem [resolvable:$true] %s90
      %96 = dma.hbm_to_vmem [thread:$0]  %s17, 4096, %s91, [#allocation5], 128, 128, 8
    $region73: #{coarse_net_forward.1} parent=1 // pred_fallthru
      _
    // Predicated region
    $region74: #{coarse_net_forward.1} parent=1 // pred_check
      _
    $region75: #{coarse_net_forward.1} parent=1 // pred_check_branch
      %98 = sbr.rel (0) target = $region77
    $region76: #{coarse_net_forward.1} parent=1 // pred_region
      _
    $region77: #{coarse_net_forward.1} parent=1 // pred_fallthru
      _
    // Predicated region
    $region78: #{coarse_net_forward.1} parent=1 // pred_check
      _
    $region79: #{coarse_net_forward.1} parent=1 // pred_check_branch
      %100 = sbr.rel (0) target = $region81
    $region80: #{coarse_net_forward.1} parent=1 // pred_region
      _
    $region81: #{coarse_net_forward.1} parent=1 // pred_fallthru
      _
    // Predicated region
    $region82: #{coarse_net_forward.1} parent=1 // pred_check
      _
    $region83: #{coarse_net_forward.1} parent=1 // pred_check_branch
      %102 = sbr.rel (0) target = $region85
    $region84: #{coarse_net_forward.1} parent=1 // pred_region
      _
    $region85: #{coarse_net_forward.1} parent=1 // pred_fallthru
      _
    // Predicated region
    $region86: #{coarse_net_forward.1} parent=1 // pred_check
      _
    $region87: #{coarse_net_forward.1} parent=1 // pred_check_branch
      %104 = sbr.rel (0) target = $region89
    $region88: #{coarse_net_forward.1} parent=1 // pred_region
      %s106 = ssub.s32 4096, 4096
      %107 = vsyncadd [#allocation8], %s106
      %s108 = sshll.u32 [#allocation7], 4
      %s109 = int_to_ptr.vmem [resolvable:$true] %s108
      %114 = dma.hbm_to_vmem [thread:$0]  %s21, 4096, %s109, [#allocation8], 64, 64, 4
    $region89: #{coarse_net_forward.1} parent=1 // pred_fallthru
      _
    // Predicated region
    $region90: #{coarse_net_forward.1} parent=1 // pred_check
      _
    $region91: #{coarse_net_forward.1} parent=1 // pred_check_branch
      %116 = sbr.rel (0) target = $region93
    $region92: #{coarse_net_forward.1} parent=1 // pred_region
      _
    $region93: #{coarse_net_forward.1} parent=1 // pred_fallthru
      _
    // Predicated region
    $region94: #{coarse_net_forward.1} parent=1 // pred_check
      _
    $region95: #{coarse_net_forward.1} parent=1 // pred_check_branch
      %118 = sbr.rel (0) target = $region97
    $region96: #{coarse_net_forward.1} parent=1 // pred_region
      %119 = dma.done [#allocation3], 1024
    $region97: #{coarse_net_forward.1} parent=1 // pred_fallthru
      _
    // Predicated region
    $region98: #{coarse_net_forward.1} parent=1 // pred_check
      _
    $region99: #{coarse_net_forward.1} parent=1 // pred_check_branch
      %121 = sbr.rel (0) target = $region101
    $region100: #{coarse_net_forward.1} parent=1 // pred_region
      %122 = dma.done [#allocation5], 1024
    $region101: #{coarse_net_forward.1} parent=1 // pred_fallthru
      _
    // Predicated region
    $region102: #{coarse_net_forward.1} parent=1 // pred_check
      _
    $region103: #{coarse_net_forward.1} parent=1 // pred_check_branch
      %124 = sbr.rel (0) target = $region105
    $region104: #{coarse_net_forward.1} parent=1 // pred_region
      %125 = dma.done [#allocation5], 4096
    $region105: #{coarse_net_forward.1} parent=1 // pred_fallthru
      _
    // Predicated region
    $region106: #{coarse_net_forward.1} parent=1 // pred_check
      _
    $region107: #{coarse_net_forward.1} parent=1 // pred_check_branch
      %127 = sbr.rel (0) target = $region109
    $region108: #{coarse_net_forward.1} parent=1 // pred_region
      %128 = dma.done [#allocation8], 4096
    $region109: #{coarse_net_forward.1} parent=1 // pred_fallthru
      _
    %v130 = vld [vmem:[%s0] sm:$0xf]
    %v131 = vld [vmem:[%s0 + $0x4] sm:$0xf]
    %v132 = vld [vmem:[%s0 + $0x8] sm:$0xf]
    %v133 = vld [vmem:[%s0 + $0xc] sm:$0xf]
    %v134 = vld [vmem:[%s0 + $0x10] sm:$0xf]
    %v135 = vld [vmem:[%s0 + $0x14] sm:$0xf]
    %v136 = vld [vmem:[%s0 + $0x18] sm:$0xf]
    %v137 = vld [vmem:[%s0 + $0x1c] sm:$0xf]
    %v138 = vld [vmem:[%s0 + $0x20] sm:$0xf]
    %v139 = vld [vmem:[%s0 + $0x24] sm:$0xf]
    %v140 = vld [vmem:[%s0 + $0x28] sm:$0xf]
    %v141 = vld [vmem:[%s0 + $0x2c] sm:$0xf]
    %v142 = vld [vmem:[%s0 + $0x30] sm:$0xf]
    %v143 = vld [vmem:[%s0 + $0x34] sm:$0xf]
    %v144 = vld [vmem:[%s0 + $0x38] sm:$0xf]
    %v145 = vld [vmem:[%s0 + $0x3c] sm:$0xf]
    %v146 = vld [vmem:[%s1] sm:$0xf]
    %v147 = vld [vmem:[%s1 + $0x4] sm:$0xf]
    %v148 = vld [vmem:[%s1 + $0x8] sm:$0xf]
    %v149 = vld [vmem:[%s1 + $0xc] sm:$0xf]
    %v150 = vld [vmem:[%s1 + $0x10] sm:$0xf]
    %v151 = vld [vmem:[%s1 + $0x14] sm:$0xf]
    %v152 = vld [vmem:[%s1 + $0x18] sm:$0xf]
    %v153 = vld [vmem:[%s1 + $0x1c] sm:$0xf]
    %v154 = vld [vmem:[%s1 + $0x20] sm:$0xf]
    %v155 = vld [vmem:[%s1 + $0x24] sm:$0xf]
    %v156 = vld [vmem:[%s1 + $0x28] sm:$0xf]
    %v157 = vld [vmem:[%s1 + $0x2c] sm:$0xf]
    %v158 = vld [vmem:[%s1 + $0x30] sm:$0xf]
    %v159 = vld [vmem:[%s1 + $0x34] sm:$0xf]
    %v160 = vld [vmem:[%s1 + $0x38] sm:$0xf]
    %v161 = vld [vmem:[%s1 + $0x3c] sm:$0xf]
    %v162 = vld [vmem:[%s2] sm:$0x1]
    %v164 = vlaneseq
    %v165 = vshrl.u32 %v164, 7
    %v166 = vsub.s32 0, %v165
    %v167 = vrot.slane %v162, %v166
    %v185 = vunpack.c.l.b16 %v130
    %v186 = vunpack.c.l.b16 %v131
    %v187 = vunpack.c.l.b16 %v132
    %v188 = vunpack.c.l.b16 %v133
    %v189 = vunpack.c.l.b16 %v134
    %v190 = vunpack.c.l.b16 %v135
    %v191 = vunpack.c.l.b16 %v136
    %v192 = vunpack.c.l.b16 %v137
    %v193 = vunpack.c.l.b16 %v138
    %v194 = vunpack.c.l.b16 %v139
    %v195 = vunpack.c.l.b16 %v140
    %v196 = vunpack.c.l.b16 %v141
    %v197 = vunpack.c.l.b16 %v142
    %v198 = vunpack.c.l.b16 %v143
    %v199 = vunpack.c.l.b16 %v144
    %v200 = vunpack.c.l.b16 %v145
    %v201 = vpack.c.b16 %v186, %v185
    %v202 = vpack.c.b16 %v188, %v187
    %v203 = vpack.c.b16 %v190, %v189
    %v204 = vpack.c.b16 %v192, %v191
    %v205 = vpack.c.b16 %v194, %v193
    %v206 = vpack.c.b16 %v196, %v195
    %v207 = vpack.c.b16 %v198, %v197
    %v208 = vpack.c.b16 %v200, %v199
    %v233 = vunpack.c.l.b16 %v146
    %v234 = vunpack.c.l.b16 %v147
    %v235 = vunpack.c.l.b16 %v148
    %v236 = vunpack.c.l.b16 %v149
    %v237 = vunpack.c.l.b16 %v150
    %v238 = vunpack.c.l.b16 %v151
    %v239 = vunpack.c.l.b16 %v152
    %v240 = vunpack.c.l.b16 %v153
    %v241 = vunpack.c.l.b16 %v154
    %v242 = vunpack.c.l.b16 %v155
    %v243 = vunpack.c.l.b16 %v156
    %v244 = vunpack.c.l.b16 %v157
    %v245 = vunpack.c.l.b16 %v158
    %v246 = vunpack.c.l.b16 %v159
    %v247 = vunpack.c.l.b16 %v160
    %v248 = vunpack.c.l.b16 %v161
    %v249 = vpack.c.b16 %v234, %v233
    %v250 = vpack.c.b16 %v236, %v235
    %v251 = vpack.c.b16 %v238, %v237
    %v252 = vpack.c.b16 %v240, %v239
    %v253 = vpack.c.b16 %v242, %v241
    %v254 = vpack.c.b16 %v244, %v243
    %v255 = vpack.c.b16 %v246, %v245
    %v256 = vpack.c.b16 %v248, %v247
    %265 = vmatprep.subr.bf16.mxu0 0
    %266 = vmatpush1.bf16.msra.mxu0 %v256
    %267 = vmatprep.subr.bf16.mxu0 0
    %268 = vmatpush1.bf16.msra.mxu0 %v255
    %269 = vmatprep.subr.bf16.mxu0 0
    %270 = vmatpush1.bf16.msra.mxu0 %v254
    %271 = vmatprep.subr.bf16.mxu0 0
    %272 = vmatpush1.bf16.msra.mxu0 %v253
    %273 = vmatprep.subr.bf16.mxu0 0
    %274 = vmatpush1.bf16.msra.mxu0 %v252
    %275 = vmatprep.subr.bf16.mxu0 0
    %276 = vmatpush1.bf16.msra.mxu0 %v251
    %277 = vmatprep.subr.bf16.mxu0 0
    %278 = vmatpush1.bf16.msra.mxu0 %v250
    %279 = vmatprep.subr.bf16.mxu0 0
    %280 = vmatpush1.bf16.msra.mxu0 %v249
    %281 = vmatprep.subr.bf16.mxu0 0
    %282 = vmatpush2.bf16.msra.mxu0 0
    %283 = vmatprep.subr.bf16.mxu0 0
    %284 = vmatpush2.bf16.msra.mxu0 0
    %285 = vmatprep.subr.bf16.mxu0 0
    %286 = vmatpush2.bf16.msra.mxu0 0
    %287 = vmatprep.subr.bf16.mxu0 0
    %288 = vmatpush2.bf16.msra.mxu0 0
    %289 = vmatprep.subr.bf16.mxu0 0
    %290 = vmatpush2.bf16.msra.mxu0 0
    %291 = vmatprep.subr.bf16.mxu0 0
    %292 = vmatpush2.bf16.msra.mxu0 0
    %293 = vmatprep.subr.bf16.mxu0 0
    %294 = vmatpush2.bf16.msra.mxu0 0
    %295 = vmatprep.subr.bf16.mxu0 0
    %296 = vmatpush2.bf16.msra.mxu0 0
    %297 = vmatprep.mubr.bf16.mxu0 0
    %298 = vmatmul.mubr.bf16.gmra.mxu0 %v201
    %v299 = vpop.f32.mrf.mxu0
    %v300 = vadd.f32 %v167, %v299
    %v301 = vpop.f32.mrf.mxu0
    %v302 = vpop.f32.mrf.mxu0
    %v303 = vadd.f32 %v167, %v302
    %v304 = vpop.f32.mrf.mxu0
    %305 = vmatprep.mubr.bf16.mxu0 0
    %306 = vmatmul.mubr.bf16.gmra.mxu0 %v202
    %v307 = vpop.f32.mrf.mxu0
    %v308 = vadd.f32 %v167, %v307
    %v309 = vpop.f32.mrf.mxu0
    %v310 = vpop.f32.mrf.mxu0
    %v311 = vadd.f32 %v167, %v310
    %v312 = vpop.f32.mrf.mxu0
    %313 = vmatprep.mubr.bf16.mxu0 0
    %314 = vmatmul.mubr.bf16.gmra.mxu0 %v203
    %v315 = vpop.f32.mrf.mxu0
    %v316 = vadd.f32 %v167, %v315
    %v317 = vpop.f32.mrf.mxu0
    %v318 = vpop.f32.mrf.mxu0
    %v319 = vadd.f32 %v167, %v318
    %v320 = vpop.f32.mrf.mxu0
    %321 = vmatprep.mubr.bf16.mxu0 0
    %322 = vmatmul.mubr.bf16.gmra.mxu0 %v204
    %v323 = vpop.f32.mrf.mxu0
    %v324 = vadd.f32 %v167, %v323
    %v325 = vpop.f32.mrf.mxu0
    %v326 = vpop.f32.mrf.mxu0
    %v327 = vadd.f32 %v167, %v326
    %v328 = vpop.f32.mrf.mxu0
    %329 = vmatprep.mubr.bf16.mxu0 0
    %330 = vmatmul.mubr.bf16.gmra.mxu0 %v205
    %v331 = vpop.f32.mrf.mxu0
    %v332 = vadd.f32 %v167, %v331
    %v333 = vpop.f32.mrf.mxu0
    %v334 = vpop.f32.mrf.mxu0
    %v335 = vadd.f32 %v167, %v334
    %v336 = vpop.f32.mrf.mxu0
    %337 = vmatprep.mubr.bf16.mxu0 0
    %338 = vmatmul.mubr.bf16.gmra.mxu0 %v206
    %v339 = vpop.f32.mrf.mxu0
    %v340 = vadd.f32 %v167, %v339
    %v341 = vpop.f32.mrf.mxu0
    %v342 = vpop.f32.mrf.mxu0
    %v343 = vadd.f32 %v167, %v342
    %v344 = vpop.f32.mrf.mxu0
    %345 = vmatprep.mubr.bf16.mxu0 0
    %346 = vmatmul.mubr.bf16.gmra.mxu0 %v207
    %v347 = vpop.f32.mrf.mxu0
    %v348 = vadd.f32 %v167, %v347
    %v349 = vpop.f32.mrf.mxu0
    %v350 = vpop.f32.mrf.mxu0
    %v351 = vadd.f32 %v167, %v350
    %v352 = vpop.f32.mrf.mxu0
    %353 = vmatprep.mubr.bf16.mxu0 0
    %354 = vmatmul.mubr.bf16.gmra.mxu0 %v208
    %v355 = vpop.f32.mrf.mxu0
    %v356 = vadd.f32 %v167, %v355
    %v357 = vpop.f32.mrf.mxu0
    %v358 = vpop.f32.mrf.mxu0
    %v359 = vadd.f32 %v167, %v358
    %v360 = vpop.f32.mrf.mxu0
    %361 = vdwg.mxu0
    %v362 = vmax.f32 %v300, 0.0
    %v363 = vmax.f32 %v303, 0.0
    %v364 = vmax.f32 %v308, 0.0
    %v365 = vmax.f32 %v311, 0.0
    %v366 = vmax.f32 %v316, 0.0
    %v367 = vmax.f32 %v319, 0.0
    %v368 = vmax.f32 %v324, 0.0
    %v369 = vmax.f32 %v327, 0.0
    %v370 = vmax.f32 %v332, 0.0
    %v371 = vmax.f32 %v335, 0.0
    %v372 = vmax.f32 %v340, 0.0
    %v373 = vmax.f32 %v343, 0.0
    %v374 = vmax.f32 %v348, 0.0
    %v375 = vmax.f32 %v351, 0.0
    %v376 = vmax.f32 %v356, 0.0
    %v377 = vmax.f32 %v359, 0.0
    %v378 = vpack.c.bf16 %v363, %v362
    %v379 = vpack.c.bf16 %v365, %v364
    %v380 = vpack.c.bf16 %v367, %v366
    %v381 = vpack.c.bf16 %v369, %v368
    %v382 = vpack.c.bf16 %v371, %v370
    %v383 = vpack.c.bf16 %v373, %v372
    %v384 = vpack.c.bf16 %v375, %v374
    %v385 = vpack.c.bf16 %v377, %v376
    %v386 = vld [vmem:[%s3] sm:$0xf]
    %v387 = vld [vmem:[%s3 + $0x4] sm:$0xf]
    %v388 = vld [vmem:[%s3 + $0x8] sm:$0xf]
    %v389 = vld [vmem:[%s3 + $0xc] sm:$0xf]
    %v390 = vld [vmem:[%s3 + $0x10] sm:$0xf]
    %v391 = vld [vmem:[%s3 + $0x14] sm:$0xf]
    %v392 = vld [vmem:[%s3 + $0x18] sm:$0xf]
    %v393 = vld [vmem:[%s3 + $0x1c] sm:$0xf]
    %v394 = vld [vmem:[%s3 + $0x20] sm:$0xf]
    %v395 = vld [vmem:[%s3 + $0x24] sm:$0xf]
    %v396 = vld [vmem:[%s3 + $0x28] sm:$0xf]
    %v397 = vld [vmem:[%s3 + $0x2c] sm:$0xf]
    %v398 = vld [vmem:[%s3 + $0x30] sm:$0xf]
    %v399 = vld [vmem:[%s3 + $0x34] sm:$0xf]
    %v400 = vld [vmem:[%s3 + $0x38] sm:$0xf]
    %v401 = vld [vmem:[%s3 + $0x3c] sm:$0xf]
    %v418 = vunpack.c.l.b16 %v386
    %v419 = vunpack.c.l.b16 %v387
    %v420 = vunpack.c.l.b16 %v388
    %v421 = vunpack.c.l.b16 %v389
    %v422 = vunpack.c.l.b16 %v390
    %v423 = vunpack.c.l.b16 %v391
    %v424 = vunpack.c.l.b16 %v392
    %v425 = vunpack.c.l.b16 %v393
    %v426 = vunpack.c.l.b16 %v394
    %v427 = vunpack.c.l.b16 %v395
    %v428 = vunpack.c.l.b16 %v396
    %v429 = vunpack.c.l.b16 %v397
    %v430 = vunpack.c.l.b16 %v398
    %v431 = vunpack.c.l.b16 %v399
    %v432 = vunpack.c.l.b16 %v400
    %v433 = vunpack.c.l.b16 %v401
    %v434 = vpack.c.b16 %v419, %v418
    %v435 = vpack.c.b16 %v421, %v420
    %v436 = vpack.c.b16 %v423, %v422
    %v437 = vpack.c.b16 %v425, %v424
    %v438 = vpack.c.b16 %v427, %v426
    %v439 = vpack.c.b16 %v429, %v428
    %v440 = vpack.c.b16 %v431, %v430
    %v441 = vpack.c.b16 %v433, %v432
    %450 = vmatprep.subr.bf16.mxu0 0
    %451 = vmatpush1.bf16.msra.mxu0 %v385
    %452 = vmatprep.subr.bf16.mxu0 0
    %453 = vmatpush1.bf16.msra.mxu0 %v384
    %454 = vmatprep.subr.bf16.mxu0 0
    %455 = vmatpush1.bf16.msra.mxu0 %v383
    %456 = vmatprep.subr.bf16.mxu0 0
    %457 = vmatpush1.bf16.msra.mxu0 %v382
    %458 = vmatprep.subr.bf16.mxu0 0
    %459 = vmatpush1.bf16.msra.mxu0 %v381
    %460 = vmatprep.subr.bf16.mxu0 0
    %461 = vmatpush1.bf16.msra.mxu0 %v380
    %462 = vmatprep.subr.bf16.mxu0 0
    %463 = vmatpush1.bf16.msra.mxu0 %v379
    %464 = vmatprep.subr.bf16.mxu0 0
    %465 = vmatpush1.bf16.msra.mxu0 %v378
    %466 = vmatprep.subr.bf16.mxu0 0
    %467 = vmatpush2.bf16.msra.mxu0 0
    %468 = vmatprep.subr.bf16.mxu0 0
    %469 = vmatpush2.bf16.msra.mxu0 0
    %470 = vmatprep.subr.bf16.mxu0 0
    %471 = vmatpush2.bf16.msra.mxu0 0
    %472 = vmatprep.subr.bf16.mxu0 0
    %473 = vmatpush2.bf16.msra.mxu0 0
    %474 = vmatprep.subr.bf16.mxu0 0
    %475 = vmatpush2.bf16.msra.mxu0 0
    %476 = vmatprep.subr.bf16.mxu0 0
    %477 = vmatpush2.bf16.msra.mxu0 0
    %478 = vmatprep.subr.bf16.mxu0 0
    %479 = vmatpush2.bf16.msra.mxu0 0
    %480 = vmatprep.subr.bf16.mxu0 0
    %481 = vmatpush2.bf16.msra.mxu0 0
    %482 = vmatprep.mubr.bf16.mxu0 0
    %483 = vmatmul.mubr.bf16.gmra.mxu0 %v434
    %v484 = vpop.f32.mrf.mxu0
    %v485 = vadd.f32 0.0, %v484
    %v486 = vpop.f32.mrf.mxu0
    %v487 = vpop.f32.mrf.mxu0
    %v488 = vadd.f32 0.0, %v487
    %v489 = vpop.f32.mrf.mxu0
    %490 = vmatprep.mubr.bf16.mxu0 0
    %491 = vmatmul.mubr.bf16.gmra.mxu0 %v435
    %v492 = vpop.f32.mrf.mxu0
    %v493 = vadd.f32 0.0, %v492
    %v494 = vpop.f32.mrf.mxu0
    %v495 = vpop.f32.mrf.mxu0
    %v496 = vadd.f32 0.0, %v495
    %v497 = vpop.f32.mrf.mxu0
    %498 = vmatprep.mubr.bf16.mxu0 0
    %499 = vmatmul.mubr.bf16.gmra.mxu0 %v436
    %v500 = vpop.f32.mrf.mxu0
    %v501 = vadd.f32 0.0, %v500
    %v502 = vpop.f32.mrf.mxu0
    %v503 = vpop.f32.mrf.mxu0
    %v504 = vadd.f32 0.0, %v503
    %v505 = vpop.f32.mrf.mxu0
    %506 = vmatprep.mubr.bf16.mxu0 0
    %507 = vmatmul.mubr.bf16.gmra.mxu0 %v437
    %v508 = vpop.f32.mrf.mxu0
    %v509 = vadd.f32 0.0, %v508
    %v510 = vpop.f32.mrf.mxu0
    %v511 = vpop.f32.mrf.mxu0
    %v512 = vadd.f32 0.0, %v511
    %v513 = vpop.f32.mrf.mxu0
    %514 = vmatprep.mubr.bf16.mxu0 0
    %515 = vmatmul.mubr.bf16.gmra.mxu0 %v438
    %v516 = vpop.f32.mrf.mxu0
    %v517 = vadd.f32 0.0, %v516
    %v518 = vpop.f32.mrf.mxu0
    %v519 = vpop.f32.mrf.mxu0
    %v520 = vadd.f32 0.0, %v519
    %v521 = vpop.f32.mrf.mxu0
    %522 = vmatprep.mubr.bf16.mxu0 0
    %523 = vmatmul.mubr.bf16.gmra.mxu0 %v439
    %v524 = vpop.f32.mrf.mxu0
    %v525 = vadd.f32 0.0, %v524
    %v526 = vpop.f32.mrf.mxu0
    %v527 = vpop.f32.mrf.mxu0
    %v528 = vadd.f32 0.0, %v527
    %v529 = vpop.f32.mrf.mxu0
    %530 = vmatprep.mubr.bf16.mxu0 0
    %531 = vmatmul.mubr.bf16.gmra.mxu0 %v440
    %v532 = vpop.f32.mrf.mxu0
    %v533 = vadd.f32 0.0, %v532
    %v534 = vpop.f32.mrf.mxu0
    %v535 = vpop.f32.mrf.mxu0
    %v536 = vadd.f32 0.0, %v535
    %v537 = vpop.f32.mrf.mxu0
    %538 = vmatprep.mubr.bf16.mxu0 0
    %539 = vmatmul.mubr.bf16.gmra.mxu0 %v441
    %v540 = vpop.f32.mrf.mxu0
    %v541 = vadd.f32 0.0, %v540
    %v542 = vpop.f32.mrf.mxu0
    %v543 = vpop.f32.mrf.mxu0
    %v544 = vadd.f32 0.0, %v543
    %v545 = vpop.f32.mrf.mxu0
    %546 = vdwg.mxu0
    %v547 = vpack.c.bf16 %v488, %v485
    %v548 = vpack.c.bf16 %v496, %v493
    %v549 = vpack.c.bf16 %v504, %v501
    %v550 = vpack.c.bf16 %v512, %v509
    %v551 = vpack.c.bf16 %v520, %v517
    %v552 = vpack.c.bf16 %v528, %v525
    %v553 = vpack.c.bf16 %v536, %v533
    %v554 = vpack.c.bf16 %v544, %v541
    %v555 = vld [vmem:[%s4] sm:$0xf]
    %v556 = vld [vmem:[%s4 + $0x4] sm:$0xf]
    %v557 = vld [vmem:[%s4 + $0x8] sm:$0xf]
    %v558 = vld [vmem:[%s4 + $0xc] sm:$0xf]
    %v559 = vld [vmem:[%s4 + $0x10] sm:$0xf]
    %v560 = vld [vmem:[%s4 + $0x14] sm:$0xf]
    %v561 = vld [vmem:[%s4 + $0x18] sm:$0xf]
    %v562 = vld [vmem:[%s4 + $0x1c] sm:$0xf]
    %v563 = vld [vmem:[%s4 + $0x20] sm:$0xf]
    %v564 = vld [vmem:[%s4 + $0x24] sm:$0xf]
    %v565 = vld [vmem:[%s4 + $0x28] sm:$0xf]
    %v566 = vld [vmem:[%s4 + $0x2c] sm:$0xf]
    %v567 = vld [vmem:[%s4 + $0x30] sm:$0xf]
    %v568 = vld [vmem:[%s4 + $0x34] sm:$0xf]
    %v569 = vld [vmem:[%s4 + $0x38] sm:$0xf]
    %v570 = vld [vmem:[%s4 + $0x3c] sm:$0xf]
    %s571 = scalar_lea.vmem %s3, 64
    %v572 = vld [vmem:[%s571] sm:$0xf]
    %v573 = vld [vmem:[%s571 + $0x4] sm:$0xf]
    %v574 = vld [vmem:[%s571 + $0x8] sm:$0xf]
    %v575 = vld [vmem:[%s571 + $0xc] sm:$0xf]
    %v576 = vld [vmem:[%s571 + $0x10] sm:$0xf]
    %v577 = vld [vmem:[%s571 + $0x14] sm:$0xf]
    %v578 = vld [vmem:[%s571 + $0x18] sm:$0xf]
    %v579 = vld [vmem:[%s571 + $0x1c] sm:$0xf]
    %v580 = vld [vmem:[%s571 + $0x20] sm:$0xf]
    %v581 = vld [vmem:[%s571 + $0x24] sm:$0xf]
    %v582 = vld [vmem:[%s571 + $0x28] sm:$0xf]
    %v583 = vld [vmem:[%s571 + $0x2c] sm:$0xf]
    %v584 = vld [vmem:[%s571 + $0x30] sm:$0xf]
    %v585 = vld [vmem:[%s571 + $0x34] sm:$0xf]
    %v586 = vld [vmem:[%s571 + $0x38] sm:$0xf]
    %v587 = vld [vmem:[%s571 + $0x3c] sm:$0xf]
    %v604 = vunpack.c.l.b16 %v572
    %v605 = vunpack.c.l.b16 %v573
    %v606 = vunpack.c.l.b16 %v574
    %v607 = vunpack.c.l.b16 %v575
    %v608 = vunpack.c.l.b16 %v576
    %v609 = vunpack.c.l.b16 %v577
    %v610 = vunpack.c.l.b16 %v578
    %v611 = vunpack.c.l.b16 %v579
    %v612 = vunpack.c.l.b16 %v580
    %v613 = vunpack.c.l.b16 %v581
    %v614 = vunpack.c.l.b16 %v582
    %v615 = vunpack.c.l.b16 %v583
    %v616 = vunpack.c.l.b16 %v584
    %v617 = vunpack.c.l.b16 %v585
    %v618 = vunpack.c.l.b16 %v586
    %v619 = vunpack.c.l.b16 %v587
    %v620 = vpack.c.b16 %v605, %v604
    %v621 = vpack.c.b16 %v607, %v606
    %v622 = vpack.c.b16 %v609, %v608
    %v623 = vpack.c.b16 %v611, %v610
    %v624 = vpack.c.b16 %v613, %v612
    %v625 = vpack.c.b16 %v615, %v614
    %v626 = vpack.c.b16 %v617, %v616
    %v627 = vpack.c.b16 %v619, %v618
    %636 = vmatprep.subr.bf16.mxu0 0
    %637 = vmatpush1.bf16.msra.mxu0 %v385
    %638 = vmatprep.subr.bf16.mxu0 0
    %639 = vmatpush1.bf16.msra.mxu0 %v384
    %640 = vmatprep.subr.bf16.mxu0 0
    %641 = vmatpush1.bf16.msra.mxu0 %v383
    %642 = vmatprep.subr.bf16.mxu0 0
    %643 = vmatpush1.bf16.msra.mxu0 %v382
    %644 = vmatprep.subr.bf16.mxu0 0
    %645 = vmatpush1.bf16.msra.mxu0 %v381
    %646 = vmatprep.subr.bf16.mxu0 0
    %647 = vmatpush1.bf16.msra.mxu0 %v380
    %648 = vmatprep.subr.bf16.mxu0 0
    %649 = vmatpush1.bf16.msra.mxu0 %v379
    %650 = vmatprep.subr.bf16.mxu0 0
    %651 = vmatpush1.bf16.msra.mxu0 %v378
    %652 = vmatprep.subr.bf16.mxu0 0
    %653 = vmatpush2.bf16.msra.mxu0 0
    %654 = vmatprep.subr.bf16.mxu0 0
    %655 = vmatpush2.bf16.msra.mxu0 0
    %656 = vmatprep.subr.bf16.mxu0 0
    %657 = vmatpush2.bf16.msra.mxu0 0
    %658 = vmatprep.subr.bf16.mxu0 0
    %659 = vmatpush2.bf16.msra.mxu0 0
    %660 = vmatprep.subr.bf16.mxu0 0
    %661 = vmatpush2.bf16.msra.mxu0 0
    %662 = vmatprep.subr.bf16.mxu0 0
    %663 = vmatpush2.bf16.msra.mxu0 0
    %664 = vmatprep.subr.bf16.mxu0 0
    %665 = vmatpush2.bf16.msra.mxu0 0
    %666 = vmatprep.subr.bf16.mxu0 0
    %667 = vmatpush2.bf16.msra.mxu0 0
    %668 = vmatprep.mubr.bf16.mxu0 0
    %669 = vmatmul.mubr.bf16.gmra.mxu0 %v620
    %v670 = vpop.f32.mrf.mxu0
    %v671 = vadd.f32 0.0, %v670
    %v672 = vpop.f32.mrf.mxu0
    %v673 = vpop.f32.mrf.mxu0
    %v674 = vadd.f32 0.0, %v673
    %v675 = vpop.f32.mrf.mxu0
    %676 = vmatprep.mubr.bf16.mxu0 0
    %677 = vmatmul.mubr.bf16.gmra.mxu0 %v621
    %v678 = vpop.f32.mrf.mxu0
    %v679 = vadd.f32 0.0, %v678
    %v680 = vpop.f32.mrf.mxu0
    %v681 = vpop.f32.mrf.mxu0
    %v682 = vadd.f32 0.0, %v681
    %v683 = vpop.f32.mrf.mxu0
    %684 = vmatprep.mubr.bf16.mxu0 0
    %685 = vmatmul.mubr.bf16.gmra.mxu0 %v622
    %v686 = vpop.f32.mrf.mxu0
    %v687 = vadd.f32 0.0, %v686
    %v688 = vpop.f32.mrf.mxu0
    %v689 = vpop.f32.mrf.mxu0
    %v690 = vadd.f32 0.0, %v689
    %v691 = vpop.f32.mrf.mxu0
    %692 = vmatprep.mubr.bf16.mxu0 0
    %693 = vmatmul.mubr.bf16.gmra.mxu0 %v623
    %v694 = vpop.f32.mrf.mxu0
    %v695 = vadd.f32 0.0, %v694
    %v696 = vpop.f32.mrf.mxu0
    %v697 = vpop.f32.mrf.mxu0
    %v698 = vadd.f32 0.0, %v697
    %v699 = vpop.f32.mrf.mxu0
    %700 = vmatprep.mubr.bf16.mxu0 0
    %701 = vmatmul.mubr.bf16.gmra.mxu0 %v624
    %v702 = vpop.f32.mrf.mxu0
    %v703 = vadd.f32 0.0, %v702
    %v704 = vpop.f32.mrf.mxu0
    %v705 = vpop.f32.mrf.mxu0
    %v706 = vadd.f32 0.0, %v705
    %v707 = vpop.f32.mrf.mxu0
    %708 = vmatprep.mubr.bf16.mxu0 0
    %709 = vmatmul.mubr.bf16.gmra.mxu0 %v625
    %v710 = vpop.f32.mrf.mxu0
    %v711 = vadd.f32 0.0, %v710
    %v712 = vpop.f32.mrf.mxu0
    %v713 = vpop.f32.mrf.mxu0
    %v714 = vadd.f32 0.0, %v713
    %v715 = vpop.f32.mrf.mxu0
    %716 = vmatprep.mubr.bf16.mxu0 0
    %717 = vmatmul.mubr.bf16.gmra.mxu0 %v626
    %v718 = vpop.f32.mrf.mxu0
    %v719 = vadd.f32 0.0, %v718
    %v720 = vpop.f32.mrf.mxu0
    %v721 = vpop.f32.mrf.mxu0
    %v722 = vadd.f32 0.0, %v721
    %v723 = vpop.f32.mrf.mxu0
    %724 = vmatprep.mubr.bf16.mxu0 0
    %725 = vmatmul.mubr.bf16.gmra.mxu0 %v627
    %v726 = vpop.f32.mrf.mxu0
    %v727 = vadd.f32 0.0, %v726
    %v728 = vpop.f32.mrf.mxu0
    %v729 = vpop.f32.mrf.mxu0
    %v730 = vadd.f32 0.0, %v729
    %v731 = vpop.f32.mrf.mxu0
    %732 = vdwg.mxu0
    %v733 = vpack.c.bf16 %v674, %v671
    %v734 = vpack.c.bf16 %v682, %v679
    %v735 = vpack.c.bf16 %v690, %v687
    %v736 = vpack.c.bf16 %v698, %v695
    %v737 = vpack.c.bf16 %v706, %v703
    %v738 = vpack.c.bf16 %v714, %v711
    %v739 = vpack.c.bf16 %v722, %v719
    %v740 = vpack.c.bf16 %v730, %v727
    %s741 = scalar_lea.vmem %s4, 64
    %v742 = vld [vmem:[%s741] sm:$0xf]
    %v743 = vld [vmem:[%s741 + $0x4] sm:$0xf]
    %v744 = vld [vmem:[%s741 + $0x8] sm:$0xf]
    %v745 = vld [vmem:[%s741 + $0xc] sm:$0xf]
    %v746 = vld [vmem:[%s741 + $0x10] sm:$0xf]
    %v747 = vld [vmem:[%s741 + $0x14] sm:$0xf]
    %v748 = vld [vmem:[%s741 + $0x18] sm:$0xf]
    %v749 = vld [vmem:[%s741 + $0x1c] sm:$0xf]
    %v750 = vld [vmem:[%s741 + $0x20] sm:$0xf]
    %v751 = vld [vmem:[%s741 + $0x24] sm:$0xf]
    %v752 = vld [vmem:[%s741 + $0x28] sm:$0xf]
    %v753 = vld [vmem:[%s741 + $0x2c] sm:$0xf]
    %v754 = vld [vmem:[%s741 + $0x30] sm:$0xf]
    %v755 = vld [vmem:[%s741 + $0x34] sm:$0xf]
    %v756 = vld [vmem:[%s741 + $0x38] sm:$0xf]
    %v757 = vld [vmem:[%s741 + $0x3c] sm:$0xf]
    %v774 = vunpack.c.l.b16 %v742
    %v775 = vunpack.c.l.b16 %v743
    %v776 = vunpack.c.l.b16 %v744
    %v777 = vunpack.c.l.b16 %v745
    %v778 = vunpack.c.l.b16 %v746
    %v779 = vunpack.c.l.b16 %v747
    %v780 = vunpack.c.l.b16 %v748
    %v781 = vunpack.c.l.b16 %v749
    %v782 = vunpack.c.l.b16 %v750
    %v783 = vunpack.c.l.b16 %v751
    %v784 = vunpack.c.l.b16 %v752
    %v785 = vunpack.c.l.b16 %v753
    %v786 = vunpack.c.l.b16 %v754
    %v787 = vunpack.c.l.b16 %v755
    %v788 = vunpack.c.l.b16 %v756
    %v789 = vunpack.c.l.b16 %v757
    %v790 = vpack.c.b16 %v775, %v774
    %v791 = vpack.c.b16 %v777, %v776
    %v792 = vpack.c.b16 %v779, %v778
    %v793 = vpack.c.b16 %v781, %v780
    %v794 = vpack.c.b16 %v783, %v782
    %v795 = vpack.c.b16 %v785, %v784
    %v796 = vpack.c.b16 %v787, %v786
    %v797 = vpack.c.b16 %v789, %v788
    %806 = vmatprep.subr.bf16.mxu0 0
    %807 = vmatpush1.bf16.msra.mxu0 %v797
    %808 = vmatprep.subr.bf16.mxu0 0
    %809 = vmatpush1.bf16.msra.mxu0 %v796
    %810 = vmatprep.subr.bf16.mxu0 0
    %811 = vmatpush1.bf16.msra.mxu0 %v795
    %812 = vmatprep.subr.bf16.mxu0 0
    %813 = vmatpush1.bf16.msra.mxu0 %v794
    %814 = vmatprep.subr.bf16.mxu0 0
    %815 = vmatpush1.bf16.msra.mxu0 %v793
    %816 = vmatprep.subr.bf16.mxu0 0
    %817 = vmatpush1.bf16.msra.mxu0 %v792
    %818 = vmatprep.subr.bf16.mxu0 0
    %819 = vmatpush1.bf16.msra.mxu0 %v791
    %820 = vmatprep.subr.bf16.mxu0 0
    %821 = vmatpush1.bf16.msra.mxu0 %v790
    %822 = vmatprep.subr.bf16.mxu0 0
    %823 = vmatpush2.bf16.msra.mxu0 0
    %824 = vmatprep.subr.bf16.mxu0 0
    %825 = vmatpush2.bf16.msra.mxu0 0
    %826 = vmatprep.subr.bf16.mxu0 0
    %827 = vmatpush2.bf16.msra.mxu0 0
    %828 = vmatprep.subr.bf16.mxu0 0
    %829 = vmatpush2.bf16.msra.mxu0 0
    %830 = vmatprep.subr.bf16.mxu0 0
    %831 = vmatpush2.bf16.msra.mxu0 0
    %832 = vmatprep.subr.bf16.mxu0 0
    %833 = vmatpush2.bf16.msra.mxu0 0
    %834 = vmatprep.subr.bf16.mxu0 0
    %835 = vmatpush2.bf16.msra.mxu0 0
    %836 = vmatprep.subr.bf16.mxu0 0
    %837 = vmatpush2.bf16.msra.mxu0 0
    %838 = vmatprep.mubr.bf16.mxu0 0
    %839 = vmatmul.mubr.bf16.gmra.mxu0 %v733
    %v840 = vpop.f32.mrf.mxu0
    %v841 = vadd.f32 0.0, %v840
    %v842 = vpop.f32.mrf.mxu0
    %v843 = vpop.f32.mrf.mxu0
    %v844 = vadd.f32 0.0, %v843
    %v845 = vpop.f32.mrf.mxu0
    %846 = vmatprep.mubr.bf16.mxu0 0
    %847 = vmatmul.mubr.bf16.gmra.mxu0 %v734
    %v848 = vpop.f32.mrf.mxu0
    %v849 = vadd.f32 0.0, %v848
    %v850 = vpop.f32.mrf.mxu0
    %v851 = vpop.f32.mrf.mxu0
    %v852 = vadd.f32 0.0, %v851
    %v853 = vpop.f32.mrf.mxu0
    %854 = vmatprep.mubr.bf16.mxu0 0
    %855 = vmatmul.mubr.bf16.gmra.mxu0 %v735
    %v856 = vpop.f32.mrf.mxu0
    %v857 = vadd.f32 0.0, %v856
    %v858 = vpop.f32.mrf.mxu0
    %v859 = vpop.f32.mrf.mxu0
    %v860 = vadd.f32 0.0, %v859
    %v861 = vpop.f32.mrf.mxu0
    %862 = vmatprep.mubr.bf16.mxu0 0
    %863 = vmatmul.mubr.bf16.gmra.mxu0 %v736
    %v864 = vpop.f32.mrf.mxu0
    %v865 = vadd.f32 0.0, %v864
    %v866 = vpop.f32.mrf.mxu0
    %v867 = vpop.f32.mrf.mxu0
    %v868 = vadd.f32 0.0, %v867
    %v869 = vpop.f32.mrf.mxu0
    %870 = vmatprep.mubr.bf16.mxu0 0
    %871 = vmatmul.mubr.bf16.gmra.mxu0 %v737
    %v872 = vpop.f32.mrf.mxu0
    %v873 = vadd.f32 0.0, %v872
    %v874 = vpop.f32.mrf.mxu0
    %v875 = vpop.f32.mrf.mxu0
    %v876 = vadd.f32 0.0, %v875
    %v877 = vpop.f32.mrf.mxu0
    %878 = vmatprep.mubr.bf16.mxu0 0
    %879 = vmatmul.mubr.bf16.gmra.mxu0 %v738
    %v880 = vpop.f32.mrf.mxu0
    %v881 = vadd.f32 0.0, %v880
    %v882 = vpop.f32.mrf.mxu0
    %v883 = vpop.f32.mrf.mxu0
    %v884 = vadd.f32 0.0, %v883
    %v885 = vpop.f32.mrf.mxu0
    %886 = vmatprep.mubr.bf16.mxu0 0
    %887 = vmatmul.mubr.bf16.gmra.mxu0 %v739
    %v888 = vpop.f32.mrf.mxu0
    %v889 = vadd.f32 0.0, %v888
    %v890 = vpop.f32.mrf.mxu0
    %v891 = vpop.f32.mrf.mxu0
    %v892 = vadd.f32 0.0, %v891
    %v893 = vpop.f32.mrf.mxu0
    %894 = vmatprep.mubr.bf16.mxu0 0
    %895 = vmatmul.mubr.bf16.gmra.mxu0 %v740
    %v896 = vpop.f32.mrf.mxu0
    %v897 = vadd.f32 0.0, %v896
    %v898 = vpop.f32.mrf.mxu0
    %v899 = vpop.f32.mrf.mxu0
    %v900 = vadd.f32 0.0, %v899
    %v901 = vpop.f32.mrf.mxu0
    %902 = vdwg.mxu0
    %v919 = vunpack.c.l.b16 %v555
    %v920 = vunpack.c.l.b16 %v556
    %v921 = vunpack.c.l.b16 %v557
    %v922 = vunpack.c.l.b16 %v558
    %v923 = vunpack.c.l.b16 %v559
    %v924 = vunpack.c.l.b16 %v560
    %v925 = vunpack.c.l.b16 %v561
    %v926 = vunpack.c.l.b16 %v562
    %v927 = vunpack.c.l.b16 %v563
    %v928 = vunpack.c.l.b16 %v564
    %v929 = vunpack.c.l.b16 %v565
    %v930 = vunpack.c.l.b16 %v566
    %v931 = vunpack.c.l.b16 %v567
    %v932 = vunpack.c.l.b16 %v568
    %v933 = vunpack.c.l.b16 %v569
    %v934 = vunpack.c.l.b16 %v570
    %v935 = vpack.c.b16 %v920, %v919
    %v936 = vpack.c.b16 %v922, %v921
    %v937 = vpack.c.b16 %v924, %v923
    %v938 = vpack.c.b16 %v926, %v925
    %v939 = vpack.c.b16 %v928, %v927
    %v940 = vpack.c.b16 %v930, %v929
    %v941 = vpack.c.b16 %v932, %v931
    %v942 = vpack.c.b16 %v934, %v933
    %951 = vmatprep.subr.bf16.mxu0 0
    %952 = vmatpush1.bf16.msra.mxu0 %v942
    %953 = vmatprep.subr.bf16.mxu0 0
    %954 = vmatpush1.bf16.msra.mxu0 %v941
    %955 = vmatprep.subr.bf16.mxu0 0
    %956 = vmatpush1.bf16.msra.mxu0 %v940
    %957 = vmatprep.subr.bf16.mxu0 0
    %958 = vmatpush1.bf16.msra.mxu0 %v939
    %959 = vmatprep.subr.bf16.mxu0 0
    %960 = vmatpush1.bf16.msra.mxu0 %v938
    %961 = vmatprep.subr.bf16.mxu0 0
    %962 = vmatpush1.bf16.msra.mxu0 %v937
    %963 = vmatprep.subr.bf16.mxu0 0
    %964 = vmatpush1.bf16.msra.mxu0 %v936
    %965 = vmatprep.subr.bf16.mxu0 0
    %966 = vmatpush1.bf16.msra.mxu0 %v935
    %967 = vmatprep.subr.bf16.mxu0 0
    %968 = vmatpush2.bf16.msra.mxu0 0
    %969 = vmatprep.subr.bf16.mxu0 0
    %970 = vmatpush2.bf16.msra.mxu0 0
    %971 = vmatprep.subr.bf16.mxu0 0
    %972 = vmatpush2.bf16.msra.mxu0 0
    %973 = vmatprep.subr.bf16.mxu0 0
    %974 = vmatpush2.bf16.msra.mxu0 0
    %975 = vmatprep.subr.bf16.mxu0 0
    %976 = vmatpush2.bf16.msra.mxu0 0
    %977 = vmatprep.subr.bf16.mxu0 0
    %978 = vmatpush2.bf16.msra.mxu0 0
    %979 = vmatprep.subr.bf16.mxu0 0
    %980 = vmatpush2.bf16.msra.mxu0 0
    %981 = vmatprep.subr.bf16.mxu0 0
    %982 = vmatpush2.bf16.msra.mxu0 0
    %983 = vmatprep.mubr.bf16.mxu0 0
    %984 = vmatmul.mubr.bf16.gmra.mxu0 %v547
    %v985 = vpop.f32.mrf.mxu0
    %v986 = vadd.f32 %v841, %v985
    %v987 = vpop.f32.mrf.mxu0
    %v988 = vpop.f32.mrf.mxu0
    %v989 = vadd.f32 %v844, %v988
    %v990 = vpop.f32.mrf.mxu0
    %991 = vmatprep.mubr.bf16.mxu0 0
    %992 = vmatmul.mubr.bf16.gmra.mxu0 %v548
    %v993 = vpop.f32.mrf.mxu0
    %v994 = vadd.f32 %v849, %v993
    %v995 = vpop.f32.mrf.mxu0
    %v996 = vpop.f32.mrf.mxu0
    %v997 = vadd.f32 %v852, %v996
    %v998 = vpop.f32.mrf.mxu0
    %999 = vmatprep.mubr.bf16.mxu0 0
    %1000 = vmatmul.mubr.bf16.gmra.mxu0 %v549
    %v1001 = vpop.f32.mrf.mxu0
    %v1002 = vadd.f32 %v857, %v1001
    %v1003 = vpop.f32.mrf.mxu0
    %v1004 = vpop.f32.mrf.mxu0
    %v1005 = vadd.f32 %v860, %v1004
    %v1006 = vpop.f32.mrf.mxu0
    %1007 = vmatprep.mubr.bf16.mxu0 0
    %1008 = vmatmul.mubr.bf16.gmra.mxu0 %v550
    %v1009 = vpop.f32.mrf.mxu0
    %v1010 = vadd.f32 %v865, %v1009
    %v1011 = vpop.f32.mrf.mxu0
    %v1012 = vpop.f32.mrf.mxu0
    %v1013 = vadd.f32 %v868, %v1012
    %v1014 = vpop.f32.mrf.mxu0
    %1015 = vmatprep.mubr.bf16.mxu0 0
    %1016 = vmatmul.mubr.bf16.gmra.mxu0 %v551
    %v1017 = vpop.f32.mrf.mxu0
    %v1018 = vadd.f32 %v873, %v1017
    %v1019 = vpop.f32.mrf.mxu0
    %v1020 = vpop.f32.mrf.mxu0
    %v1021 = vadd.f32 %v876, %v1020
    %v1022 = vpop.f32.mrf.mxu0
    %1023 = vmatprep.mubr.bf16.mxu0 0
    %1024 = vmatmul.mubr.bf16.gmra.mxu0 %v552
    %v1025 = vpop.f32.mrf.mxu0
    %v1026 = vadd.f32 %v881, %v1025
    %v1027 = vpop.f32.mrf.mxu0
    %v1028 = vpop.f32.mrf.mxu0
    %v1029 = vadd.f32 %v884, %v1028
    %v1030 = vpop.f32.mrf.mxu0
    %1031 = vmatprep.mubr.bf16.mxu0 0
    %1032 = vmatmul.mubr.bf16.gmra.mxu0 %v553
    %v1033 = vpop.f32.mrf.mxu0
    %v1034 = vadd.f32 %v889, %v1033
    %v1035 = vpop.f32.mrf.mxu0
    %v1036 = vpop.f32.mrf.mxu0
    %v1037 = vadd.f32 %v892, %v1036
    %v1038 = vpop.f32.mrf.mxu0
    %1039 = vmatprep.mubr.bf16.mxu0 0
    %1040 = vmatmul.mubr.bf16.gmra.mxu0 %v554
    %v1041 = vpop.f32.mrf.mxu0
    %v1042 = vadd.f32 %v897, %v1041
    %v1043 = vpop.f32.mrf.mxu0
    %v1044 = vpop.f32.mrf.mxu0
    %v1045 = vadd.f32 %v900, %v1044
    %v1046 = vpop.f32.mrf.mxu0
    %1047 = vdwg.mxu0
    %s1048 = scalar_lea.vmem %s3, 128
    %v1049 = vld [vmem:[%s1048] sm:$0xf]
    %v1050 = vld [vmem:[%s1048 + $0x4] sm:$0xf]
    %v1051 = vld [vmem:[%s1048 + $0x8] sm:$0xf]
    %v1052 = vld [vmem:[%s1048 + $0xc] sm:$0xf]
    %v1053 = vld [vmem:[%s1048 + $0x10] sm:$0xf]
    %v1054 = vld [vmem:[%s1048 + $0x14] sm:$0xf]
    %v1055 = vld [vmem:[%s1048 + $0x18] sm:$0xf]
    %v1056 = vld [vmem:[%s1048 + $0x1c] sm:$0xf]
    %v1057 = vld [vmem:[%s1048 + $0x20] sm:$0xf]
    %v1058 = vld [vmem:[%s1048 + $0x24] sm:$0xf]
    %v1059 = vld [vmem:[%s1048 + $0x28] sm:$0xf]
    %v1060 = vld [vmem:[%s1048 + $0x2c] sm:$0xf]
    %v1061 = vld [vmem:[%s1048 + $0x30] sm:$0xf]
    %v1062 = vld [vmem:[%s1048 + $0x34] sm:$0xf]
    %v1063 = vld [vmem:[%s1048 + $0x38] sm:$0xf]
    %v1064 = vld [vmem:[%s1048 + $0x3c] sm:$0xf]
    %v1081 = vunpack.c.l.b16 %v1049
    %v1082 = vunpack.c.l.b16 %v1050
    %v1083 = vunpack.c.l.b16 %v1051
    %v1084 = vunpack.c.l.b16 %v1052
    %v1085 = vunpack.c.l.b16 %v1053
    %v1086 = vunpack.c.l.b16 %v1054
    %v1087 = vunpack.c.l.b16 %v1055
    %v1088 = vunpack.c.l.b16 %v1056
    %v1089 = vunpack.c.l.b16 %v1057
    %v1090 = vunpack.c.l.b16 %v1058
    %v1091 = vunpack.c.l.b16 %v1059
    %v1092 = vunpack.c.l.b16 %v1060
    %v1093 = vunpack.c.l.b16 %v1061
    %v1094 = vunpack.c.l.b16 %v1062
    %v1095 = vunpack.c.l.b16 %v1063
    %v1096 = vunpack.c.l.b16 %v1064
    %v1097 = vpack.c.b16 %v1082, %v1081
    %v1098 = vpack.c.b16 %v1084, %v1083
    %v1099 = vpack.c.b16 %v1086, %v1085
    %v1100 = vpack.c.b16 %v1088, %v1087
    %v1101 = vpack.c.b16 %v1090, %v1089
    %v1102 = vpack.c.b16 %v1092, %v1091
    %v1103 = vpack.c.b16 %v1094, %v1093
    %v1104 = vpack.c.b16 %v1096, %v1095
    %1113 = vmatprep.subr.bf16.mxu0 0
    %1114 = vmatpush1.bf16.msra.mxu0 %v385
    %1115 = vmatprep.subr.bf16.mxu0 0
    %1116 = vmatpush1.bf16.msra.mxu0 %v384
    %1117 = vmatprep.subr.bf16.mxu0 0
    %1118 = vmatpush1.bf16.msra.mxu0 %v383
    %1119 = vmatprep.subr.bf16.mxu0 0
    %1120 = vmatpush1.bf16.msra.mxu0 %v382
    %1121 = vmatprep.subr.bf16.mxu0 0
    %1122 = vmatpush1.bf16.msra.mxu0 %v381
    %1123 = vmatprep.subr.bf16.mxu0 0
    %1124 = vmatpush1.bf16.msra.mxu0 %v380
    %1125 = vmatprep.subr.bf16.mxu0 0
    %1126 = vmatpush1.bf16.msra.mxu0 %v379
    %1127 = vmatprep.subr.bf16.mxu0 0
    %1128 = vmatpush1.bf16.msra.mxu0 %v378
    %1129 = vmatprep.subr.bf16.mxu0 0
    %1130 = vmatpush2.bf16.msra.mxu0 0
    %1131 = vmatprep.subr.bf16.mxu0 0
    %1132 = vmatpush2.bf16.msra.mxu0 0
    %1133 = vmatprep.subr.bf16.mxu0 0
    %1134 = vmatpush2.bf16.msra.mxu0 0
    %1135 = vmatprep.subr.bf16.mxu0 0
    %1136 = vmatpush2.bf16.msra.mxu0 0
    %1137 = vmatprep.subr.bf16.mxu0 0
    %1138 = vmatpush2.bf16.msra.mxu0 0
    %1139 = vmatprep.subr.bf16.mxu0 0
    %1140 = vmatpush2.bf16.msra.mxu0 0
    %1141 = vmatprep.subr.bf16.mxu0 0
    %1142 = vmatpush2.bf16.msra.mxu0 0
    %1143 = vmatprep.subr.bf16.mxu0 0
    %1144 = vmatpush2.bf16.msra.mxu0 0
    %1145 = vmatprep.mubr.bf16.mxu0 0
    %1146 = vmatmul.mubr.bf16.gmra.mxu0 %v1097
    %v1147 = vpop.f32.mrf.mxu0
    %v1148 = vadd.f32 0.0, %v1147
    %v1149 = vpop.f32.mrf.mxu0
    %v1150 = vpop.f32.mrf.mxu0
    %v1151 = vadd.f32 0.0, %v1150
    %v1152 = vpop.f32.mrf.mxu0
    %1153 = vmatprep.mubr.bf16.mxu0 0
    %1154 = vmatmul.mubr.bf16.gmra.mxu0 %v1098
    %v1155 = vpop.f32.mrf.mxu0
    %v1156 = vadd.f32 0.0, %v1155
    %v1157 = vpop.f32.mrf.mxu0
    %v1158 = vpop.f32.mrf.mxu0
    %v1159 = vadd.f32 0.0, %v1158
    %v1160 = vpop.f32.mrf.mxu0
    %1161 = vmatprep.mubr.bf16.mxu0 0
    %1162 = vmatmul.mubr.bf16.gmra.mxu0 %v1099
    %v1163 = vpop.f32.mrf.mxu0
    %v1164 = vadd.f32 0.0, %v1163
    %v1165 = vpop.f32.mrf.mxu0
    %v1166 = vpop.f32.mrf.mxu0
    %v1167 = vadd.f32 0.0, %v1166
    %v1168 = vpop.f32.mrf.mxu0
    %1169 = vmatprep.mubr.bf16.mxu0 0
    %1170 = vmatmul.mubr.bf16.gmra.mxu0 %v1100
    %v1171 = vpop.f32.mrf.mxu0
    %v1172 = vadd.f32 0.0, %v1171
    %v1173 = vpop.f32.mrf.mxu0
    %v1174 = vpop.f32.mrf.mxu0
    %v1175 = vadd.f32 0.0, %v1174
    %v1176 = vpop.f32.mrf.mxu0
    %1177 = vmatprep.mubr.bf16.mxu0 0
    %1178 = vmatmul.mubr.bf16.gmra.mxu0 %v1101
    %v1179 = vpop.f32.mrf.mxu0
    %v1180 = vadd.f32 0.0, %v1179
    %v1181 = vpop.f32.mrf.mxu0
    %v1182 = vpop.f32.mrf.mxu0
    %v1183 = vadd.f32 0.0, %v1182
    %v1184 = vpop.f32.mrf.mxu0
    %1185 = vmatprep.mubr.bf16.mxu0 0
    %1186 = vmatmul.mubr.bf16.gmra.mxu0 %v1102
    %v1187 = vpop.f32.mrf.mxu0
    %v1188 = vadd.f32 0.0, %v1187
    %v1189 = vpop.f32.mrf.mxu0
    %v1190 = vpop.f32.mrf.mxu0
    %v1191 = vadd.f32 0.0, %v1190
    %v1192 = vpop.f32.mrf.mxu0
    %1193 = vmatprep.mubr.bf16.mxu0 0
    %1194 = vmatmul.mubr.bf16.gmra.mxu0 %v1103
    %v1195 = vpop.f32.mrf.mxu0
    %v1196 = vadd.f32 0.0, %v1195
    %v1197 = vpop.f32.mrf.mxu0
    %v1198 = vpop.f32.mrf.mxu0
    %v1199 = vadd.f32 0.0, %v1198
    %v1200 = vpop.f32.mrf.mxu0
    %1201 = vmatprep.mubr.bf16.mxu0 0
    %1202 = vmatmul.mubr.bf16.gmra.mxu0 %v1104
    %v1203 = vpop.f32.mrf.mxu0
    %v1204 = vadd.f32 0.0, %v1203
    %v1205 = vpop.f32.mrf.mxu0
    %v1206 = vpop.f32.mrf.mxu0
    %v1207 = vadd.f32 0.0, %v1206
    %v1208 = vpop.f32.mrf.mxu0
    %1209 = vdwg.mxu0
    %v1210 = vpack.c.bf16 %v1151, %v1148
    %v1211 = vpack.c.bf16 %v1159, %v1156
    %v1212 = vpack.c.bf16 %v1167, %v1164
    %v1213 = vpack.c.bf16 %v1175, %v1172
    %v1214 = vpack.c.bf16 %v1183, %v1180
    %v1215 = vpack.c.bf16 %v1191, %v1188
    %v1216 = vpack.c.bf16 %v1199, %v1196
    %v1217 = vpack.c.bf16 %v1207, %v1204
    %s1218 = scalar_lea.vmem %s4, 128
    %v1219 = vld [vmem:[%s1218] sm:$0xf]
    %v1220 = vld [vmem:[%s1218 + $0x4] sm:$0xf]
    %v1221 = vld [vmem:[%s1218 + $0x8] sm:$0xf]
    %v1222 = vld [vmem:[%s1218 + $0xc] sm:$0xf]
    %v1223 = vld [vmem:[%s1218 + $0x10] sm:$0xf]
    %v1224 = vld [vmem:[%s1218 + $0x14] sm:$0xf]
    %v1225 = vld [vmem:[%s1218 + $0x18] sm:$0xf]
    %v1226 = vld [vmem:[%s1218 + $0x1c] sm:$0xf]
    %v1227 = vld [vmem:[%s1218 + $0x20] sm:$0xf]
    %v1228 = vld [vmem:[%s1218 + $0x24] sm:$0xf]
    %v1229 = vld [vmem:[%s1218 + $0x28] sm:$0xf]
    %v1230 = vld [vmem:[%s1218 + $0x2c] sm:$0xf]
    %v1231 = vld [vmem:[%s1218 + $0x30] sm:$0xf]
    %v1232 = vld [vmem:[%s1218 + $0x34] sm:$0xf]
    %v1233 = vld [vmem:[%s1218 + $0x38] sm:$0xf]
    %v1234 = vld [vmem:[%s1218 + $0x3c] sm:$0xf]
    %v1251 = vunpack.c.l.b16 %v1219
    %v1252 = vunpack.c.l.b16 %v1220
    %v1253 = vunpack.c.l.b16 %v1221
    %v1254 = vunpack.c.l.b16 %v1222
    %v1255 = vunpack.c.l.b16 %v1223
    %v1256 = vunpack.c.l.b16 %v1224
    %v1257 = vunpack.c.l.b16 %v1225
    %v1258 = vunpack.c.l.b16 %v1226
    %v1259 = vunpack.c.l.b16 %v1227
    %v1260 = vunpack.c.l.b16 %v1228
    %v1261 = vunpack.c.l.b16 %v1229
    %v1262 = vunpack.c.l.b16 %v1230
    %v1263 = vunpack.c.l.b16 %v1231
    %v1264 = vunpack.c.l.b16 %v1232
    %v1265 = vunpack.c.l.b16 %v1233
    %v1266 = vunpack.c.l.b16 %v1234
    %v1267 = vpack.c.b16 %v1252, %v1251
    %v1268 = vpack.c.b16 %v1254, %v1253
    %v1269 = vpack.c.b16 %v1256, %v1255
    %v1270 = vpack.c.b16 %v1258, %v1257
    %v1271 = vpack.c.b16 %v1260, %v1259
    %v1272 = vpack.c.b16 %v1262, %v1261
    %v1273 = vpack.c.b16 %v1264, %v1263
    %v1274 = vpack.c.b16 %v1266, %v1265
    %1283 = vmatprep.subr.bf16.mxu0 0
    %1284 = vmatpush1.bf16.msra.mxu0 %v1274
    %1285 = vmatprep.subr.bf16.mxu0 0
    %1286 = vmatpush1.bf16.msra.mxu0 %v1273
    %1287 = vmatprep.subr.bf16.mxu0 0
    %1288 = vmatpush1.bf16.msra.mxu0 %v1272
    %1289 = vmatprep.subr.bf16.mxu0 0
    %1290 = vmatpush1.bf16.msra.mxu0 %v1271
    %1291 = vmatprep.subr.bf16.mxu0 0
    %1292 = vmatpush1.bf16.msra.mxu0 %v1270
    %1293 = vmatprep.subr.bf16.mxu0 0
    %1294 = vmatpush1.bf16.msra.mxu0 %v1269
    %1295 = vmatprep.subr.bf16.mxu0 0
    %1296 = vmatpush1.bf16.msra.mxu0 %v1268
    %1297 = vmatprep.subr.bf16.mxu0 0
    %1298 = vmatpush1.bf16.msra.mxu0 %v1267
    %1299 = vmatprep.subr.bf16.mxu0 0
    %1300 = vmatpush2.bf16.msra.mxu0 0
    %1301 = vmatprep.subr.bf16.mxu0 0
    %1302 = vmatpush2.bf16.msra.mxu0 0
    %1303 = vmatprep.subr.bf16.mxu0 0
    %1304 = vmatpush2.bf16.msra.mxu0 0
    %1305 = vmatprep.subr.bf16.mxu0 0
    %1306 = vmatpush2.bf16.msra.mxu0 0
    %1307 = vmatprep.subr.bf16.mxu0 0
    %1308 = vmatpush2.bf16.msra.mxu0 0
    %1309 = vmatprep.subr.bf16.mxu0 0
    %1310 = vmatpush2.bf16.msra.mxu0 0
    %1311 = vmatprep.subr.bf16.mxu0 0
    %1312 = vmatpush2.bf16.msra.mxu0 0
    %1313 = vmatprep.subr.bf16.mxu0 0
    %1314 = vmatpush2.bf16.msra.mxu0 0
    %1315 = vmatprep.mubr.bf16.mxu0 0
    %1316 = vmatmul.mubr.bf16.gmra.mxu0 %v1210
    %v1317 = vpop.f32.mrf.mxu0
    %v1318 = vadd.f32 0.0, %v1317
    %v1319 = vpop.f32.mrf.mxu0
    %v1320 = vpop.f32.mrf.mxu0
    %v1321 = vadd.f32 0.0, %v1320
    %v1322 = vpop.f32.mrf.mxu0
    %1323 = vmatprep.mubr.bf16.mxu0 0
    %1324 = vmatmul.mubr.bf16.gmra.mxu0 %v1211
    %v1325 = vpop.f32.mrf.mxu0
    %v1326 = vadd.f32 0.0, %v1325
    %v1327 = vpop.f32.mrf.mxu0
    %v1328 = vpop.f32.mrf.mxu0
    %v1329 = vadd.f32 0.0, %v1328
    %v1330 = vpop.f32.mrf.mxu0
    %1331 = vmatprep.mubr.bf16.mxu0 0
    %1332 = vmatmul.mubr.bf16.gmra.mxu0 %v1212
    %v1333 = vpop.f32.mrf.mxu0
    %v1334 = vadd.f32 0.0, %v1333
    %v1335 = vpop.f32.mrf.mxu0
    %v1336 = vpop.f32.mrf.mxu0
    %v1337 = vadd.f32 0.0, %v1336
    %v1338 = vpop.f32.mrf.mxu0
    %1339 = vmatprep.mubr.bf16.mxu0 0
    %1340 = vmatmul.mubr.bf16.gmra.mxu0 %v1213
    %v1341 = vpop.f32.mrf.mxu0
    %v1342 = vadd.f32 0.0, %v1341
    %v1343 = vpop.f32.mrf.mxu0
    %v1344 = vpop.f32.mrf.mxu0
    %v1345 = vadd.f32 0.0, %v1344
    %v1346 = vpop.f32.mrf.mxu0
    %1347 = vmatprep.mubr.bf16.mxu0 0
    %1348 = vmatmul.mubr.bf16.gmra.mxu0 %v1214
    %v1349 = vpop.f32.mrf.mxu0
    %v1350 = vadd.f32 0.0, %v1349
    %v1351 = vpop.f32.mrf.mxu0
    %v1352 = vpop.f32.mrf.mxu0
    %v1353 = vadd.f32 0.0, %v1352
    %v1354 = vpop.f32.mrf.mxu0
    %1355 = vmatprep.mubr.bf16.mxu0 0
    %1356 = vmatmul.mubr.bf16.gmra.mxu0 %v1215
    %v1357 = vpop.f32.mrf.mxu0
    %v1358 = vadd.f32 0.0, %v1357
    %v1359 = vpop.f32.mrf.mxu0
    %v1360 = vpop.f32.mrf.mxu0
    %v1361 = vadd.f32 0.0, %v1360
    %v1362 = vpop.f32.mrf.mxu0
    %1363 = vmatprep.mubr.bf16.mxu0 0
    %1364 = vmatmul.mubr.bf16.gmra.mxu0 %v1216
    %v1365 = vpop.f32.mrf.mxu0
    %v1366 = vadd.f32 0.0, %v1365
    %v1367 = vpop.f32.mrf.mxu0
    %v1368 = vpop.f32.mrf.mxu0
    %v1369 = vadd.f32 0.0, %v1368
    %v1370 = vpop.f32.mrf.mxu0
    %1371 = vmatprep.mubr.bf16.mxu0 0
    %1372 = vmatmul.mubr.bf16.gmra.mxu0 %v1217
    %v1373 = vpop.f32.mrf.mxu0
    %v1374 = vadd.f32 0.0, %v1373
    %v1375 = vpop.f32.mrf.mxu0
    %v1376 = vpop.f32.mrf.mxu0
    %v1377 = vadd.f32 0.0, %v1376
    %v1378 = vpop.f32.mrf.mxu0
    %1379 = vdwg.mxu0
    %v1380 = vadd.f32 %v986, %v1318
    %v1381 = vadd.f32 %v989, %v1321
    %v1382 = vadd.f32 %v994, %v1326
    %v1383 = vadd.f32 %v997, %v1329
    %v1384 = vadd.f32 %v1002, %v1334
    %v1385 = vadd.f32 %v1005, %v1337
    %v1386 = vadd.f32 %v1010, %v1342
    %v1387 = vadd.f32 %v1013, %v1345
    %v1388 = vadd.f32 %v1018, %v1350
    %v1389 = vadd.f32 %v1021, %v1353
    %v1390 = vadd.f32 %v1026, %v1358
    %v1391 = vadd.f32 %v1029, %v1361
    %v1392 = vadd.f32 %v1034, %v1366
    %v1393 = vadd.f32 %v1037, %v1369
    %v1394 = vadd.f32 %v1042, %v1374
    %v1395 = vadd.f32 %v1045, %v1377
    %s1396 = scalar_lea.vmem %s3, 192
    %v1397 = vld [vmem:[%s1396] sm:$0xf]
    %v1398 = vld [vmem:[%s1396 + $0x4] sm:$0xf]
    %v1399 = vld [vmem:[%s1396 + $0x8] sm:$0xf]
    %v1400 = vld [vmem:[%s1396 + $0xc] sm:$0xf]
    %v1401 = vld [vmem:[%s1396 + $0x10] sm:$0xf]
    %v1402 = vld [vmem:[%s1396 + $0x14] sm:$0xf]
    %v1403 = vld [vmem:[%s1396 + $0x18] sm:$0xf]
    %v1404 = vld [vmem:[%s1396 + $0x1c] sm:$0xf]
    %v1405 = vld [vmem:[%s1396 + $0x20] sm:$0xf]
    %v1406 = vld [vmem:[%s1396 + $0x24] sm:$0xf]
    %v1407 = vld [vmem:[%s1396 + $0x28] sm:$0xf]
    %v1408 = vld [vmem:[%s1396 + $0x2c] sm:$0xf]
    %v1409 = vld [vmem:[%s1396 + $0x30] sm:$0xf]
    %v1410 = vld [vmem:[%s1396 + $0x34] sm:$0xf]
    %v1411 = vld [vmem:[%s1396 + $0x38] sm:$0xf]
    %v1412 = vld [vmem:[%s1396 + $0x3c] sm:$0xf]
    %v1429 = vunpack.c.l.b16 %v1397
    %v1430 = vunpack.c.l.b16 %v1398
    %v1431 = vunpack.c.l.b16 %v1399
    %v1432 = vunpack.c.l.b16 %v1400
    %v1433 = vunpack.c.l.b16 %v1401
    %v1434 = vunpack.c.l.b16 %v1402
    %v1435 = vunpack.c.l.b16 %v1403
    %v1436 = vunpack.c.l.b16 %v1404
    %v1437 = vunpack.c.l.b16 %v1405
    %v1438 = vunpack.c.l.b16 %v1406
    %v1439 = vunpack.c.l.b16 %v1407
    %v1440 = vunpack.c.l.b16 %v1408
    %v1441 = vunpack.c.l.b16 %v1409
    %v1442 = vunpack.c.l.b16 %v1410
    %v1443 = vunpack.c.l.b16 %v1411
    %v1444 = vunpack.c.l.b16 %v1412
    %v1445 = vpack.c.b16 %v1430, %v1429
    %v1446 = vpack.c.b16 %v1432, %v1431
    %v1447 = vpack.c.b16 %v1434, %v1433
    %v1448 = vpack.c.b16 %v1436, %v1435
    %v1449 = vpack.c.b16 %v1438, %v1437
    %v1450 = vpack.c.b16 %v1440, %v1439
    %v1451 = vpack.c.b16 %v1442, %v1441
    %v1452 = vpack.c.b16 %v1444, %v1443
    %1461 = vmatprep.subr.bf16.mxu0 0
    %1462 = vmatpush1.bf16.msra.mxu0 %v385
    %1463 = vmatprep.subr.bf16.mxu0 0
    %1464 = vmatpush1.bf16.msra.mxu0 %v384
    %1465 = vmatprep.subr.bf16.mxu0 0
    %1466 = vmatpush1.bf16.msra.mxu0 %v383
    %1467 = vmatprep.subr.bf16.mxu0 0
    %1468 = vmatpush1.bf16.msra.mxu0 %v382
    %1469 = vmatprep.subr.bf16.mxu0 0
    %1470 = vmatpush1.bf16.msra.mxu0 %v381
    %1471 = vmatprep.subr.bf16.mxu0 0
    %1472 = vmatpush1.bf16.msra.mxu0 %v380
    %1473 = vmatprep.subr.bf16.mxu0 0
    %1474 = vmatpush1.bf16.msra.mxu0 %v379
    %1475 = vmatprep.subr.bf16.mxu0 0
    %1476 = vmatpush1.bf16.msra.mxu0 %v378
    %1477 = vmatprep.subr.bf16.mxu0 0
    %1478 = vmatpush2.bf16.msra.mxu0 0
    %1479 = vmatprep.subr.bf16.mxu0 0
    %1480 = vmatpush2.bf16.msra.mxu0 0
    %1481 = vmatprep.subr.bf16.mxu0 0
    %1482 = vmatpush2.bf16.msra.mxu0 0
    %1483 = vmatprep.subr.bf16.mxu0 0
    %1484 = vmatpush2.bf16.msra.mxu0 0
    %1485 = vmatprep.subr.bf16.mxu0 0
    %1486 = vmatpush2.bf16.msra.mxu0 0
    %1487 = vmatprep.subr.bf16.mxu0 0
    %1488 = vmatpush2.bf16.msra.mxu0 0
    %1489 = vmatprep.subr.bf16.mxu0 0
    %1490 = vmatpush2.bf16.msra.mxu0 0
    %1491 = vmatprep.subr.bf16.mxu0 0
    %1492 = vmatpush2.bf16.msra.mxu0 0
    %1493 = vmatprep.mubr.bf16.mxu0 0
    %1494 = vmatmul.mubr.bf16.gmra.mxu0 %v1445
    %v1495 = vpop.f32.mrf.mxu0
    %v1496 = vadd.f32 0.0, %v1495
    %v1497 = vpop.f32.mrf.mxu0
    %v1498 = vpop.f32.mrf.mxu0
    %v1499 = vadd.f32 0.0, %v1498
    %v1500 = vpop.f32.mrf.mxu0
    %1501 = vmatprep.mubr.bf16.mxu0 0
    %1502 = vmatmul.mubr.bf16.gmra.mxu0 %v1446
    %v1503 = vpop.f32.mrf.mxu0
    %v1504 = vadd.f32 0.0, %v1503
    %v1505 = vpop.f32.mrf.mxu0
    %v1506 = vpop.f32.mrf.mxu0
    %v1507 = vadd.f32 0.0, %v1506
    %v1508 = vpop.f32.mrf.mxu0
    %1509 = vmatprep.mubr.bf16.mxu0 0
    %1510 = vmatmul.mubr.bf16.gmra.mxu0 %v1447
    %v1511 = vpop.f32.mrf.mxu0
    %v1512 = vadd.f32 0.0, %v1511
    %v1513 = vpop.f32.mrf.mxu0
    %v1514 = vpop.f32.mrf.mxu0
    %v1515 = vadd.f32 0.0, %v1514
    %v1516 = vpop.f32.mrf.mxu0
    %1517 = vmatprep.mubr.bf16.mxu0 0
    %1518 = vmatmul.mubr.bf16.gmra.mxu0 %v1448
    %v1519 = vpop.f32.mrf.mxu0
    %v1520 = vadd.f32 0.0, %v1519
    %v1521 = vpop.f32.mrf.mxu0
    %v1522 = vpop.f32.mrf.mxu0
    %v1523 = vadd.f32 0.0, %v1522
    %v1524 = vpop.f32.mrf.mxu0
    %1525 = vmatprep.mubr.bf16.mxu0 0
    %1526 = vmatmul.mubr.bf16.gmra.mxu0 %v1449
    %v1527 = vpop.f32.mrf.mxu0
    %v1528 = vadd.f32 0.0, %v1527
    %v1529 = vpop.f32.mrf.mxu0
    %v1530 = vpop.f32.mrf.mxu0
    %v1531 = vadd.f32 0.0, %v1530
    %v1532 = vpop.f32.mrf.mxu0
    %1533 = vmatprep.mubr.bf16.mxu0 0
    %1534 = vmatmul.mubr.bf16.gmra.mxu0 %v1450
    %v1535 = vpop.f32.mrf.mxu0
    %v1536 = vadd.f32 0.0, %v1535
    %v1537 = vpop.f32.mrf.mxu0
    %v1538 = vpop.f32.mrf.mxu0
    %v1539 = vadd.f32 0.0, %v1538
    %v1540 = vpop.f32.mrf.mxu0
    %1541 = vmatprep.mubr.bf16.mxu0 0
    %1542 = vmatmul.mubr.bf16.gmra.mxu0 %v1451
    %v1543 = vpop.f32.mrf.mxu0
    %v1544 = vadd.f32 0.0, %v1543
    %v1545 = vpop.f32.mrf.mxu0
    %v1546 = vpop.f32.mrf.mxu0
    %v1547 = vadd.f32 0.0, %v1546
    %v1548 = vpop.f32.mrf.mxu0
    %1549 = vmatprep.mubr.bf16.mxu0 0
    %1550 = vmatmul.mubr.bf16.gmra.mxu0 %v1452
    %v1551 = vpop.f32.mrf.mxu0
    %v1552 = vadd.f32 0.0, %v1551
    %v1553 = vpop.f32.mrf.mxu0
    %v1554 = vpop.f32.mrf.mxu0
    %v1555 = vadd.f32 0.0, %v1554
    %v1556 = vpop.f32.mrf.mxu0
    %1557 = vdwg.mxu0
    %v1558 = vpack.c.bf16 %v1499, %v1496
    %v1559 = vpack.c.bf16 %v1507, %v1504
    %v1560 = vpack.c.bf16 %v1515, %v1512
    %v1561 = vpack.c.bf16 %v1523, %v1520
    %v1562 = vpack.c.bf16 %v1531, %v1528
    %v1563 = vpack.c.bf16 %v1539, %v1536
    %v1564 = vpack.c.bf16 %v1547, %v1544
    %v1565 = vpack.c.bf16 %v1555, %v1552
    %s1566 = scalar_lea.vmem %s4, 192
    %v1567 = vld [vmem:[%s1566] sm:$0xf]
    %v1568 = vld [vmem:[%s1566 + $0x4] sm:$0xf]
    %v1569 = vld [vmem:[%s1566 + $0x8] sm:$0xf]
    %v1570 = vld [vmem:[%s1566 + $0xc] sm:$0xf]
    %v1571 = vld [vmem:[%s1566 + $0x10] sm:$0xf]
    %v1572 = vld [vmem:[%s1566 + $0x14] sm:$0xf]
    %v1573 = vld [vmem:[%s1566 + $0x18] sm:$0xf]
    %v1574 = vld [vmem:[%s1566 + $0x1c] sm:$0xf]
    %v1575 = vld [vmem:[%s1566 + $0x20] sm:$0xf]
    %v1576 = vld [vmem:[%s1566 + $0x24] sm:$0xf]
    %v1577 = vld [vmem:[%s1566 + $0x28] sm:$0xf]
    %v1578 = vld [vmem:[%s1566 + $0x2c] sm:$0xf]
    %v1579 = vld [vmem:[%s1566 + $0x30] sm:$0xf]
    %v1580 = vld [vmem:[%s1566 + $0x34] sm:$0xf]
    %v1581 = vld [vmem:[%s1566 + $0x38] sm:$0xf]
    %v1582 = vld [vmem:[%s1566 + $0x3c] sm:$0xf]
    %v1599 = vunpack.c.l.b16 %v1567
    %v1600 = vunpack.c.l.b16 %v1568
    %v1601 = vunpack.c.l.b16 %v1569
    %v1602 = vunpack.c.l.b16 %v1570
    %v1603 = vunpack.c.l.b16 %v1571
    %v1604 = vunpack.c.l.b16 %v1572
    %v1605 = vunpack.c.l.b16 %v1573
    %v1606 = vunpack.c.l.b16 %v1574
    %v1607 = vunpack.c.l.b16 %v1575
    %v1608 = vunpack.c.l.b16 %v1576
    %v1609 = vunpack.c.l.b16 %v1577
    %v1610 = vunpack.c.l.b16 %v1578
    %v1611 = vunpack.c.l.b16 %v1579
    %v1612 = vunpack.c.l.b16 %v1580
    %v1613 = vunpack.c.l.b16 %v1581
    %v1614 = vunpack.c.l.b16 %v1582
    %v1615 = vpack.c.b16 %v1600, %v1599
    %v1616 = vpack.c.b16 %v1602, %v1601
    %v1617 = vpack.c.b16 %v1604, %v1603
    %v1618 = vpack.c.b16 %v1606, %v1605
    %v1619 = vpack.c.b16 %v1608, %v1607
    %v1620 = vpack.c.b16 %v1610, %v1609
    %v1621 = vpack.c.b16 %v1612, %v1611
    %v1622 = vpack.c.b16 %v1614, %v1613
    %1631 = vmatprep.subr.bf16.mxu0 0
    %1632 = vmatpush1.bf16.msra.mxu0 %v1622
    %1633 = vmatprep.subr.bf16.mxu0 0
    %1634 = vmatpush1.bf16.msra.mxu0 %v1621
    %1635 = vmatprep.subr.bf16.mxu0 0
    %1636 = vmatpush1.bf16.msra.mxu0 %v1620
    %1637 = vmatprep.subr.bf16.mxu0 0
    %1638 = vmatpush1.bf16.msra.mxu0 %v1619
    %1639 = vmatprep.subr.bf16.mxu0 0
    %1640 = vmatpush1.bf16.msra.mxu0 %v1618
    %1641 = vmatprep.subr.bf16.mxu0 0
    %1642 = vmatpush1.bf16.msra.mxu0 %v1617
    %1643 = vmatprep.subr.bf16.mxu0 0
    %1644 = vmatpush1.bf16.msra.mxu0 %v1616
    %1645 = vmatprep.subr.bf16.mxu0 0
    %1646 = vmatpush1.bf16.msra.mxu0 %v1615
    %1647 = vmatprep.subr.bf16.mxu0 0
    %1648 = vmatpush2.bf16.msra.mxu0 0
    %1649 = vmatprep.subr.bf16.mxu0 0
    %1650 = vmatpush2.bf16.msra.mxu0 0
    %1651 = vmatprep.subr.bf16.mxu0 0
    %1652 = vmatpush2.bf16.msra.mxu0 0
    %1653 = vmatprep.subr.bf16.mxu0 0
    %1654 = vmatpush2.bf16.msra.mxu0 0
    %1655 = vmatprep.subr.bf16.mxu0 0
    %1656 = vmatpush2.bf16.msra.mxu0 0
    %1657 = vmatprep.subr.bf16.mxu0 0
    %1658 = vmatpush2.bf16.msra.mxu0 0
    %1659 = vmatprep.subr.bf16.mxu0 0
    %1660 = vmatpush2.bf16.msra.mxu0 0
    %1661 = vmatprep.subr.bf16.mxu0 0
    %1662 = vmatpush2.bf16.msra.mxu0 0
    %1663 = vmatprep.mubr.bf16.mxu0 0
    %1664 = vmatmul.mubr.bf16.gmra.mxu0 %v1558
    %v1665 = vpop.f32.mrf.mxu0
    %v1666 = vadd.f32 0.0, %v1665
    %v1667 = vpop.f32.mrf.mxu0
    %v1668 = vpop.f32.mrf.mxu0
    %v1669 = vadd.f32 0.0, %v1668
    %v1670 = vpop.f32.mrf.mxu0
    %1671 = vmatprep.mubr.bf16.mxu0 0
    %1672 = vmatmul.mubr.bf16.gmra.mxu0 %v1559
    %v1673 = vpop.f32.mrf.mxu0
    %v1674 = vadd.f32 0.0, %v1673
    %v1675 = vpop.f32.mrf.mxu0
    %v1676 = vpop.f32.mrf.mxu0
    %v1677 = vadd.f32 0.0, %v1676
    %v1678 = vpop.f32.mrf.mxu0
    %1679 = vmatprep.mubr.bf16.mxu0 0
    %1680 = vmatmul.mubr.bf16.gmra.mxu0 %v1560
    %v1681 = vpop.f32.mrf.mxu0
    %v1682 = vadd.f32 0.0, %v1681
    %v1683 = vpop.f32.mrf.mxu0
    %v1684 = vpop.f32.mrf.mxu0
    %v1685 = vadd.f32 0.0, %v1684
    %v1686 = vpop.f32.mrf.mxu0
    %1687 = vmatprep.mubr.bf16.mxu0 0
    %1688 = vmatmul.mubr.bf16.gmra.mxu0 %v1561
    %v1689 = vpop.f32.mrf.mxu0
    %v1690 = vadd.f32 0.0, %v1689
    %v1691 = vpop.f32.mrf.mxu0
    %v1692 = vpop.f32.mrf.mxu0
    %v1693 = vadd.f32 0.0, %v1692
    %v1694 = vpop.f32.mrf.mxu0
    %1695 = vmatprep.mubr.bf16.mxu0 0
    %1696 = vmatmul.mubr.bf16.gmra.mxu0 %v1562
    %v1697 = vpop.f32.mrf.mxu0
    %v1698 = vadd.f32 0.0, %v1697
    %v1699 = vpop.f32.mrf.mxu0
    %v1700 = vpop.f32.mrf.mxu0
    %v1701 = vadd.f32 0.0, %v1700
    %v1702 = vpop.f32.mrf.mxu0
    %1703 = vmatprep.mubr.bf16.mxu0 0
    %1704 = vmatmul.mubr.bf16.gmra.mxu0 %v1563
    %v1705 = vpop.f32.mrf.mxu0
    %v1706 = vadd.f32 0.0, %v1705
    %v1707 = vpop.f32.mrf.mxu0
    %v1708 = vpop.f32.mrf.mxu0
    %v1709 = vadd.f32 0.0, %v1708
    %v1710 = vpop.f32.mrf.mxu0
    %1711 = vmatprep.mubr.bf16.mxu0 0
    %1712 = vmatmul.mubr.bf16.gmra.mxu0 %v1564
    %v1713 = vpop.f32.mrf.mxu0
    %v1714 = vadd.f32 0.0, %v1713
    %v1715 = vpop.f32.mrf.mxu0
    %v1716 = vpop.f32.mrf.mxu0
    %v1717 = vadd.f32 0.0, %v1716
    %v1718 = vpop.f32.mrf.mxu0
    %1719 = vmatprep.mubr.bf16.mxu0 0
    %1720 = vmatmul.mubr.bf16.gmra.mxu0 %v1565
    %v1721 = vpop.f32.mrf.mxu0
    %v1722 = vadd.f32 0.0, %v1721
    %v1723 = vpop.f32.mrf.mxu0
    %v1724 = vpop.f32.mrf.mxu0
    %v1725 = vadd.f32 0.0, %v1724
    %v1726 = vpop.f32.mrf.mxu0
    %1727 = vdwg.mxu0
    %v1728 = vadd.f32 %v1380, %v1666
    %v1729 = vadd.f32 %v1381, %v1669
    %v1730 = vadd.f32 %v1382, %v1674
    %v1731 = vadd.f32 %v1383, %v1677
    %v1732 = vadd.f32 %v1384, %v1682
    %v1733 = vadd.f32 %v1385, %v1685
    %v1734 = vadd.f32 %v1386, %v1690
    %v1735 = vadd.f32 %v1387, %v1693
    %v1736 = vadd.f32 %v1388, %v1698
    %v1737 = vadd.f32 %v1389, %v1701
    %v1738 = vadd.f32 %v1390, %v1706
    %v1739 = vadd.f32 %v1391, %v1709
    %v1740 = vadd.f32 %v1392, %v1714
    %v1741 = vadd.f32 %v1393, %v1717
    %v1742 = vadd.f32 %v1394, %v1722
    %v1743 = vadd.f32 %v1395, %v1725
    %s1744 = scalar_lea.vmem %s3, 256
    %v1745 = vld [vmem:[%s1744] sm:$0xf]
    %v1746 = vld [vmem:[%s1744 + $0x4] sm:$0xf]
    %v1747 = vld [vmem:[%s1744 + $0x8] sm:$0xf]
    %v1748 = vld [vmem:[%s1744 + $0xc] sm:$0xf]
    %v1749 = vld [vmem:[%s1744 + $0x10] sm:$0xf]
    %v1750 = vld [vmem:[%s1744 + $0x14] sm:$0xf]
    %v1751 = vld [vmem:[%s1744 + $0x18] sm:$0xf]
    %v1752 = vld [vmem:[%s1744 + $0x1c] sm:$0xf]
    %v1753 = vld [vmem:[%s1744 + $0x20] sm:$0xf]
    %v1754 = vld [vmem:[%s1744 + $0x24] sm:$0xf]
    %v1755 = vld [vmem:[%s1744 + $0x28] sm:$0xf]
    %v1756 = vld [vmem:[%s1744 + $0x2c] sm:$0xf]
    %v1757 = vld [vmem:[%s1744 + $0x30] sm:$0xf]
    %v1758 = vld [vmem:[%s1744 + $0x34] sm:$0xf]
    %v1759 = vld [vmem:[%s1744 + $0x38] sm:$0xf]
    %v1760 = vld [vmem:[%s1744 + $0x3c] sm:$0xf]
    %v1777 = vunpack.c.l.b16 %v1745
    %v1778 = vunpack.c.l.b16 %v1746
    %v1779 = vunpack.c.l.b16 %v1747
    %v1780 = vunpack.c.l.b16 %v1748
    %v1781 = vunpack.c.l.b16 %v1749
    %v1782 = vunpack.c.l.b16 %v1750
    %v1783 = vunpack.c.l.b16 %v1751
    %v1784 = vunpack.c.l.b16 %v1752
    %v1785 = vunpack.c.l.b16 %v1753
    %v1786 = vunpack.c.l.b16 %v1754
    %v1787 = vunpack.c.l.b16 %v1755
    %v1788 = vunpack.c.l.b16 %v1756
    %v1789 = vunpack.c.l.b16 %v1757
    %v1790 = vunpack.c.l.b16 %v1758
    %v1791 = vunpack.c.l.b16 %v1759
    %v1792 = vunpack.c.l.b16 %v1760
    %v1793 = vpack.c.b16 %v1778, %v1777
    %v1794 = vpack.c.b16 %v1780, %v1779
    %v1795 = vpack.c.b16 %v1782, %v1781
    %v1796 = vpack.c.b16 %v1784, %v1783
    %v1797 = vpack.c.b16 %v1786, %v1785
    %v1798 = vpack.c.b16 %v1788, %v1787
    %v1799 = vpack.c.b16 %v1790, %v1789
    %v1800 = vpack.c.b16 %v1792, %v1791
    %1809 = vmatprep.subr.bf16.mxu0 0
    %1810 = vmatpush1.bf16.msra.mxu0 %v385
    %1811 = vmatprep.subr.bf16.mxu0 0
    %1812 = vmatpush1.bf16.msra.mxu0 %v384
    %1813 = vmatprep.subr.bf16.mxu0 0
    %1814 = vmatpush1.bf16.msra.mxu0 %v383
    %1815 = vmatprep.subr.bf16.mxu0 0
    %1816 = vmatpush1.bf16.msra.mxu0 %v382
    %1817 = vmatprep.subr.bf16.mxu0 0
    %1818 = vmatpush1.bf16.msra.mxu0 %v381
    %1819 = vmatprep.subr.bf16.mxu0 0
    %1820 = vmatpush1.bf16.msra.mxu0 %v380
    %1821 = vmatprep.subr.bf16.mxu0 0
    %1822 = vmatpush1.bf16.msra.mxu0 %v379
    %1823 = vmatprep.subr.bf16.mxu0 0
    %1824 = vmatpush1.bf16.msra.mxu0 %v378
    %1825 = vmatprep.subr.bf16.mxu0 0
    %1826 = vmatpush2.bf16.msra.mxu0 0
    %1827 = vmatprep.subr.bf16.mxu0 0
    %1828 = vmatpush2.bf16.msra.mxu0 0
    %1829 = vmatprep.subr.bf16.mxu0 0
    %1830 = vmatpush2.bf16.msra.mxu0 0
    %1831 = vmatprep.subr.bf16.mxu0 0
    %1832 = vmatpush2.bf16.msra.mxu0 0
    %1833 = vmatprep.subr.bf16.mxu0 0
    %1834 = vmatpush2.bf16.msra.mxu0 0
    %1835 = vmatprep.subr.bf16.mxu0 0
    %1836 = vmatpush2.bf16.msra.mxu0 0
    %1837 = vmatprep.subr.bf16.mxu0 0
    %1838 = vmatpush2.bf16.msra.mxu0 0
    %1839 = vmatprep.subr.bf16.mxu0 0
    %1840 = vmatpush2.bf16.msra.mxu0 0
    %1841 = vmatprep.mubr.bf16.mxu0 0
    %1842 = vmatmul.mubr.bf16.gmra.mxu0 %v1793
    %v1843 = vpop.f32.mrf.mxu0
    %v1844 = vadd.f32 0.0, %v1843
    %v1845 = vpop.f32.mrf.mxu0
    %v1846 = vpop.f32.mrf.mxu0
    %v1847 = vadd.f32 0.0, %v1846
    %v1848 = vpop.f32.mrf.mxu0
    %1849 = vmatprep.mubr.bf16.mxu0 0
    %1850 = vmatmul.mubr.bf16.gmra.mxu0 %v1794
    %v1851 = vpop.f32.mrf.mxu0
    %v1852 = vadd.f32 0.0, %v1851
    %v1853 = vpop.f32.mrf.mxu0
    %v1854 = vpop.f32.mrf.mxu0
    %v1855 = vadd.f32 0.0, %v1854
    %v1856 = vpop.f32.mrf.mxu0
    %1857 = vmatprep.mubr.bf16.mxu0 0
    %1858 = vmatmul.mubr.bf16.gmra.mxu0 %v1795
    %v1859 = vpop.f32.mrf.mxu0
    %v1860 = vadd.f32 0.0, %v1859
    %v1861 = vpop.f32.mrf.mxu0
    %v1862 = vpop.f32.mrf.mxu0
    %v1863 = vadd.f32 0.0, %v1862
    %v1864 = vpop.f32.mrf.mxu0
    %1865 = vmatprep.mubr.bf16.mxu0 0
    %1866 = vmatmul.mubr.bf16.gmra.mxu0 %v1796
    %v1867 = vpop.f32.mrf.mxu0
    %v1868 = vadd.f32 0.0, %v1867
    %v1869 = vpop.f32.mrf.mxu0
    %v1870 = vpop.f32.mrf.mxu0
    %v1871 = vadd.f32 0.0, %v1870
    %v1872 = vpop.f32.mrf.mxu0
    %1873 = vmatprep.mubr.bf16.mxu0 0
    %1874 = vmatmul.mubr.bf16.gmra.mxu0 %v1797
    %v1875 = vpop.f32.mrf.mxu0
    %v1876 = vadd.f32 0.0, %v1875
    %v1877 = vpop.f32.mrf.mxu0
    %v1878 = vpop.f32.mrf.mxu0
    %v1879 = vadd.f32 0.0, %v1878
    %v1880 = vpop.f32.mrf.mxu0
    %1881 = vmatprep.mubr.bf16.mxu0 0
    %1882 = vmatmul.mubr.bf16.gmra.mxu0 %v1798
    %v1883 = vpop.f32.mrf.mxu0
    %v1884 = vadd.f32 0.0, %v1883
    %v1885 = vpop.f32.mrf.mxu0
    %v1886 = vpop.f32.mrf.mxu0
    %v1887 = vadd.f32 0.0, %v1886
    %v1888 = vpop.f32.mrf.mxu0
    %1889 = vmatprep.mubr.bf16.mxu0 0
    %1890 = vmatmul.mubr.bf16.gmra.mxu0 %v1799
    %v1891 = vpop.f32.mrf.mxu0
    %v1892 = vadd.f32 0.0, %v1891
    %v1893 = vpop.f32.mrf.mxu0
    %v1894 = vpop.f32.mrf.mxu0
    %v1895 = vadd.f32 0.0, %v1894
    %v1896 = vpop.f32.mrf.mxu0
    %1897 = vmatprep.mubr.bf16.mxu0 0
    %1898 = vmatmul.mubr.bf16.gmra.mxu0 %v1800
    %v1899 = vpop.f32.mrf.mxu0
    %v1900 = vadd.f32 0.0, %v1899
    %v1901 = vpop.f32.mrf.mxu0
    %v1902 = vpop.f32.mrf.mxu0
    %v1903 = vadd.f32 0.0, %v1902
    %v1904 = vpop.f32.mrf.mxu0
    %1905 = vdwg.mxu0
    %v1906 = vpack.c.bf16 %v1847, %v1844
    %v1907 = vpack.c.bf16 %v1855, %v1852
    %v1908 = vpack.c.bf16 %v1863, %v1860
    %v1909 = vpack.c.bf16 %v1871, %v1868
    %v1910 = vpack.c.bf16 %v1879, %v1876
    %v1911 = vpack.c.bf16 %v1887, %v1884
    %v1912 = vpack.c.bf16 %v1895, %v1892
    %v1913 = vpack.c.bf16 %v1903, %v1900
    %s1914 = scalar_lea.vmem %s4, 256
    %v1915 = vld [vmem:[%s1914] sm:$0xf]
    %v1916 = vld [vmem:[%s1914 + $0x4] sm:$0xf]
    %v1917 = vld [vmem:[%s1914 + $0x8] sm:$0xf]
    %v1918 = vld [vmem:[%s1914 + $0xc] sm:$0xf]
    %v1919 = vld [vmem:[%s1914 + $0x10] sm:$0xf]
    %v1920 = vld [vmem:[%s1914 + $0x14] sm:$0xf]
    %v1921 = vld [vmem:[%s1914 + $0x18] sm:$0xf]
    %v1922 = vld [vmem:[%s1914 + $0x1c] sm:$0xf]
    %v1923 = vld [vmem:[%s1914 + $0x20] sm:$0xf]
    %v1924 = vld [vmem:[%s1914 + $0x24] sm:$0xf]
    %v1925 = vld [vmem:[%s1914 + $0x28] sm:$0xf]
    %v1926 = vld [vmem:[%s1914 + $0x2c] sm:$0xf]
    %v1927 = vld [vmem:[%s1914 + $0x30] sm:$0xf]
    %v1928 = vld [vmem:[%s1914 + $0x34] sm:$0xf]
    %v1929 = vld [vmem:[%s1914 + $0x38] sm:$0xf]
    %v1930 = vld [vmem:[%s1914 + $0x3c] sm:$0xf]
    %v1947 = vunpack.c.l.b16 %v1915
    %v1948 = vunpack.c.l.b16 %v1916
    %v1949 = vunpack.c.l.b16 %v1917
    %v1950 = vunpack.c.l.b16 %v1918
    %v1951 = vunpack.c.l.b16 %v1919
    %v1952 = vunpack.c.l.b16 %v1920
    %v1953 = vunpack.c.l.b16 %v1921
    %v1954 = vunpack.c.l.b16 %v1922
    %v1955 = vunpack.c.l.b16 %v1923
    %v1956 = vunpack.c.l.b16 %v1924
    %v1957 = vunpack.c.l.b16 %v1925
    %v1958 = vunpack.c.l.b16 %v1926
    %v1959 = vunpack.c.l.b16 %v1927
    %v1960 = vunpack.c.l.b16 %v1928
    %v1961 = vunpack.c.l.b16 %v1929
    %v1962 = vunpack.c.l.b16 %v1930
    %v1963 = vpack.c.b16 %v1948, %v1947
    %v1964 = vpack.c.b16 %v1950, %v1949
    %v1965 = vpack.c.b16 %v1952, %v1951
    %v1966 = vpack.c.b16 %v1954, %v1953
    %v1967 = vpack.c.b16 %v1956, %v1955
    %v1968 = vpack.c.b16 %v1958, %v1957
    %v1969 = vpack.c.b16 %v1960, %v1959
    %v1970 = vpack.c.b16 %v1962, %v1961
    %1979 = vmatprep.subr.bf16.mxu0 0
    %1980 = vmatpush1.bf16.msra.mxu0 %v1970
    %1981 = vmatprep.subr.bf16.mxu0 0
    %1982 = vmatpush1.bf16.msra.mxu0 %v1969
    %1983 = vmatprep.subr.bf16.mxu0 0
    %1984 = vmatpush1.bf16.msra.mxu0 %v1968
    %1985 = vmatprep.subr.bf16.mxu0 0
    %1986 = vmatpush1.bf16.msra.mxu0 %v1967
    %1987 = vmatprep.subr.bf16.mxu0 0
    %1988 = vmatpush1.bf16.msra.mxu0 %v1966
    %1989 = vmatprep.subr.bf16.mxu0 0
    %1990 = vmatpush1.bf16.msra.mxu0 %v1965
    %1991 = vmatprep.subr.bf16.mxu0 0
    %1992 = vmatpush1.bf16.msra.mxu0 %v1964
    %1993 = vmatprep.subr.bf16.mxu0 0
    %1994 = vmatpush1.bf16.msra.mxu0 %v1963
    %1995 = vmatprep.subr.bf16.mxu0 0
    %1996 = vmatpush2.bf16.msra.mxu0 0
    %1997 = vmatprep.subr.bf16.mxu0 0
    %1998 = vmatpush2.bf16.msra.mxu0 0
    %1999 = vmatprep.subr.bf16.mxu0 0
    %2000 = vmatpush2.bf16.msra.mxu0 0
    %2001 = vmatprep.subr.bf16.mxu0 0
    %2002 = vmatpush2.bf16.msra.mxu0 0
    %2003 = vmatprep.subr.bf16.mxu0 0
    %2004 = vmatpush2.bf16.msra.mxu0 0
    %2005 = vmatprep.subr.bf16.mxu0 0
    %2006 = vmatpush2.bf16.msra.mxu0 0
    %2007 = vmatprep.subr.bf16.mxu0 0
    %2008 = vmatpush2.bf16.msra.mxu0 0
    %2009 = vmatprep.subr.bf16.mxu0 0
    %2010 = vmatpush2.bf16.msra.mxu0 0
    %2011 = vmatprep.mubr.bf16.mxu0 0
    %2012 = vmatmul.mubr.bf16.gmra.mxu0 %v1906
    %v2013 = vpop.f32.mrf.mxu0
    %v2014 = vadd.f32 0.0, %v2013
    %v2015 = vpop.f32.mrf.mxu0
    %v2016 = vpop.f32.mrf.mxu0
    %v2017 = vadd.f32 0.0, %v2016
    %v2018 = vpop.f32.mrf.mxu0
    %2019 = vmatprep.mubr.bf16.mxu0 0
    %2020 = vmatmul.mubr.bf16.gmra.mxu0 %v1907
    %v2021 = vpop.f32.mrf.mxu0
    %v2022 = vadd.f32 0.0, %v2021
    %v2023 = vpop.f32.mrf.mxu0
    %v2024 = vpop.f32.mrf.mxu0
    %v2025 = vadd.f32 0.0, %v2024
    %v2026 = vpop.f32.mrf.mxu0
    %2027 = vmatprep.mubr.bf16.mxu0 0
    %2028 = vmatmul.mubr.bf16.gmra.mxu0 %v1908
    %v2029 = vpop.f32.mrf.mxu0
    %v2030 = vadd.f32 0.0, %v2029
    %v2031 = vpop.f32.mrf.mxu0
    %v2032 = vpop.f32.mrf.mxu0
    %v2033 = vadd.f32 0.0, %v2032
    %v2034 = vpop.f32.mrf.mxu0
    %2035 = vmatprep.mubr.bf16.mxu0 0
    %2036 = vmatmul.mubr.bf16.gmra.mxu0 %v1909
    %v2037 = vpop.f32.mrf.mxu0
    %v2038 = vadd.f32 0.0, %v2037
    %v2039 = vpop.f32.mrf.mxu0
    %v2040 = vpop.f32.mrf.mxu0
    %v2041 = vadd.f32 0.0, %v2040
    %v2042 = vpop.f32.mrf.mxu0
    %2043 = vmatprep.mubr.bf16.mxu0 0
    %2044 = vmatmul.mubr.bf16.gmra.mxu0 %v1910
    %v2045 = vpop.f32.mrf.mxu0
    %v2046 = vadd.f32 0.0, %v2045
    %v2047 = vpop.f32.mrf.mxu0
    %v2048 = vpop.f32.mrf.mxu0
    %v2049 = vadd.f32 0.0, %v2048
    %v2050 = vpop.f32.mrf.mxu0
    %2051 = vmatprep.mubr.bf16.mxu0 0
    %2052 = vmatmul.mubr.bf16.gmra.mxu0 %v1911
    %v2053 = vpop.f32.mrf.mxu0
    %v2054 = vadd.f32 0.0, %v2053
    %v2055 = vpop.f32.mrf.mxu0
    %v2056 = vpop.f32.mrf.mxu0
    %v2057 = vadd.f32 0.0, %v2056
    %v2058 = vpop.f32.mrf.mxu0
    %2059 = vmatprep.mubr.bf16.mxu0 0
    %2060 = vmatmul.mubr.bf16.gmra.mxu0 %v1912
    %v2061 = vpop.f32.mrf.mxu0
    %v2062 = vadd.f32 0.0, %v2061
    %v2063 = vpop.f32.mrf.mxu0
    %v2064 = vpop.f32.mrf.mxu0
    %v2065 = vadd.f32 0.0, %v2064
    %v2066 = vpop.f32.mrf.mxu0
    %2067 = vmatprep.mubr.bf16.mxu0 0
    %2068 = vmatmul.mubr.bf16.gmra.mxu0 %v1913
    %v2069 = vpop.f32.mrf.mxu0
    %v2070 = vadd.f32 0.0, %v2069
    %v2071 = vpop.f32.mrf.mxu0
    %v2072 = vpop.f32.mrf.mxu0
    %v2073 = vadd.f32 0.0, %v2072
    %v2074 = vpop.f32.mrf.mxu0
    %2075 = vdwg.mxu0
    %v2076 = vadd.f32 %v1728, %v2014
    %v2077 = vadd.f32 %v1729, %v2017
    %v2078 = vadd.f32 %v1730, %v2022
    %v2079 = vadd.f32 %v1731, %v2025
    %v2080 = vadd.f32 %v1732, %v2030
    %v2081 = vadd.f32 %v1733, %v2033
    %v2082 = vadd.f32 %v1734, %v2038
    %v2083 = vadd.f32 %v1735, %v2041
    %v2084 = vadd.f32 %v1736, %v2046
    %v2085 = vadd.f32 %v1737, %v2049
    %v2086 = vadd.f32 %v1738, %v2054
    %v2087 = vadd.f32 %v1739, %v2057
    %v2088 = vadd.f32 %v1740, %v2062
    %v2089 = vadd.f32 %v1741, %v2065
    %v2090 = vadd.f32 %v1742, %v2070
    %v2091 = vadd.f32 %v1743, %v2073
    %s2092 = scalar_lea.vmem %s3, 320
    %v2093 = vld [vmem:[%s2092] sm:$0xf]
    %v2094 = vld [vmem:[%s2092 + $0x4] sm:$0xf]
    %v2095 = vld [vmem:[%s2092 + $0x8] sm:$0xf]
    %v2096 = vld [vmem:[%s2092 + $0xc] sm:$0xf]
    %v2097 = vld [vmem:[%s2092 + $0x10] sm:$0xf]
    %v2098 = vld [vmem:[%s2092 + $0x14] sm:$0xf]
    %v2099 = vld [vmem:[%s2092 + $0x18] sm:$0xf]
    %v2100 = vld [vmem:[%s2092 + $0x1c] sm:$0xf]
    %v2101 = vld [vmem:[%s2092 + $0x20] sm:$0xf]
    %v2102 = vld [vmem:[%s2092 + $0x24] sm:$0xf]
    %v2103 = vld [vmem:[%s2092 + $0x28] sm:$0xf]
    %v2104 = vld [vmem:[%s2092 + $0x2c] sm:$0xf]
    %v2105 = vld [vmem:[%s2092 + $0x30] sm:$0xf]
    %v2106 = vld [vmem:[%s2092 + $0x34] sm:$0xf]
    %v2107 = vld [vmem:[%s2092 + $0x38] sm:$0xf]
    %v2108 = vld [vmem:[%s2092 + $0x3c] sm:$0xf]
    %v2125 = vunpack.c.l.b16 %v2093
    %v2126 = vunpack.c.l.b16 %v2094
    %v2127 = vunpack.c.l.b16 %v2095
    %v2128 = vunpack.c.l.b16 %v2096
    %v2129 = vunpack.c.l.b16 %v2097
    %v2130 = vunpack.c.l.b16 %v2098
    %v2131 = vunpack.c.l.b16 %v2099
    %v2132 = vunpack.c.l.b16 %v2100
    %v2133 = vunpack.c.l.b16 %v2101
    %v2134 = vunpack.c.l.b16 %v2102
    %v2135 = vunpack.c.l.b16 %v2103
    %v2136 = vunpack.c.l.b16 %v2104
    %v2137 = vunpack.c.l.b16 %v2105
    %v2138 = vunpack.c.l.b16 %v2106
    %v2139 = vunpack.c.l.b16 %v2107
    %v2140 = vunpack.c.l.b16 %v2108
    %v2141 = vpack.c.b16 %v2126, %v2125
    %v2142 = vpack.c.b16 %v2128, %v2127
    %v2143 = vpack.c.b16 %v2130, %v2129
    %v2144 = vpack.c.b16 %v2132, %v2131
    %v2145 = vpack.c.b16 %v2134, %v2133
    %v2146 = vpack.c.b16 %v2136, %v2135
    %v2147 = vpack.c.b16 %v2138, %v2137
    %v2148 = vpack.c.b16 %v2140, %v2139
    %2157 = vmatprep.subr.bf16.mxu0 0
    %2158 = vmatpush1.bf16.msra.mxu0 %v385
    %2159 = vmatprep.subr.bf16.mxu0 0
    %2160 = vmatpush1.bf16.msra.mxu0 %v384
    %2161 = vmatprep.subr.bf16.mxu0 0
    %2162 = vmatpush1.bf16.msra.mxu0 %v383
    %2163 = vmatprep.subr.bf16.mxu0 0
    %2164 = vmatpush1.bf16.msra.mxu0 %v382
    %2165 = vmatprep.subr.bf16.mxu0 0
    %2166 = vmatpush1.bf16.msra.mxu0 %v381
    %2167 = vmatprep.subr.bf16.mxu0 0
    %2168 = vmatpush1.bf16.msra.mxu0 %v380
    %2169 = vmatprep.subr.bf16.mxu0 0
    %2170 = vmatpush1.bf16.msra.mxu0 %v379
    %2171 = vmatprep.subr.bf16.mxu0 0
    %2172 = vmatpush1.bf16.msra.mxu0 %v378
    %2173 = vmatprep.subr.bf16.mxu0 0
    %2174 = vmatpush2.bf16.msra.mxu0 0
    %2175 = vmatprep.subr.bf16.mxu0 0
    %2176 = vmatpush2.bf16.msra.mxu0 0
    %2177 = vmatprep.subr.bf16.mxu0 0
    %2178 = vmatpush2.bf16.msra.mxu0 0
    %2179 = vmatprep.subr.bf16.mxu0 0
    %2180 = vmatpush2.bf16.msra.mxu0 0
    %2181 = vmatprep.subr.bf16.mxu0 0
    %2182 = vmatpush2.bf16.msra.mxu0 0
    %2183 = vmatprep.subr.bf16.mxu0 0
    %2184 = vmatpush2.bf16.msra.mxu0 0
    %2185 = vmatprep.subr.bf16.mxu0 0
    %2186 = vmatpush2.bf16.msra.mxu0 0
    %2187 = vmatprep.subr.bf16.mxu0 0
    %2188 = vmatpush2.bf16.msra.mxu0 0
    %2189 = vmatprep.mubr.bf16.mxu0 0
    %2190 = vmatmul.mubr.bf16.gmra.mxu0 %v2141
    %v2191 = vpop.f32.mrf.mxu0
    %v2192 = vadd.f32 0.0, %v2191
    %v2193 = vpop.f32.mrf.mxu0
    %v2194 = vpop.f32.mrf.mxu0
    %v2195 = vadd.f32 0.0, %v2194
    %v2196 = vpop.f32.mrf.mxu0
    %2197 = vmatprep.mubr.bf16.mxu0 0
    %2198 = vmatmul.mubr.bf16.gmra.mxu0 %v2142
    %v2199 = vpop.f32.mrf.mxu0
    %v2200 = vadd.f32 0.0, %v2199
    %v2201 = vpop.f32.mrf.mxu0
    %v2202 = vpop.f32.mrf.mxu0
    %v2203 = vadd.f32 0.0, %v2202
    %v2204 = vpop.f32.mrf.mxu0
    %2205 = vmatprep.mubr.bf16.mxu0 0
    %2206 = vmatmul.mubr.bf16.gmra.mxu0 %v2143
    %v2207 = vpop.f32.mrf.mxu0
    %v2208 = vadd.f32 0.0, %v2207
    %v2209 = vpop.f32.mrf.mxu0
    %v2210 = vpop.f32.mrf.mxu0
    %v2211 = vadd.f32 0.0, %v2210
    %v2212 = vpop.f32.mrf.mxu0
    %2213 = vmatprep.mubr.bf16.mxu0 0
    %2214 = vmatmul.mubr.bf16.gmra.mxu0 %v2144
    %v2215 = vpop.f32.mrf.mxu0
    %v2216 = vadd.f32 0.0, %v2215
    %v2217 = vpop.f32.mrf.mxu0
    %v2218 = vpop.f32.mrf.mxu0
    %v2219 = vadd.f32 0.0, %v2218
    %v2220 = vpop.f32.mrf.mxu0
    %2221 = vmatprep.mubr.bf16.mxu0 0
    %2222 = vmatmul.mubr.bf16.gmra.mxu0 %v2145
    %v2223 = vpop.f32.mrf.mxu0
    %v2224 = vadd.f32 0.0, %v2223
    %v2225 = vpop.f32.mrf.mxu0
    %v2226 = vpop.f32.mrf.mxu0
    %v2227 = vadd.f32 0.0, %v2226
    %v2228 = vpop.f32.mrf.mxu0
    %2229 = vmatprep.mubr.bf16.mxu0 0
    %2230 = vmatmul.mubr.bf16.gmra.mxu0 %v2146
    %v2231 = vpop.f32.mrf.mxu0
    %v2232 = vadd.f32 0.0, %v2231
    %v2233 = vpop.f32.mrf.mxu0
    %v2234 = vpop.f32.mrf.mxu0
    %v2235 = vadd.f32 0.0, %v2234
    %v2236 = vpop.f32.mrf.mxu0
    %2237 = vmatprep.mubr.bf16.mxu0 0
    %2238 = vmatmul.mubr.bf16.gmra.mxu0 %v2147
    %v2239 = vpop.f32.mrf.mxu0
    %v2240 = vadd.f32 0.0, %v2239
    %v2241 = vpop.f32.mrf.mxu0
    %v2242 = vpop.f32.mrf.mxu0
    %v2243 = vadd.f32 0.0, %v2242
    %v2244 = vpop.f32.mrf.mxu0
    %2245 = vmatprep.mubr.bf16.mxu0 0
    %2246 = vmatmul.mubr.bf16.gmra.mxu0 %v2148
    %v2247 = vpop.f32.mrf.mxu0
    %v2248 = vadd.f32 0.0, %v2247
    %v2249 = vpop.f32.mrf.mxu0
    %v2250 = vpop.f32.mrf.mxu0
    %v2251 = vadd.f32 0.0, %v2250
    %v2252 = vpop.f32.mrf.mxu0
    %2253 = vdwg.mxu0
    %v2254 = vpack.c.bf16 %v2195, %v2192
    %v2255 = vpack.c.bf16 %v2203, %v2200
    %v2256 = vpack.c.bf16 %v2211, %v2208
    %v2257 = vpack.c.bf16 %v2219, %v2216
    %v2258 = vpack.c.bf16 %v2227, %v2224
    %v2259 = vpack.c.bf16 %v2235, %v2232
    %v2260 = vpack.c.bf16 %v2243, %v2240
    %v2261 = vpack.c.bf16 %v2251, %v2248
    %s2262 = scalar_lea.vmem %s4, 320
    %v2263 = vld [vmem:[%s2262] sm:$0xf]
    %v2264 = vld [vmem:[%s2262 + $0x4] sm:$0xf]
    %v2265 = vld [vmem:[%s2262 + $0x8] sm:$0xf]
    %v2266 = vld [vmem:[%s2262 + $0xc] sm:$0xf]
    %v2267 = vld [vmem:[%s2262 + $0x10] sm:$0xf]
    %v2268 = vld [vmem:[%s2262 + $0x14] sm:$0xf]
    %v2269 = vld [vmem:[%s2262 + $0x18] sm:$0xf]
    %v2270 = vld [vmem:[%s2262 + $0x1c] sm:$0xf]
    %v2271 = vld [vmem:[%s2262 + $0x20] sm:$0xf]
    %v2272 = vld [vmem:[%s2262 + $0x24] sm:$0xf]
    %v2273 = vld [vmem:[%s2262 + $0x28] sm:$0xf]
    %v2274 = vld [vmem:[%s2262 + $0x2c] sm:$0xf]
    %v2275 = vld [vmem:[%s2262 + $0x30] sm:$0xf]
    %v2276 = vld [vmem:[%s2262 + $0x34] sm:$0xf]
    %v2277 = vld [vmem:[%s2262 + $0x38] sm:$0xf]
    %v2278 = vld [vmem:[%s2262 + $0x3c] sm:$0xf]
    %v2295 = vunpack.c.l.b16 %v2263
    %v2296 = vunpack.c.l.b16 %v2264
    %v2297 = vunpack.c.l.b16 %v2265
    %v2298 = vunpack.c.l.b16 %v2266
    %v2299 = vunpack.c.l.b16 %v2267
    %v2300 = vunpack.c.l.b16 %v2268
    %v2301 = vunpack.c.l.b16 %v2269
    %v2302 = vunpack.c.l.b16 %v2270
    %v2303 = vunpack.c.l.b16 %v2271
    %v2304 = vunpack.c.l.b16 %v2272
    %v2305 = vunpack.c.l.b16 %v2273
    %v2306 = vunpack.c.l.b16 %v2274
    %v2307 = vunpack.c.l.b16 %v2275
    %v2308 = vunpack.c.l.b16 %v2276
    %v2309 = vunpack.c.l.b16 %v2277
    %v2310 = vunpack.c.l.b16 %v2278
    %v2311 = vpack.c.b16 %v2296, %v2295
    %v2312 = vpack.c.b16 %v2298, %v2297
    %v2313 = vpack.c.b16 %v2300, %v2299
    %v2314 = vpack.c.b16 %v2302, %v2301
    %v2315 = vpack.c.b16 %v2304, %v2303
    %v2316 = vpack.c.b16 %v2306, %v2305
    %v2317 = vpack.c.b16 %v2308, %v2307
    %v2318 = vpack.c.b16 %v2310, %v2309
    %2327 = vmatprep.subr.bf16.mxu0 0
    %2328 = vmatpush1.bf16.msra.mxu0 %v2318
    %2329 = vmatprep.subr.bf16.mxu0 0
    %2330 = vmatpush1.bf16.msra.mxu0 %v2317
    %2331 = vmatprep.subr.bf16.mxu0 0
    %2332 = vmatpush1.bf16.msra.mxu0 %v2316
    %2333 = vmatprep.subr.bf16.mxu0 0
    %2334 = vmatpush1.bf16.msra.mxu0 %v2315
    %2335 = vmatprep.subr.bf16.mxu0 0
    %2336 = vmatpush1.bf16.msra.mxu0 %v2314
    %2337 = vmatprep.subr.bf16.mxu0 0
    %2338 = vmatpush1.bf16.msra.mxu0 %v2313
    %2339 = vmatprep.subr.bf16.mxu0 0
    %2340 = vmatpush1.bf16.msra.mxu0 %v2312
    %2341 = vmatprep.subr.bf16.mxu0 0
    %2342 = vmatpush1.bf16.msra.mxu0 %v2311
    %2343 = vmatprep.subr.bf16.mxu0 0
    %2344 = vmatpush2.bf16.msra.mxu0 0
    %2345 = vmatprep.subr.bf16.mxu0 0
    %2346 = vmatpush2.bf16.msra.mxu0 0
    %2347 = vmatprep.subr.bf16.mxu0 0
    %2348 = vmatpush2.bf16.msra.mxu0 0
    %2349 = vmatprep.subr.bf16.mxu0 0
    %2350 = vmatpush2.bf16.msra.mxu0 0
    %2351 = vmatprep.subr.bf16.mxu0 0
    %2352 = vmatpush2.bf16.msra.mxu0 0
    %2353 = vmatprep.subr.bf16.mxu0 0
    %2354 = vmatpush2.bf16.msra.mxu0 0
    %2355 = vmatprep.subr.bf16.mxu0 0
    %2356 = vmatpush2.bf16.msra.mxu0 0
    %2357 = vmatprep.subr.bf16.mxu0 0
    %2358 = vmatpush2.bf16.msra.mxu0 0
    %2359 = vmatprep.mubr.bf16.mxu0 0
    %2360 = vmatmul.mubr.bf16.gmra.mxu0 %v2254
    %v2361 = vpop.f32.mrf.mxu0
    %v2362 = vadd.f32 0.0, %v2361
    %v2363 = vpop.f32.mrf.mxu0
    %v2364 = vpop.f32.mrf.mxu0
    %v2365 = vadd.f32 0.0, %v2364
    %v2366 = vpop.f32.mrf.mxu0
    %2367 = vmatprep.mubr.bf16.mxu0 0
    %2368 = vmatmul.mubr.bf16.gmra.mxu0 %v2255
    %v2369 = vpop.f32.mrf.mxu0
    %v2370 = vadd.f32 0.0, %v2369
    %v2371 = vpop.f32.mrf.mxu0
    %v2372 = vpop.f32.mrf.mxu0
    %v2373 = vadd.f32 0.0, %v2372
    %v2374 = vpop.f32.mrf.mxu0
    %2375 = vmatprep.mubr.bf16.mxu0 0
    %2376 = vmatmul.mubr.bf16.gmra.mxu0 %v2256
    %v2377 = vpop.f32.mrf.mxu0
    %v2378 = vadd.f32 0.0, %v2377
    %v2379 = vpop.f32.mrf.mxu0
    %v2380 = vpop.f32.mrf.mxu0
    %v2381 = vadd.f32 0.0, %v2380
    %v2382 = vpop.f32.mrf.mxu0
    %2383 = vmatprep.mubr.bf16.mxu0 0
    %2384 = vmatmul.mubr.bf16.gmra.mxu0 %v2257
    %v2385 = vpop.f32.mrf.mxu0
    %v2386 = vadd.f32 0.0, %v2385
    %v2387 = vpop.f32.mrf.mxu0
    %v2388 = vpop.f32.mrf.mxu0
    %v2389 = vadd.f32 0.0, %v2388
    %v2390 = vpop.f32.mrf.mxu0
    %2391 = vmatprep.mubr.bf16.mxu0 0
    %2392 = vmatmul.mubr.bf16.gmra.mxu0 %v2258
    %v2393 = vpop.f32.mrf.mxu0
    %v2394 = vadd.f32 0.0, %v2393
    %v2395 = vpop.f32.mrf.mxu0
    %v2396 = vpop.f32.mrf.mxu0
    %v2397 = vadd.f32 0.0, %v2396
    %v2398 = vpop.f32.mrf.mxu0
    %2399 = vmatprep.mubr.bf16.mxu0 0
    %2400 = vmatmul.mubr.bf16.gmra.mxu0 %v2259
    %v2401 = vpop.f32.mrf.mxu0
    %v2402 = vadd.f32 0.0, %v2401
    %v2403 = vpop.f32.mrf.mxu0
    %v2404 = vpop.f32.mrf.mxu0
    %v2405 = vadd.f32 0.0, %v2404
    %v2406 = vpop.f32.mrf.mxu0
    %2407 = vmatprep.mubr.bf16.mxu0 0
    %2408 = vmatmul.mubr.bf16.gmra.mxu0 %v2260
    %v2409 = vpop.f32.mrf.mxu0
    %v2410 = vadd.f32 0.0, %v2409
    %v2411 = vpop.f32.mrf.mxu0
    %v2412 = vpop.f32.mrf.mxu0
    %v2413 = vadd.f32 0.0, %v2412
    %v2414 = vpop.f32.mrf.mxu0
    %2415 = vmatprep.mubr.bf16.mxu0 0
    %2416 = vmatmul.mubr.bf16.gmra.mxu0 %v2261
    %v2417 = vpop.f32.mrf.mxu0
    %v2418 = vadd.f32 0.0, %v2417
    %v2419 = vpop.f32.mrf.mxu0
    %v2420 = vpop.f32.mrf.mxu0
    %v2421 = vadd.f32 0.0, %v2420
    %v2422 = vpop.f32.mrf.mxu0
    %2423 = vdwg.mxu0
    %v2424 = vadd.f32 %v2076, %v2362
    %v2425 = vadd.f32 %v2077, %v2365
    %v2426 = vadd.f32 %v2078, %v2370
    %v2427 = vadd.f32 %v2079, %v2373
    %v2428 = vadd.f32 %v2080, %v2378
    %v2429 = vadd.f32 %v2081, %v2381
    %v2430 = vadd.f32 %v2082, %v2386
    %v2431 = vadd.f32 %v2083, %v2389
    %v2432 = vadd.f32 %v2084, %v2394
    %v2433 = vadd.f32 %v2085, %v2397
    %v2434 = vadd.f32 %v2086, %v2402
    %v2435 = vadd.f32 %v2087, %v2405
    %v2436 = vadd.f32 %v2088, %v2410
    %v2437 = vadd.f32 %v2089, %v2413
    %v2438 = vadd.f32 %v2090, %v2418
    %v2439 = vadd.f32 %v2091, %v2421
    %s2440 = scalar_lea.vmem %s3, 384
    %v2441 = vld [vmem:[%s2440] sm:$0xf]
    %v2442 = vld [vmem:[%s2440 + $0x4] sm:$0xf]
    %v2443 = vld [vmem:[%s2440 + $0x8] sm:$0xf]
    %v2444 = vld [vmem:[%s2440 + $0xc] sm:$0xf]
    %v2445 = vld [vmem:[%s2440 + $0x10] sm:$0xf]
    %v2446 = vld [vmem:[%s2440 + $0x14] sm:$0xf]
    %v2447 = vld [vmem:[%s2440 + $0x18] sm:$0xf]
    %v2448 = vld [vmem:[%s2440 + $0x1c] sm:$0xf]
    %v2449 = vld [vmem:[%s2440 + $0x20] sm:$0xf]
    %v2450 = vld [vmem:[%s2440 + $0x24] sm:$0xf]
    %v2451 = vld [vmem:[%s2440 + $0x28] sm:$0xf]
    %v2452 = vld [vmem:[%s2440 + $0x2c] sm:$0xf]
    %v2453 = vld [vmem:[%s2440 + $0x30] sm:$0xf]
    %v2454 = vld [vmem:[%s2440 + $0x34] sm:$0xf]
    %v2455 = vld [vmem:[%s2440 + $0x38] sm:$0xf]
    %v2456 = vld [vmem:[%s2440 + $0x3c] sm:$0xf]
    %v2473 = vunpack.c.l.b16 %v2441
    %v2474 = vunpack.c.l.b16 %v2442
    %v2475 = vunpack.c.l.b16 %v2443
    %v2476 = vunpack.c.l.b16 %v2444
    %v2477 = vunpack.c.l.b16 %v2445
    %v2478 = vunpack.c.l.b16 %v2446
    %v2479 = vunpack.c.l.b16 %v2447
    %v2480 = vunpack.c.l.b16 %v2448
    %v2481 = vunpack.c.l.b16 %v2449
    %v2482 = vunpack.c.l.b16 %v2450
    %v2483 = vunpack.c.l.b16 %v2451
    %v2484 = vunpack.c.l.b16 %v2452
    %v2485 = vunpack.c.l.b16 %v2453
    %v2486 = vunpack.c.l.b16 %v2454
    %v2487 = vunpack.c.l.b16 %v2455
    %v2488 = vunpack.c.l.b16 %v2456
    %v2489 = vpack.c.b16 %v2474, %v2473
    %v2490 = vpack.c.b16 %v2476, %v2475
    %v2491 = vpack.c.b16 %v2478, %v2477
    %v2492 = vpack.c.b16 %v2480, %v2479
    %v2493 = vpack.c.b16 %v2482, %v2481
    %v2494 = vpack.c.b16 %v2484, %v2483
    %v2495 = vpack.c.b16 %v2486, %v2485
    %v2496 = vpack.c.b16 %v2488, %v2487
    %2505 = vmatprep.subr.bf16.mxu0 0
    %2506 = vmatpush1.bf16.msra.mxu0 %v385
    %2507 = vmatprep.subr.bf16.mxu0 0
    %2508 = vmatpush1.bf16.msra.mxu0 %v384
    %2509 = vmatprep.subr.bf16.mxu0 0
    %2510 = vmatpush1.bf16.msra.mxu0 %v383
    %2511 = vmatprep.subr.bf16.mxu0 0
    %2512 = vmatpush1.bf16.msra.mxu0 %v382
    %2513 = vmatprep.subr.bf16.mxu0 0
    %2514 = vmatpush1.bf16.msra.mxu0 %v381
    %2515 = vmatprep.subr.bf16.mxu0 0
    %2516 = vmatpush1.bf16.msra.mxu0 %v380
    %2517 = vmatprep.subr.bf16.mxu0 0
    %2518 = vmatpush1.bf16.msra.mxu0 %v379
    %2519 = vmatprep.subr.bf16.mxu0 0
    %2520 = vmatpush1.bf16.msra.mxu0 %v378
    %2521 = vmatprep.subr.bf16.mxu0 0
    %2522 = vmatpush2.bf16.msra.mxu0 0
    %2523 = vmatprep.subr.bf16.mxu0 0
    %2524 = vmatpush2.bf16.msra.mxu0 0
    %2525 = vmatprep.subr.bf16.mxu0 0
    %2526 = vmatpush2.bf16.msra.mxu0 0
    %2527 = vmatprep.subr.bf16.mxu0 0
    %2528 = vmatpush2.bf16.msra.mxu0 0
    %2529 = vmatprep.subr.bf16.mxu0 0
    %2530 = vmatpush2.bf16.msra.mxu0 0
    %2531 = vmatprep.subr.bf16.mxu0 0
    %2532 = vmatpush2.bf16.msra.mxu0 0
    %2533 = vmatprep.subr.bf16.mxu0 0
    %2534 = vmatpush2.bf16.msra.mxu0 0
    %2535 = vmatprep.subr.bf16.mxu0 0
    %2536 = vmatpush2.bf16.msra.mxu0 0
    %2537 = vmatprep.mubr.bf16.mxu0 0
    %2538 = vmatmul.mubr.bf16.gmra.mxu0 %v2489
    %v2539 = vpop.f32.mrf.mxu0
    %v2540 = vadd.f32 0.0, %v2539
    %v2541 = vpop.f32.mrf.mxu0
    %v2542 = vpop.f32.mrf.mxu0
    %v2543 = vadd.f32 0.0, %v2542
    %v2544 = vpop.f32.mrf.mxu0
    %2545 = vmatprep.mubr.bf16.mxu0 0
    %2546 = vmatmul.mubr.bf16.gmra.mxu0 %v2490
    %v2547 = vpop.f32.mrf.mxu0
    %v2548 = vadd.f32 0.0, %v2547
    %v2549 = vpop.f32.mrf.mxu0
    %v2550 = vpop.f32.mrf.mxu0
    %v2551 = vadd.f32 0.0, %v2550
    %v2552 = vpop.f32.mrf.mxu0
    %2553 = vmatprep.mubr.bf16.mxu0 0
    %2554 = vmatmul.mubr.bf16.gmra.mxu0 %v2491
    %v2555 = vpop.f32.mrf.mxu0
    %v2556 = vadd.f32 0.0, %v2555
    %v2557 = vpop.f32.mrf.mxu0
    %v2558 = vpop.f32.mrf.mxu0
    %v2559 = vadd.f32 0.0, %v2558
    %v2560 = vpop.f32.mrf.mxu0
    %2561 = vmatprep.mubr.bf16.mxu0 0
    %2562 = vmatmul.mubr.bf16.gmra.mxu0 %v2492
    %v2563 = vpop.f32.mrf.mxu0
    %v2564 = vadd.f32 0.0, %v2563
    %v2565 = vpop.f32.mrf.mxu0
    %v2566 = vpop.f32.mrf.mxu0
    %v2567 = vadd.f32 0.0, %v2566
    %v2568 = vpop.f32.mrf.mxu0
    %2569 = vmatprep.mubr.bf16.mxu0 0
    %2570 = vmatmul.mubr.bf16.gmra.mxu0 %v2493
    %v2571 = vpop.f32.mrf.mxu0
    %v2572 = vadd.f32 0.0, %v2571
    %v2573 = vpop.f32.mrf.mxu0
    %v2574 = vpop.f32.mrf.mxu0
    %v2575 = vadd.f32 0.0, %v2574
    %v2576 = vpop.f32.mrf.mxu0
    %2577 = vmatprep.mubr.bf16.mxu0 0
    %2578 = vmatmul.mubr.bf16.gmra.mxu0 %v2494
    %v2579 = vpop.f32.mrf.mxu0
    %v2580 = vadd.f32 0.0, %v2579
    %v2581 = vpop.f32.mrf.mxu0
    %v2582 = vpop.f32.mrf.mxu0
    %v2583 = vadd.f32 0.0, %v2582
    %v2584 = vpop.f32.mrf.mxu0
    %2585 = vmatprep.mubr.bf16.mxu0 0
    %2586 = vmatmul.mubr.bf16.gmra.mxu0 %v2495
    %v2587 = vpop.f32.mrf.mxu0
    %v2588 = vadd.f32 0.0, %v2587
    %v2589 = vpop.f32.mrf.mxu0
    %v2590 = vpop.f32.mrf.mxu0
    %v2591 = vadd.f32 0.0, %v2590
    %v2592 = vpop.f32.mrf.mxu0
    %2593 = vmatprep.mubr.bf16.mxu0 0
    %2594 = vmatmul.mubr.bf16.gmra.mxu0 %v2496
    %v2595 = vpop.f32.mrf.mxu0
    %v2596 = vadd.f32 0.0, %v2595
    %v2597 = vpop.f32.mrf.mxu0
    %v2598 = vpop.f32.mrf.mxu0
    %v2599 = vadd.f32 0.0, %v2598
    %v2600 = vpop.f32.mrf.mxu0
    %2601 = vdwg.mxu0
    %v2602 = vpack.c.bf16 %v2543, %v2540
    %v2603 = vpack.c.bf16 %v2551, %v2548
    %v2604 = vpack.c.bf16 %v2559, %v2556
    %v2605 = vpack.c.bf16 %v2567, %v2564
    %v2606 = vpack.c.bf16 %v2575, %v2572
    %v2607 = vpack.c.bf16 %v2583, %v2580
    %v2608 = vpack.c.bf16 %v2591, %v2588
    %v2609 = vpack.c.bf16 %v2599, %v2596
    %s2610 = scalar_lea.vmem %s4, 384
    %v2611 = vld [vmem:[%s2610] sm:$0xf]
    %v2612 = vld [vmem:[%s2610 + $0x4] sm:$0xf]
    %v2613 = vld [vmem:[%s2610 + $0x8] sm:$0xf]
    %v2614 = vld [vmem:[%s2610 + $0xc] sm:$0xf]
    %v2615 = vld [vmem:[%s2610 + $0x10] sm:$0xf]
    %v2616 = vld [vmem:[%s2610 + $0x14] sm:$0xf]
    %v2617 = vld [vmem:[%s2610 + $0x18] sm:$0xf]
    %v2618 = vld [vmem:[%s2610 + $0x1c] sm:$0xf]
    %v2619 = vld [vmem:[%s2610 + $0x20] sm:$0xf]
    %v2620 = vld [vmem:[%s2610 + $0x24] sm:$0xf]
    %v2621 = vld [vmem:[%s2610 + $0x28] sm:$0xf]
    %v2622 = vld [vmem:[%s2610 + $0x2c] sm:$0xf]
    %v2623 = vld [vmem:[%s2610 + $0x30] sm:$0xf]
    %v2624 = vld [vmem:[%s2610 + $0x34] sm:$0xf]
    %v2625 = vld [vmem:[%s2610 + $0x38] sm:$0xf]
    %v2626 = vld [vmem:[%s2610 + $0x3c] sm:$0xf]
    %v2643 = vunpack.c.l.b16 %v2611
    %v2644 = vunpack.c.l.b16 %v2612
    %v2645 = vunpack.c.l.b16 %v2613
    %v2646 = vunpack.c.l.b16 %v2614
    %v2647 = vunpack.c.l.b16 %v2615
    %v2648 = vunpack.c.l.b16 %v2616
    %v2649 = vunpack.c.l.b16 %v2617
    %v2650 = vunpack.c.l.b16 %v2618
    %v2651 = vunpack.c.l.b16 %v2619
    %v2652 = vunpack.c.l.b16 %v2620
    %v2653 = vunpack.c.l.b16 %v2621
    %v2654 = vunpack.c.l.b16 %v2622
    %v2655 = vunpack.c.l.b16 %v2623
    %v2656 = vunpack.c.l.b16 %v2624
    %v2657 = vunpack.c.l.b16 %v2625
    %v2658 = vunpack.c.l.b16 %v2626
    %v2659 = vpack.c.b16 %v2644, %v2643
    %v2660 = vpack.c.b16 %v2646, %v2645
    %v2661 = vpack.c.b16 %v2648, %v2647
    %v2662 = vpack.c.b16 %v2650, %v2649
    %v2663 = vpack.c.b16 %v2652, %v2651
    %v2664 = vpack.c.b16 %v2654, %v2653
    %v2665 = vpack.c.b16 %v2656, %v2655
    %v2666 = vpack.c.b16 %v2658, %v2657
    %2675 = vmatprep.subr.bf16.mxu0 0
    %2676 = vmatpush1.bf16.msra.mxu0 %v2666
    %2677 = vmatprep.subr.bf16.mxu0 0
    %2678 = vmatpush1.bf16.msra.mxu0 %v2665
    %2679 = vmatprep.subr.bf16.mxu0 0
    %2680 = vmatpush1.bf16.msra.mxu0 %v2664
    %2681 = vmatprep.subr.bf16.mxu0 0
    %2682 = vmatpush1.bf16.msra.mxu0 %v2663
    %2683 = vmatprep.subr.bf16.mxu0 0
    %2684 = vmatpush1.bf16.msra.mxu0 %v2662
    %2685 = vmatprep.subr.bf16.mxu0 0
    %2686 = vmatpush1.bf16.msra.mxu0 %v2661
    %2687 = vmatprep.subr.bf16.mxu0 0
    %2688 = vmatpush1.bf16.msra.mxu0 %v2660
    %2689 = vmatprep.subr.bf16.mxu0 0
    %2690 = vmatpush1.bf16.msra.mxu0 %v2659
    %2691 = vmatprep.subr.bf16.mxu0 0
    %2692 = vmatpush2.bf16.msra.mxu0 0
    %2693 = vmatprep.subr.bf16.mxu0 0
    %2694 = vmatpush2.bf16.msra.mxu0 0
    %2695 = vmatprep.subr.bf16.mxu0 0
    %2696 = vmatpush2.bf16.msra.mxu0 0
    %2697 = vmatprep.subr.bf16.mxu0 0
    %2698 = vmatpush2.bf16.msra.mxu0 0
    %2699 = vmatprep.subr.bf16.mxu0 0
    %2700 = vmatpush2.bf16.msra.mxu0 0
    %2701 = vmatprep.subr.bf16.mxu0 0
    %2702 = vmatpush2.bf16.msra.mxu0 0
    %2703 = vmatprep.subr.bf16.mxu0 0
    %2704 = vmatpush2.bf16.msra.mxu0 0
    %2705 = vmatprep.subr.bf16.mxu0 0
    %2706 = vmatpush2.bf16.msra.mxu0 0
    %2707 = vmatprep.mubr.bf16.mxu0 0
    %2708 = vmatmul.mubr.bf16.gmra.mxu0 %v2602
    %v2709 = vpop.f32.mrf.mxu0
    %v2710 = vadd.f32 0.0, %v2709
    %v2711 = vpop.f32.mrf.mxu0
    %v2712 = vpop.f32.mrf.mxu0
    %v2713 = vadd.f32 0.0, %v2712
    %v2714 = vpop.f32.mrf.mxu0
    %2715 = vmatprep.mubr.bf16.mxu0 0
    %2716 = vmatmul.mubr.bf16.gmra.mxu0 %v2603
    %v2717 = vpop.f32.mrf.mxu0
    %v2718 = vadd.f32 0.0, %v2717
    %v2719 = vpop.f32.mrf.mxu0
    %v2720 = vpop.f32.mrf.mxu0
    %v2721 = vadd.f32 0.0, %v2720
    %v2722 = vpop.f32.mrf.mxu0
    %2723 = vmatprep.mubr.bf16.mxu0 0
    %2724 = vmatmul.mubr.bf16.gmra.mxu0 %v2604
    %v2725 = vpop.f32.mrf.mxu0
    %v2726 = vadd.f32 0.0, %v2725
    %v2727 = vpop.f32.mrf.mxu0
    %v2728 = vpop.f32.mrf.mxu0
    %v2729 = vadd.f32 0.0, %v2728
    %v2730 = vpop.f32.mrf.mxu0
    %2731 = vmatprep.mubr.bf16.mxu0 0
    %2732 = vmatmul.mubr.bf16.gmra.mxu0 %v2605
    %v2733 = vpop.f32.mrf.mxu0
    %v2734 = vadd.f32 0.0, %v2733
    %v2735 = vpop.f32.mrf.mxu0
    %v2736 = vpop.f32.mrf.mxu0
    %v2737 = vadd.f32 0.0, %v2736
    %v2738 = vpop.f32.mrf.mxu0
    %2739 = vmatprep.mubr.bf16.mxu0 0
    %2740 = vmatmul.mubr.bf16.gmra.mxu0 %v2606
    %v2741 = vpop.f32.mrf.mxu0
    %v2742 = vadd.f32 0.0, %v2741
    %v2743 = vpop.f32.mrf.mxu0
    %v2744 = vpop.f32.mrf.mxu0
    %v2745 = vadd.f32 0.0, %v2744
    %v2746 = vpop.f32.mrf.mxu0
    %2747 = vmatprep.mubr.bf16.mxu0 0
    %2748 = vmatmul.mubr.bf16.gmra.mxu0 %v2607
    %v2749 = vpop.f32.mrf.mxu0
    %v2750 = vadd.f32 0.0, %v2749
    %v2751 = vpop.f32.mrf.mxu0
    %v2752 = vpop.f32.mrf.mxu0
    %v2753 = vadd.f32 0.0, %v2752
    %v2754 = vpop.f32.mrf.mxu0
    %2755 = vmatprep.mubr.bf16.mxu0 0
    %2756 = vmatmul.mubr.bf16.gmra.mxu0 %v2608
    %v2757 = vpop.f32.mrf.mxu0
    %v2758 = vadd.f32 0.0, %v2757
    %v2759 = vpop.f32.mrf.mxu0
    %v2760 = vpop.f32.mrf.mxu0
    %v2761 = vadd.f32 0.0, %v2760
    %v2762 = vpop.f32.mrf.mxu0
    %2763 = vmatprep.mubr.bf16.mxu0 0
    %2764 = vmatmul.mubr.bf16.gmra.mxu0 %v2609
    %v2765 = vpop.f32.mrf.mxu0
    %v2766 = vadd.f32 0.0, %v2765
    %v2767 = vpop.f32.mrf.mxu0
    %v2768 = vpop.f32.mrf.mxu0
    %v2769 = vadd.f32 0.0, %v2768
    %v2770 = vpop.f32.mrf.mxu0
    %2771 = vdwg.mxu0
    %v2772 = vadd.f32 %v2424, %v2710
    %v2773 = vadd.f32 %v2425, %v2713
    %v2774 = vadd.f32 %v2426, %v2718
    %v2775 = vadd.f32 %v2427, %v2721
    %v2776 = vadd.f32 %v2428, %v2726
    %v2777 = vadd.f32 %v2429, %v2729
    %v2778 = vadd.f32 %v2430, %v2734
    %v2779 = vadd.f32 %v2431, %v2737
    %v2780 = vadd.f32 %v2432, %v2742
    %v2781 = vadd.f32 %v2433, %v2745
    %v2782 = vadd.f32 %v2434, %v2750
    %v2783 = vadd.f32 %v2435, %v2753
    %v2784 = vadd.f32 %v2436, %v2758
    %v2785 = vadd.f32 %v2437, %v2761
    %v2786 = vadd.f32 %v2438, %v2766
    %v2787 = vadd.f32 %v2439, %v2769
    %s2788 = scalar_lea.vmem %s3, 448
    %v2789 = vld [vmem:[%s2788] sm:$0xf]
    %v2790 = vld [vmem:[%s2788 + $0x4] sm:$0xf]
    %v2791 = vld [vmem:[%s2788 + $0x8] sm:$0xf]
    %v2792 = vld [vmem:[%s2788 + $0xc] sm:$0xf]
    %v2793 = vld [vmem:[%s2788 + $0x10] sm:$0xf]
    %v2794 = vld [vmem:[%s2788 + $0x14] sm:$0xf]
    %v2795 = vld [vmem:[%s2788 + $0x18] sm:$0xf]
    %v2796 = vld [vmem:[%s2788 + $0x1c] sm:$0xf]
    %v2797 = vld [vmem:[%s2788 + $0x20] sm:$0xf]
    %v2798 = vld [vmem:[%s2788 + $0x24] sm:$0xf]
    %v2799 = vld [vmem:[%s2788 + $0x28] sm:$0xf]
    %v2800 = vld [vmem:[%s2788 + $0x2c] sm:$0xf]
    %v2801 = vld [vmem:[%s2788 + $0x30] sm:$0xf]
    %v2802 = vld [vmem:[%s2788 + $0x34] sm:$0xf]
    %v2803 = vld [vmem:[%s2788 + $0x38] sm:$0xf]
    %v2804 = vld [vmem:[%s2788 + $0x3c] sm:$0xf]
    %v2821 = vunpack.c.l.b16 %v2789
    %v2822 = vunpack.c.l.b16 %v2790
    %v2823 = vunpack.c.l.b16 %v2791
    %v2824 = vunpack.c.l.b16 %v2792
    %v2825 = vunpack.c.l.b16 %v2793
    %v2826 = vunpack.c.l.b16 %v2794
    %v2827 = vunpack.c.l.b16 %v2795
    %v2828 = vunpack.c.l.b16 %v2796
    %v2829 = vunpack.c.l.b16 %v2797
    %v2830 = vunpack.c.l.b16 %v2798
    %v2831 = vunpack.c.l.b16 %v2799
    %v2832 = vunpack.c.l.b16 %v2800
    %v2833 = vunpack.c.l.b16 %v2801
    %v2834 = vunpack.c.l.b16 %v2802
    %v2835 = vunpack.c.l.b16 %v2803
    %v2836 = vunpack.c.l.b16 %v2804
    %v2837 = vpack.c.b16 %v2822, %v2821
    %v2838 = vpack.c.b16 %v2824, %v2823
    %v2839 = vpack.c.b16 %v2826, %v2825
    %v2840 = vpack.c.b16 %v2828, %v2827
    %v2841 = vpack.c.b16 %v2830, %v2829
    %v2842 = vpack.c.b16 %v2832, %v2831
    %v2843 = vpack.c.b16 %v2834, %v2833
    %v2844 = vpack.c.b16 %v2836, %v2835
    %2853 = vmatprep.subr.bf16.mxu0 0
    %2854 = vmatpush1.bf16.msra.mxu0 %v385
    %2855 = vmatprep.subr.bf16.mxu0 0
    %2856 = vmatpush1.bf16.msra.mxu0 %v384
    %2857 = vmatprep.subr.bf16.mxu0 0
    %2858 = vmatpush1.bf16.msra.mxu0 %v383
    %2859 = vmatprep.subr.bf16.mxu0 0
    %2860 = vmatpush1.bf16.msra.mxu0 %v382
    %2861 = vmatprep.subr.bf16.mxu0 0
    %2862 = vmatpush1.bf16.msra.mxu0 %v381
    %2863 = vmatprep.subr.bf16.mxu0 0
    %2864 = vmatpush1.bf16.msra.mxu0 %v380
    %2865 = vmatprep.subr.bf16.mxu0 0
    %2866 = vmatpush1.bf16.msra.mxu0 %v379
    %2867 = vmatprep.subr.bf16.mxu0 0
    %2868 = vmatpush1.bf16.msra.mxu0 %v378
    %2869 = vmatprep.subr.bf16.mxu0 0
    %2870 = vmatpush2.bf16.msra.mxu0 0
    %2871 = vmatprep.subr.bf16.mxu0 0
    %2872 = vmatpush2.bf16.msra.mxu0 0
    %2873 = vmatprep.subr.bf16.mxu0 0
    %2874 = vmatpush2.bf16.msra.mxu0 0
    %2875 = vmatprep.subr.bf16.mxu0 0
    %2876 = vmatpush2.bf16.msra.mxu0 0
    %2877 = vmatprep.subr.bf16.mxu0 0
    %2878 = vmatpush2.bf16.msra.mxu0 0
    %2879 = vmatprep.subr.bf16.mxu0 0
    %2880 = vmatpush2.bf16.msra.mxu0 0
    %2881 = vmatprep.subr.bf16.mxu0 0
    %2882 = vmatpush2.bf16.msra.mxu0 0
    %2883 = vmatprep.subr.bf16.mxu0 0
    %2884 = vmatpush2.bf16.msra.mxu0 0
    %2885 = vmatprep.mubr.bf16.mxu0 0
    %2886 = vmatmul.mubr.bf16.gmra.mxu0 %v2837
    %v2887 = vpop.f32.mrf.mxu0
    %v2888 = vadd.f32 0.0, %v2887
    %v2889 = vpop.f32.mrf.mxu0
    %v2890 = vpop.f32.mrf.mxu0
    %v2891 = vadd.f32 0.0, %v2890
    %v2892 = vpop.f32.mrf.mxu0
    %2893 = vmatprep.mubr.bf16.mxu0 0
    %2894 = vmatmul.mubr.bf16.gmra.mxu0 %v2838
    %v2895 = vpop.f32.mrf.mxu0
    %v2896 = vadd.f32 0.0, %v2895
    %v2897 = vpop.f32.mrf.mxu0
    %v2898 = vpop.f32.mrf.mxu0
    %v2899 = vadd.f32 0.0, %v2898
    %v2900 = vpop.f32.mrf.mxu0
    %2901 = vmatprep.mubr.bf16.mxu0 0
    %2902 = vmatmul.mubr.bf16.gmra.mxu0 %v2839
    %v2903 = vpop.f32.mrf.mxu0
    %v2904 = vadd.f32 0.0, %v2903
    %v2905 = vpop.f32.mrf.mxu0
    %v2906 = vpop.f32.mrf.mxu0
    %v2907 = vadd.f32 0.0, %v2906
    %v2908 = vpop.f32.mrf.mxu0
    %2909 = vmatprep.mubr.bf16.mxu0 0
    %2910 = vmatmul.mubr.bf16.gmra.mxu0 %v2840
    %v2911 = vpop.f32.mrf.mxu0
    %v2912 = vadd.f32 0.0, %v2911
    %v2913 = vpop.f32.mrf.mxu0
    %v2914 = vpop.f32.mrf.mxu0
    %v2915 = vadd.f32 0.0, %v2914
    %v2916 = vpop.f32.mrf.mxu0
    %2917 = vmatprep.mubr.bf16.mxu0 0
    %2918 = vmatmul.mubr.bf16.gmra.mxu0 %v2841
    %v2919 = vpop.f32.mrf.mxu0
    %v2920 = vadd.f32 0.0, %v2919
    %v2921 = vpop.f32.mrf.mxu0
    %v2922 = vpop.f32.mrf.mxu0
    %v2923 = vadd.f32 0.0, %v2922
    %v2924 = vpop.f32.mrf.mxu0
    %2925 = vmatprep.mubr.bf16.mxu0 0
    %2926 = vmatmul.mubr.bf16.gmra.mxu0 %v2842
    %v2927 = vpop.f32.mrf.mxu0
    %v2928 = vadd.f32 0.0, %v2927
    %v2929 = vpop.f32.mrf.mxu0
    %v2930 = vpop.f32.mrf.mxu0
    %v2931 = vadd.f32 0.0, %v2930
    %v2932 = vpop.f32.mrf.mxu0
    %2933 = vmatprep.mubr.bf16.mxu0 0
    %2934 = vmatmul.mubr.bf16.gmra.mxu0 %v2843
    %v2935 = vpop.f32.mrf.mxu0
    %v2936 = vadd.f32 0.0, %v2935
    %v2937 = vpop.f32.mrf.mxu0
    %v2938 = vpop.f32.mrf.mxu0
    %v2939 = vadd.f32 0.0, %v2938
    %v2940 = vpop.f32.mrf.mxu0
    %2941 = vmatprep.mubr.bf16.mxu0 0
    %2942 = vmatmul.mubr.bf16.gmra.mxu0 %v2844
    %v2943 = vpop.f32.mrf.mxu0
    %v2944 = vadd.f32 0.0, %v2943
    %v2945 = vpop.f32.mrf.mxu0
    %v2946 = vpop.f32.mrf.mxu0
    %v2947 = vadd.f32 0.0, %v2946
    %v2948 = vpop.f32.mrf.mxu0
    %2949 = vdwg.mxu0
    %v2950 = vpack.c.bf16 %v2891, %v2888
    %v2951 = vpack.c.bf16 %v2899, %v2896
    %v2952 = vpack.c.bf16 %v2907, %v2904
    %v2953 = vpack.c.bf16 %v2915, %v2912
    %v2954 = vpack.c.bf16 %v2923, %v2920
    %v2955 = vpack.c.bf16 %v2931, %v2928
    %v2956 = vpack.c.bf16 %v2939, %v2936
    %v2957 = vpack.c.bf16 %v2947, %v2944
    %s2958 = scalar_lea.vmem %s4, 448
    %v2959 = vld [vmem:[%s2958] sm:$0xf]
    %v2960 = vld [vmem:[%s2958 + $0x4] sm:$0xf]
    %v2961 = vld [vmem:[%s2958 + $0x8] sm:$0xf]
    %v2962 = vld [vmem:[%s2958 + $0xc] sm:$0xf]
    %v2963 = vld [vmem:[%s2958 + $0x10] sm:$0xf]
    %v2964 = vld [vmem:[%s2958 + $0x14] sm:$0xf]
    %v2965 = vld [vmem:[%s2958 + $0x18] sm:$0xf]
    %v2966 = vld [vmem:[%s2958 + $0x1c] sm:$0xf]
    %v2967 = vld [vmem:[%s2958 + $0x20] sm:$0xf]
    %v2968 = vld [vmem:[%s2958 + $0x24] sm:$0xf]
    %v2969 = vld [vmem:[%s2958 + $0x28] sm:$0xf]
    %v2970 = vld [vmem:[%s2958 + $0x2c] sm:$0xf]
    %v2971 = vld [vmem:[%s2958 + $0x30] sm:$0xf]
    %v2972 = vld [vmem:[%s2958 + $0x34] sm:$0xf]
    %v2973 = vld [vmem:[%s2958 + $0x38] sm:$0xf]
    %v2974 = vld [vmem:[%s2958 + $0x3c] sm:$0xf]
    %v2991 = vunpack.c.l.b16 %v2959
    %v2992 = vunpack.c.l.b16 %v2960
    %v2993 = vunpack.c.l.b16 %v2961
    %v2994 = vunpack.c.l.b16 %v2962
    %v2995 = vunpack.c.l.b16 %v2963
    %v2996 = vunpack.c.l.b16 %v2964
    %v2997 = vunpack.c.l.b16 %v2965
    %v2998 = vunpack.c.l.b16 %v2966
    %v2999 = vunpack.c.l.b16 %v2967
    %v3000 = vunpack.c.l.b16 %v2968
    %v3001 = vunpack.c.l.b16 %v2969
    %v3002 = vunpack.c.l.b16 %v2970
    %v3003 = vunpack.c.l.b16 %v2971
    %v3004 = vunpack.c.l.b16 %v2972
    %v3005 = vunpack.c.l.b16 %v2973
    %v3006 = vunpack.c.l.b16 %v2974
    %v3007 = vpack.c.b16 %v2992, %v2991
    %v3008 = vpack.c.b16 %v2994, %v2993
    %v3009 = vpack.c.b16 %v2996, %v2995
    %v3010 = vpack.c.b16 %v2998, %v2997
    %v3011 = vpack.c.b16 %v3000, %v2999
    %v3012 = vpack.c.b16 %v3002, %v3001
    %v3013 = vpack.c.b16 %v3004, %v3003
    %v3014 = vpack.c.b16 %v3006, %v3005
    %3023 = vmatprep.subr.bf16.mxu0 0
    %3024 = vmatpush1.bf16.msra.mxu0 %v3014
    %3025 = vmatprep.subr.bf16.mxu0 0
    %3026 = vmatpush1.bf16.msra.mxu0 %v3013
    %3027 = vmatprep.subr.bf16.mxu0 0
    %3028 = vmatpush1.bf16.msra.mxu0 %v3012
    %3029 = vmatprep.subr.bf16.mxu0 0
    %3030 = vmatpush1.bf16.msra.mxu0 %v3011
    %3031 = vmatprep.subr.bf16.mxu0 0
    %3032 = vmatpush1.bf16.msra.mxu0 %v3010
    %3033 = vmatprep.subr.bf16.mxu0 0
    %3034 = vmatpush1.bf16.msra.mxu0 %v3009
    %3035 = vmatprep.subr.bf16.mxu0 0
    %3036 = vmatpush1.bf16.msra.mxu0 %v3008
    %3037 = vmatprep.subr.bf16.mxu0 0
    %3038 = vmatpush1.bf16.msra.mxu0 %v3007
    %3039 = vmatprep.subr.bf16.mxu0 0
    %3040 = vmatpush2.bf16.msra.mxu0 0
    %3041 = vmatprep.subr.bf16.mxu0 0
    %3042 = vmatpush2.bf16.msra.mxu0 0
    %3043 = vmatprep.subr.bf16.mxu0 0
    %3044 = vmatpush2.bf16.msra.mxu0 0
    %3045 = vmatprep.subr.bf16.mxu0 0
    %3046 = vmatpush2.bf16.msra.mxu0 0
    %3047 = vmatprep.subr.bf16.mxu0 0
    %3048 = vmatpush2.bf16.msra.mxu0 0
    %3049 = vmatprep.subr.bf16.mxu0 0
    %3050 = vmatpush2.bf16.msra.mxu0 0
    %3051 = vmatprep.subr.bf16.mxu0 0
    %3052 = vmatpush2.bf16.msra.mxu0 0
    %3053 = vmatprep.subr.bf16.mxu0 0
    %3054 = vmatpush2.bf16.msra.mxu0 0
    %3055 = vmatprep.mubr.bf16.mxu0 0
    %3056 = vmatmul.mubr.bf16.gmra.mxu0 %v2950
    %v3057 = vpop.f32.mrf.mxu0
    %v3058 = vadd.f32 0.0, %v3057
    %v3059 = vpop.f32.mrf.mxu0
    %v3060 = vpop.f32.mrf.mxu0
    %v3061 = vadd.f32 0.0, %v3060
    %v3062 = vpop.f32.mrf.mxu0
    %3063 = vmatprep.mubr.bf16.mxu0 0
    %3064 = vmatmul.mubr.bf16.gmra.mxu0 %v2951
    %v3065 = vpop.f32.mrf.mxu0
    %v3066 = vadd.f32 0.0, %v3065
    %v3067 = vpop.f32.mrf.mxu0
    %v3068 = vpop.f32.mrf.mxu0
    %v3069 = vadd.f32 0.0, %v3068
    %v3070 = vpop.f32.mrf.mxu0
    %3071 = vmatprep.mubr.bf16.mxu0 0
    %3072 = vmatmul.mubr.bf16.gmra.mxu0 %v2952
    %v3073 = vpop.f32.mrf.mxu0
    %v3074 = vadd.f32 0.0, %v3073
    %v3075 = vpop.f32.mrf.mxu0
    %v3076 = vpop.f32.mrf.mxu0
    %v3077 = vadd.f32 0.0, %v3076
    %v3078 = vpop.f32.mrf.mxu0
    %3079 = vmatprep.mubr.bf16.mxu0 0
    %3080 = vmatmul.mubr.bf16.gmra.mxu0 %v2953
    %v3081 = vpop.f32.mrf.mxu0
    %v3082 = vadd.f32 0.0, %v3081
    %v3083 = vpop.f32.mrf.mxu0
    %v3084 = vpop.f32.mrf.mxu0
    %v3085 = vadd.f32 0.0, %v3084
    %v3086 = vpop.f32.mrf.mxu0
    %3087 = vmatprep.mubr.bf16.mxu0 0
    %3088 = vmatmul.mubr.bf16.gmra.mxu0 %v2954
    %v3089 = vpop.f32.mrf.mxu0
    %v3090 = vadd.f32 0.0, %v3089
    %v3091 = vpop.f32.mrf.mxu0
    %v3092 = vpop.f32.mrf.mxu0
    %v3093 = vadd.f32 0.0, %v3092
    %v3094 = vpop.f32.mrf.mxu0
    %3095 = vmatprep.mubr.bf16.mxu0 0
    %3096 = vmatmul.mubr.bf16.gmra.mxu0 %v2955
    %v3097 = vpop.f32.mrf.mxu0
    %v3098 = vadd.f32 0.0, %v3097
    %v3099 = vpop.f32.mrf.mxu0
    %v3100 = vpop.f32.mrf.mxu0
    %v3101 = vadd.f32 0.0, %v3100
    %v3102 = vpop.f32.mrf.mxu0
    %3103 = vmatprep.mubr.bf16.mxu0 0
    %3104 = vmatmul.mubr.bf16.gmra.mxu0 %v2956
    %v3105 = vpop.f32.mrf.mxu0
    %v3106 = vadd.f32 0.0, %v3105
    %v3107 = vpop.f32.mrf.mxu0
    %v3108 = vpop.f32.mrf.mxu0
    %v3109 = vadd.f32 0.0, %v3108
    %v3110 = vpop.f32.mrf.mxu0
    %3111 = vmatprep.mubr.bf16.mxu0 0
    %3112 = vmatmul.mubr.bf16.gmra.mxu0 %v2957
    %v3113 = vpop.f32.mrf.mxu0
    %v3114 = vadd.f32 0.0, %v3113
    %v3115 = vpop.f32.mrf.mxu0
    %v3116 = vpop.f32.mrf.mxu0
    %v3117 = vadd.f32 0.0, %v3116
    %v3118 = vpop.f32.mrf.mxu0
    %3119 = vdwg.mxu0
    %v3120 = vadd.f32 %v2772, %v3058
    %v3121 = vadd.f32 %v2773, %v3061
    %v3122 = vadd.f32 %v2774, %v3066
    %v3123 = vadd.f32 %v2775, %v3069
    %v3124 = vadd.f32 %v2776, %v3074
    %v3125 = vadd.f32 %v2777, %v3077
    %v3126 = vadd.f32 %v2778, %v3082
    %v3127 = vadd.f32 %v2779, %v3085
    %v3128 = vadd.f32 %v2780, %v3090
    %v3129 = vadd.f32 %v2781, %v3093
    %v3130 = vadd.f32 %v2782, %v3098
    %v3131 = vadd.f32 %v2783, %v3101
    %v3132 = vadd.f32 %v2784, %v3106
    %v3133 = vadd.f32 %v2785, %v3109
    %v3134 = vadd.f32 %v2786, %v3114
    %v3135 = vadd.f32 %v2787, %v3117
    %s3136 = scalar_lea.vmem %s3, 512
    %v3137 = vld [vmem:[%s3136] sm:$0xf]
    %v3138 = vld [vmem:[%s3136 + $0x4] sm:$0xf]
    %v3139 = vld [vmem:[%s3136 + $0x8] sm:$0xf]
    %v3140 = vld [vmem:[%s3136 + $0xc] sm:$0xf]
    %v3141 = vld [vmem:[%s3136 + $0x10] sm:$0xf]
    %v3142 = vld [vmem:[%s3136 + $0x14] sm:$0xf]
    %v3143 = vld [vmem:[%s3136 + $0x18] sm:$0xf]
    %v3144 = vld [vmem:[%s3136 + $0x1c] sm:$0xf]
    %v3145 = vld [vmem:[%s3136 + $0x20] sm:$0xf]
    %v3146 = vld [vmem:[%s3136 + $0x24] sm:$0xf]
    %v3147 = vld [vmem:[%s3136 + $0x28] sm:$0xf]
    %v3148 = vld [vmem:[%s3136 + $0x2c] sm:$0xf]
    %v3149 = vld [vmem:[%s3136 + $0x30] sm:$0xf]
    %v3150 = vld [vmem:[%s3136 + $0x34] sm:$0xf]
    %v3151 = vld [vmem:[%s3136 + $0x38] sm:$0xf]
    %v3152 = vld [vmem:[%s3136 + $0x3c] sm:$0xf]
    %v3169 = vunpack.c.l.b16 %v3137
    %v3170 = vunpack.c.l.b16 %v3138
    %v3171 = vunpack.c.l.b16 %v3139
    %v3172 = vunpack.c.l.b16 %v3140
    %v3173 = vunpack.c.l.b16 %v3141
    %v3174 = vunpack.c.l.b16 %v3142
    %v3175 = vunpack.c.l.b16 %v3143
    %v3176 = vunpack.c.l.b16 %v3144
    %v3177 = vunpack.c.l.b16 %v3145
    %v3178 = vunpack.c.l.b16 %v3146
    %v3179 = vunpack.c.l.b16 %v3147
    %v3180 = vunpack.c.l.b16 %v3148
    %v3181 = vunpack.c.l.b16 %v3149
    %v3182 = vunpack.c.l.b16 %v3150
    %v3183 = vunpack.c.l.b16 %v3151
    %v3184 = vunpack.c.l.b16 %v3152
    %v3185 = vpack.c.b16 %v3170, %v3169
    %v3186 = vpack.c.b16 %v3172, %v3171
    %v3187 = vpack.c.b16 %v3174, %v3173
    %v3188 = vpack.c.b16 %v3176, %v3175
    %v3189 = vpack.c.b16 %v3178, %v3177
    %v3190 = vpack.c.b16 %v3180, %v3179
    %v3191 = vpack.c.b16 %v3182, %v3181
    %v3192 = vpack.c.b16 %v3184, %v3183
    %3201 = vmatprep.subr.bf16.mxu0 0
    %3202 = vmatpush1.bf16.msra.mxu0 %v385
    %3203 = vmatprep.subr.bf16.mxu0 0
    %3204 = vmatpush1.bf16.msra.mxu0 %v384
    %3205 = vmatprep.subr.bf16.mxu0 0
    %3206 = vmatpush1.bf16.msra.mxu0 %v383
    %3207 = vmatprep.subr.bf16.mxu0 0
    %3208 = vmatpush1.bf16.msra.mxu0 %v382
    %3209 = vmatprep.subr.bf16.mxu0 0
    %3210 = vmatpush1.bf16.msra.mxu0 %v381
    %3211 = vmatprep.subr.bf16.mxu0 0
    %3212 = vmatpush1.bf16.msra.mxu0 %v380
    %3213 = vmatprep.subr.bf16.mxu0 0
    %3214 = vmatpush1.bf16.msra.mxu0 %v379
    %3215 = vmatprep.subr.bf16.mxu0 0
    %3216 = vmatpush1.bf16.msra.mxu0 %v378
    %3217 = vmatprep.subr.bf16.mxu0 0
    %3218 = vmatpush2.bf16.msra.mxu0 0
    %3219 = vmatprep.subr.bf16.mxu0 0
    %3220 = vmatpush2.bf16.msra.mxu0 0
    %3221 = vmatprep.subr.bf16.mxu0 0
    %3222 = vmatpush2.bf16.msra.mxu0 0
    %3223 = vmatprep.subr.bf16.mxu0 0
    %3224 = vmatpush2.bf16.msra.mxu0 0
    %3225 = vmatprep.subr.bf16.mxu0 0
    %3226 = vmatpush2.bf16.msra.mxu0 0
    %3227 = vmatprep.subr.bf16.mxu0 0
    %3228 = vmatpush2.bf16.msra.mxu0 0
    %3229 = vmatprep.subr.bf16.mxu0 0
    %3230 = vmatpush2.bf16.msra.mxu0 0
    %3231 = vmatprep.subr.bf16.mxu0 0
    %3232 = vmatpush2.bf16.msra.mxu0 0
    %3233 = vmatprep.mubr.bf16.mxu0 0
    %3234 = vmatmul.mubr.bf16.gmra.mxu0 %v3185
    %v3235 = vpop.f32.mrf.mxu0
    %v3236 = vadd.f32 0.0, %v3235
    %v3237 = vpop.f32.mrf.mxu0
    %v3238 = vpop.f32.mrf.mxu0
    %v3239 = vadd.f32 0.0, %v3238
    %v3240 = vpop.f32.mrf.mxu0
    %3241 = vmatprep.mubr.bf16.mxu0 0
    %3242 = vmatmul.mubr.bf16.gmra.mxu0 %v3186
    %v3243 = vpop.f32.mrf.mxu0
    %v3244 = vadd.f32 0.0, %v3243
    %v3245 = vpop.f32.mrf.mxu0
    %v3246 = vpop.f32.mrf.mxu0
    %v3247 = vadd.f32 0.0, %v3246
    %v3248 = vpop.f32.mrf.mxu0
    %3249 = vmatprep.mubr.bf16.mxu0 0
    %3250 = vmatmul.mubr.bf16.gmra.mxu0 %v3187
    %v3251 = vpop.f32.mrf.mxu0
    %v3252 = vadd.f32 0.0, %v3251
    %v3253 = vpop.f32.mrf.mxu0
    %v3254 = vpop.f32.mrf.mxu0
    %v3255 = vadd.f32 0.0, %v3254
    %v3256 = vpop.f32.mrf.mxu0
    %3257 = vmatprep.mubr.bf16.mxu0 0
    %3258 = vmatmul.mubr.bf16.gmra.mxu0 %v3188
    %v3259 = vpop.f32.mrf.mxu0
    %v3260 = vadd.f32 0.0, %v3259
    %v3261 = vpop.f32.mrf.mxu0
    %v3262 = vpop.f32.mrf.mxu0
    %v3263 = vadd.f32 0.0, %v3262
    %v3264 = vpop.f32.mrf.mxu0
    %3265 = vmatprep.mubr.bf16.mxu0 0
    %3266 = vmatmul.mubr.bf16.gmra.mxu0 %v3189
    %v3267 = vpop.f32.mrf.mxu0
    %v3268 = vadd.f32 0.0, %v3267
    %v3269 = vpop.f32.mrf.mxu0
    %v3270 = vpop.f32.mrf.mxu0
    %v3271 = vadd.f32 0.0, %v3270
    %v3272 = vpop.f32.mrf.mxu0
    %3273 = vmatprep.mubr.bf16.mxu0 0
    %3274 = vmatmul.mubr.bf16.gmra.mxu0 %v3190
    %v3275 = vpop.f32.mrf.mxu0
    %v3276 = vadd.f32 0.0, %v3275
    %v3277 = vpop.f32.mrf.mxu0
    %v3278 = vpop.f32.mrf.mxu0
    %v3279 = vadd.f32 0.0, %v3278
    %v3280 = vpop.f32.mrf.mxu0
    %3281 = vmatprep.mubr.bf16.mxu0 0
    %3282 = vmatmul.mubr.bf16.gmra.mxu0 %v3191
    %v3283 = vpop.f32.mrf.mxu0
    %v3284 = vadd.f32 0.0, %v3283
    %v3285 = vpop.f32.mrf.mxu0
    %v3286 = vpop.f32.mrf.mxu0
    %v3287 = vadd.f32 0.0, %v3286
    %v3288 = vpop.f32.mrf.mxu0
    %3289 = vmatprep.mubr.bf16.mxu0 0
    %3290 = vmatmul.mubr.bf16.gmra.mxu0 %v3192
    %v3291 = vpop.f32.mrf.mxu0
    %v3292 = vadd.f32 0.0, %v3291
    %v3293 = vpop.f32.mrf.mxu0
    %v3294 = vpop.f32.mrf.mxu0
    %v3295 = vadd.f32 0.0, %v3294
    %v3296 = vpop.f32.mrf.mxu0
    %3297 = vdwg.mxu0
    %v3298 = vpack.c.bf16 %v3239, %v3236
    %v3299 = vpack.c.bf16 %v3247, %v3244
    %v3300 = vpack.c.bf16 %v3255, %v3252
    %v3301 = vpack.c.bf16 %v3263, %v3260
    %v3302 = vpack.c.bf16 %v3271, %v3268
    %v3303 = vpack.c.bf16 %v3279, %v3276
    %v3304 = vpack.c.bf16 %v3287, %v3284
    %v3305 = vpack.c.bf16 %v3295, %v3292
    %s3306 = scalar_lea.vmem %s4, 512
    %v3307 = vld [vmem:[%s3306] sm:$0xf]
    %v3308 = vld [vmem:[%s3306 + $0x4] sm:$0xf]
    %v3309 = vld [vmem:[%s3306 + $0x8] sm:$0xf]
    %v3310 = vld [vmem:[%s3306 + $0xc] sm:$0xf]
    %v3311 = vld [vmem:[%s3306 + $0x10] sm:$0xf]
    %v3312 = vld [vmem:[%s3306 + $0x14] sm:$0xf]
    %v3313 = vld [vmem:[%s3306 + $0x18] sm:$0xf]
    %v3314 = vld [vmem:[%s3306 + $0x1c] sm:$0xf]
    %v3315 = vld [vmem:[%s3306 + $0x20] sm:$0xf]
    %v3316 = vld [vmem:[%s3306 + $0x24] sm:$0xf]
    %v3317 = vld [vmem:[%s3306 + $0x28] sm:$0xf]
    %v3318 = vld [vmem:[%s3306 + $0x2c] sm:$0xf]
    %v3319 = vld [vmem:[%s3306 + $0x30] sm:$0xf]
    %v3320 = vld [vmem:[%s3306 + $0x34] sm:$0xf]
    %v3321 = vld [vmem:[%s3306 + $0x38] sm:$0xf]
    %v3322 = vld [vmem:[%s3306 + $0x3c] sm:$0xf]
    %v3339 = vunpack.c.l.b16 %v3307
    %v3340 = vunpack.c.l.b16 %v3308
    %v3341 = vunpack.c.l.b16 %v3309
    %v3342 = vunpack.c.l.b16 %v3310
    %v3343 = vunpack.c.l.b16 %v3311
    %v3344 = vunpack.c.l.b16 %v3312
    %v3345 = vunpack.c.l.b16 %v3313
    %v3346 = vunpack.c.l.b16 %v3314
    %v3347 = vunpack.c.l.b16 %v3315
    %v3348 = vunpack.c.l.b16 %v3316
    %v3349 = vunpack.c.l.b16 %v3317
    %v3350 = vunpack.c.l.b16 %v3318
    %v3351 = vunpack.c.l.b16 %v3319
    %v3352 = vunpack.c.l.b16 %v3320
    %v3353 = vunpack.c.l.b16 %v3321
    %v3354 = vunpack.c.l.b16 %v3322
    %v3355 = vpack.c.b16 %v3340, %v3339
    %v3356 = vpack.c.b16 %v3342, %v3341
    %v3357 = vpack.c.b16 %v3344, %v3343
    %v3358 = vpack.c.b16 %v3346, %v3345
    %v3359 = vpack.c.b16 %v3348, %v3347
    %v3360 = vpack.c.b16 %v3350, %v3349
    %v3361 = vpack.c.b16 %v3352, %v3351
    %v3362 = vpack.c.b16 %v3354, %v3353
    %3371 = vmatprep.subr.bf16.mxu0 0
    %3372 = vmatpush1.bf16.msra.mxu0 %v3362
    %3373 = vmatprep.subr.bf16.mxu0 0
    %3374 = vmatpush1.bf16.msra.mxu0 %v3361
    %3375 = vmatprep.subr.bf16.mxu0 0
    %3376 = vmatpush1.bf16.msra.mxu0 %v3360
    %3377 = vmatprep.subr.bf16.mxu0 0
    %3378 = vmatpush1.bf16.msra.mxu0 %v3359
    %3379 = vmatprep.subr.bf16.mxu0 0
    %3380 = vmatpush1.bf16.msra.mxu0 %v3358
    %3381 = vmatprep.subr.bf16.mxu0 0
    %3382 = vmatpush1.bf16.msra.mxu0 %v3357
    %3383 = vmatprep.subr.bf16.mxu0 0
    %3384 = vmatpush1.bf16.msra.mxu0 %v3356
    %3385 = vmatprep.subr.bf16.mxu0 0
    %3386 = vmatpush1.bf16.msra.mxu0 %v3355
    %3387 = vmatprep.subr.bf16.mxu0 0
    %3388 = vmatpush2.bf16.msra.mxu0 0
    %3389 = vmatprep.subr.bf16.mxu0 0
    %3390 = vmatpush2.bf16.msra.mxu0 0
    %3391 = vmatprep.subr.bf16.mxu0 0
    %3392 = vmatpush2.bf16.msra.mxu0 0
    %3393 = vmatprep.subr.bf16.mxu0 0
    %3394 = vmatpush2.bf16.msra.mxu0 0
    %3395 = vmatprep.subr.bf16.mxu0 0
    %3396 = vmatpush2.bf16.msra.mxu0 0
    %3397 = vmatprep.subr.bf16.mxu0 0
    %3398 = vmatpush2.bf16.msra.mxu0 0
    %3399 = vmatprep.subr.bf16.mxu0 0
    %3400 = vmatpush2.bf16.msra.mxu0 0
    %3401 = vmatprep.subr.bf16.mxu0 0
    %3402 = vmatpush2.bf16.msra.mxu0 0
    %3403 = vmatprep.mubr.bf16.mxu0 0
    %3404 = vmatmul.mubr.bf16.gmra.mxu0 %v3298
    %v3405 = vpop.f32.mrf.mxu0
    %v3406 = vadd.f32 0.0, %v3405
    %v3407 = vpop.f32.mrf.mxu0
    %v3408 = vpop.f32.mrf.mxu0
    %v3409 = vadd.f32 0.0, %v3408
    %v3410 = vpop.f32.mrf.mxu0
    %3411 = vmatprep.mubr.bf16.mxu0 0
    %3412 = vmatmul.mubr.bf16.gmra.mxu0 %v3299
    %v3413 = vpop.f32.mrf.mxu0
    %v3414 = vadd.f32 0.0, %v3413
    %v3415 = vpop.f32.mrf.mxu0
    %v3416 = vpop.f32.mrf.mxu0
    %v3417 = vadd.f32 0.0, %v3416
    %v3418 = vpop.f32.mrf.mxu0
    %3419 = vmatprep.mubr.bf16.mxu0 0
    %3420 = vmatmul.mubr.bf16.gmra.mxu0 %v3300
    %v3421 = vpop.f32.mrf.mxu0
    %v3422 = vadd.f32 0.0, %v3421
    %v3423 = vpop.f32.mrf.mxu0
    %v3424 = vpop.f32.mrf.mxu0
    %v3425 = vadd.f32 0.0, %v3424
    %v3426 = vpop.f32.mrf.mxu0
    %3427 = vmatprep.mubr.bf16.mxu0 0
    %3428 = vmatmul.mubr.bf16.gmra.mxu0 %v3301
    %v3429 = vpop.f32.mrf.mxu0
    %v3430 = vadd.f32 0.0, %v3429
    %v3431 = vpop.f32.mrf.mxu0
    %v3432 = vpop.f32.mrf.mxu0
    %v3433 = vadd.f32 0.0, %v3432
    %v3434 = vpop.f32.mrf.mxu0
    %3435 = vmatprep.mubr.bf16.mxu0 0
    %3436 = vmatmul.mubr.bf16.gmra.mxu0 %v3302
    %v3437 = vpop.f32.mrf.mxu0
    %v3438 = vadd.f32 0.0, %v3437
    %v3439 = vpop.f32.mrf.mxu0
    %v3440 = vpop.f32.mrf.mxu0
    %v3441 = vadd.f32 0.0, %v3440
    %v3442 = vpop.f32.mrf.mxu0
    %3443 = vmatprep.mubr.bf16.mxu0 0
    %3444 = vmatmul.mubr.bf16.gmra.mxu0 %v3303
    %v3445 = vpop.f32.mrf.mxu0
    %v3446 = vadd.f32 0.0, %v3445
    %v3447 = vpop.f32.mrf.mxu0
    %v3448 = vpop.f32.mrf.mxu0
    %v3449 = vadd.f32 0.0, %v3448
    %v3450 = vpop.f32.mrf.mxu0
    %3451 = vmatprep.mubr.bf16.mxu0 0
    %3452 = vmatmul.mubr.bf16.gmra.mxu0 %v3304
    %v3453 = vpop.f32.mrf.mxu0
    %v3454 = vadd.f32 0.0, %v3453
    %v3455 = vpop.f32.mrf.mxu0
    %v3456 = vpop.f32.mrf.mxu0
    %v3457 = vadd.f32 0.0, %v3456
    %v3458 = vpop.f32.mrf.mxu0
    %3459 = vmatprep.mubr.bf16.mxu0 0
    %3460 = vmatmul.mubr.bf16.gmra.mxu0 %v3305
    %v3461 = vpop.f32.mrf.mxu0
    %v3462 = vadd.f32 0.0, %v3461
    %v3463 = vpop.f32.mrf.mxu0
    %v3464 = vpop.f32.mrf.mxu0
    %v3465 = vadd.f32 0.0, %v3464
    %v3466 = vpop.f32.mrf.mxu0
    %3467 = vdwg.mxu0
    %v3468 = vadd.f32 %v3120, %v3406
    %v3469 = vadd.f32 %v3121, %v3409
    %v3470 = vadd.f32 %v3122, %v3414
    %v3471 = vadd.f32 %v3123, %v3417
    %v3472 = vadd.f32 %v3124, %v3422
    %v3473 = vadd.f32 %v3125, %v3425
    %v3474 = vadd.f32 %v3126, %v3430
    %v3475 = vadd.f32 %v3127, %v3433
    %v3476 = vadd.f32 %v3128, %v3438
    %v3477 = vadd.f32 %v3129, %v3441
    %v3478 = vadd.f32 %v3130, %v3446
    %v3479 = vadd.f32 %v3131, %v3449
    %v3480 = vadd.f32 %v3132, %v3454
    %v3481 = vadd.f32 %v3133, %v3457
    %v3482 = vadd.f32 %v3134, %v3462
    %v3483 = vadd.f32 %v3135, %v3465
    %v3484 = vld [vmem:[%s5] sm:$0x1]
    %v3486 = vlaneseq
    %v3487 = vshrl.u32 %v3486, 7
    %v3488 = vsub.s32 0, %v3487
    %v3489 = vrot.slane %v3484, %v3488
    %v3491 = vadd.f32 %v3468, %v3489
    %v3492 = vadd.f32 %v3469, %v3489
    %v3493 = vadd.f32 %v3470, %v3489
    %v3494 = vadd.f32 %v3471, %v3489
    %v3495 = vadd.f32 %v3472, %v3489
    %v3496 = vadd.f32 %v3473, %v3489
    %v3497 = vadd.f32 %v3474, %v3489
    %v3498 = vadd.f32 %v3475, %v3489
    %v3499 = vadd.f32 %v3476, %v3489
    %v3500 = vadd.f32 %v3477, %v3489
    %v3501 = vadd.f32 %v3478, %v3489
    %v3502 = vadd.f32 %v3479, %v3489
    %v3503 = vadd.f32 %v3480, %v3489
    %v3504 = vadd.f32 %v3481, %v3489
    %v3505 = vadd.f32 %v3482, %v3489
    %v3506 = vadd.f32 %v3483, %v3489
    %v3507 = vmax.f32 %v3491, 0.0
    %v3508 = vmax.f32 %v3492, 0.0
    %v3509 = vmax.f32 %v3493, 0.0
    %v3510 = vmax.f32 %v3494, 0.0
    %v3511 = vmax.f32 %v3495, 0.0
    %v3512 = vmax.f32 %v3496, 0.0
    %v3513 = vmax.f32 %v3497, 0.0
    %v3514 = vmax.f32 %v3498, 0.0
    %v3515 = vmax.f32 %v3499, 0.0
    %v3516 = vmax.f32 %v3500, 0.0
    %v3517 = vmax.f32 %v3501, 0.0
    %v3518 = vmax.f32 %v3502, 0.0
    %v3519 = vmax.f32 %v3503, 0.0
    %v3520 = vmax.f32 %v3504, 0.0
    %v3521 = vmax.f32 %v3505, 0.0
    %v3522 = vmax.f32 %v3506, 0.0
    %v3523 = vpack.c.bf16 %v3508, %v3507
    %v3524 = vpack.c.bf16 %v3510, %v3509
    %v3525 = vpack.c.bf16 %v3512, %v3511
    %v3526 = vpack.c.bf16 %v3514, %v3513
    %v3527 = vpack.c.bf16 %v3516, %v3515
    %v3528 = vpack.c.bf16 %v3518, %v3517
    %v3529 = vpack.c.bf16 %v3520, %v3519
    %v3530 = vpack.c.bf16 %v3522, %v3521
    %3531 = vmatprep.subr.bf16.mxu0 0
    %3532 = vmatpush1.bf16.msra.mxu0 %v3530
    %3533 = vmatprep.subr.bf16.mxu0 0
    %3534 = vmatpush1.bf16.msra.mxu0 %v3529
    %3535 = vmatprep.subr.bf16.mxu0 0
    %3536 = vmatpush1.bf16.msra.mxu0 %v3528
    %3537 = vmatprep.subr.bf16.mxu0 0
    %3538 = vmatpush1.bf16.msra.mxu0 %v3527
    %3539 = vmatprep.subr.bf16.mxu0 0
    %3540 = vmatpush1.bf16.msra.mxu0 %v3526
    %3541 = vmatprep.subr.bf16.mxu0 0
    %3542 = vmatpush1.bf16.msra.mxu0 %v3525
    %3543 = vmatprep.subr.bf16.mxu0 0
    %3544 = vmatpush1.bf16.msra.mxu0 %v3524
    %3545 = vmatprep.subr.bf16.mxu0 0
    %3546 = vmatpush1.bf16.msra.mxu0 %v3523
    %3547 = vmatprep.subr.bf16.mxu0 0
    %3548 = vmatpush2.bf16.msra.mxu0 0
    %3549 = vmatprep.subr.bf16.mxu0 0
    %3550 = vmatpush2.bf16.msra.mxu0 0
    %3551 = vmatprep.subr.bf16.mxu0 0
    %3552 = vmatpush2.bf16.msra.mxu0 0
    %3553 = vmatprep.subr.bf16.mxu0 0
    %3554 = vmatpush2.bf16.msra.mxu0 0
    %3555 = vmatprep.subr.bf16.mxu0 0
    %3556 = vmatpush2.bf16.msra.mxu0 0
    %3557 = vmatprep.subr.bf16.mxu0 0
    %3558 = vmatpush2.bf16.msra.mxu0 0
    %3559 = vmatprep.subr.bf16.mxu0 0
    %3560 = vmatpush2.bf16.msra.mxu0 0
    %3561 = vmatprep.subr.bf16.mxu0 0
    %3562 = vmatpush2.bf16.msra.mxu0 0
    %3563 = vmatprep.mubr.bf16.mxu0 0
    %3564 = vmatmul.mubr.bf16.gmra.mxu0 %v434
    %v3565 = vpop.f32.mrf.mxu0
    %v3566 = vadd.f32 0.0, %v3565
    %v3567 = vpop.f32.mrf.mxu0
    %v3568 = vpop.f32.mrf.mxu0
    %v3569 = vadd.f32 0.0, %v3568
    %v3570 = vpop.f32.mrf.mxu0
    %3571 = vmatprep.mubr.bf16.mxu0 0
    %3572 = vmatmul.mubr.bf16.gmra.mxu0 %v435
    %v3573 = vpop.f32.mrf.mxu0
    %v3574 = vadd.f32 0.0, %v3573
    %v3575 = vpop.f32.mrf.mxu0
    %v3576 = vpop.f32.mrf.mxu0
    %v3577 = vadd.f32 0.0, %v3576
    %v3578 = vpop.f32.mrf.mxu0
    %3579 = vmatprep.mubr.bf16.mxu0 0
    %3580 = vmatmul.mubr.bf16.gmra.mxu0 %v436
    %v3581 = vpop.f32.mrf.mxu0
    %v3582 = vadd.f32 0.0, %v3581
    %v3583 = vpop.f32.mrf.mxu0
    %v3584 = vpop.f32.mrf.mxu0
    %v3585 = vadd.f32 0.0, %v3584
    %v3586 = vpop.f32.mrf.mxu0
    %3587 = vmatprep.mubr.bf16.mxu0 0
    %3588 = vmatmul.mubr.bf16.gmra.mxu0 %v437
    %v3589 = vpop.f32.mrf.mxu0
    %v3590 = vadd.f32 0.0, %v3589
    %v3591 = vpop.f32.mrf.mxu0
    %v3592 = vpop.f32.mrf.mxu0
    %v3593 = vadd.f32 0.0, %v3592
    %v3594 = vpop.f32.mrf.mxu0
    %3595 = vmatprep.mubr.bf16.mxu0 0
    %3596 = vmatmul.mubr.bf16.gmra.mxu0 %v438
    %v3597 = vpop.f32.mrf.mxu0
    %v3598 = vadd.f32 0.0, %v3597
    %v3599 = vpop.f32.mrf.mxu0
    %v3600 = vpop.f32.mrf.mxu0
    %v3601 = vadd.f32 0.0, %v3600
    %v3602 = vpop.f32.mrf.mxu0
    %3603 = vmatprep.mubr.bf16.mxu0 0
    %3604 = vmatmul.mubr.bf16.gmra.mxu0 %v439
    %v3605 = vpop.f32.mrf.mxu0
    %v3606 = vadd.f32 0.0, %v3605
    %v3607 = vpop.f32.mrf.mxu0
    %v3608 = vpop.f32.mrf.mxu0
    %v3609 = vadd.f32 0.0, %v3608
    %v3610 = vpop.f32.mrf.mxu0
    %3611 = vmatprep.mubr.bf16.mxu0 0
    %3612 = vmatmul.mubr.bf16.gmra.mxu0 %v440
    %v3613 = vpop.f32.mrf.mxu0
    %v3614 = vadd.f32 0.0, %v3613
    %v3615 = vpop.f32.mrf.mxu0
    %v3616 = vpop.f32.mrf.mxu0
    %v3617 = vadd.f32 0.0, %v3616
    %v3618 = vpop.f32.mrf.mxu0
    %3619 = vmatprep.mubr.bf16.mxu0 0
    %3620 = vmatmul.mubr.bf16.gmra.mxu0 %v441
    %v3621 = vpop.f32.mrf.mxu0
    %v3622 = vadd.f32 0.0, %v3621
    %v3623 = vpop.f32.mrf.mxu0
    %v3624 = vpop.f32.mrf.mxu0
    %v3625 = vadd.f32 0.0, %v3624
    %v3626 = vpop.f32.mrf.mxu0
    %3627 = vdwg.mxu0
    %v3628 = vpack.c.bf16 %v3569, %v3566
    %v3629 = vpack.c.bf16 %v3577, %v3574
    %v3630 = vpack.c.bf16 %v3585, %v3582
    %v3631 = vpack.c.bf16 %v3593, %v3590
    %v3632 = vpack.c.bf16 %v3601, %v3598
    %v3633 = vpack.c.bf16 %v3609, %v3606
    %v3634 = vpack.c.bf16 %v3617, %v3614
    %v3635 = vpack.c.bf16 %v3625, %v3622
    %v3636 = vld [vmem:[%s6] sm:$0xf]
    %v3637 = vld [vmem:[%s6 + $0x4] sm:$0xf]
    %v3638 = vld [vmem:[%s6 + $0x8] sm:$0xf]
    %v3639 = vld [vmem:[%s6 + $0xc] sm:$0xf]
    %v3640 = vld [vmem:[%s6 + $0x10] sm:$0xf]
    %v3641 = vld [vmem:[%s6 + $0x14] sm:$0xf]
    %v3642 = vld [vmem:[%s6 + $0x18] sm:$0xf]
    %v3643 = vld [vmem:[%s6 + $0x1c] sm:$0xf]
    %v3644 = vld [vmem:[%s6 + $0x20] sm:$0xf]
    %v3645 = vld [vmem:[%s6 + $0x24] sm:$0xf]
    %v3646 = vld [vmem:[%s6 + $0x28] sm:$0xf]
    %v3647 = vld [vmem:[%s6 + $0x2c] sm:$0xf]
    %v3648 = vld [vmem:[%s6 + $0x30] sm:$0xf]
    %v3649 = vld [vmem:[%s6 + $0x34] sm:$0xf]
    %v3650 = vld [vmem:[%s6 + $0x38] sm:$0xf]
    %v3651 = vld [vmem:[%s6 + $0x3c] sm:$0xf]
    %3652 = vmatprep.subr.bf16.mxu0 0
    %3653 = vmatpush1.bf16.msra.mxu0 %v3530
    %3654 = vmatprep.subr.bf16.mxu0 0
    %3655 = vmatpush1.bf16.msra.mxu0 %v3529
    %3656 = vmatprep.subr.bf16.mxu0 0
    %3657 = vmatpush1.bf16.msra.mxu0 %v3528
    %3658 = vmatprep.subr.bf16.mxu0 0
    %3659 = vmatpush1.bf16.msra.mxu0 %v3527
    %3660 = vmatprep.subr.bf16.mxu0 0
    %3661 = vmatpush1.bf16.msra.mxu0 %v3526
    %3662 = vmatprep.subr.bf16.mxu0 0
    %3663 = vmatpush1.bf16.msra.mxu0 %v3525
    %3664 = vmatprep.subr.bf16.mxu0 0
    %3665 = vmatpush1.bf16.msra.mxu0 %v3524
    %3666 = vmatprep.subr.bf16.mxu0 0
    %3667 = vmatpush1.bf16.msra.mxu0 %v3523
    %3668 = vmatprep.subr.bf16.mxu0 0
    %3669 = vmatpush2.bf16.msra.mxu0 0
    %3670 = vmatprep.subr.bf16.mxu0 0
    %3671 = vmatpush2.bf16.msra.mxu0 0
    %3672 = vmatprep.subr.bf16.mxu0 0
    %3673 = vmatpush2.bf16.msra.mxu0 0
    %3674 = vmatprep.subr.bf16.mxu0 0
    %3675 = vmatpush2.bf16.msra.mxu0 0
    %3676 = vmatprep.subr.bf16.mxu0 0
    %3677 = vmatpush2.bf16.msra.mxu0 0
    %3678 = vmatprep.subr.bf16.mxu0 0
    %3679 = vmatpush2.bf16.msra.mxu0 0
    %3680 = vmatprep.subr.bf16.mxu0 0
    %3681 = vmatpush2.bf16.msra.mxu0 0
    %3682 = vmatprep.subr.bf16.mxu0 0
    %3683 = vmatpush2.bf16.msra.mxu0 0
    %3684 = vmatprep.mubr.bf16.mxu0 0
    %3685 = vmatmul.mubr.bf16.gmra.mxu0 %v620
    %v3686 = vpop.f32.mrf.mxu0
    %v3687 = vadd.f32 0.0, %v3686
    %v3688 = vpop.f32.mrf.mxu0
    %v3689 = vpop.f32.mrf.mxu0
    %v3690 = vadd.f32 0.0, %v3689
    %v3691 = vpop.f32.mrf.mxu0
    %3692 = vmatprep.mubr.bf16.mxu0 0
    %3693 = vmatmul.mubr.bf16.gmra.mxu0 %v621
    %v3694 = vpop.f32.mrf.mxu0
    %v3695 = vadd.f32 0.0, %v3694
    %v3696 = vpop.f32.mrf.mxu0
    %v3697 = vpop.f32.mrf.mxu0
    %v3698 = vadd.f32 0.0, %v3697
    %v3699 = vpop.f32.mrf.mxu0
    %3700 = vmatprep.mubr.bf16.mxu0 0
    %3701 = vmatmul.mubr.bf16.gmra.mxu0 %v622
    %v3702 = vpop.f32.mrf.mxu0
    %v3703 = vadd.f32 0.0, %v3702
    %v3704 = vpop.f32.mrf.mxu0
    %v3705 = vpop.f32.mrf.mxu0
    %v3706 = vadd.f32 0.0, %v3705
    %v3707 = vpop.f32.mrf.mxu0
    %3708 = vmatprep.mubr.bf16.mxu0 0
    %3709 = vmatmul.mubr.bf16.gmra.mxu0 %v623
    %v3710 = vpop.f32.mrf.mxu0
    %v3711 = vadd.f32 0.0, %v3710
    %v3712 = vpop.f32.mrf.mxu0
    %v3713 = vpop.f32.mrf.mxu0
    %v3714 = vadd.f32 0.0, %v3713
    %v3715 = vpop.f32.mrf.mxu0
    %3716 = vmatprep.mubr.bf16.mxu0 0
    %3717 = vmatmul.mubr.bf16.gmra.mxu0 %v624
    %v3718 = vpop.f32.mrf.mxu0
    %v3719 = vadd.f32 0.0, %v3718
    %v3720 = vpop.f32.mrf.mxu0
    %v3721 = vpop.f32.mrf.mxu0
    %v3722 = vadd.f32 0.0, %v3721
    %v3723 = vpop.f32.mrf.mxu0
    %3724 = vmatprep.mubr.bf16.mxu0 0
    %3725 = vmatmul.mubr.bf16.gmra.mxu0 %v625
    %v3726 = vpop.f32.mrf.mxu0
    %v3727 = vadd.f32 0.0, %v3726
    %v3728 = vpop.f32.mrf.mxu0
    %v3729 = vpop.f32.mrf.mxu0
    %v3730 = vadd.f32 0.0, %v3729
    %v3731 = vpop.f32.mrf.mxu0
    %3732 = vmatprep.mubr.bf16.mxu0 0
    %3733 = vmatmul.mubr.bf16.gmra.mxu0 %v626
    %v3734 = vpop.f32.mrf.mxu0
    %v3735 = vadd.f32 0.0, %v3734
    %v3736 = vpop.f32.mrf.mxu0
    %v3737 = vpop.f32.mrf.mxu0
    %v3738 = vadd.f32 0.0, %v3737
    %v3739 = vpop.f32.mrf.mxu0
    %3740 = vmatprep.mubr.bf16.mxu0 0
    %3741 = vmatmul.mubr.bf16.gmra.mxu0 %v627
    %v3742 = vpop.f32.mrf.mxu0
    %v3743 = vadd.f32 0.0, %v3742
    %v3744 = vpop.f32.mrf.mxu0
    %v3745 = vpop.f32.mrf.mxu0
    %v3746 = vadd.f32 0.0, %v3745
    %v3747 = vpop.f32.mrf.mxu0
    %3748 = vdwg.mxu0
    %v3749 = vpack.c.bf16 %v3690, %v3687
    %v3750 = vpack.c.bf16 %v3698, %v3695
    %v3751 = vpack.c.bf16 %v3706, %v3703
    %v3752 = vpack.c.bf16 %v3714, %v3711
    %v3753 = vpack.c.bf16 %v3722, %v3719
    %v3754 = vpack.c.bf16 %v3730, %v3727
    %v3755 = vpack.c.bf16 %v3738, %v3735
    %v3756 = vpack.c.bf16 %v3746, %v3743
    %s3757 = scalar_lea.vmem %s6, 64
    %v3758 = vld [vmem:[%s3757] sm:$0xf]
    %v3759 = vld [vmem:[%s3757 + $0x4] sm:$0xf]
    %v3760 = vld [vmem:[%s3757 + $0x8] sm:$0xf]
    %v3761 = vld [vmem:[%s3757 + $0xc] sm:$0xf]
    %v3762 = vld [vmem:[%s3757 + $0x10] sm:$0xf]
    %v3763 = vld [vmem:[%s3757 + $0x14] sm:$0xf]
    %v3764 = vld [vmem:[%s3757 + $0x18] sm:$0xf]
    %v3765 = vld [vmem:[%s3757 + $0x1c] sm:$0xf]
    %v3766 = vld [vmem:[%s3757 + $0x20] sm:$0xf]
    %v3767 = vld [vmem:[%s3757 + $0x24] sm:$0xf]
    %v3768 = vld [vmem:[%s3757 + $0x28] sm:$0xf]
    %v3769 = vld [vmem:[%s3757 + $0x2c] sm:$0xf]
    %v3770 = vld [vmem:[%s3757 + $0x30] sm:$0xf]
    %v3771 = vld [vmem:[%s3757 + $0x34] sm:$0xf]
    %v3772 = vld [vmem:[%s3757 + $0x38] sm:$0xf]
    %v3773 = vld [vmem:[%s3757 + $0x3c] sm:$0xf]
    %v3790 = vunpack.c.l.b16 %v3758
    %v3791 = vunpack.c.l.b16 %v3759
    %v3792 = vunpack.c.l.b16 %v3760
    %v3793 = vunpack.c.l.b16 %v3761
    %v3794 = vunpack.c.l.b16 %v3762
    %v3795 = vunpack.c.l.b16 %v3763
    %v3796 = vunpack.c.l.b16 %v3764
    %v3797 = vunpack.c.l.b16 %v3765
    %v3798 = vunpack.c.l.b16 %v3766
    %v3799 = vunpack.c.l.b16 %v3767
    %v3800 = vunpack.c.l.b16 %v3768
    %v3801 = vunpack.c.l.b16 %v3769
    %v3802 = vunpack.c.l.b16 %v3770
    %v3803 = vunpack.c.l.b16 %v3771
    %v3804 = vunpack.c.l.b16 %v3772
    %v3805 = vunpack.c.l.b16 %v3773
    %v3806 = vpack.c.b16 %v3791, %v3790
    %v3807 = vpack.c.b16 %v3793, %v3792
    %v3808 = vpack.c.b16 %v3795, %v3794
    %v3809 = vpack.c.b16 %v3797, %v3796
    %v3810 = vpack.c.b16 %v3799, %v3798
    %v3811 = vpack.c.b16 %v3801, %v3800
    %v3812 = vpack.c.b16 %v3803, %v3802
    %v3813 = vpack.c.b16 %v3805, %v3804
    %3822 = vmatprep.subr.bf16.mxu0 0
    %3823 = vmatpush1.bf16.msra.mxu0 %v3813
    %3824 = vmatprep.subr.bf16.mxu0 0
    %3825 = vmatpush1.bf16.msra.mxu0 %v3812
    %3826 = vmatprep.subr.bf16.mxu0 0
    %3827 = vmatpush1.bf16.msra.mxu0 %v3811
    %3828 = vmatprep.subr.bf16.mxu0 0
    %3829 = vmatpush1.bf16.msra.mxu0 %v3810
    %3830 = vmatprep.subr.bf16.mxu0 0
    %3831 = vmatpush1.bf16.msra.mxu0 %v3809
    %3832 = vmatprep.subr.bf16.mxu0 0
    %3833 = vmatpush1.bf16.msra.mxu0 %v3808
    %3834 = vmatprep.subr.bf16.mxu0 0
    %3835 = vmatpush1.bf16.msra.mxu0 %v3807
    %3836 = vmatprep.subr.bf16.mxu0 0
    %3837 = vmatpush1.bf16.msra.mxu0 %v3806
    %3838 = vmatprep.subr.bf16.mxu0 0
    %3839 = vmatpush2.bf16.msra.mxu0 0
    %3840 = vmatprep.subr.bf16.mxu0 0
    %3841 = vmatpush2.bf16.msra.mxu0 0
    %3842 = vmatprep.subr.bf16.mxu0 0
    %3843 = vmatpush2.bf16.msra.mxu0 0
    %3844 = vmatprep.subr.bf16.mxu0 0
    %3845 = vmatpush2.bf16.msra.mxu0 0
    %3846 = vmatprep.subr.bf16.mxu0 0
    %3847 = vmatpush2.bf16.msra.mxu0 0
    %3848 = vmatprep.subr.bf16.mxu0 0
    %3849 = vmatpush2.bf16.msra.mxu0 0
    %3850 = vmatprep.subr.bf16.mxu0 0
    %3851 = vmatpush2.bf16.msra.mxu0 0
    %3852 = vmatprep.subr.bf16.mxu0 0
    %3853 = vmatpush2.bf16.msra.mxu0 0
    %3854 = vmatprep.mubr.bf16.mxu0 0
    %3855 = vmatmul.mubr.bf16.gmra.mxu0 %v3749
    %v3856 = vpop.f32.mrf.mxu0
    %v3857 = vadd.f32 0.0, %v3856
    %v3858 = vpop.f32.mrf.mxu0
    %v3859 = vpop.f32.mrf.mxu0
    %v3860 = vadd.f32 0.0, %v3859
    %v3861 = vpop.f32.mrf.mxu0
    %3862 = vmatprep.mubr.bf16.mxu0 0
    %3863 = vmatmul.mubr.bf16.gmra.mxu0 %v3750
    %v3864 = vpop.f32.mrf.mxu0
    %v3865 = vadd.f32 0.0, %v3864
    %v3866 = vpop.f32.mrf.mxu0
    %v3867 = vpop.f32.mrf.mxu0
    %v3868 = vadd.f32 0.0, %v3867
    %v3869 = vpop.f32.mrf.mxu0
    %3870 = vmatprep.mubr.bf16.mxu0 0
    %3871 = vmatmul.mubr.bf16.gmra.mxu0 %v3751
    %v3872 = vpop.f32.mrf.mxu0
    %v3873 = vadd.f32 0.0, %v3872
    %v3874 = vpop.f32.mrf.mxu0
    %v3875 = vpop.f32.mrf.mxu0
    %v3876 = vadd.f32 0.0, %v3875
    %v3877 = vpop.f32.mrf.mxu0
    %3878 = vmatprep.mubr.bf16.mxu0 0
    %3879 = vmatmul.mubr.bf16.gmra.mxu0 %v3752
    %v3880 = vpop.f32.mrf.mxu0
    %v3881 = vadd.f32 0.0, %v3880
    %v3882 = vpop.f32.mrf.mxu0
    %v3883 = vpop.f32.mrf.mxu0
    %v3884 = vadd.f32 0.0, %v3883
    %v3885 = vpop.f32.mrf.mxu0
    %3886 = vmatprep.mubr.bf16.mxu0 0
    %3887 = vmatmul.mubr.bf16.gmra.mxu0 %v3753
    %v3888 = vpop.f32.mrf.mxu0
    %v3889 = vadd.f32 0.0, %v3888
    %v3890 = vpop.f32.mrf.mxu0
    %v3891 = vpop.f32.mrf.mxu0
    %v3892 = vadd.f32 0.0, %v3891
    %v3893 = vpop.f32.mrf.mxu0
    %3894 = vmatprep.mubr.bf16.mxu0 0
    %3895 = vmatmul.mubr.bf16.gmra.mxu0 %v3754
    %v3896 = vpop.f32.mrf.mxu0
    %v3897 = vadd.f32 0.0, %v3896
    %v3898 = vpop.f32.mrf.mxu0
    %v3899 = vpop.f32.mrf.mxu0
    %v3900 = vadd.f32 0.0, %v3899
    %v3901 = vpop.f32.mrf.mxu0
    %3902 = vmatprep.mubr.bf16.mxu0 0
    %3903 = vmatmul.mubr.bf16.gmra.mxu0 %v3755
    %v3904 = vpop.f32.mrf.mxu0
    %v3905 = vadd.f32 0.0, %v3904
    %v3906 = vpop.f32.mrf.mxu0
    %v3907 = vpop.f32.mrf.mxu0
    %v3908 = vadd.f32 0.0, %v3907
    %v3909 = vpop.f32.mrf.mxu0
    %3910 = vmatprep.mubr.bf16.mxu0 0
    %3911 = vmatmul.mubr.bf16.gmra.mxu0 %v3756
    %v3912 = vpop.f32.mrf.mxu0
    %v3913 = vadd.f32 0.0, %v3912
    %v3914 = vpop.f32.mrf.mxu0
    %v3915 = vpop.f32.mrf.mxu0
    %v3916 = vadd.f32 0.0, %v3915
    %v3917 = vpop.f32.mrf.mxu0
    %3918 = vdwg.mxu0
    %v3935 = vunpack.c.l.b16 %v3636
    %v3936 = vunpack.c.l.b16 %v3637
    %v3937 = vunpack.c.l.b16 %v3638
    %v3938 = vunpack.c.l.b16 %v3639
    %v3939 = vunpack.c.l.b16 %v3640
    %v3940 = vunpack.c.l.b16 %v3641
    %v3941 = vunpack.c.l.b16 %v3642
    %v3942 = vunpack.c.l.b16 %v3643
    %v3943 = vunpack.c.l.b16 %v3644
    %v3944 = vunpack.c.l.b16 %v3645
    %v3945 = vunpack.c.l.b16 %v3646
    %v3946 = vunpack.c.l.b16 %v3647
    %v3947 = vunpack.c.l.b16 %v3648
    %v3948 = vunpack.c.l.b16 %v3649
    %v3949 = vunpack.c.l.b16 %v3650
    %v3950 = vunpack.c.l.b16 %v3651
    %v3951 = vpack.c.b16 %v3936, %v3935
    %v3952 = vpack.c.b16 %v3938, %v3937
    %v3953 = vpack.c.b16 %v3940, %v3939
    %v3954 = vpack.c.b16 %v3942, %v3941
    %v3955 = vpack.c.b16 %v3944, %v3943
    %v3956 = vpack.c.b16 %v3946, %v3945
    %v3957 = vpack.c.b16 %v3948, %v3947
    %v3958 = vpack.c.b16 %v3950, %v3949
    %3967 = vmatprep.subr.bf16.mxu0 0
    %3968 = vmatpush1.bf16.msra.mxu0 %v3958
    %3969 = vmatprep.subr.bf16.mxu0 0
    %3970 = vmatpush1.bf16.msra.mxu0 %v3957
    %3971 = vmatprep.subr.bf16.mxu0 0
    %3972 = vmatpush1.bf16.msra.mxu0 %v3956
    %3973 = vmatprep.subr.bf16.mxu0 0
    %3974 = vmatpush1.bf16.msra.mxu0 %v3955
    %3975 = vmatprep.subr.bf16.mxu0 0
    %3976 = vmatpush1.bf16.msra.mxu0 %v3954
    %3977 = vmatprep.subr.bf16.mxu0 0
    %3978 = vmatpush1.bf16.msra.mxu0 %v3953
    %3979 = vmatprep.subr.bf16.mxu0 0
    %3980 = vmatpush1.bf16.msra.mxu0 %v3952
    %3981 = vmatprep.subr.bf16.mxu0 0
    %3982 = vmatpush1.bf16.msra.mxu0 %v3951
    %3983 = vmatprep.subr.bf16.mxu0 0
    %3984 = vmatpush2.bf16.msra.mxu0 0
    %3985 = vmatprep.subr.bf16.mxu0 0
    %3986 = vmatpush2.bf16.msra.mxu0 0
    %3987 = vmatprep.subr.bf16.mxu0 0
    %3988 = vmatpush2.bf16.msra.mxu0 0
    %3989 = vmatprep.subr.bf16.mxu0 0
    %3990 = vmatpush2.bf16.msra.mxu0 0
    %3991 = vmatprep.subr.bf16.mxu0 0
    %3992 = vmatpush2.bf16.msra.mxu0 0
    %3993 = vmatprep.subr.bf16.mxu0 0
    %3994 = vmatpush2.bf16.msra.mxu0 0
    %3995 = vmatprep.subr.bf16.mxu0 0
    %3996 = vmatpush2.bf16.msra.mxu0 0
    %3997 = vmatprep.subr.bf16.mxu0 0
    %3998 = vmatpush2.bf16.msra.mxu0 0
    %3999 = vmatprep.mubr.bf16.mxu0 0
    %4000 = vmatmul.mubr.bf16.gmra.mxu0 %v3628
    %v4001 = vpop.f32.mrf.mxu0
    %v4002 = vadd.f32 %v3857, %v4001
    %v4003 = vpop.f32.mrf.mxu0
    %v4004 = vpop.f32.mrf.mxu0
    %v4005 = vadd.f32 %v3860, %v4004
    %v4006 = vpop.f32.mrf.mxu0
    %4007 = vmatprep.mubr.bf16.mxu0 0
    %4008 = vmatmul.mubr.bf16.gmra.mxu0 %v3629
    %v4009 = vpop.f32.mrf.mxu0
    %v4010 = vadd.f32 %v3865, %v4009
    %v4011 = vpop.f32.mrf.mxu0
    %v4012 = vpop.f32.mrf.mxu0
    %v4013 = vadd.f32 %v3868, %v4012
    %v4014 = vpop.f32.mrf.mxu0
    %4015 = vmatprep.mubr.bf16.mxu0 0
    %4016 = vmatmul.mubr.bf16.gmra.mxu0 %v3630
    %v4017 = vpop.f32.mrf.mxu0
    %v4018 = vadd.f32 %v3873, %v4017
    %v4019 = vpop.f32.mrf.mxu0
    %v4020 = vpop.f32.mrf.mxu0
    %v4021 = vadd.f32 %v3876, %v4020
    %v4022 = vpop.f32.mrf.mxu0
    %4023 = vmatprep.mubr.bf16.mxu0 0
    %4024 = vmatmul.mubr.bf16.gmra.mxu0 %v3631
    %v4025 = vpop.f32.mrf.mxu0
    %v4026 = vadd.f32 %v3881, %v4025
    %v4027 = vpop.f32.mrf.mxu0
    %v4028 = vpop.f32.mrf.mxu0
    %v4029 = vadd.f32 %v3884, %v4028
    %v4030 = vpop.f32.mrf.mxu0
    %4031 = vmatprep.mubr.bf16.mxu0 0
    %4032 = vmatmul.mubr.bf16.gmra.mxu0 %v3632
    %v4033 = vpop.f32.mrf.mxu0
    %v4034 = vadd.f32 %v3889, %v4033
    %v4035 = vpop.f32.mrf.mxu0
    %v4036 = vpop.f32.mrf.mxu0
    %v4037 = vadd.f32 %v3892, %v4036
    %v4038 = vpop.f32.mrf.mxu0
    %4039 = vmatprep.mubr.bf16.mxu0 0
    %4040 = vmatmul.mubr.bf16.gmra.mxu0 %v3633
    %v4041 = vpop.f32.mrf.mxu0
    %v4042 = vadd.f32 %v3897, %v4041
    %v4043 = vpop.f32.mrf.mxu0
    %v4044 = vpop.f32.mrf.mxu0
    %v4045 = vadd.f32 %v3900, %v4044
    %v4046 = vpop.f32.mrf.mxu0
    %4047 = vmatprep.mubr.bf16.mxu0 0
    %4048 = vmatmul.mubr.bf16.gmra.mxu0 %v3634
    %v4049 = vpop.f32.mrf.mxu0
    %v4050 = vadd.f32 %v3905, %v4049
    %v4051 = vpop.f32.mrf.mxu0
    %v4052 = vpop.f32.mrf.mxu0
    %v4053 = vadd.f32 %v3908, %v4052
    %v4054 = vpop.f32.mrf.mxu0
    %4055 = vmatprep.mubr.bf16.mxu0 0
    %4056 = vmatmul.mubr.bf16.gmra.mxu0 %v3635
    %v4057 = vpop.f32.mrf.mxu0
    %v4058 = vadd.f32 %v3913, %v4057
    %v4059 = vpop.f32.mrf.mxu0
    %v4060 = vpop.f32.mrf.mxu0
    %v4061 = vadd.f32 %v3916, %v4060
    %v4062 = vpop.f32.mrf.mxu0
    %4063 = vdwg.mxu0
    %4064 = vmatprep.subr.bf16.mxu0 0
    %4065 = vmatpush1.bf16.msra.mxu0 %v3530
    %4066 = vmatprep.subr.bf16.mxu0 0
    %4067 = vmatpush1.bf16.msra.mxu0 %v3529
    %4068 = vmatprep.subr.bf16.mxu0 0
    %4069 = vmatpush1.bf16.msra.mxu0 %v3528
    %4070 = vmatprep.subr.bf16.mxu0 0
    %4071 = vmatpush1.bf16.msra.mxu0 %v3527
    %4072 = vmatprep.subr.bf16.mxu0 0
    %4073 = vmatpush1.bf16.msra.mxu0 %v3526
    %4074 = vmatprep.subr.bf16.mxu0 0
    %4075 = vmatpush1.bf16.msra.mxu0 %v3525
    %4076 = vmatprep.subr.bf16.mxu0 0
    %4077 = vmatpush1.bf16.msra.mxu0 %v3524
    %4078 = vmatprep.subr.bf16.mxu0 0
    %4079 = vmatpush1.bf16.msra.mxu0 %v3523
    %4080 = vmatprep.subr.bf16.mxu0 0
    %4081 = vmatpush2.bf16.msra.mxu0 0
    %4082 = vmatprep.subr.bf16.mxu0 0
    %4083 = vmatpush2.bf16.msra.mxu0 0
    %4084 = vmatprep.subr.bf16.mxu0 0
    %4085 = vmatpush2.bf16.msra.mxu0 0
    %4086 = vmatprep.subr.bf16.mxu0 0
    %4087 = vmatpush2.bf16.msra.mxu0 0
    %4088 = vmatprep.subr.bf16.mxu0 0
    %4089 = vmatpush2.bf16.msra.mxu0 0
    %4090 = vmatprep.subr.bf16.mxu0 0
    %4091 = vmatpush2.bf16.msra.mxu0 0
    %4092 = vmatprep.subr.bf16.mxu0 0
    %4093 = vmatpush2.bf16.msra.mxu0 0
    %4094 = vmatprep.subr.bf16.mxu0 0
    %4095 = vmatpush2.bf16.msra.mxu0 0
    %4096 = vmatprep.mubr.bf16.mxu0 0
    %4097 = vmatmul.mubr.bf16.gmra.mxu0 %v1097
    %v4098 = vpop.f32.mrf.mxu0
    %v4099 = vadd.f32 0.0, %v4098
    %v4100 = vpop.f32.mrf.mxu0
    %v4101 = vpop.f32.mrf.mxu0
    %v4102 = vadd.f32 0.0, %v4101
    %v4103 = vpop.f32.mrf.mxu0
    %4104 = vmatprep.mubr.bf16.mxu0 0
    %4105 = vmatmul.mubr.bf16.gmra.mxu0 %v1098
    %v4106 = vpop.f32.mrf.mxu0
    %v4107 = vadd.f32 0.0, %v4106
    %v4108 = vpop.f32.mrf.mxu0
    %v4109 = vpop.f32.mrf.mxu0
    %v4110 = vadd.f32 0.0, %v4109
    %v4111 = vpop.f32.mrf.mxu0
    %4112 = vmatprep.mubr.bf16.mxu0 0
    %4113 = vmatmul.mubr.bf16.gmra.mxu0 %v1099
    %v4114 = vpop.f32.mrf.mxu0
    %v4115 = vadd.f32 0.0, %v4114
    %v4116 = vpop.f32.mrf.mxu0
    %v4117 = vpop.f32.mrf.mxu0
    %v4118 = vadd.f32 0.0, %v4117
    %v4119 = vpop.f32.mrf.mxu0
    %4120 = vmatprep.mubr.bf16.mxu0 0
    %4121 = vmatmul.mubr.bf16.gmra.mxu0 %v1100
    %v4122 = vpop.f32.mrf.mxu0
    %v4123 = vadd.f32 0.0, %v4122
    %v4124 = vpop.f32.mrf.mxu0
    %v4125 = vpop.f32.mrf.mxu0
    %v4126 = vadd.f32 0.0, %v4125
    %v4127 = vpop.f32.mrf.mxu0
    %4128 = vmatprep.mubr.bf16.mxu0 0
    %4129 = vmatmul.mubr.bf16.gmra.mxu0 %v1101
    %v4130 = vpop.f32.mrf.mxu0
    %v4131 = vadd.f32 0.0, %v4130
    %v4132 = vpop.f32.mrf.mxu0
    %v4133 = vpop.f32.mrf.mxu0
    %v4134 = vadd.f32 0.0, %v4133
    %v4135 = vpop.f32.mrf.mxu0
    %4136 = vmatprep.mubr.bf16.mxu0 0
    %4137 = vmatmul.mubr.bf16.gmra.mxu0 %v1102
    %v4138 = vpop.f32.mrf.mxu0
    %v4139 = vadd.f32 0.0, %v4138
    %v4140 = vpop.f32.mrf.mxu0
    %v4141 = vpop.f32.mrf.mxu0
    %v4142 = vadd.f32 0.0, %v4141
    %v4143 = vpop.f32.mrf.mxu0
    %4144 = vmatprep.mubr.bf16.mxu0 0
    %4145 = vmatmul.mubr.bf16.gmra.mxu0 %v1103
    %v4146 = vpop.f32.mrf.mxu0
    %v4147 = vadd.f32 0.0, %v4146
    %v4148 = vpop.f32.mrf.mxu0
    %v4149 = vpop.f32.mrf.mxu0
    %v4150 = vadd.f32 0.0, %v4149
    %v4151 = vpop.f32.mrf.mxu0
    %4152 = vmatprep.mubr.bf16.mxu0 0
    %4153 = vmatmul.mubr.bf16.gmra.mxu0 %v1104
    %v4154 = vpop.f32.mrf.mxu0
    %v4155 = vadd.f32 0.0, %v4154
    %v4156 = vpop.f32.mrf.mxu0
    %v4157 = vpop.f32.mrf.mxu0
    %v4158 = vadd.f32 0.0, %v4157
    %v4159 = vpop.f32.mrf.mxu0
    %4160 = vdwg.mxu0
    %v4161 = vpack.c.bf16 %v4102, %v4099
    %v4162 = vpack.c.bf16 %v4110, %v4107
    %v4163 = vpack.c.bf16 %v4118, %v4115
    %v4164 = vpack.c.bf16 %v4126, %v4123
    %v4165 = vpack.c.bf16 %v4134, %v4131
    %v4166 = vpack.c.bf16 %v4142, %v4139
    %v4167 = vpack.c.bf16 %v4150, %v4147
    %v4168 = vpack.c.bf16 %v4158, %v4155
    %s4169 = scalar_lea.vmem %s6, 128
    %v4170 = vld [vmem:[%s4169] sm:$0xf]
    %v4171 = vld [vmem:[%s4169 + $0x4] sm:$0xf]
    %v4172 = vld [vmem:[%s4169 + $0x8] sm:$0xf]
    %v4173 = vld [vmem:[%s4169 + $0xc] sm:$0xf]
    %v4174 = vld [vmem:[%s4169 + $0x10] sm:$0xf]
    %v4175 = vld [vmem:[%s4169 + $0x14] sm:$0xf]
    %v4176 = vld [vmem:[%s4169 + $0x18] sm:$0xf]
    %v4177 = vld [vmem:[%s4169 + $0x1c] sm:$0xf]
    %v4178 = vld [vmem:[%s4169 + $0x20] sm:$0xf]
    %v4179 = vld [vmem:[%s4169 + $0x24] sm:$0xf]
    %v4180 = vld [vmem:[%s4169 + $0x28] sm:$0xf]
    %v4181 = vld [vmem:[%s4169 + $0x2c] sm:$0xf]
    %v4182 = vld [vmem:[%s4169 + $0x30] sm:$0xf]
    %v4183 = vld [vmem:[%s4169 + $0x34] sm:$0xf]
    %v4184 = vld [vmem:[%s4169 + $0x38] sm:$0xf]
    %v4185 = vld [vmem:[%s4169 + $0x3c] sm:$0xf]
    %v4202 = vunpack.c.l.b16 %v4170
    %v4203 = vunpack.c.l.b16 %v4171
    %v4204 = vunpack.c.l.b16 %v4172
    %v4205 = vunpack.c.l.b16 %v4173
    %v4206 = vunpack.c.l.b16 %v4174
    %v4207 = vunpack.c.l.b16 %v4175
    %v4208 = vunpack.c.l.b16 %v4176
    %v4209 = vunpack.c.l.b16 %v4177
    %v4210 = vunpack.c.l.b16 %v4178
    %v4211 = vunpack.c.l.b16 %v4179
    %v4212 = vunpack.c.l.b16 %v4180
    %v4213 = vunpack.c.l.b16 %v4181
    %v4214 = vunpack.c.l.b16 %v4182
    %v4215 = vunpack.c.l.b16 %v4183
    %v4216 = vunpack.c.l.b16 %v4184
    %v4217 = vunpack.c.l.b16 %v4185
    %v4218 = vpack.c.b16 %v4203, %v4202
    %v4219 = vpack.c.b16 %v4205, %v4204
    %v4220 = vpack.c.b16 %v4207, %v4206
    %v4221 = vpack.c.b16 %v4209, %v4208
    %v4222 = vpack.c.b16 %v4211, %v4210
    %v4223 = vpack.c.b16 %v4213, %v4212
    %v4224 = vpack.c.b16 %v4215, %v4214
    %v4225 = vpack.c.b16 %v4217, %v4216
    %4234 = vmatprep.subr.bf16.mxu0 0
    %4235 = vmatpush1.bf16.msra.mxu0 %v4225
    %4236 = vmatprep.subr.bf16.mxu0 0
    %4237 = vmatpush1.bf16.msra.mxu0 %v4224
    %4238 = vmatprep.subr.bf16.mxu0 0
    %4239 = vmatpush1.bf16.msra.mxu0 %v4223
    %4240 = vmatprep.subr.bf16.mxu0 0
    %4241 = vmatpush1.bf16.msra.mxu0 %v4222
    %4242 = vmatprep.subr.bf16.mxu0 0
    %4243 = vmatpush1.bf16.msra.mxu0 %v4221
    %4244 = vmatprep.subr.bf16.mxu0 0
    %4245 = vmatpush1.bf16.msra.mxu0 %v4220
    %4246 = vmatprep.subr.bf16.mxu0 0
    %4247 = vmatpush1.bf16.msra.mxu0 %v4219
    %4248 = vmatprep.subr.bf16.mxu0 0
    %4249 = vmatpush1.bf16.msra.mxu0 %v4218
    %4250 = vmatprep.subr.bf16.mxu0 0
    %4251 = vmatpush2.bf16.msra.mxu0 0
    %4252 = vmatprep.subr.bf16.mxu0 0
    %4253 = vmatpush2.bf16.msra.mxu0 0
    %4254 = vmatprep.subr.bf16.mxu0 0
    %4255 = vmatpush2.bf16.msra.mxu0 0
    %4256 = vmatprep.subr.bf16.mxu0 0
    %4257 = vmatpush2.bf16.msra.mxu0 0
    %4258 = vmatprep.subr.bf16.mxu0 0
    %4259 = vmatpush2.bf16.msra.mxu0 0
    %4260 = vmatprep.subr.bf16.mxu0 0
    %4261 = vmatpush2.bf16.msra.mxu0 0
    %4262 = vmatprep.subr.bf16.mxu0 0
    %4263 = vmatpush2.bf16.msra.mxu0 0
    %4264 = vmatprep.subr.bf16.mxu0 0
    %4265 = vmatpush2.bf16.msra.mxu0 0
    %4266 = vmatprep.mubr.bf16.mxu0 0
    %4267 = vmatmul.mubr.bf16.gmra.mxu0 %v4161
    %v4268 = vpop.f32.mrf.mxu0
    %v4269 = vadd.f32 0.0, %v4268
    %v4270 = vpop.f32.mrf.mxu0
    %v4271 = vpop.f32.mrf.mxu0
    %v4272 = vadd.f32 0.0, %v4271
    %v4273 = vpop.f32.mrf.mxu0
    %4274 = vmatprep.mubr.bf16.mxu0 0
    %4275 = vmatmul.mubr.bf16.gmra.mxu0 %v4162
    %v4276 = vpop.f32.mrf.mxu0
    %v4277 = vadd.f32 0.0, %v4276
    %v4278 = vpop.f32.mrf.mxu0
    %v4279 = vpop.f32.mrf.mxu0
    %v4280 = vadd.f32 0.0, %v4279
    %v4281 = vpop.f32.mrf.mxu0
    %4282 = vmatprep.mubr.bf16.mxu0 0
    %4283 = vmatmul.mubr.bf16.gmra.mxu0 %v4163
    %v4284 = vpop.f32.mrf.mxu0
    %v4285 = vadd.f32 0.0, %v4284
    %v4286 = vpop.f32.mrf.mxu0
    %v4287 = vpop.f32.mrf.mxu0
    %v4288 = vadd.f32 0.0, %v4287
    %v4289 = vpop.f32.mrf.mxu0
    %4290 = vmatprep.mubr.bf16.mxu0 0
    %4291 = vmatmul.mubr.bf16.gmra.mxu0 %v4164
    %v4292 = vpop.f32.mrf.mxu0
    %v4293 = vadd.f32 0.0, %v4292
    %v4294 = vpop.f32.mrf.mxu0
    %v4295 = vpop.f32.mrf.mxu0
    %v4296 = vadd.f32 0.0, %v4295
    %v4297 = vpop.f32.mrf.mxu0
    %4298 = vmatprep.mubr.bf16.mxu0 0
    %4299 = vmatmul.mubr.bf16.gmra.mxu0 %v4165
    %v4300 = vpop.f32.mrf.mxu0
    %v4301 = vadd.f32 0.0, %v4300
    %v4302 = vpop.f32.mrf.mxu0
    %v4303 = vpop.f32.mrf.mxu0
    %v4304 = vadd.f32 0.0, %v4303
    %v4305 = vpop.f32.mrf.mxu0
    %4306 = vmatprep.mubr.bf16.mxu0 0
    %4307 = vmatmul.mubr.bf16.gmra.mxu0 %v4166
    %v4308 = vpop.f32.mrf.mxu0
    %v4309 = vadd.f32 0.0, %v4308
    %v4310 = vpop.f32.mrf.mxu0
    %v4311 = vpop.f32.mrf.mxu0
    %v4312 = vadd.f32 0.0, %v4311
    %v4313 = vpop.f32.mrf.mxu0
    %4314 = vmatprep.mubr.bf16.mxu0 0
    %4315 = vmatmul.mubr.bf16.gmra.mxu0 %v4167
    %v4316 = vpop.f32.mrf.mxu0
    %v4317 = vadd.f32 0.0, %v4316
    %v4318 = vpop.f32.mrf.mxu0
    %v4319 = vpop.f32.mrf.mxu0
    %v4320 = vadd.f32 0.0, %v4319
    %v4321 = vpop.f32.mrf.mxu0
    %4322 = vmatprep.mubr.bf16.mxu0 0
    %4323 = vmatmul.mubr.bf16.gmra.mxu0 %v4168
    %v4324 = vpop.f32.mrf.mxu0
    %v4325 = vadd.f32 0.0, %v4324
    %v4326 = vpop.f32.mrf.mxu0
    %v4327 = vpop.f32.mrf.mxu0
    %v4328 = vadd.f32 0.0, %v4327
    %v4329 = vpop.f32.mrf.mxu0
    %4330 = vdwg.mxu0
    %v4331 = vadd.f32 %v4002, %v4269
    %v4332 = vadd.f32 %v4005, %v4272
    %v4333 = vadd.f32 %v4010, %v4277
    %v4334 = vadd.f32 %v4013, %v4280
    %v4335 = vadd.f32 %v4018, %v4285
    %v4336 = vadd.f32 %v4021, %v4288
    %v4337 = vadd.f32 %v4026, %v4293
    %v4338 = vadd.f32 %v4029, %v4296
    %v4339 = vadd.f32 %v4034, %v4301
    %v4340 = vadd.f32 %v4037, %v4304
    %v4341 = vadd.f32 %v4042, %v4309
    %v4342 = vadd.f32 %v4045, %v4312
    %v4343 = vadd.f32 %v4050, %v4317
    %v4344 = vadd.f32 %v4053, %v4320
    %v4345 = vadd.f32 %v4058, %v4325
    %v4346 = vadd.f32 %v4061, %v4328
    %4347 = vmatprep.subr.bf16.mxu0 0
    %4348 = vmatpush1.bf16.msra.mxu0 %v3530
    %4349 = vmatprep.subr.bf16.mxu0 0
    %4350 = vmatpush1.bf16.msra.mxu0 %v3529
    %4351 = vmatprep.subr.bf16.mxu0 0
    %4352 = vmatpush1.bf16.msra.mxu0 %v3528
    %4353 = vmatprep.subr.bf16.mxu0 0
    %4354 = vmatpush1.bf16.msra.mxu0 %v3527
    %4355 = vmatprep.subr.bf16.mxu0 0
    %4356 = vmatpush1.bf16.msra.mxu0 %v3526
    %4357 = vmatprep.subr.bf16.mxu0 0
    %4358 = vmatpush1.bf16.msra.mxu0 %v3525
    %4359 = vmatprep.subr.bf16.mxu0 0
    %4360 = vmatpush1.bf16.msra.mxu0 %v3524
    %4361 = vmatprep.subr.bf16.mxu0 0
    %4362 = vmatpush1.bf16.msra.mxu0 %v3523
    %4363 = vmatprep.subr.bf16.mxu0 0
    %4364 = vmatpush2.bf16.msra.mxu0 0
    %4365 = vmatprep.subr.bf16.mxu0 0
    %4366 = vmatpush2.bf16.msra.mxu0 0
    %4367 = vmatprep.subr.bf16.mxu0 0
    %4368 = vmatpush2.bf16.msra.mxu0 0
    %4369 = vmatprep.subr.bf16.mxu0 0
    %4370 = vmatpush2.bf16.msra.mxu0 0
    %4371 = vmatprep.subr.bf16.mxu0 0
    %4372 = vmatpush2.bf16.msra.mxu0 0
    %4373 = vmatprep.subr.bf16.mxu0 0
    %4374 = vmatpush2.bf16.msra.mxu0 0
    %4375 = vmatprep.subr.bf16.mxu0 0
    %4376 = vmatpush2.bf16.msra.mxu0 0
    %4377 = vmatprep.subr.bf16.mxu0 0
    %4378 = vmatpush2.bf16.msra.mxu0 0
    %4379 = vmatprep.mubr.bf16.mxu0 0
    %4380 = vmatmul.mubr.bf16.gmra.mxu0 %v1445
    %v4381 = vpop.f32.mrf.mxu0
    %v4382 = vadd.f32 0.0, %v4381
    %v4383 = vpop.f32.mrf.mxu0
    %v4384 = vpop.f32.mrf.mxu0
    %v4385 = vadd.f32 0.0, %v4384
    %v4386 = vpop.f32.mrf.mxu0
    %4387 = vmatprep.mubr.bf16.mxu0 0
    %4388 = vmatmul.mubr.bf16.gmra.mxu0 %v1446
    %v4389 = vpop.f32.mrf.mxu0
    %v4390 = vadd.f32 0.0, %v4389
    %v4391 = vpop.f32.mrf.mxu0
    %v4392 = vpop.f32.mrf.mxu0
    %v4393 = vadd.f32 0.0, %v4392
    %v4394 = vpop.f32.mrf.mxu0
    %4395 = vmatprep.mubr.bf16.mxu0 0
    %4396 = vmatmul.mubr.bf16.gmra.mxu0 %v1447
    %v4397 = vpop.f32.mrf.mxu0
    %v4398 = vadd.f32 0.0, %v4397
    %v4399 = vpop.f32.mrf.mxu0
    %v4400 = vpop.f32.mrf.mxu0
    %v4401 = vadd.f32 0.0, %v4400
    %v4402 = vpop.f32.mrf.mxu0
    %4403 = vmatprep.mubr.bf16.mxu0 0
    %4404 = vmatmul.mubr.bf16.gmra.mxu0 %v1448
    %v4405 = vpop.f32.mrf.mxu0
    %v4406 = vadd.f32 0.0, %v4405
    %v4407 = vpop.f32.mrf.mxu0
    %v4408 = vpop.f32.mrf.mxu0
    %v4409 = vadd.f32 0.0, %v4408
    %v4410 = vpop.f32.mrf.mxu0
    %4411 = vmatprep.mubr.bf16.mxu0 0
    %4412 = vmatmul.mubr.bf16.gmra.mxu0 %v1449
    %v4413 = vpop.f32.mrf.mxu0
    %v4414 = vadd.f32 0.0, %v4413
    %v4415 = vpop.f32.mrf.mxu0
    %v4416 = vpop.f32.mrf.mxu0
    %v4417 = vadd.f32 0.0, %v4416
    %v4418 = vpop.f32.mrf.mxu0
    %4419 = vmatprep.mubr.bf16.mxu0 0
    %4420 = vmatmul.mubr.bf16.gmra.mxu0 %v1450
    %v4421 = vpop.f32.mrf.mxu0
    %v4422 = vadd.f32 0.0, %v4421
    %v4423 = vpop.f32.mrf.mxu0
    %v4424 = vpop.f32.mrf.mxu0
    %v4425 = vadd.f32 0.0, %v4424
    %v4426 = vpop.f32.mrf.mxu0
    %4427 = vmatprep.mubr.bf16.mxu0 0
    %4428 = vmatmul.mubr.bf16.gmra.mxu0 %v1451
    %v4429 = vpop.f32.mrf.mxu0
    %v4430 = vadd.f32 0.0, %v4429
    %v4431 = vpop.f32.mrf.mxu0
    %v4432 = vpop.f32.mrf.mxu0
    %v4433 = vadd.f32 0.0, %v4432
    %v4434 = vpop.f32.mrf.mxu0
    %4435 = vmatprep.mubr.bf16.mxu0 0
    %4436 = vmatmul.mubr.bf16.gmra.mxu0 %v1452
    %v4437 = vpop.f32.mrf.mxu0
    %v4438 = vadd.f32 0.0, %v4437
    %v4439 = vpop.f32.mrf.mxu0
    %v4440 = vpop.f32.mrf.mxu0
    %v4441 = vadd.f32 0.0, %v4440
    %v4442 = vpop.f32.mrf.mxu0
    %4443 = vdwg.mxu0
    %v4444 = vpack.c.bf16 %v4385, %v4382
    %v4445 = vpack.c.bf16 %v4393, %v4390
    %v4446 = vpack.c.bf16 %v4401, %v4398
    %v4447 = vpack.c.bf16 %v4409, %v4406
    %v4448 = vpack.c.bf16 %v4417, %v4414
    %v4449 = vpack.c.bf16 %v4425, %v4422
    %v4450 = vpack.c.bf16 %v4433, %v4430
    %v4451 = vpack.c.bf16 %v4441, %v4438
    %s4452 = scalar_lea.vmem %s6, 192
    %v4453 = vld [vmem:[%s4452] sm:$0xf]
    %v4454 = vld [vmem:[%s4452 + $0x4] sm:$0xf]
    %v4455 = vld [vmem:[%s4452 + $0x8] sm:$0xf]
    %v4456 = vld [vmem:[%s4452 + $0xc] sm:$0xf]
    %v4457 = vld [vmem:[%s4452 + $0x10] sm:$0xf]
    %v4458 = vld [vmem:[%s4452 + $0x14] sm:$0xf]
    %v4459 = vld [vmem:[%s4452 + $0x18] sm:$0xf]
    %v4460 = vld [vmem:[%s4452 + $0x1c] sm:$0xf]
    %v4461 = vld [vmem:[%s4452 + $0x20] sm:$0xf]
    %v4462 = vld [vmem:[%s4452 + $0x24] sm:$0xf]
    %v4463 = vld [vmem:[%s4452 + $0x28] sm:$0xf]
    %v4464 = vld [vmem:[%s4452 + $0x2c] sm:$0xf]
    %v4465 = vld [vmem:[%s4452 + $0x30] sm:$0xf]
    %v4466 = vld [vmem:[%s4452 + $0x34] sm:$0xf]
    %v4467 = vld [vmem:[%s4452 + $0x38] sm:$0xf]
    %v4468 = vld [vmem:[%s4452 + $0x3c] sm:$0xf]
    %v4485 = vunpack.c.l.b16 %v4453
    %v4486 = vunpack.c.l.b16 %v4454
    %v4487 = vunpack.c.l.b16 %v4455
    %v4488 = vunpack.c.l.b16 %v4456
    %v4489 = vunpack.c.l.b16 %v4457
    %v4490 = vunpack.c.l.b16 %v4458
    %v4491 = vunpack.c.l.b16 %v4459
    %v4492 = vunpack.c.l.b16 %v4460
    %v4493 = vunpack.c.l.b16 %v4461
    %v4494 = vunpack.c.l.b16 %v4462
    %v4495 = vunpack.c.l.b16 %v4463
    %v4496 = vunpack.c.l.b16 %v4464
    %v4497 = vunpack.c.l.b16 %v4465
    %v4498 = vunpack.c.l.b16 %v4466
    %v4499 = vunpack.c.l.b16 %v4467
    %v4500 = vunpack.c.l.b16 %v4468
    %v4501 = vpack.c.b16 %v4486, %v4485
    %v4502 = vpack.c.b16 %v4488, %v4487
    %v4503 = vpack.c.b16 %v4490, %v4489
    %v4504 = vpack.c.b16 %v4492, %v4491
    %v4505 = vpack.c.b16 %v4494, %v4493
    %v4506 = vpack.c.b16 %v4496, %v4495
    %v4507 = vpack.c.b16 %v4498, %v4497
    %v4508 = vpack.c.b16 %v4500, %v4499
    %4517 = vmatprep.subr.bf16.mxu0 0
    %4518 = vmatpush1.bf16.msra.mxu0 %v4508
    %4519 = vmatprep.subr.bf16.mxu0 0
    %4520 = vmatpush1.bf16.msra.mxu0 %v4507
    %4521 = vmatprep.subr.bf16.mxu0 0
    %4522 = vmatpush1.bf16.msra.mxu0 %v4506
    %4523 = vmatprep.subr.bf16.mxu0 0
    %4524 = vmatpush1.bf16.msra.mxu0 %v4505
    %4525 = vmatprep.subr.bf16.mxu0 0
    %4526 = vmatpush1.bf16.msra.mxu0 %v4504
    %4527 = vmatprep.subr.bf16.mxu0 0
    %4528 = vmatpush1.bf16.msra.mxu0 %v4503
    %4529 = vmatprep.subr.bf16.mxu0 0
    %4530 = vmatpush1.bf16.msra.mxu0 %v4502
    %4531 = vmatprep.subr.bf16.mxu0 0
    %4532 = vmatpush1.bf16.msra.mxu0 %v4501
    %4533 = vmatprep.subr.bf16.mxu0 0
    %4534 = vmatpush2.bf16.msra.mxu0 0
    %4535 = vmatprep.subr.bf16.mxu0 0
    %4536 = vmatpush2.bf16.msra.mxu0 0
    %4537 = vmatprep.subr.bf16.mxu0 0
    %4538 = vmatpush2.bf16.msra.mxu0 0
    %4539 = vmatprep.subr.bf16.mxu0 0
    %4540 = vmatpush2.bf16.msra.mxu0 0
    %4541 = vmatprep.subr.bf16.mxu0 0
    %4542 = vmatpush2.bf16.msra.mxu0 0
    %4543 = vmatprep.subr.bf16.mxu0 0
    %4544 = vmatpush2.bf16.msra.mxu0 0
    %4545 = vmatprep.subr.bf16.mxu0 0
    %4546 = vmatpush2.bf16.msra.mxu0 0
    %4547 = vmatprep.subr.bf16.mxu0 0
    %4548 = vmatpush2.bf16.msra.mxu0 0
    %4549 = vmatprep.mubr.bf16.mxu0 0
    %4550 = vmatmul.mubr.bf16.gmra.mxu0 %v4444
    %v4551 = vpop.f32.mrf.mxu0
    %v4552 = vadd.f32 0.0, %v4551
    %v4553 = vpop.f32.mrf.mxu0
    %v4554 = vpop.f32.mrf.mxu0
    %v4555 = vadd.f32 0.0, %v4554
    %v4556 = vpop.f32.mrf.mxu0
    %4557 = vmatprep.mubr.bf16.mxu0 0
    %4558 = vmatmul.mubr.bf16.gmra.mxu0 %v4445
    %v4559 = vpop.f32.mrf.mxu0
    %v4560 = vadd.f32 0.0, %v4559
    %v4561 = vpop.f32.mrf.mxu0
    %v4562 = vpop.f32.mrf.mxu0
    %v4563 = vadd.f32 0.0, %v4562
    %v4564 = vpop.f32.mrf.mxu0
    %4565 = vmatprep.mubr.bf16.mxu0 0
    %4566 = vmatmul.mubr.bf16.gmra.mxu0 %v4446
    %v4567 = vpop.f32.mrf.mxu0
    %v4568 = vadd.f32 0.0, %v4567
    %v4569 = vpop.f32.mrf.mxu0
    %v4570 = vpop.f32.mrf.mxu0
    %v4571 = vadd.f32 0.0, %v4570
    %v4572 = vpop.f32.mrf.mxu0
    %4573 = vmatprep.mubr.bf16.mxu0 0
    %4574 = vmatmul.mubr.bf16.gmra.mxu0 %v4447
    %v4575 = vpop.f32.mrf.mxu0
    %v4576 = vadd.f32 0.0, %v4575
    %v4577 = vpop.f32.mrf.mxu0
    %v4578 = vpop.f32.mrf.mxu0
    %v4579 = vadd.f32 0.0, %v4578
    %v4580 = vpop.f32.mrf.mxu0
    %4581 = vmatprep.mubr.bf16.mxu0 0
    %4582 = vmatmul.mubr.bf16.gmra.mxu0 %v4448
    %v4583 = vpop.f32.mrf.mxu0
    %v4584 = vadd.f32 0.0, %v4583
    %v4585 = vpop.f32.mrf.mxu0
    %v4586 = vpop.f32.mrf.mxu0
    %v4587 = vadd.f32 0.0, %v4586
    %v4588 = vpop.f32.mrf.mxu0
    %4589 = vmatprep.mubr.bf16.mxu0 0
    %4590 = vmatmul.mubr.bf16.gmra.mxu0 %v4449
    %v4591 = vpop.f32.mrf.mxu0
    %v4592 = vadd.f32 0.0, %v4591
    %v4593 = vpop.f32.mrf.mxu0
    %v4594 = vpop.f32.mrf.mxu0
    %v4595 = vadd.f32 0.0, %v4594
    %v4596 = vpop.f32.mrf.mxu0
    %4597 = vmatprep.mubr.bf16.mxu0 0
    %4598 = vmatmul.mubr.bf16.gmra.mxu0 %v4450
    %v4599 = vpop.f32.mrf.mxu0
    %v4600 = vadd.f32 0.0, %v4599
    %v4601 = vpop.f32.mrf.mxu0
    %v4602 = vpop.f32.mrf.mxu0
    %v4603 = vadd.f32 0.0, %v4602
    %v4604 = vpop.f32.mrf.mxu0
    %4605 = vmatprep.mubr.bf16.mxu0 0
    %4606 = vmatmul.mubr.bf16.gmra.mxu0 %v4451
    %v4607 = vpop.f32.mrf.mxu0
    %v4608 = vadd.f32 0.0, %v4607
    %v4609 = vpop.f32.mrf.mxu0
    %v4610 = vpop.f32.mrf.mxu0
    %v4611 = vadd.f32 0.0, %v4610
    %v4612 = vpop.f32.mrf.mxu0
    %4613 = vdwg.mxu0
    %v4614 = vadd.f32 %v4331, %v4552
    %v4615 = vadd.f32 %v4332, %v4555
    %v4616 = vadd.f32 %v4333, %v4560
    %v4617 = vadd.f32 %v4334, %v4563
    %v4618 = vadd.f32 %v4335, %v4568
    %v4619 = vadd.f32 %v4336, %v4571
    %v4620 = vadd.f32 %v4337, %v4576
    %v4621 = vadd.f32 %v4338, %v4579
    %v4622 = vadd.f32 %v4339, %v4584
    %v4623 = vadd.f32 %v4340, %v4587
    %v4624 = vadd.f32 %v4341, %v4592
    %v4625 = vadd.f32 %v4342, %v4595
    %v4626 = vadd.f32 %v4343, %v4600
    %v4627 = vadd.f32 %v4344, %v4603
    %v4628 = vadd.f32 %v4345, %v4608
    %v4629 = vadd.f32 %v4346, %v4611
    %4630 = vmatprep.subr.bf16.mxu0 0
    %4631 = vmatpush1.bf16.msra.mxu0 %v3530
    %4632 = vmatprep.subr.bf16.mxu0 0
    %4633 = vmatpush1.bf16.msra.mxu0 %v3529
    %4634 = vmatprep.subr.bf16.mxu0 0
    %4635 = vmatpush1.bf16.msra.mxu0 %v3528
    %4636 = vmatprep.subr.bf16.mxu0 0
    %4637 = vmatpush1.bf16.msra.mxu0 %v3527
    %4638 = vmatprep.subr.bf16.mxu0 0
    %4639 = vmatpush1.bf16.msra.mxu0 %v3526
    %4640 = vmatprep.subr.bf16.mxu0 0
    %4641 = vmatpush1.bf16.msra.mxu0 %v3525
    %4642 = vmatprep.subr.bf16.mxu0 0
    %4643 = vmatpush1.bf16.msra.mxu0 %v3524
    %4644 = vmatprep.subr.bf16.mxu0 0
    %4645 = vmatpush1.bf16.msra.mxu0 %v3523
    %4646 = vmatprep.subr.bf16.mxu0 0
    %4647 = vmatpush2.bf16.msra.mxu0 0
    %4648 = vmatprep.subr.bf16.mxu0 0
    %4649 = vmatpush2.bf16.msra.mxu0 0
    %4650 = vmatprep.subr.bf16.mxu0 0
    %4651 = vmatpush2.bf16.msra.mxu0 0
    %4652 = vmatprep.subr.bf16.mxu0 0
    %4653 = vmatpush2.bf16.msra.mxu0 0
    %4654 = vmatprep.subr.bf16.mxu0 0
    %4655 = vmatpush2.bf16.msra.mxu0 0
    %4656 = vmatprep.subr.bf16.mxu0 0
    %4657 = vmatpush2.bf16.msra.mxu0 0
    %4658 = vmatprep.subr.bf16.mxu0 0
    %4659 = vmatpush2.bf16.msra.mxu0 0
    %4660 = vmatprep.subr.bf16.mxu0 0
    %4661 = vmatpush2.bf16.msra.mxu0 0
    %4662 = vmatprep.mubr.bf16.mxu0 0
    %4663 = vmatmul.mubr.bf16.gmra.mxu0 %v1793
    %v4664 = vpop.f32.mrf.mxu0
    %v4665 = vadd.f32 0.0, %v4664
    %v4666 = vpop.f32.mrf.mxu0
    %v4667 = vpop.f32.mrf.mxu0
    %v4668 = vadd.f32 0.0, %v4667
    %v4669 = vpop.f32.mrf.mxu0
    %4670 = vmatprep.mubr.bf16.mxu0 0
    %4671 = vmatmul.mubr.bf16.gmra.mxu0 %v1794
    %v4672 = vpop.f32.mrf.mxu0
    %v4673 = vadd.f32 0.0, %v4672
    %v4674 = vpop.f32.mrf.mxu0
    %v4675 = vpop.f32.mrf.mxu0
    %v4676 = vadd.f32 0.0, %v4675
    %v4677 = vpop.f32.mrf.mxu0
    %4678 = vmatprep.mubr.bf16.mxu0 0
    %4679 = vmatmul.mubr.bf16.gmra.mxu0 %v1795
    %v4680 = vpop.f32.mrf.mxu0
    %v4681 = vadd.f32 0.0, %v4680
    %v4682 = vpop.f32.mrf.mxu0
    %v4683 = vpop.f32.mrf.mxu0
    %v4684 = vadd.f32 0.0, %v4683
    %v4685 = vpop.f32.mrf.mxu0
    %4686 = vmatprep.mubr.bf16.mxu0 0
    %4687 = vmatmul.mubr.bf16.gmra.mxu0 %v1796
    %v4688 = vpop.f32.mrf.mxu0
    %v4689 = vadd.f32 0.0, %v4688
    %v4690 = vpop.f32.mrf.mxu0
    %v4691 = vpop.f32.mrf.mxu0
    %v4692 = vadd.f32 0.0, %v4691
    %v4693 = vpop.f32.mrf.mxu0
    %4694 = vmatprep.mubr.bf16.mxu0 0
    %4695 = vmatmul.mubr.bf16.gmra.mxu0 %v1797
    %v4696 = vpop.f32.mrf.mxu0
    %v4697 = vadd.f32 0.0, %v4696
    %v4698 = vpop.f32.mrf.mxu0
    %v4699 = vpop.f32.mrf.mxu0
    %v4700 = vadd.f32 0.0, %v4699
    %v4701 = vpop.f32.mrf.mxu0
    %4702 = vmatprep.mubr.bf16.mxu0 0
    %4703 = vmatmul.mubr.bf16.gmra.mxu0 %v1798
    %v4704 = vpop.f32.mrf.mxu0
    %v4705 = vadd.f32 0.0, %v4704
    %v4706 = vpop.f32.mrf.mxu0
    %v4707 = vpop.f32.mrf.mxu0
    %v4708 = vadd.f32 0.0, %v4707
    %v4709 = vpop.f32.mrf.mxu0
    %4710 = vmatprep.mubr.bf16.mxu0 0
    %4711 = vmatmul.mubr.bf16.gmra.mxu0 %v1799
    %v4712 = vpop.f32.mrf.mxu0
    %v4713 = vadd.f32 0.0, %v4712
    %v4714 = vpop.f32.mrf.mxu0
    %v4715 = vpop.f32.mrf.mxu0
    %v4716 = vadd.f32 0.0, %v4715
    %v4717 = vpop.f32.mrf.mxu0
    %4718 = vmatprep.mubr.bf16.mxu0 0
    %4719 = vmatmul.mubr.bf16.gmra.mxu0 %v1800
    %v4720 = vpop.f32.mrf.mxu0
    %v4721 = vadd.f32 0.0, %v4720
    %v4722 = vpop.f32.mrf.mxu0
    %v4723 = vpop.f32.mrf.mxu0
    %v4724 = vadd.f32 0.0, %v4723
    %v4725 = vpop.f32.mrf.mxu0
    %4726 = vdwg.mxu0
    %v4727 = vpack.c.bf16 %v4668, %v4665
    %v4728 = vpack.c.bf16 %v4676, %v4673
    %v4729 = vpack.c.bf16 %v4684, %v4681
    %v4730 = vpack.c.bf16 %v4692, %v4689
    %v4731 = vpack.c.bf16 %v4700, %v4697
    %v4732 = vpack.c.bf16 %v4708, %v4705
    %v4733 = vpack.c.bf16 %v4716, %v4713
    %v4734 = vpack.c.bf16 %v4724, %v4721
    %s4735 = scalar_lea.vmem %s6, 256
    %v4736 = vld [vmem:[%s4735] sm:$0xf]
    %v4737 = vld [vmem:[%s4735 + $0x4] sm:$0xf]
    %v4738 = vld [vmem:[%s4735 + $0x8] sm:$0xf]
    %v4739 = vld [vmem:[%s4735 + $0xc] sm:$0xf]
    %v4740 = vld [vmem:[%s4735 + $0x10] sm:$0xf]
    %v4741 = vld [vmem:[%s4735 + $0x14] sm:$0xf]
    %v4742 = vld [vmem:[%s4735 + $0x18] sm:$0xf]
    %v4743 = vld [vmem:[%s4735 + $0x1c] sm:$0xf]
    %v4744 = vld [vmem:[%s4735 + $0x20] sm:$0xf]
    %v4745 = vld [vmem:[%s4735 + $0x24] sm:$0xf]
    %v4746 = vld [vmem:[%s4735 + $0x28] sm:$0xf]
    %v4747 = vld [vmem:[%s4735 + $0x2c] sm:$0xf]
    %v4748 = vld [vmem:[%s4735 + $0x30] sm:$0xf]
    %v4749 = vld [vmem:[%s4735 + $0x34] sm:$0xf]
    %v4750 = vld [vmem:[%s4735 + $0x38] sm:$0xf]
    %v4751 = vld [vmem:[%s4735 + $0x3c] sm:$0xf]
    %v4768 = vunpack.c.l.b16 %v4736
    %v4769 = vunpack.c.l.b16 %v4737
    %v4770 = vunpack.c.l.b16 %v4738
    %v4771 = vunpack.c.l.b16 %v4739
    %v4772 = vunpack.c.l.b16 %v4740
    %v4773 = vunpack.c.l.b16 %v4741
    %v4774 = vunpack.c.l.b16 %v4742
    %v4775 = vunpack.c.l.b16 %v4743
    %v4776 = vunpack.c.l.b16 %v4744
    %v4777 = vunpack.c.l.b16 %v4745
    %v4778 = vunpack.c.l.b16 %v4746
    %v4779 = vunpack.c.l.b16 %v4747
    %v4780 = vunpack.c.l.b16 %v4748
    %v4781 = vunpack.c.l.b16 %v4749
    %v4782 = vunpack.c.l.b16 %v4750
    %v4783 = vunpack.c.l.b16 %v4751
    %v4784 = vpack.c.b16 %v4769, %v4768
    %v4785 = vpack.c.b16 %v4771, %v4770
    %v4786 = vpack.c.b16 %v4773, %v4772
    %v4787 = vpack.c.b16 %v4775, %v4774
    %v4788 = vpack.c.b16 %v4777, %v4776
    %v4789 = vpack.c.b16 %v4779, %v4778
    %v4790 = vpack.c.b16 %v4781, %v4780
    %v4791 = vpack.c.b16 %v4783, %v4782
    %4800 = vmatprep.subr.bf16.mxu0 0
    %4801 = vmatpush1.bf16.msra.mxu0 %v4791
    %4802 = vmatprep.subr.bf16.mxu0 0
    %4803 = vmatpush1.bf16.msra.mxu0 %v4790
    %4804 = vmatprep.subr.bf16.mxu0 0
    %4805 = vmatpush1.bf16.msra.mxu0 %v4789
    %4806 = vmatprep.subr.bf16.mxu0 0
    %4807 = vmatpush1.bf16.msra.mxu0 %v4788
    %4808 = vmatprep.subr.bf16.mxu0 0
    %4809 = vmatpush1.bf16.msra.mxu0 %v4787
    %4810 = vmatprep.subr.bf16.mxu0 0
    %4811 = vmatpush1.bf16.msra.mxu0 %v4786
    %4812 = vmatprep.subr.bf16.mxu0 0
    %4813 = vmatpush1.bf16.msra.mxu0 %v4785
    %4814 = vmatprep.subr.bf16.mxu0 0
    %4815 = vmatpush1.bf16.msra.mxu0 %v4784
    %4816 = vmatprep.subr.bf16.mxu0 0
    %4817 = vmatpush2.bf16.msra.mxu0 0
    %4818 = vmatprep.subr.bf16.mxu0 0
    %4819 = vmatpush2.bf16.msra.mxu0 0
    %4820 = vmatprep.subr.bf16.mxu0 0
    %4821 = vmatpush2.bf16.msra.mxu0 0
    %4822 = vmatprep.subr.bf16.mxu0 0
    %4823 = vmatpush2.bf16.msra.mxu0 0
    %4824 = vmatprep.subr.bf16.mxu0 0
    %4825 = vmatpush2.bf16.msra.mxu0 0
    %4826 = vmatprep.subr.bf16.mxu0 0
    %4827 = vmatpush2.bf16.msra.mxu0 0
    %4828 = vmatprep.subr.bf16.mxu0 0
    %4829 = vmatpush2.bf16.msra.mxu0 0
    %4830 = vmatprep.subr.bf16.mxu0 0
    %4831 = vmatpush2.bf16.msra.mxu0 0
    %4832 = vmatprep.mubr.bf16.mxu0 0
    %4833 = vmatmul.mubr.bf16.gmra.mxu0 %v4727
    %v4834 = vpop.f32.mrf.mxu0
    %v4835 = vadd.f32 0.0, %v4834
    %v4836 = vpop.f32.mrf.mxu0
    %v4837 = vpop.f32.mrf.mxu0
    %v4838 = vadd.f32 0.0, %v4837
    %v4839 = vpop.f32.mrf.mxu0
    %4840 = vmatprep.mubr.bf16.mxu0 0
    %4841 = vmatmul.mubr.bf16.gmra.mxu0 %v4728
    %v4842 = vpop.f32.mrf.mxu0
    %v4843 = vadd.f32 0.0, %v4842
    %v4844 = vpop.f32.mrf.mxu0
    %v4845 = vpop.f32.mrf.mxu0
    %v4846 = vadd.f32 0.0, %v4845
    %v4847 = vpop.f32.mrf.mxu0
    %4848 = vmatprep.mubr.bf16.mxu0 0
    %4849 = vmatmul.mubr.bf16.gmra.mxu0 %v4729
    %v4850 = vpop.f32.mrf.mxu0
    %v4851 = vadd.f32 0.0, %v4850
    %v4852 = vpop.f32.mrf.mxu0
    %v4853 = vpop.f32.mrf.mxu0
    %v4854 = vadd.f32 0.0, %v4853
    %v4855 = vpop.f32.mrf.mxu0
    %4856 = vmatprep.mubr.bf16.mxu0 0
    %4857 = vmatmul.mubr.bf16.gmra.mxu0 %v4730
    %v4858 = vpop.f32.mrf.mxu0
    %v4859 = vadd.f32 0.0, %v4858
    %v4860 = vpop.f32.mrf.mxu0
    %v4861 = vpop.f32.mrf.mxu0
    %v4862 = vadd.f32 0.0, %v4861
    %v4863 = vpop.f32.mrf.mxu0
    %4864 = vmatprep.mubr.bf16.mxu0 0
    %4865 = vmatmul.mubr.bf16.gmra.mxu0 %v4731
    %v4866 = vpop.f32.mrf.mxu0
    %v4867 = vadd.f32 0.0, %v4866
    %v4868 = vpop.f32.mrf.mxu0
    %v4869 = vpop.f32.mrf.mxu0
    %v4870 = vadd.f32 0.0, %v4869
    %v4871 = vpop.f32.mrf.mxu0
    %4872 = vmatprep.mubr.bf16.mxu0 0
    %4873 = vmatmul.mubr.bf16.gmra.mxu0 %v4732
    %v4874 = vpop.f32.mrf.mxu0
    %v4875 = vadd.f32 0.0, %v4874
    %v4876 = vpop.f32.mrf.mxu0
    %v4877 = vpop.f32.mrf.mxu0
    %v4878 = vadd.f32 0.0, %v4877
    %v4879 = vpop.f32.mrf.mxu0
    %4880 = vmatprep.mubr.bf16.mxu0 0
    %4881 = vmatmul.mubr.bf16.gmra.mxu0 %v4733
    %v4882 = vpop.f32.mrf.mxu0
    %v4883 = vadd.f32 0.0, %v4882
    %v4884 = vpop.f32.mrf.mxu0
    %v4885 = vpop.f32.mrf.mxu0
    %v4886 = vadd.f32 0.0, %v4885
    %v4887 = vpop.f32.mrf.mxu0
    %4888 = vmatprep.mubr.bf16.mxu0 0
    %4889 = vmatmul.mubr.bf16.gmra.mxu0 %v4734
    %v4890 = vpop.f32.mrf.mxu0
    %v4891 = vadd.f32 0.0, %v4890
    %v4892 = vpop.f32.mrf.mxu0
    %v4893 = vpop.f32.mrf.mxu0
    %v4894 = vadd.f32 0.0, %v4893
    %v4895 = vpop.f32.mrf.mxu0
    %4896 = vdwg.mxu0
    %v4897 = vadd.f32 %v4614, %v4835
    %v4898 = vadd.f32 %v4615, %v4838
    %v4899 = vadd.f32 %v4616, %v4843
    %v4900 = vadd.f32 %v4617, %v4846
    %v4901 = vadd.f32 %v4618, %v4851
    %v4902 = vadd.f32 %v4619, %v4854
    %v4903 = vadd.f32 %v4620, %v4859
    %v4904 = vadd.f32 %v4621, %v4862
    %v4905 = vadd.f32 %v4622, %v4867
    %v4906 = vadd.f32 %v4623, %v4870
    %v4907 = vadd.f32 %v4624, %v4875
    %v4908 = vadd.f32 %v4625, %v4878
    %v4909 = vadd.f32 %v4626, %v4883
    %v4910 = vadd.f32 %v4627, %v4886
    %v4911 = vadd.f32 %v4628, %v4891
    %v4912 = vadd.f32 %v4629, %v4894
    %4913 = vmatprep.subr.bf16.mxu0 0
    %4914 = vmatpush1.bf16.msra.mxu0 %v3530
    %4915 = vmatprep.subr.bf16.mxu0 0
    %4916 = vmatpush1.bf16.msra.mxu0 %v3529
    %4917 = vmatprep.subr.bf16.mxu0 0
    %4918 = vmatpush1.bf16.msra.mxu0 %v3528
    %4919 = vmatprep.subr.bf16.mxu0 0
    %4920 = vmatpush1.bf16.msra.mxu0 %v3527
    %4921 = vmatprep.subr.bf16.mxu0 0
    %4922 = vmatpush1.bf16.msra.mxu0 %v3526
    %4923 = vmatprep.subr.bf16.mxu0 0
    %4924 = vmatpush1.bf16.msra.mxu0 %v3525
    %4925 = vmatprep.subr.bf16.mxu0 0
    %4926 = vmatpush1.bf16.msra.mxu0 %v3524
    %4927 = vmatprep.subr.bf16.mxu0 0
    %4928 = vmatpush1.bf16.msra.mxu0 %v3523
    %4929 = vmatprep.subr.bf16.mxu0 0
    %4930 = vmatpush2.bf16.msra.mxu0 0
    %4931 = vmatprep.subr.bf16.mxu0 0
    %4932 = vmatpush2.bf16.msra.mxu0 0
    %4933 = vmatprep.subr.bf16.mxu0 0
    %4934 = vmatpush2.bf16.msra.mxu0 0
    %4935 = vmatprep.subr.bf16.mxu0 0
    %4936 = vmatpush2.bf16.msra.mxu0 0
    %4937 = vmatprep.subr.bf16.mxu0 0
    %4938 = vmatpush2.bf16.msra.mxu0 0
    %4939 = vmatprep.subr.bf16.mxu0 0
    %4940 = vmatpush2.bf16.msra.mxu0 0
    %4941 = vmatprep.subr.bf16.mxu0 0
    %4942 = vmatpush2.bf16.msra.mxu0 0
    %4943 = vmatprep.subr.bf16.mxu0 0
    %4944 = vmatpush2.bf16.msra.mxu0 0
    %4945 = vmatprep.mubr.bf16.mxu0 0
    %4946 = vmatmul.mubr.bf16.gmra.mxu0 %v2141
    %v4947 = vpop.f32.mrf.mxu0
    %v4948 = vadd.f32 0.0, %v4947
    %v4949 = vpop.f32.mrf.mxu0
    %v4950 = vpop.f32.mrf.mxu0
    %v4951 = vadd.f32 0.0, %v4950
    %v4952 = vpop.f32.mrf.mxu0
    %4953 = vmatprep.mubr.bf16.mxu0 0
    %4954 = vmatmul.mubr.bf16.gmra.mxu0 %v2142
    %v4955 = vpop.f32.mrf.mxu0
    %v4956 = vadd.f32 0.0, %v4955
    %v4957 = vpop.f32.mrf.mxu0
    %v4958 = vpop.f32.mrf.mxu0
    %v4959 = vadd.f32 0.0, %v4958
    %v4960 = vpop.f32.mrf.mxu0
    %4961 = vmatprep.mubr.bf16.mxu0 0
    %4962 = vmatmul.mubr.bf16.gmra.mxu0 %v2143
    %v4963 = vpop.f32.mrf.mxu0
    %v4964 = vadd.f32 0.0, %v4963
    %v4965 = vpop.f32.mrf.mxu0
    %v4966 = vpop.f32.mrf.mxu0
    %v4967 = vadd.f32 0.0, %v4966
    %v4968 = vpop.f32.mrf.mxu0
    %4969 = vmatprep.mubr.bf16.mxu0 0
    %4970 = vmatmul.mubr.bf16.gmra.mxu0 %v2144
    %v4971 = vpop.f32.mrf.mxu0
    %v4972 = vadd.f32 0.0, %v4971
    %v4973 = vpop.f32.mrf.mxu0
    %v4974 = vpop.f32.mrf.mxu0
    %v4975 = vadd.f32 0.0, %v4974
    %v4976 = vpop.f32.mrf.mxu0
    %4977 = vmatprep.mubr.bf16.mxu0 0
    %4978 = vmatmul.mubr.bf16.gmra.mxu0 %v2145
    %v4979 = vpop.f32.mrf.mxu0
    %v4980 = vadd.f32 0.0, %v4979
    %v4981 = vpop.f32.mrf.mxu0
    %v4982 = vpop.f32.mrf.mxu0
    %v4983 = vadd.f32 0.0, %v4982
    %v4984 = vpop.f32.mrf.mxu0
    %4985 = vmatprep.mubr.bf16.mxu0 0
    %4986 = vmatmul.mubr.bf16.gmra.mxu0 %v2146
    %v4987 = vpop.f32.mrf.mxu0
    %v4988 = vadd.f32 0.0, %v4987
    %v4989 = vpop.f32.mrf.mxu0
    %v4990 = vpop.f32.mrf.mxu0
    %v4991 = vadd.f32 0.0, %v4990
    %v4992 = vpop.f32.mrf.mxu0
    %4993 = vmatprep.mubr.bf16.mxu0 0
    %4994 = vmatmul.mubr.bf16.gmra.mxu0 %v2147
    %v4995 = vpop.f32.mrf.mxu0
    %v4996 = vadd.f32 0.0, %v4995
    %v4997 = vpop.f32.mrf.mxu0
    %v4998 = vpop.f32.mrf.mxu0
    %v4999 = vadd.f32 0.0, %v4998
    %v5000 = vpop.f32.mrf.mxu0
    %5001 = vmatprep.mubr.bf16.mxu0 0
    %5002 = vmatmul.mubr.bf16.gmra.mxu0 %v2148
    %v5003 = vpop.f32.mrf.mxu0
    %v5004 = vadd.f32 0.0, %v5003
    %v5005 = vpop.f32.mrf.mxu0
    %v5006 = vpop.f32.mrf.mxu0
    %v5007 = vadd.f32 0.0, %v5006
    %v5008 = vpop.f32.mrf.mxu0
    %5009 = vdwg.mxu0
    %v5010 = vpack.c.bf16 %v4951, %v4948
    %v5011 = vpack.c.bf16 %v4959, %v4956
    %v5012 = vpack.c.bf16 %v4967, %v4964
    %v5013 = vpack.c.bf16 %v4975, %v4972
    %v5014 = vpack.c.bf16 %v4983, %v4980
    %v5015 = vpack.c.bf16 %v4991, %v4988
    %v5016 = vpack.c.bf16 %v4999, %v4996
    %v5017 = vpack.c.bf16 %v5007, %v5004
    %s5018 = scalar_lea.vmem %s6, 320
    %v5019 = vld [vmem:[%s5018] sm:$0xf]
    %v5020 = vld [vmem:[%s5018 + $0x4] sm:$0xf]
    %v5021 = vld [vmem:[%s5018 + $0x8] sm:$0xf]
    %v5022 = vld [vmem:[%s5018 + $0xc] sm:$0xf]
    %v5023 = vld [vmem:[%s5018 + $0x10] sm:$0xf]
    %v5024 = vld [vmem:[%s5018 + $0x14] sm:$0xf]
    %v5025 = vld [vmem:[%s5018 + $0x18] sm:$0xf]
    %v5026 = vld [vmem:[%s5018 + $0x1c] sm:$0xf]
    %v5027 = vld [vmem:[%s5018 + $0x20] sm:$0xf]
    %v5028 = vld [vmem:[%s5018 + $0x24] sm:$0xf]
    %v5029 = vld [vmem:[%s5018 + $0x28] sm:$0xf]
    %v5030 = vld [vmem:[%s5018 + $0x2c] sm:$0xf]
    %v5031 = vld [vmem:[%s5018 + $0x30] sm:$0xf]
    %v5032 = vld [vmem:[%s5018 + $0x34] sm:$0xf]
    %v5033 = vld [vmem:[%s5018 + $0x38] sm:$0xf]
    %v5034 = vld [vmem:[%s5018 + $0x3c] sm:$0xf]
    %v5051 = vunpack.c.l.b16 %v5019
    %v5052 = vunpack.c.l.b16 %v5020
    %v5053 = vunpack.c.l.b16 %v5021
    %v5054 = vunpack.c.l.b16 %v5022
    %v5055 = vunpack.c.l.b16 %v5023
    %v5056 = vunpack.c.l.b16 %v5024
    %v5057 = vunpack.c.l.b16 %v5025
    %v5058 = vunpack.c.l.b16 %v5026
    %v5059 = vunpack.c.l.b16 %v5027
    %v5060 = vunpack.c.l.b16 %v5028
    %v5061 = vunpack.c.l.b16 %v5029
    %v5062 = vunpack.c.l.b16 %v5030
    %v5063 = vunpack.c.l.b16 %v5031
    %v5064 = vunpack.c.l.b16 %v5032
    %v5065 = vunpack.c.l.b16 %v5033
    %v5066 = vunpack.c.l.b16 %v5034
    %v5067 = vpack.c.b16 %v5052, %v5051
    %v5068 = vpack.c.b16 %v5054, %v5053
    %v5069 = vpack.c.b16 %v5056, %v5055
    %v5070 = vpack.c.b16 %v5058, %v5057
    %v5071 = vpack.c.b16 %v5060, %v5059
    %v5072 = vpack.c.b16 %v5062, %v5061
    %v5073 = vpack.c.b16 %v5064, %v5063
    %v5074 = vpack.c.b16 %v5066, %v5065
    %5083 = vmatprep.subr.bf16.mxu0 0
    %5084 = vmatpush1.bf16.msra.mxu0 %v5074
    %5085 = vmatprep.subr.bf16.mxu0 0
    %5086 = vmatpush1.bf16.msra.mxu0 %v5073
    %5087 = vmatprep.subr.bf16.mxu0 0
    %5088 = vmatpush1.bf16.msra.mxu0 %v5072
    %5089 = vmatprep.subr.bf16.mxu0 0
    %5090 = vmatpush1.bf16.msra.mxu0 %v5071
    %5091 = vmatprep.subr.bf16.mxu0 0
    %5092 = vmatpush1.bf16.msra.mxu0 %v5070
    %5093 = vmatprep.subr.bf16.mxu0 0
    %5094 = vmatpush1.bf16.msra.mxu0 %v5069
    %5095 = vmatprep.subr.bf16.mxu0 0
    %5096 = vmatpush1.bf16.msra.mxu0 %v5068
    %5097 = vmatprep.subr.bf16.mxu0 0
    %5098 = vmatpush1.bf16.msra.mxu0 %v5067
    %5099 = vmatprep.subr.bf16.mxu0 0
    %5100 = vmatpush2.bf16.msra.mxu0 0
    %5101 = vmatprep.subr.bf16.mxu0 0
    %5102 = vmatpush2.bf16.msra.mxu0 0
    %5103 = vmatprep.subr.bf16.mxu0 0
    %5104 = vmatpush2.bf16.msra.mxu0 0
    %5105 = vmatprep.subr.bf16.mxu0 0
    %5106 = vmatpush2.bf16.msra.mxu0 0
    %5107 = vmatprep.subr.bf16.mxu0 0
    %5108 = vmatpush2.bf16.msra.mxu0 0
    %5109 = vmatprep.subr.bf16.mxu0 0
    %5110 = vmatpush2.bf16.msra.mxu0 0
    %5111 = vmatprep.subr.bf16.mxu0 0
    %5112 = vmatpush2.bf16.msra.mxu0 0
    %5113 = vmatprep.subr.bf16.mxu0 0
    %5114 = vmatpush2.bf16.msra.mxu0 0
    %5115 = vmatprep.mubr.bf16.mxu0 0
    %5116 = vmatmul.mubr.bf16.gmra.mxu0 %v5010
    %v5117 = vpop.f32.mrf.mxu0
    %v5118 = vadd.f32 0.0, %v5117
    %v5119 = vpop.f32.mrf.mxu0
    %v5120 = vpop.f32.mrf.mxu0
    %v5121 = vadd.f32 0.0, %v5120
    %v5122 = vpop.f32.mrf.mxu0
    %5123 = vmatprep.mubr.bf16.mxu0 0
    %5124 = vmatmul.mubr.bf16.gmra.mxu0 %v5011
    %v5125 = vpop.f32.mrf.mxu0
    %v5126 = vadd.f32 0.0, %v5125
    %v5127 = vpop.f32.mrf.mxu0
    %v5128 = vpop.f32.mrf.mxu0
    %v5129 = vadd.f32 0.0, %v5128
    %v5130 = vpop.f32.mrf.mxu0
    %5131 = vmatprep.mubr.bf16.mxu0 0
    %5132 = vmatmul.mubr.bf16.gmra.mxu0 %v5012
    %v5133 = vpop.f32.mrf.mxu0
    %v5134 = vadd.f32 0.0, %v5133
    %v5135 = vpop.f32.mrf.mxu0
    %v5136 = vpop.f32.mrf.mxu0
    %v5137 = vadd.f32 0.0, %v5136
    %v5138 = vpop.f32.mrf.mxu0
    %5139 = vmatprep.mubr.bf16.mxu0 0
    %5140 = vmatmul.mubr.bf16.gmra.mxu0 %v5013
    %v5141 = vpop.f32.mrf.mxu0
    %v5142 = vadd.f32 0.0, %v5141
    %v5143 = vpop.f32.mrf.mxu0
    %v5144 = vpop.f32.mrf.mxu0
    %v5145 = vadd.f32 0.0, %v5144
    %v5146 = vpop.f32.mrf.mxu0
    %5147 = vmatprep.mubr.bf16.mxu0 0
    %5148 = vmatmul.mubr.bf16.gmra.mxu0 %v5014
    %v5149 = vpop.f32.mrf.mxu0
    %v5150 = vadd.f32 0.0, %v5149
    %v5151 = vpop.f32.mrf.mxu0
    %v5152 = vpop.f32.mrf.mxu0
    %v5153 = vadd.f32 0.0, %v5152
    %v5154 = vpop.f32.mrf.mxu0
    %5155 = vmatprep.mubr.bf16.mxu0 0
    %5156 = vmatmul.mubr.bf16.gmra.mxu0 %v5015
    %v5157 = vpop.f32.mrf.mxu0
    %v5158 = vadd.f32 0.0, %v5157
    %v5159 = vpop.f32.mrf.mxu0
    %v5160 = vpop.f32.mrf.mxu0
    %v5161 = vadd.f32 0.0, %v5160
    %v5162 = vpop.f32.mrf.mxu0
    %5163 = vmatprep.mubr.bf16.mxu0 0
    %5164 = vmatmul.mubr.bf16.gmra.mxu0 %v5016
    %v5165 = vpop.f32.mrf.mxu0
    %v5166 = vadd.f32 0.0, %v5165
    %v5167 = vpop.f32.mrf.mxu0
    %v5168 = vpop.f32.mrf.mxu0
    %v5169 = vadd.f32 0.0, %v5168
    %v5170 = vpop.f32.mrf.mxu0
    %5171 = vmatprep.mubr.bf16.mxu0 0
    %5172 = vmatmul.mubr.bf16.gmra.mxu0 %v5017
    %v5173 = vpop.f32.mrf.mxu0
    %v5174 = vadd.f32 0.0, %v5173
    %v5175 = vpop.f32.mrf.mxu0
    %v5176 = vpop.f32.mrf.mxu0
    %v5177 = vadd.f32 0.0, %v5176
    %v5178 = vpop.f32.mrf.mxu0
    %5179 = vdwg.mxu0
    %v5180 = vadd.f32 %v4897, %v5118
    %v5181 = vadd.f32 %v4898, %v5121
    %v5182 = vadd.f32 %v4899, %v5126
    %v5183 = vadd.f32 %v4900, %v5129
    %v5184 = vadd.f32 %v4901, %v5134
    %v5185 = vadd.f32 %v4902, %v5137
    %v5186 = vadd.f32 %v4903, %v5142
    %v5187 = vadd.f32 %v4904, %v5145
    %v5188 = vadd.f32 %v4905, %v5150
    %v5189 = vadd.f32 %v4906, %v5153
    %v5190 = vadd.f32 %v4907, %v5158
    %v5191 = vadd.f32 %v4908, %v5161
    %v5192 = vadd.f32 %v4909, %v5166
    %v5193 = vadd.f32 %v4910, %v5169
    %v5194 = vadd.f32 %v4911, %v5174
    %v5195 = vadd.f32 %v4912, %v5177
    %5196 = vmatprep.subr.bf16.mxu0 0
    %5197 = vmatpush1.bf16.msra.mxu0 %v3530
    %5198 = vmatprep.subr.bf16.mxu0 0
    %5199 = vmatpush1.bf16.msra.mxu0 %v3529
    %5200 = vmatprep.subr.bf16.mxu0 0
    %5201 = vmatpush1.bf16.msra.mxu0 %v3528
    %5202 = vmatprep.subr.bf16.mxu0 0
    %5203 = vmatpush1.bf16.msra.mxu0 %v3527
    %5204 = vmatprep.subr.bf16.mxu0 0
    %5205 = vmatpush1.bf16.msra.mxu0 %v3526
    %5206 = vmatprep.subr.bf16.mxu0 0
    %5207 = vmatpush1.bf16.msra.mxu0 %v3525
    %5208 = vmatprep.subr.bf16.mxu0 0
    %5209 = vmatpush1.bf16.msra.mxu0 %v3524
    %5210 = vmatprep.subr.bf16.mxu0 0
    %5211 = vmatpush1.bf16.msra.mxu0 %v3523
    %5212 = vmatprep.subr.bf16.mxu0 0
    %5213 = vmatpush2.bf16.msra.mxu0 0
    %5214 = vmatprep.subr.bf16.mxu0 0
    %5215 = vmatpush2.bf16.msra.mxu0 0
    %5216 = vmatprep.subr.bf16.mxu0 0
    %5217 = vmatpush2.bf16.msra.mxu0 0
    %5218 = vmatprep.subr.bf16.mxu0 0
    %5219 = vmatpush2.bf16.msra.mxu0 0
    %5220 = vmatprep.subr.bf16.mxu0 0
    %5221 = vmatpush2.bf16.msra.mxu0 0
    %5222 = vmatprep.subr.bf16.mxu0 0
    %5223 = vmatpush2.bf16.msra.mxu0 0
    %5224 = vmatprep.subr.bf16.mxu0 0
    %5225 = vmatpush2.bf16.msra.mxu0 0
    %5226 = vmatprep.subr.bf16.mxu0 0
    %5227 = vmatpush2.bf16.msra.mxu0 0
    %5228 = vmatprep.mubr.bf16.mxu0 0
    %5229 = vmatmul.mubr.bf16.gmra.mxu0 %v2489
    %v5230 = vpop.f32.mrf.mxu0
    %v5231 = vadd.f32 0.0, %v5230
    %v5232 = vpop.f32.mrf.mxu0
    %v5233 = vpop.f32.mrf.mxu0
    %v5234 = vadd.f32 0.0, %v5233
    %v5235 = vpop.f32.mrf.mxu0
    %5236 = vmatprep.mubr.bf16.mxu0 0
    %5237 = vmatmul.mubr.bf16.gmra.mxu0 %v2490
    %v5238 = vpop.f32.mrf.mxu0
    %v5239 = vadd.f32 0.0, %v5238
    %v5240 = vpop.f32.mrf.mxu0
    %v5241 = vpop.f32.mrf.mxu0
    %v5242 = vadd.f32 0.0, %v5241
    %v5243 = vpop.f32.mrf.mxu0
    %5244 = vmatprep.mubr.bf16.mxu0 0
    %5245 = vmatmul.mubr.bf16.gmra.mxu0 %v2491
    %v5246 = vpop.f32.mrf.mxu0
    %v5247 = vadd.f32 0.0, %v5246
    %v5248 = vpop.f32.mrf.mxu0
    %v5249 = vpop.f32.mrf.mxu0
    %v5250 = vadd.f32 0.0, %v5249
    %v5251 = vpop.f32.mrf.mxu0
    %5252 = vmatprep.mubr.bf16.mxu0 0
    %5253 = vmatmul.mubr.bf16.gmra.mxu0 %v2492
    %v5254 = vpop.f32.mrf.mxu0
    %v5255 = vadd.f32 0.0, %v5254
    %v5256 = vpop.f32.mrf.mxu0
    %v5257 = vpop.f32.mrf.mxu0
    %v5258 = vadd.f32 0.0, %v5257
    %v5259 = vpop.f32.mrf.mxu0
    %5260 = vmatprep.mubr.bf16.mxu0 0
    %5261 = vmatmul.mubr.bf16.gmra.mxu0 %v2493
    %v5262 = vpop.f32.mrf.mxu0
    %v5263 = vadd.f32 0.0, %v5262
    %v5264 = vpop.f32.mrf.mxu0
    %v5265 = vpop.f32.mrf.mxu0
    %v5266 = vadd.f32 0.0, %v5265
    %v5267 = vpop.f32.mrf.mxu0
    %5268 = vmatprep.mubr.bf16.mxu0 0
    %5269 = vmatmul.mubr.bf16.gmra.mxu0 %v2494
    %v5270 = vpop.f32.mrf.mxu0
    %v5271 = vadd.f32 0.0, %v5270
    %v5272 = vpop.f32.mrf.mxu0
    %v5273 = vpop.f32.mrf.mxu0
    %v5274 = vadd.f32 0.0, %v5273
    %v5275 = vpop.f32.mrf.mxu0
    %5276 = vmatprep.mubr.bf16.mxu0 0
    %5277 = vmatmul.mubr.bf16.gmra.mxu0 %v2495
    %v5278 = vpop.f32.mrf.mxu0
    %v5279 = vadd.f32 0.0, %v5278
    %v5280 = vpop.f32.mrf.mxu0
    %v5281 = vpop.f32.mrf.mxu0
    %v5282 = vadd.f32 0.0, %v5281
    %v5283 = vpop.f32.mrf.mxu0
    %5284 = vmatprep.mubr.bf16.mxu0 0
    %5285 = vmatmul.mubr.bf16.gmra.mxu0 %v2496
    %v5286 = vpop.f32.mrf.mxu0
    %v5287 = vadd.f32 0.0, %v5286
    %v5288 = vpop.f32.mrf.mxu0
    %v5289 = vpop.f32.mrf.mxu0
    %v5290 = vadd.f32 0.0, %v5289
    %v5291 = vpop.f32.mrf.mxu0
    %5292 = vdwg.mxu0
    %v5293 = vpack.c.bf16 %v5234, %v5231
    %v5294 = vpack.c.bf16 %v5242, %v5239
    %v5295 = vpack.c.bf16 %v5250, %v5247
    %v5296 = vpack.c.bf16 %v5258, %v5255
    %v5297 = vpack.c.bf16 %v5266, %v5263
    %v5298 = vpack.c.bf16 %v5274, %v5271
    %v5299 = vpack.c.bf16 %v5282, %v5279
    %v5300 = vpack.c.bf16 %v5290, %v5287
    %s5301 = scalar_lea.vmem %s6, 384
    %v5302 = vld [vmem:[%s5301] sm:$0xf]
    %v5303 = vld [vmem:[%s5301 + $0x4] sm:$0xf]
    %v5304 = vld [vmem:[%s5301 + $0x8] sm:$0xf]
    %v5305 = vld [vmem:[%s5301 + $0xc] sm:$0xf]
    %v5306 = vld [vmem:[%s5301 + $0x10] sm:$0xf]
    %v5307 = vld [vmem:[%s5301 + $0x14] sm:$0xf]
    %v5308 = vld [vmem:[%s5301 + $0x18] sm:$0xf]
    %v5309 = vld [vmem:[%s5301 + $0x1c] sm:$0xf]
    %v5310 = vld [vmem:[%s5301 + $0x20] sm:$0xf]
    %v5311 = vld [vmem:[%s5301 + $0x24] sm:$0xf]
    %v5312 = vld [vmem:[%s5301 + $0x28] sm:$0xf]
    %v5313 = vld [vmem:[%s5301 + $0x2c] sm:$0xf]
    %v5314 = vld [vmem:[%s5301 + $0x30] sm:$0xf]
    %v5315 = vld [vmem:[%s5301 + $0x34] sm:$0xf]
    %v5316 = vld [vmem:[%s5301 + $0x38] sm:$0xf]
    %v5317 = vld [vmem:[%s5301 + $0x3c] sm:$0xf]
    %v5334 = vunpack.c.l.b16 %v5302
    %v5335 = vunpack.c.l.b16 %v5303
    %v5336 = vunpack.c.l.b16 %v5304
    %v5337 = vunpack.c.l.b16 %v5305
    %v5338 = vunpack.c.l.b16 %v5306
    %v5339 = vunpack.c.l.b16 %v5307
    %v5340 = vunpack.c.l.b16 %v5308
    %v5341 = vunpack.c.l.b16 %v5309
    %v5342 = vunpack.c.l.b16 %v5310
    %v5343 = vunpack.c.l.b16 %v5311
    %v5344 = vunpack.c.l.b16 %v5312
    %v5345 = vunpack.c.l.b16 %v5313
    %v5346 = vunpack.c.l.b16 %v5314
    %v5347 = vunpack.c.l.b16 %v5315
    %v5348 = vunpack.c.l.b16 %v5316
    %v5349 = vunpack.c.l.b16 %v5317
    %v5350 = vpack.c.b16 %v5335, %v5334
    %v5351 = vpack.c.b16 %v5337, %v5336
    %v5352 = vpack.c.b16 %v5339, %v5338
    %v5353 = vpack.c.b16 %v5341, %v5340
    %v5354 = vpack.c.b16 %v5343, %v5342
    %v5355 = vpack.c.b16 %v5345, %v5344
    %v5356 = vpack.c.b16 %v5347, %v5346
    %v5357 = vpack.c.b16 %v5349, %v5348
    %5366 = vmatprep.subr.bf16.mxu0 0
    %5367 = vmatpush1.bf16.msra.mxu0 %v5357
    %5368 = vmatprep.subr.bf16.mxu0 0
    %5369 = vmatpush1.bf16.msra.mxu0 %v5356
    %5370 = vmatprep.subr.bf16.mxu0 0
    %5371 = vmatpush1.bf16.msra.mxu0 %v5355
    %5372 = vmatprep.subr.bf16.mxu0 0
    %5373 = vmatpush1.bf16.msra.mxu0 %v5354
    %5374 = vmatprep.subr.bf16.mxu0 0
    %5375 = vmatpush1.bf16.msra.mxu0 %v5353
    %5376 = vmatprep.subr.bf16.mxu0 0
    %5377 = vmatpush1.bf16.msra.mxu0 %v5352
    %5378 = vmatprep.subr.bf16.mxu0 0
    %5379 = vmatpush1.bf16.msra.mxu0 %v5351
    %5380 = vmatprep.subr.bf16.mxu0 0
    %5381 = vmatpush1.bf16.msra.mxu0 %v5350
    %5382 = vmatprep.subr.bf16.mxu0 0
    %5383 = vmatpush2.bf16.msra.mxu0 0
    %5384 = vmatprep.subr.bf16.mxu0 0
    %5385 = vmatpush2.bf16.msra.mxu0 0
    %5386 = vmatprep.subr.bf16.mxu0 0
    %5387 = vmatpush2.bf16.msra.mxu0 0
    %5388 = vmatprep.subr.bf16.mxu0 0
    %5389 = vmatpush2.bf16.msra.mxu0 0
    %5390 = vmatprep.subr.bf16.mxu0 0
    %5391 = vmatpush2.bf16.msra.mxu0 0
    %5392 = vmatprep.subr.bf16.mxu0 0
    %5393 = vmatpush2.bf16.msra.mxu0 0
    %5394 = vmatprep.subr.bf16.mxu0 0
    %5395 = vmatpush2.bf16.msra.mxu0 0
    %5396 = vmatprep.subr.bf16.mxu0 0
    %5397 = vmatpush2.bf16.msra.mxu0 0
    %5398 = vmatprep.mubr.bf16.mxu0 0
    %5399 = vmatmul.mubr.bf16.gmra.mxu0 %v5293
    %v5400 = vpop.f32.mrf.mxu0
    %v5401 = vadd.f32 0.0, %v5400
    %v5402 = vpop.f32.mrf.mxu0
    %v5403 = vpop.f32.mrf.mxu0
    %v5404 = vadd.f32 0.0, %v5403
    %v5405 = vpop.f32.mrf.mxu0
    %5406 = vmatprep.mubr.bf16.mxu0 0
    %5407 = vmatmul.mubr.bf16.gmra.mxu0 %v5294
    %v5408 = vpop.f32.mrf.mxu0
    %v5409 = vadd.f32 0.0, %v5408
    %v5410 = vpop.f32.mrf.mxu0
    %v5411 = vpop.f32.mrf.mxu0
    %v5412 = vadd.f32 0.0, %v5411
    %v5413 = vpop.f32.mrf.mxu0
    %5414 = vmatprep.mubr.bf16.mxu0 0
    %5415 = vmatmul.mubr.bf16.gmra.mxu0 %v5295
    %v5416 = vpop.f32.mrf.mxu0
    %v5417 = vadd.f32 0.0, %v5416
    %v5418 = vpop.f32.mrf.mxu0
    %v5419 = vpop.f32.mrf.mxu0
    %v5420 = vadd.f32 0.0, %v5419
    %v5421 = vpop.f32.mrf.mxu0
    %5422 = vmatprep.mubr.bf16.mxu0 0
    %5423 = vmatmul.mubr.bf16.gmra.mxu0 %v5296
    %v5424 = vpop.f32.mrf.mxu0
    %v5425 = vadd.f32 0.0, %v5424
    %v5426 = vpop.f32.mrf.mxu0
    %v5427 = vpop.f32.mrf.mxu0
    %v5428 = vadd.f32 0.0, %v5427
    %v5429 = vpop.f32.mrf.mxu0
    %5430 = vmatprep.mubr.bf16.mxu0 0
    %5431 = vmatmul.mubr.bf16.gmra.mxu0 %v5297
    %v5432 = vpop.f32.mrf.mxu0
    %v5433 = vadd.f32 0.0, %v5432
    %v5434 = vpop.f32.mrf.mxu0
    %v5435 = vpop.f32.mrf.mxu0
    %v5436 = vadd.f32 0.0, %v5435
    %v5437 = vpop.f32.mrf.mxu0
    %5438 = vmatprep.mubr.bf16.mxu0 0
    %5439 = vmatmul.mubr.bf16.gmra.mxu0 %v5298
    %v5440 = vpop.f32.mrf.mxu0
    %v5441 = vadd.f32 0.0, %v5440
    %v5442 = vpop.f32.mrf.mxu0
    %v5443 = vpop.f32.mrf.mxu0
    %v5444 = vadd.f32 0.0, %v5443
    %v5445 = vpop.f32.mrf.mxu0
    %5446 = vmatprep.mubr.bf16.mxu0 0
    %5447 = vmatmul.mubr.bf16.gmra.mxu0 %v5299
    %v5448 = vpop.f32.mrf.mxu0
    %v5449 = vadd.f32 0.0, %v5448
    %v5450 = vpop.f32.mrf.mxu0
    %v5451 = vpop.f32.mrf.mxu0
    %v5452 = vadd.f32 0.0, %v5451
    %v5453 = vpop.f32.mrf.mxu0
    %5454 = vmatprep.mubr.bf16.mxu0 0
    %5455 = vmatmul.mubr.bf16.gmra.mxu0 %v5300
    %v5456 = vpop.f32.mrf.mxu0
    %v5457 = vadd.f32 0.0, %v5456
    %v5458 = vpop.f32.mrf.mxu0
    %v5459 = vpop.f32.mrf.mxu0
    %v5460 = vadd.f32 0.0, %v5459
    %v5461 = vpop.f32.mrf.mxu0
    %5462 = vdwg.mxu0
    %v5463 = vadd.f32 %v5180, %v5401
    %v5464 = vadd.f32 %v5181, %v5404
    %v5465 = vadd.f32 %v5182, %v5409
    %v5466 = vadd.f32 %v5183, %v5412
    %v5467 = vadd.f32 %v5184, %v5417
    %v5468 = vadd.f32 %v5185, %v5420
    %v5469 = vadd.f32 %v5186, %v5425
    %v5470 = vadd.f32 %v5187, %v5428
    %v5471 = vadd.f32 %v5188, %v5433
    %v5472 = vadd.f32 %v5189, %v5436
    %v5473 = vadd.f32 %v5190, %v5441
    %v5474 = vadd.f32 %v5191, %v5444
    %v5475 = vadd.f32 %v5192, %v5449
    %v5476 = vadd.f32 %v5193, %v5452
    %v5477 = vadd.f32 %v5194, %v5457
    %v5478 = vadd.f32 %v5195, %v5460
    %5479 = vmatprep.subr.bf16.mxu0 0
    %5480 = vmatpush1.bf16.msra.mxu0 %v3530
    %5481 = vmatprep.subr.bf16.mxu0 0
    %5482 = vmatpush1.bf16.msra.mxu0 %v3529
    %5483 = vmatprep.subr.bf16.mxu0 0
    %5484 = vmatpush1.bf16.msra.mxu0 %v3528
    %5485 = vmatprep.subr.bf16.mxu0 0
    %5486 = vmatpush1.bf16.msra.mxu0 %v3527
    %5487 = vmatprep.subr.bf16.mxu0 0
    %5488 = vmatpush1.bf16.msra.mxu0 %v3526
    %5489 = vmatprep.subr.bf16.mxu0 0
    %5490 = vmatpush1.bf16.msra.mxu0 %v3525
    %5491 = vmatprep.subr.bf16.mxu0 0
    %5492 = vmatpush1.bf16.msra.mxu0 %v3524
    %5493 = vmatprep.subr.bf16.mxu0 0
    %5494 = vmatpush1.bf16.msra.mxu0 %v3523
    %5495 = vmatprep.subr.bf16.mxu0 0
    %5496 = vmatpush2.bf16.msra.mxu0 0
    %5497 = vmatprep.subr.bf16.mxu0 0
    %5498 = vmatpush2.bf16.msra.mxu0 0
    %5499 = vmatprep.subr.bf16.mxu0 0
    %5500 = vmatpush2.bf16.msra.mxu0 0
    %5501 = vmatprep.subr.bf16.mxu0 0
    %5502 = vmatpush2.bf16.msra.mxu0 0
    %5503 = vmatprep.subr.bf16.mxu0 0
    %5504 = vmatpush2.bf16.msra.mxu0 0
    %5505 = vmatprep.subr.bf16.mxu0 0
    %5506 = vmatpush2.bf16.msra.mxu0 0
    %5507 = vmatprep.subr.bf16.mxu0 0
    %5508 = vmatpush2.bf16.msra.mxu0 0
    %5509 = vmatprep.subr.bf16.mxu0 0
    %5510 = vmatpush2.bf16.msra.mxu0 0
    %5511 = vmatprep.mubr.bf16.mxu0 0
    %5512 = vmatmul.mubr.bf16.gmra.mxu0 %v2837
    %v5513 = vpop.f32.mrf.mxu0
    %v5514 = vadd.f32 0.0, %v5513
    %v5515 = vpop.f32.mrf.mxu0
    %v5516 = vpop.f32.mrf.mxu0
    %v5517 = vadd.f32 0.0, %v5516
    %v5518 = vpop.f32.mrf.mxu0
    %5519 = vmatprep.mubr.bf16.mxu0 0
    %5520 = vmatmul.mubr.bf16.gmra.mxu0 %v2838
    %v5521 = vpop.f32.mrf.mxu0
    %v5522 = vadd.f32 0.0, %v5521
    %v5523 = vpop.f32.mrf.mxu0
    %v5524 = vpop.f32.mrf.mxu0
    %v5525 = vadd.f32 0.0, %v5524
    %v5526 = vpop.f32.mrf.mxu0
    %5527 = vmatprep.mubr.bf16.mxu0 0
    %5528 = vmatmul.mubr.bf16.gmra.mxu0 %v2839
    %v5529 = vpop.f32.mrf.mxu0
    %v5530 = vadd.f32 0.0, %v5529
    %v5531 = vpop.f32.mrf.mxu0
    %v5532 = vpop.f32.mrf.mxu0
    %v5533 = vadd.f32 0.0, %v5532
    %v5534 = vpop.f32.mrf.mxu0
    %5535 = vmatprep.mubr.bf16.mxu0 0
    %5536 = vmatmul.mubr.bf16.gmra.mxu0 %v2840
    %v5537 = vpop.f32.mrf.mxu0
    %v5538 = vadd.f32 0.0, %v5537
    %v5539 = vpop.f32.mrf.mxu0
    %v5540 = vpop.f32.mrf.mxu0
    %v5541 = vadd.f32 0.0, %v5540
    %v5542 = vpop.f32.mrf.mxu0
    %5543 = vmatprep.mubr.bf16.mxu0 0
    %5544 = vmatmul.mubr.bf16.gmra.mxu0 %v2841
    %v5545 = vpop.f32.mrf.mxu0
    %v5546 = vadd.f32 0.0, %v5545
    %v5547 = vpop.f32.mrf.mxu0
    %v5548 = vpop.f32.mrf.mxu0
    %v5549 = vadd.f32 0.0, %v5548
    %v5550 = vpop.f32.mrf.mxu0
    %5551 = vmatprep.mubr.bf16.mxu0 0
    %5552 = vmatmul.mubr.bf16.gmra.mxu0 %v2842
    %v5553 = vpop.f32.mrf.mxu0
    %v5554 = vadd.f32 0.0, %v5553
    %v5555 = vpop.f32.mrf.mxu0
    %v5556 = vpop.f32.mrf.mxu0
    %v5557 = vadd.f32 0.0, %v5556
    %v5558 = vpop.f32.mrf.mxu0
    %5559 = vmatprep.mubr.bf16.mxu0 0
    %5560 = vmatmul.mubr.bf16.gmra.mxu0 %v2843
    %v5561 = vpop.f32.mrf.mxu0
    %v5562 = vadd.f32 0.0, %v5561
    %v5563 = vpop.f32.mrf.mxu0
    %v5564 = vpop.f32.mrf.mxu0
    %v5565 = vadd.f32 0.0, %v5564
    %v5566 = vpop.f32.mrf.mxu0
    %5567 = vmatprep.mubr.bf16.mxu0 0
    %5568 = vmatmul.mubr.bf16.gmra.mxu0 %v2844
    %v5569 = vpop.f32.mrf.mxu0
    %v5570 = vadd.f32 0.0, %v5569
    %v5571 = vpop.f32.mrf.mxu0
    %v5572 = vpop.f32.mrf.mxu0
    %v5573 = vadd.f32 0.0, %v5572
    %v5574 = vpop.f32.mrf.mxu0
    %5575 = vdwg.mxu0
    %v5576 = vpack.c.bf16 %v5517, %v5514
    %v5577 = vpack.c.bf16 %v5525, %v5522
    %v5578 = vpack.c.bf16 %v5533, %v5530
    %v5579 = vpack.c.bf16 %v5541, %v5538
    %v5580 = vpack.c.bf16 %v5549, %v5546
    %v5581 = vpack.c.bf16 %v5557, %v5554
    %v5582 = vpack.c.bf16 %v5565, %v5562
    %v5583 = vpack.c.bf16 %v5573, %v5570
    %s5584 = scalar_lea.vmem %s6, 448
    %v5585 = vld [vmem:[%s5584] sm:$0xf]
    %v5586 = vld [vmem:[%s5584 + $0x4] sm:$0xf]
    %v5587 = vld [vmem:[%s5584 + $0x8] sm:$0xf]
    %v5588 = vld [vmem:[%s5584 + $0xc] sm:$0xf]
    %v5589 = vld [vmem:[%s5584 + $0x10] sm:$0xf]
    %v5590 = vld [vmem:[%s5584 + $0x14] sm:$0xf]
    %v5591 = vld [vmem:[%s5584 + $0x18] sm:$0xf]
    %v5592 = vld [vmem:[%s5584 + $0x1c] sm:$0xf]
    %v5593 = vld [vmem:[%s5584 + $0x20] sm:$0xf]
    %v5594 = vld [vmem:[%s5584 + $0x24] sm:$0xf]
    %v5595 = vld [vmem:[%s5584 + $0x28] sm:$0xf]
    %v5596 = vld [vmem:[%s5584 + $0x2c] sm:$0xf]
    %v5597 = vld [vmem:[%s5584 + $0x30] sm:$0xf]
    %v5598 = vld [vmem:[%s5584 + $0x34] sm:$0xf]
    %v5599 = vld [vmem:[%s5584 + $0x38] sm:$0xf]
    %v5600 = vld [vmem:[%s5584 + $0x3c] sm:$0xf]
    %v5617 = vunpack.c.l.b16 %v5585
    %v5618 = vunpack.c.l.b16 %v5586
    %v5619 = vunpack.c.l.b16 %v5587
    %v5620 = vunpack.c.l.b16 %v5588
    %v5621 = vunpack.c.l.b16 %v5589
    %v5622 = vunpack.c.l.b16 %v5590
    %v5623 = vunpack.c.l.b16 %v5591
    %v5624 = vunpack.c.l.b16 %v5592
    %v5625 = vunpack.c.l.b16 %v5593
    %v5626 = vunpack.c.l.b16 %v5594
    %v5627 = vunpack.c.l.b16 %v5595
    %v5628 = vunpack.c.l.b16 %v5596
    %v5629 = vunpack.c.l.b16 %v5597
    %v5630 = vunpack.c.l.b16 %v5598
    %v5631 = vunpack.c.l.b16 %v5599
    %v5632 = vunpack.c.l.b16 %v5600
    %v5633 = vpack.c.b16 %v5618, %v5617
    %v5634 = vpack.c.b16 %v5620, %v5619
    %v5635 = vpack.c.b16 %v5622, %v5621
    %v5636 = vpack.c.b16 %v5624, %v5623
    %v5637 = vpack.c.b16 %v5626, %v5625
    %v5638 = vpack.c.b16 %v5628, %v5627
    %v5639 = vpack.c.b16 %v5630, %v5629
    %v5640 = vpack.c.b16 %v5632, %v5631
    %5649 = vmatprep.subr.bf16.mxu0 0
    %5650 = vmatpush1.bf16.msra.mxu0 %v5640
    %5651 = vmatprep.subr.bf16.mxu0 0
    %5652 = vmatpush1.bf16.msra.mxu0 %v5639
    %5653 = vmatprep.subr.bf16.mxu0 0
    %5654 = vmatpush1.bf16.msra.mxu0 %v5638
    %5655 = vmatprep.subr.bf16.mxu0 0
    %5656 = vmatpush1.bf16.msra.mxu0 %v5637
    %5657 = vmatprep.subr.bf16.mxu0 0
    %5658 = vmatpush1.bf16.msra.mxu0 %v5636
    %5659 = vmatprep.subr.bf16.mxu0 0
    %5660 = vmatpush1.bf16.msra.mxu0 %v5635
    %5661 = vmatprep.subr.bf16.mxu0 0
    %5662 = vmatpush1.bf16.msra.mxu0 %v5634
    %5663 = vmatprep.subr.bf16.mxu0 0
    %5664 = vmatpush1.bf16.msra.mxu0 %v5633
    %5665 = vmatprep.subr.bf16.mxu0 0
    %5666 = vmatpush2.bf16.msra.mxu0 0
    %5667 = vmatprep.subr.bf16.mxu0 0
    %5668 = vmatpush2.bf16.msra.mxu0 0
    %5669 = vmatprep.subr.bf16.mxu0 0
    %5670 = vmatpush2.bf16.msra.mxu0 0
    %5671 = vmatprep.subr.bf16.mxu0 0
    %5672 = vmatpush2.bf16.msra.mxu0 0
    %5673 = vmatprep.subr.bf16.mxu0 0
    %5674 = vmatpush2.bf16.msra.mxu0 0
    %5675 = vmatprep.subr.bf16.mxu0 0
    %5676 = vmatpush2.bf16.msra.mxu0 0
    %5677 = vmatprep.subr.bf16.mxu0 0
    %5678 = vmatpush2.bf16.msra.mxu0 0
    %5679 = vmatprep.subr.bf16.mxu0 0
    %5680 = vmatpush2.bf16.msra.mxu0 0
    %5681 = vmatprep.mubr.bf16.mxu0 0
    %5682 = vmatmul.mubr.bf16.gmra.mxu0 %v5576
    %v5683 = vpop.f32.mrf.mxu0
    %v5684 = vadd.f32 0.0, %v5683
    %v5685 = vpop.f32.mrf.mxu0
    %v5686 = vpop.f32.mrf.mxu0
    %v5687 = vadd.f32 0.0, %v5686
    %v5688 = vpop.f32.mrf.mxu0
    %5689 = vmatprep.mubr.bf16.mxu0 0
    %5690 = vmatmul.mubr.bf16.gmra.mxu0 %v5577
    %v5691 = vpop.f32.mrf.mxu0
    %v5692 = vadd.f32 0.0, %v5691
    %v5693 = vpop.f32.mrf.mxu0
    %v5694 = vpop.f32.mrf.mxu0
    %v5695 = vadd.f32 0.0, %v5694
    %v5696 = vpop.f32.mrf.mxu0
    %5697 = vmatprep.mubr.bf16.mxu0 0
    %5698 = vmatmul.mubr.bf16.gmra.mxu0 %v5578
    %v5699 = vpop.f32.mrf.mxu0
    %v5700 = vadd.f32 0.0, %v5699
    %v5701 = vpop.f32.mrf.mxu0
    %v5702 = vpop.f32.mrf.mxu0
    %v5703 = vadd.f32 0.0, %v5702
    %v5704 = vpop.f32.mrf.mxu0
    %5705 = vmatprep.mubr.bf16.mxu0 0
    %5706 = vmatmul.mubr.bf16.gmra.mxu0 %v5579
    %v5707 = vpop.f32.mrf.mxu0
    %v5708 = vadd.f32 0.0, %v5707
    %v5709 = vpop.f32.mrf.mxu0
    %v5710 = vpop.f32.mrf.mxu0
    %v5711 = vadd.f32 0.0, %v5710
    %v5712 = vpop.f32.mrf.mxu0
    %5713 = vmatprep.mubr.bf16.mxu0 0
    %5714 = vmatmul.mubr.bf16.gmra.mxu0 %v5580
    %v5715 = vpop.f32.mrf.mxu0
    %v5716 = vadd.f32 0.0, %v5715
    %v5717 = vpop.f32.mrf.mxu0
    %v5718 = vpop.f32.mrf.mxu0
    %v5719 = vadd.f32 0.0, %v5718
    %v5720 = vpop.f32.mrf.mxu0
    %5721 = vmatprep.mubr.bf16.mxu0 0
    %5722 = vmatmul.mubr.bf16.gmra.mxu0 %v5581
    %v5723 = vpop.f32.mrf.mxu0
    %v5724 = vadd.f32 0.0, %v5723
    %v5725 = vpop.f32.mrf.mxu0
    %v5726 = vpop.f32.mrf.mxu0
    %v5727 = vadd.f32 0.0, %v5726
    %v5728 = vpop.f32.mrf.mxu0
    %5729 = vmatprep.mubr.bf16.mxu0 0
    %5730 = vmatmul.mubr.bf16.gmra.mxu0 %v5582
    %v5731 = vpop.f32.mrf.mxu0
    %v5732 = vadd.f32 0.0, %v5731
    %v5733 = vpop.f32.mrf.mxu0
    %v5734 = vpop.f32.mrf.mxu0
    %v5735 = vadd.f32 0.0, %v5734
    %v5736 = vpop.f32.mrf.mxu0
    %5737 = vmatprep.mubr.bf16.mxu0 0
    %5738 = vmatmul.mubr.bf16.gmra.mxu0 %v5583
    %v5739 = vpop.f32.mrf.mxu0
    %v5740 = vadd.f32 0.0, %v5739
    %v5741 = vpop.f32.mrf.mxu0
    %v5742 = vpop.f32.mrf.mxu0
    %v5743 = vadd.f32 0.0, %v5742
    %v5744 = vpop.f32.mrf.mxu0
    %5745 = vdwg.mxu0
    %v5746 = vadd.f32 %v5463, %v5684
    %v5747 = vadd.f32 %v5464, %v5687
    %v5748 = vadd.f32 %v5465, %v5692
    %v5749 = vadd.f32 %v5466, %v5695
    %v5750 = vadd.f32 %v5467, %v5700
    %v5751 = vadd.f32 %v5468, %v5703
    %v5752 = vadd.f32 %v5469, %v5708
    %v5753 = vadd.f32 %v5470, %v5711
    %v5754 = vadd.f32 %v5471, %v5716
    %v5755 = vadd.f32 %v5472, %v5719
    %v5756 = vadd.f32 %v5473, %v5724
    %v5757 = vadd.f32 %v5474, %v5727
    %v5758 = vadd.f32 %v5475, %v5732
    %v5759 = vadd.f32 %v5476, %v5735
    %v5760 = vadd.f32 %v5477, %v5740
    %v5761 = vadd.f32 %v5478, %v5743
    %5762 = vmatprep.subr.bf16.mxu0 0
    %5763 = vmatpush1.bf16.msra.mxu0 %v3530
    %5764 = vmatprep.subr.bf16.mxu0 0
    %5765 = vmatpush1.bf16.msra.mxu0 %v3529
    %5766 = vmatprep.subr.bf16.mxu0 0
    %5767 = vmatpush1.bf16.msra.mxu0 %v3528
    %5768 = vmatprep.subr.bf16.mxu0 0
    %5769 = vmatpush1.bf16.msra.mxu0 %v3527
    %5770 = vmatprep.subr.bf16.mxu0 0
    %5771 = vmatpush1.bf16.msra.mxu0 %v3526
    %5772 = vmatprep.subr.bf16.mxu0 0
    %5773 = vmatpush1.bf16.msra.mxu0 %v3525
    %5774 = vmatprep.subr.bf16.mxu0 0
    %5775 = vmatpush1.bf16.msra.mxu0 %v3524
    %5776 = vmatprep.subr.bf16.mxu0 0
    %5777 = vmatpush1.bf16.msra.mxu0 %v3523
    %5778 = vmatprep.subr.bf16.mxu0 0
    %5779 = vmatpush2.bf16.msra.mxu0 0
    %5780 = vmatprep.subr.bf16.mxu0 0
    %5781 = vmatpush2.bf16.msra.mxu0 0
    %5782 = vmatprep.subr.bf16.mxu0 0
    %5783 = vmatpush2.bf16.msra.mxu0 0
    %5784 = vmatprep.subr.bf16.mxu0 0
    %5785 = vmatpush2.bf16.msra.mxu0 0
    %5786 = vmatprep.subr.bf16.mxu0 0
    %5787 = vmatpush2.bf16.msra.mxu0 0
    %5788 = vmatprep.subr.bf16.mxu0 0
    %5789 = vmatpush2.bf16.msra.mxu0 0
    %5790 = vmatprep.subr.bf16.mxu0 0
    %5791 = vmatpush2.bf16.msra.mxu0 0
    %5792 = vmatprep.subr.bf16.mxu0 0
    %5793 = vmatpush2.bf16.msra.mxu0 0
    %5794 = vmatprep.mubr.bf16.mxu0 0
    %5795 = vmatmul.mubr.bf16.gmra.mxu0 %v3185
    %v5796 = vpop.f32.mrf.mxu0
    %v5797 = vadd.f32 0.0, %v5796
    %v5798 = vpop.f32.mrf.mxu0
    %v5799 = vpop.f32.mrf.mxu0
    %v5800 = vadd.f32 0.0, %v5799
    %v5801 = vpop.f32.mrf.mxu0
    %5802 = vmatprep.mubr.bf16.mxu0 0
    %5803 = vmatmul.mubr.bf16.gmra.mxu0 %v3186
    %v5804 = vpop.f32.mrf.mxu0
    %v5805 = vadd.f32 0.0, %v5804
    %v5806 = vpop.f32.mrf.mxu0
    %v5807 = vpop.f32.mrf.mxu0
    %v5808 = vadd.f32 0.0, %v5807
    %v5809 = vpop.f32.mrf.mxu0
    %5810 = vmatprep.mubr.bf16.mxu0 0
    %5811 = vmatmul.mubr.bf16.gmra.mxu0 %v3187
    %v5812 = vpop.f32.mrf.mxu0
    %v5813 = vadd.f32 0.0, %v5812
    %v5814 = vpop.f32.mrf.mxu0
    %v5815 = vpop.f32.mrf.mxu0
    %v5816 = vadd.f32 0.0, %v5815
    %v5817 = vpop.f32.mrf.mxu0
    %5818 = vmatprep.mubr.bf16.mxu0 0
    %5819 = vmatmul.mubr.bf16.gmra.mxu0 %v3188
    %v5820 = vpop.f32.mrf.mxu0
    %v5821 = vadd.f32 0.0, %v5820
    %v5822 = vpop.f32.mrf.mxu0
    %v5823 = vpop.f32.mrf.mxu0
    %v5824 = vadd.f32 0.0, %v5823
    %v5825 = vpop.f32.mrf.mxu0
    %5826 = vmatprep.mubr.bf16.mxu0 0
    %5827 = vmatmul.mubr.bf16.gmra.mxu0 %v3189
    %v5828 = vpop.f32.mrf.mxu0
    %v5829 = vadd.f32 0.0, %v5828
    %v5830 = vpop.f32.mrf.mxu0
    %v5831 = vpop.f32.mrf.mxu0
    %v5832 = vadd.f32 0.0, %v5831
    %v5833 = vpop.f32.mrf.mxu0
    %5834 = vmatprep.mubr.bf16.mxu0 0
    %5835 = vmatmul.mubr.bf16.gmra.mxu0 %v3190
    %v5836 = vpop.f32.mrf.mxu0
    %v5837 = vadd.f32 0.0, %v5836
    %v5838 = vpop.f32.mrf.mxu0
    %v5839 = vpop.f32.mrf.mxu0
    %v5840 = vadd.f32 0.0, %v5839
    %v5841 = vpop.f32.mrf.mxu0
    %5842 = vmatprep.mubr.bf16.mxu0 0
    %5843 = vmatmul.mubr.bf16.gmra.mxu0 %v3191
    %v5844 = vpop.f32.mrf.mxu0
    %v5845 = vadd.f32 0.0, %v5844
    %v5846 = vpop.f32.mrf.mxu0
    %v5847 = vpop.f32.mrf.mxu0
    %v5848 = vadd.f32 0.0, %v5847
    %v5849 = vpop.f32.mrf.mxu0
    %5850 = vmatprep.mubr.bf16.mxu0 0
    %5851 = vmatmul.mubr.bf16.gmra.mxu0 %v3192
    %v5852 = vpop.f32.mrf.mxu0
    %v5853 = vadd.f32 0.0, %v5852
    %v5854 = vpop.f32.mrf.mxu0
    %v5855 = vpop.f32.mrf.mxu0
    %v5856 = vadd.f32 0.0, %v5855
    %v5857 = vpop.f32.mrf.mxu0
    %5858 = vdwg.mxu0
    %v5859 = vpack.c.bf16 %v5800, %v5797
    %v5860 = vpack.c.bf16 %v5808, %v5805
    %v5861 = vpack.c.bf16 %v5816, %v5813
    %v5862 = vpack.c.bf16 %v5824, %v5821
    %v5863 = vpack.c.bf16 %v5832, %v5829
    %v5864 = vpack.c.bf16 %v5840, %v5837
    %v5865 = vpack.c.bf16 %v5848, %v5845
    %v5866 = vpack.c.bf16 %v5856, %v5853
    %s5867 = scalar_lea.vmem %s6, 512
    %v5868 = vld [vmem:[%s5867] sm:$0xf]
    %v5869 = vld [vmem:[%s5867 + $0x4] sm:$0xf]
    %v5870 = vld [vmem:[%s5867 + $0x8] sm:$0xf]
    %v5871 = vld [vmem:[%s5867 + $0xc] sm:$0xf]
    %v5872 = vld [vmem:[%s5867 + $0x10] sm:$0xf]
    %v5873 = vld [vmem:[%s5867 + $0x14] sm:$0xf]
    %v5874 = vld [vmem:[%s5867 + $0x18] sm:$0xf]
    %v5875 = vld [vmem:[%s5867 + $0x1c] sm:$0xf]
    %v5876 = vld [vmem:[%s5867 + $0x20] sm:$0xf]
    %v5877 = vld [vmem:[%s5867 + $0x24] sm:$0xf]
    %v5878 = vld [vmem:[%s5867 + $0x28] sm:$0xf]
    %v5879 = vld [vmem:[%s5867 + $0x2c] sm:$0xf]
    %v5880 = vld [vmem:[%s5867 + $0x30] sm:$0xf]
    %v5881 = vld [vmem:[%s5867 + $0x34] sm:$0xf]
    %v5882 = vld [vmem:[%s5867 + $0x38] sm:$0xf]
    %v5883 = vld [vmem:[%s5867 + $0x3c] sm:$0xf]
    %v5900 = vunpack.c.l.b16 %v5868
    %v5901 = vunpack.c.l.b16 %v5869
    %v5902 = vunpack.c.l.b16 %v5870
    %v5903 = vunpack.c.l.b16 %v5871
    %v5904 = vunpack.c.l.b16 %v5872
    %v5905 = vunpack.c.l.b16 %v5873
    %v5906 = vunpack.c.l.b16 %v5874
    %v5907 = vunpack.c.l.b16 %v5875
    %v5908 = vunpack.c.l.b16 %v5876
    %v5909 = vunpack.c.l.b16 %v5877
    %v5910 = vunpack.c.l.b16 %v5878
    %v5911 = vunpack.c.l.b16 %v5879
    %v5912 = vunpack.c.l.b16 %v5880
    %v5913 = vunpack.c.l.b16 %v5881
    %v5914 = vunpack.c.l.b16 %v5882
    %v5915 = vunpack.c.l.b16 %v5883
    %v5916 = vpack.c.b16 %v5901, %v5900
    %v5917 = vpack.c.b16 %v5903, %v5902
    %v5918 = vpack.c.b16 %v5905, %v5904
    %v5919 = vpack.c.b16 %v5907, %v5906
    %v5920 = vpack.c.b16 %v5909, %v5908
    %v5921 = vpack.c.b16 %v5911, %v5910
    %v5922 = vpack.c.b16 %v5913, %v5912
    %v5923 = vpack.c.b16 %v5915, %v5914
    %5932 = vmatprep.subr.bf16.mxu0 0
    %5933 = vmatpush1.bf16.msra.mxu0 %v5923
    %5934 = vmatprep.subr.bf16.mxu0 0
    %5935 = vmatpush1.bf16.msra.mxu0 %v5922
    %5936 = vmatprep.subr.bf16.mxu0 0
    %5937 = vmatpush1.bf16.msra.mxu0 %v5921
    %5938 = vmatprep.subr.bf16.mxu0 0
    %5939 = vmatpush1.bf16.msra.mxu0 %v5920
    %5940 = vmatprep.subr.bf16.mxu0 0
    %5941 = vmatpush1.bf16.msra.mxu0 %v5919
    %5942 = vmatprep.subr.bf16.mxu0 0
    %5943 = vmatpush1.bf16.msra.mxu0 %v5918
    %5944 = vmatprep.subr.bf16.mxu0 0
    %5945 = vmatpush1.bf16.msra.mxu0 %v5917
    %5946 = vmatprep.subr.bf16.mxu0 0
    %5947 = vmatpush1.bf16.msra.mxu0 %v5916
    %5948 = vmatprep.subr.bf16.mxu0 0
    %5949 = vmatpush2.bf16.msra.mxu0 0
    %5950 = vmatprep.subr.bf16.mxu0 0
    %5951 = vmatpush2.bf16.msra.mxu0 0
    %5952 = vmatprep.subr.bf16.mxu0 0
    %5953 = vmatpush2.bf16.msra.mxu0 0
    %5954 = vmatprep.subr.bf16.mxu0 0
    %5955 = vmatpush2.bf16.msra.mxu0 0
    %5956 = vmatprep.subr.bf16.mxu0 0
    %5957 = vmatpush2.bf16.msra.mxu0 0
    %5958 = vmatprep.subr.bf16.mxu0 0
    %5959 = vmatpush2.bf16.msra.mxu0 0
    %5960 = vmatprep.subr.bf16.mxu0 0
    %5961 = vmatpush2.bf16.msra.mxu0 0
    %5962 = vmatprep.subr.bf16.mxu0 0
    %5963 = vmatpush2.bf16.msra.mxu0 0
    %5964 = vmatprep.mubr.bf16.mxu0 0
    %5965 = vmatmul.mubr.bf16.gmra.mxu0 %v5859
    %v5966 = vpop.f32.mrf.mxu0
    %v5967 = vadd.f32 0.0, %v5966
    %v5968 = vpop.f32.mrf.mxu0
    %v5969 = vpop.f32.mrf.mxu0
    %v5970 = vadd.f32 0.0, %v5969
    %v5971 = vpop.f32.mrf.mxu0
    %5972 = vmatprep.mubr.bf16.mxu0 0
    %5973 = vmatmul.mubr.bf16.gmra.mxu0 %v5860
    %v5974 = vpop.f32.mrf.mxu0
    %v5975 = vadd.f32 0.0, %v5974
    %v5976 = vpop.f32.mrf.mxu0
    %v5977 = vpop.f32.mrf.mxu0
    %v5978 = vadd.f32 0.0, %v5977
    %v5979 = vpop.f32.mrf.mxu0
    %5980 = vmatprep.mubr.bf16.mxu0 0
    %5981 = vmatmul.mubr.bf16.gmra.mxu0 %v5861
    %v5982 = vpop.f32.mrf.mxu0
    %v5983 = vadd.f32 0.0, %v5982
    %v5984 = vpop.f32.mrf.mxu0
    %v5985 = vpop.f32.mrf.mxu0
    %v5986 = vadd.f32 0.0, %v5985
    %v5987 = vpop.f32.mrf.mxu0
    %5988 = vmatprep.mubr.bf16.mxu0 0
    %5989 = vmatmul.mubr.bf16.gmra.mxu0 %v5862
    %v5990 = vpop.f32.mrf.mxu0
    %v5991 = vadd.f32 0.0, %v5990
    %v5992 = vpop.f32.mrf.mxu0
    %v5993 = vpop.f32.mrf.mxu0
    %v5994 = vadd.f32 0.0, %v5993
    %v5995 = vpop.f32.mrf.mxu0
    %5996 = vmatprep.mubr.bf16.mxu0 0
    %5997 = vmatmul.mubr.bf16.gmra.mxu0 %v5863
    %v5998 = vpop.f32.mrf.mxu0
    %v5999 = vadd.f32 0.0, %v5998
    %v6000 = vpop.f32.mrf.mxu0
    %v6001 = vpop.f32.mrf.mxu0
    %v6002 = vadd.f32 0.0, %v6001
    %v6003 = vpop.f32.mrf.mxu0
    %6004 = vmatprep.mubr.bf16.mxu0 0
    %6005 = vmatmul.mubr.bf16.gmra.mxu0 %v5864
    %v6006 = vpop.f32.mrf.mxu0
    %v6007 = vadd.f32 0.0, %v6006
    %v6008 = vpop.f32.mrf.mxu0
    %v6009 = vpop.f32.mrf.mxu0
    %v6010 = vadd.f32 0.0, %v6009
    %v6011 = vpop.f32.mrf.mxu0
    %6012 = vmatprep.mubr.bf16.mxu0 0
    %6013 = vmatmul.mubr.bf16.gmra.mxu0 %v5865
    %v6014 = vpop.f32.mrf.mxu0
    %v6015 = vadd.f32 0.0, %v6014
    %v6016 = vpop.f32.mrf.mxu0
    %v6017 = vpop.f32.mrf.mxu0
    %v6018 = vadd.f32 0.0, %v6017
    %v6019 = vpop.f32.mrf.mxu0
    %6020 = vmatprep.mubr.bf16.mxu0 0
    %6021 = vmatmul.mubr.bf16.gmra.mxu0 %v5866
    %v6022 = vpop.f32.mrf.mxu0
    %v6023 = vadd.f32 0.0, %v6022
    %v6024 = vpop.f32.mrf.mxu0
    %v6025 = vpop.f32.mrf.mxu0
    %v6026 = vadd.f32 0.0, %v6025
    %v6027 = vpop.f32.mrf.mxu0
    %6028 = vdwg.mxu0
    %v6029 = vadd.f32 %v5746, %v5967
    %v6030 = vadd.f32 %v5747, %v5970
    %v6031 = vadd.f32 %v5748, %v5975
    %v6032 = vadd.f32 %v5749, %v5978
    %v6033 = vadd.f32 %v5750, %v5983
    %v6034 = vadd.f32 %v5751, %v5986
    %v6035 = vadd.f32 %v5752, %v5991
    %v6036 = vadd.f32 %v5753, %v5994
    %v6037 = vadd.f32 %v5754, %v5999
    %v6038 = vadd.f32 %v5755, %v6002
    %v6039 = vadd.f32 %v5756, %v6007
    %v6040 = vadd.f32 %v5757, %v6010
    %v6041 = vadd.f32 %v5758, %v6015
    %v6042 = vadd.f32 %v5759, %v6018
    %v6043 = vadd.f32 %v5760, %v6023
    %v6044 = vadd.f32 %v5761, %v6026
    %v6045 = vld [vmem:[%s7] sm:$0x1]
    %v6047 = vlaneseq
    %v6048 = vshrl.u32 %v6047, 7
    %v6049 = vsub.s32 0, %v6048
    %v6050 = vrot.slane %v6045, %v6049
    %v6052 = vadd.f32 %v6029, %v6050
    %v6053 = vadd.f32 %v6030, %v6050
    %v6054 = vadd.f32 %v6031, %v6050
    %v6055 = vadd.f32 %v6032, %v6050
    %v6056 = vadd.f32 %v6033, %v6050
    %v6057 = vadd.f32 %v6034, %v6050
    %v6058 = vadd.f32 %v6035, %v6050
    %v6059 = vadd.f32 %v6036, %v6050
    %v6060 = vadd.f32 %v6037, %v6050
    %v6061 = vadd.f32 %v6038, %v6050
    %v6062 = vadd.f32 %v6039, %v6050
    %v6063 = vadd.f32 %v6040, %v6050
    %v6064 = vadd.f32 %v6041, %v6050
    %v6065 = vadd.f32 %v6042, %v6050
    %v6066 = vadd.f32 %v6043, %v6050
    %v6067 = vadd.f32 %v6044, %v6050
    %v6068 = vadd.f32 %v6052, %v362
    %v6069 = vadd.f32 %v6053, %v363
    %v6070 = vadd.f32 %v6054, %v364
    %v6071 = vadd.f32 %v6055, %v365
    %v6072 = vadd.f32 %v6056, %v366
    %v6073 = vadd.f32 %v6057, %v367
    %v6074 = vadd.f32 %v6058, %v368
    %v6075 = vadd.f32 %v6059, %v369
    %v6076 = vadd.f32 %v6060, %v370
    %v6077 = vadd.f32 %v6061, %v371
    %v6078 = vadd.f32 %v6062, %v372
    %v6079 = vadd.f32 %v6063, %v373
    %v6080 = vadd.f32 %v6064, %v374
    %v6081 = vadd.f32 %v6065, %v375
    %v6082 = vadd.f32 %v6066, %v376
    %v6083 = vadd.f32 %v6067, %v377
    %v6084 = vmax.f32 %v6068, 0.0
    %v6085 = vmax.f32 %v6069, 0.0
    %v6086 = vmax.f32 %v6070, 0.0
    %v6087 = vmax.f32 %v6071, 0.0
    %v6088 = vmax.f32 %v6072, 0.0
    %v6089 = vmax.f32 %v6073, 0.0
    %v6090 = vmax.f32 %v6074, 0.0
    %v6091 = vmax.f32 %v6075, 0.0
    %v6092 = vmax.f32 %v6076, 0.0
    %v6093 = vmax.f32 %v6077, 0.0
    %v6094 = vmax.f32 %v6078, 0.0
    %v6095 = vmax.f32 %v6079, 0.0
    %v6096 = vmax.f32 %v6080, 0.0
    %v6097 = vmax.f32 %v6081, 0.0
    %v6098 = vmax.f32 %v6082, 0.0
    %v6099 = vmax.f32 %v6083, 0.0
    %v6100 = vpack.c.bf16 %v6085, %v6084
    %v6101 = vpack.c.bf16 %v6087, %v6086
    %v6102 = vpack.c.bf16 %v6089, %v6088
    %v6103 = vpack.c.bf16 %v6091, %v6090
    %v6104 = vpack.c.bf16 %v6093, %v6092
    %v6105 = vpack.c.bf16 %v6095, %v6094
    %v6106 = vpack.c.bf16 %v6097, %v6096
    %v6107 = vpack.c.bf16 %v6099, %v6098
    %6108 = vmatprep.subr.bf16.mxu0 0
    %6109 = vmatpush1.bf16.msra.mxu0 %v6107
    %6110 = vmatprep.subr.bf16.mxu0 0
    %6111 = vmatpush1.bf16.msra.mxu0 %v6106
    %6112 = vmatprep.subr.bf16.mxu0 0
    %6113 = vmatpush1.bf16.msra.mxu0 %v6105
    %6114 = vmatprep.subr.bf16.mxu0 0
    %6115 = vmatpush1.bf16.msra.mxu0 %v6104
    %6116 = vmatprep.subr.bf16.mxu0 0
    %6117 = vmatpush1.bf16.msra.mxu0 %v6103
    %6118 = vmatprep.subr.bf16.mxu0 0
    %6119 = vmatpush1.bf16.msra.mxu0 %v6102
    %6120 = vmatprep.subr.bf16.mxu0 0
    %6121 = vmatpush1.bf16.msra.mxu0 %v6101
    %6122 = vmatprep.subr.bf16.mxu0 0
    %6123 = vmatpush1.bf16.msra.mxu0 %v6100
    %6124 = vmatprep.subr.bf16.mxu0 0
    %6125 = vmatpush2.bf16.msra.mxu0 0
    %6126 = vmatprep.subr.bf16.mxu0 0
    %6127 = vmatpush2.bf16.msra.mxu0 0
    %6128 = vmatprep.subr.bf16.mxu0 0
    %6129 = vmatpush2.bf16.msra.mxu0 0
    %6130 = vmatprep.subr.bf16.mxu0 0
    %6131 = vmatpush2.bf16.msra.mxu0 0
    %6132 = vmatprep.subr.bf16.mxu0 0
    %6133 = vmatpush2.bf16.msra.mxu0 0
    %6134 = vmatprep.subr.bf16.mxu0 0
    %6135 = vmatpush2.bf16.msra.mxu0 0
    %6136 = vmatprep.subr.bf16.mxu0 0
    %6137 = vmatpush2.bf16.msra.mxu0 0
    %6138 = vmatprep.subr.bf16.mxu0 0
    %6139 = vmatpush2.bf16.msra.mxu0 0
    %6140 = vmatprep.mubr.bf16.mxu0 0
    %6141 = vmatmul.mubr.bf16.gmra.mxu0 %v434
    %v6142 = vpop.f32.mrf.mxu0
    %v6143 = vadd.f32 0.0, %v6142
    %v6144 = vpop.f32.mrf.mxu0
    %v6145 = vpop.f32.mrf.mxu0
    %v6146 = vadd.f32 0.0, %v6145
    %v6147 = vpop.f32.mrf.mxu0
    %6148 = vmatprep.mubr.bf16.mxu0 0
    %6149 = vmatmul.mubr.bf16.gmra.mxu0 %v435
    %v6150 = vpop.f32.mrf.mxu0
    %v6151 = vadd.f32 0.0, %v6150
    %v6152 = vpop.f32.mrf.mxu0
    %v6153 = vpop.f32.mrf.mxu0
    %v6154 = vadd.f32 0.0, %v6153
    %v6155 = vpop.f32.mrf.mxu0
    %6156 = vmatprep.mubr.bf16.mxu0 0
    %6157 = vmatmul.mubr.bf16.gmra.mxu0 %v436
    %v6158 = vpop.f32.mrf.mxu0
    %v6159 = vadd.f32 0.0, %v6158
    %v6160 = vpop.f32.mrf.mxu0
    %v6161 = vpop.f32.mrf.mxu0
    %v6162 = vadd.f32 0.0, %v6161
    %v6163 = vpop.f32.mrf.mxu0
    %6164 = vmatprep.mubr.bf16.mxu0 0
    %6165 = vmatmul.mubr.bf16.gmra.mxu0 %v437
    %v6166 = vpop.f32.mrf.mxu0
    %v6167 = vadd.f32 0.0, %v6166
    %v6168 = vpop.f32.mrf.mxu0
    %v6169 = vpop.f32.mrf.mxu0
    %v6170 = vadd.f32 0.0, %v6169
    %v6171 = vpop.f32.mrf.mxu0
    %6172 = vmatprep.mubr.bf16.mxu0 0
    %6173 = vmatmul.mubr.bf16.gmra.mxu0 %v438
    %v6174 = vpop.f32.mrf.mxu0
    %v6175 = vadd.f32 0.0, %v6174
    %v6176 = vpop.f32.mrf.mxu0
    %v6177 = vpop.f32.mrf.mxu0
    %v6178 = vadd.f32 0.0, %v6177
    %v6179 = vpop.f32.mrf.mxu0
    %6180 = vmatprep.mubr.bf16.mxu0 0
    %6181 = vmatmul.mubr.bf16.gmra.mxu0 %v439
    %v6182 = vpop.f32.mrf.mxu0
    %v6183 = vadd.f32 0.0, %v6182
    %v6184 = vpop.f32.mrf.mxu0
    %v6185 = vpop.f32.mrf.mxu0
    %v6186 = vadd.f32 0.0, %v6185
    %v6187 = vpop.f32.mrf.mxu0
    %6188 = vmatprep.mubr.bf16.mxu0 0
    %6189 = vmatmul.mubr.bf16.gmra.mxu0 %v440
    %v6190 = vpop.f32.mrf.mxu0
    %v6191 = vadd.f32 0.0, %v6190
    %v6192 = vpop.f32.mrf.mxu0
    %v6193 = vpop.f32.mrf.mxu0
    %v6194 = vadd.f32 0.0, %v6193
    %v6195 = vpop.f32.mrf.mxu0
    %6196 = vmatprep.mubr.bf16.mxu0 0
    %6197 = vmatmul.mubr.bf16.gmra.mxu0 %v441
    %v6198 = vpop.f32.mrf.mxu0
    %v6199 = vadd.f32 0.0, %v6198
    %v6200 = vpop.f32.mrf.mxu0
    %v6201 = vpop.f32.mrf.mxu0
    %v6202 = vadd.f32 0.0, %v6201
    %v6203 = vpop.f32.mrf.mxu0
    %6204 = vdwg.mxu0
    %v6205 = vpack.c.bf16 %v6146, %v6143
    %v6206 = vpack.c.bf16 %v6154, %v6151
    %v6207 = vpack.c.bf16 %v6162, %v6159
    %v6208 = vpack.c.bf16 %v6170, %v6167
    %v6209 = vpack.c.bf16 %v6178, %v6175
    %v6210 = vpack.c.bf16 %v6186, %v6183
    %v6211 = vpack.c.bf16 %v6194, %v6191
    %v6212 = vpack.c.bf16 %v6202, %v6199
    %v6213 = vld [vmem:[%s8] sm:$0xf]
    %v6214 = vld [vmem:[%s8 + $0x4] sm:$0xf]
    %v6215 = vld [vmem:[%s8 + $0x8] sm:$0xf]
    %v6216 = vld [vmem:[%s8 + $0xc] sm:$0xf]
    %v6217 = vld [vmem:[%s8 + $0x10] sm:$0xf]
    %v6218 = vld [vmem:[%s8 + $0x14] sm:$0xf]
    %v6219 = vld [vmem:[%s8 + $0x18] sm:$0xf]
    %v6220 = vld [vmem:[%s8 + $0x1c] sm:$0xf]
    %v6221 = vld [vmem:[%s8 + $0x20] sm:$0xf]
    %v6222 = vld [vmem:[%s8 + $0x24] sm:$0xf]
    %v6223 = vld [vmem:[%s8 + $0x28] sm:$0xf]
    %v6224 = vld [vmem:[%s8 + $0x2c] sm:$0xf]
    %v6225 = vld [vmem:[%s8 + $0x30] sm:$0xf]
    %v6226 = vld [vmem:[%s8 + $0x34] sm:$0xf]
    %v6227 = vld [vmem:[%s8 + $0x38] sm:$0xf]
    %v6228 = vld [vmem:[%s8 + $0x3c] sm:$0xf]
    %6229 = vmatprep.subr.bf16.mxu0 0
    %6230 = vmatpush1.bf16.msra.mxu0 %v6107
    %6231 = vmatprep.subr.bf16.mxu0 0
    %6232 = vmatpush1.bf16.msra.mxu0 %v6106
    %6233 = vmatprep.subr.bf16.mxu0 0
    %6234 = vmatpush1.bf16.msra.mxu0 %v6105
    %6235 = vmatprep.subr.bf16.mxu0 0
    %6236 = vmatpush1.bf16.msra.mxu0 %v6104
    %6237 = vmatprep.subr.bf16.mxu0 0
    %6238 = vmatpush1.bf16.msra.mxu0 %v6103
    %6239 = vmatprep.subr.bf16.mxu0 0
    %6240 = vmatpush1.bf16.msra.mxu0 %v6102
    %6241 = vmatprep.subr.bf16.mxu0 0
    %6242 = vmatpush1.bf16.msra.mxu0 %v6101
    %6243 = vmatprep.subr.bf16.mxu0 0
    %6244 = vmatpush1.bf16.msra.mxu0 %v6100
    %6245 = vmatprep.subr.bf16.mxu0 0
    %6246 = vmatpush2.bf16.msra.mxu0 0
    %6247 = vmatprep.subr.bf16.mxu0 0
    %6248 = vmatpush2.bf16.msra.mxu0 0
    %6249 = vmatprep.subr.bf16.mxu0 0
    %6250 = vmatpush2.bf16.msra.mxu0 0
    %6251 = vmatprep.subr.bf16.mxu0 0
    %6252 = vmatpush2.bf16.msra.mxu0 0
    %6253 = vmatprep.subr.bf16.mxu0 0
    %6254 = vmatpush2.bf16.msra.mxu0 0
    %6255 = vmatprep.subr.bf16.mxu0 0
    %6256 = vmatpush2.bf16.msra.mxu0 0
    %6257 = vmatprep.subr.bf16.mxu0 0
    %6258 = vmatpush2.bf16.msra.mxu0 0
    %6259 = vmatprep.subr.bf16.mxu0 0
    %6260 = vmatpush2.bf16.msra.mxu0 0
    %6261 = vmatprep.mubr.bf16.mxu0 0
    %6262 = vmatmul.mubr.bf16.gmra.mxu0 %v620
    %v6263 = vpop.f32.mrf.mxu0
    %v6264 = vadd.f32 0.0, %v6263
    %v6265 = vpop.f32.mrf.mxu0
    %v6266 = vpop.f32.mrf.mxu0
    %v6267 = vadd.f32 0.0, %v6266
    %v6268 = vpop.f32.mrf.mxu0
    %6269 = vmatprep.mubr.bf16.mxu0 0
    %6270 = vmatmul.mubr.bf16.gmra.mxu0 %v621
    %v6271 = vpop.f32.mrf.mxu0
    %v6272 = vadd.f32 0.0, %v6271
    %v6273 = vpop.f32.mrf.mxu0
    %v6274 = vpop.f32.mrf.mxu0
    %v6275 = vadd.f32 0.0, %v6274
    %v6276 = vpop.f32.mrf.mxu0
    %6277 = vmatprep.mubr.bf16.mxu0 0
    %6278 = vmatmul.mubr.bf16.gmra.mxu0 %v622
    %v6279 = vpop.f32.mrf.mxu0
    %v6280 = vadd.f32 0.0, %v6279
    %v6281 = vpop.f32.mrf.mxu0
    %v6282 = vpop.f32.mrf.mxu0
    %v6283 = vadd.f32 0.0, %v6282
    %v6284 = vpop.f32.mrf.mxu0
    %6285 = vmatprep.mubr.bf16.mxu0 0
    %6286 = vmatmul.mubr.bf16.gmra.mxu0 %v623
    %v6287 = vpop.f32.mrf.mxu0
    %v6288 = vadd.f32 0.0, %v6287
    %v6289 = vpop.f32.mrf.mxu0
    %v6290 = vpop.f32.mrf.mxu0
    %v6291 = vadd.f32 0.0, %v6290
    %v6292 = vpop.f32.mrf.mxu0
    %6293 = vmatprep.mubr.bf16.mxu0 0
    %6294 = vmatmul.mubr.bf16.gmra.mxu0 %v624
    %v6295 = vpop.f32.mrf.mxu0
    %v6296 = vadd.f32 0.0, %v6295
    %v6297 = vpop.f32.mrf.mxu0
    %v6298 = vpop.f32.mrf.mxu0
    %v6299 = vadd.f32 0.0, %v6298
    %v6300 = vpop.f32.mrf.mxu0
    %6301 = vmatprep.mubr.bf16.mxu0 0
    %6302 = vmatmul.mubr.bf16.gmra.mxu0 %v625
    %v6303 = vpop.f32.mrf.mxu0
    %v6304 = vadd.f32 0.0, %v6303
    %v6305 = vpop.f32.mrf.mxu0
    %v6306 = vpop.f32.mrf.mxu0
    %v6307 = vadd.f32 0.0, %v6306
    %v6308 = vpop.f32.mrf.mxu0
    %6309 = vmatprep.mubr.bf16.mxu0 0
    %6310 = vmatmul.mubr.bf16.gmra.mxu0 %v626
    %v6311 = vpop.f32.mrf.mxu0
    %v6312 = vadd.f32 0.0, %v6311
    %v6313 = vpop.f32.mrf.mxu0
    %v6314 = vpop.f32.mrf.mxu0
    %v6315 = vadd.f32 0.0, %v6314
    %v6316 = vpop.f32.mrf.mxu0
    %6317 = vmatprep.mubr.bf16.mxu0 0
    %6318 = vmatmul.mubr.bf16.gmra.mxu0 %v627
    %v6319 = vpop.f32.mrf.mxu0
    %v6320 = vadd.f32 0.0, %v6319
    %v6321 = vpop.f32.mrf.mxu0
    %v6322 = vpop.f32.mrf.mxu0
    %v6323 = vadd.f32 0.0, %v6322
    %v6324 = vpop.f32.mrf.mxu0
    %6325 = vdwg.mxu0
    %v6326 = vpack.c.bf16 %v6267, %v6264
    %v6327 = vpack.c.bf16 %v6275, %v6272
    %v6328 = vpack.c.bf16 %v6283, %v6280
    %v6329 = vpack.c.bf16 %v6291, %v6288
    %v6330 = vpack.c.bf16 %v6299, %v6296
    %v6331 = vpack.c.bf16 %v6307, %v6304
    %v6332 = vpack.c.bf16 %v6315, %v6312
    %v6333 = vpack.c.bf16 %v6323, %v6320
    %s6334 = scalar_lea.vmem %s8, 64
    %v6335 = vld [vmem:[%s6334] sm:$0xf]
    %v6336 = vld [vmem:[%s6334 + $0x4] sm:$0xf]
    %v6337 = vld [vmem:[%s6334 + $0x8] sm:$0xf]
    %v6338 = vld [vmem:[%s6334 + $0xc] sm:$0xf]
    %v6339 = vld [vmem:[%s6334 + $0x10] sm:$0xf]
    %v6340 = vld [vmem:[%s6334 + $0x14] sm:$0xf]
    %v6341 = vld [vmem:[%s6334 + $0x18] sm:$0xf]
    %v6342 = vld [vmem:[%s6334 + $0x1c] sm:$0xf]
    %v6343 = vld [vmem:[%s6334 + $0x20] sm:$0xf]
    %v6344 = vld [vmem:[%s6334 + $0x24] sm:$0xf]
    %v6345 = vld [vmem:[%s6334 + $0x28] sm:$0xf]
    %v6346 = vld [vmem:[%s6334 + $0x2c] sm:$0xf]
    %v6347 = vld [vmem:[%s6334 + $0x30] sm:$0xf]
    %v6348 = vld [vmem:[%s6334 + $0x34] sm:$0xf]
    %v6349 = vld [vmem:[%s6334 + $0x38] sm:$0xf]
    %v6350 = vld [vmem:[%s6334 + $0x3c] sm:$0xf]
    %v6367 = vunpack.c.l.b16 %v6335
    %v6368 = vunpack.c.l.b16 %v6336
    %v6369 = vunpack.c.l.b16 %v6337
    %v6370 = vunpack.c.l.b16 %v6338
    %v6371 = vunpack.c.l.b16 %v6339
    %v6372 = vunpack.c.l.b16 %v6340
    %v6373 = vunpack.c.l.b16 %v6341
    %v6374 = vunpack.c.l.b16 %v6342
    %v6375 = vunpack.c.l.b16 %v6343
    %v6376 = vunpack.c.l.b16 %v6344
    %v6377 = vunpack.c.l.b16 %v6345
    %v6378 = vunpack.c.l.b16 %v6346
    %v6379 = vunpack.c.l.b16 %v6347
    %v6380 = vunpack.c.l.b16 %v6348
    %v6381 = vunpack.c.l.b16 %v6349
    %v6382 = vunpack.c.l.b16 %v6350
    %v6383 = vpack.c.b16 %v6368, %v6367
    %v6384 = vpack.c.b16 %v6370, %v6369
    %v6385 = vpack.c.b16 %v6372, %v6371
    %v6386 = vpack.c.b16 %v6374, %v6373
    %v6387 = vpack.c.b16 %v6376, %v6375
    %v6388 = vpack.c.b16 %v6378, %v6377
    %v6389 = vpack.c.b16 %v6380, %v6379
    %v6390 = vpack.c.b16 %v6382, %v6381
    %6399 = vmatprep.subr.bf16.mxu0 0
    %6400 = vmatpush1.bf16.msra.mxu0 %v6390
    %6401 = vmatprep.subr.bf16.mxu0 0
    %6402 = vmatpush1.bf16.msra.mxu0 %v6389
    %6403 = vmatprep.subr.bf16.mxu0 0
    %6404 = vmatpush1.bf16.msra.mxu0 %v6388
    %6405 = vmatprep.subr.bf16.mxu0 0
    %6406 = vmatpush1.bf16.msra.mxu0 %v6387
    %6407 = vmatprep.subr.bf16.mxu0 0
    %6408 = vmatpush1.bf16.msra.mxu0 %v6386
    %6409 = vmatprep.subr.bf16.mxu0 0
    %6410 = vmatpush1.bf16.msra.mxu0 %v6385
    %6411 = vmatprep.subr.bf16.mxu0 0
    %6412 = vmatpush1.bf16.msra.mxu0 %v6384
    %6413 = vmatprep.subr.bf16.mxu0 0
    %6414 = vmatpush1.bf16.msra.mxu0 %v6383
    %6415 = vmatprep.subr.bf16.mxu0 0
    %6416 = vmatpush2.bf16.msra.mxu0 0
    %6417 = vmatprep.subr.bf16.mxu0 0
    %6418 = vmatpush2.bf16.msra.mxu0 0
    %6419 = vmatprep.subr.bf16.mxu0 0
    %6420 = vmatpush2.bf16.msra.mxu0 0
    %6421 = vmatprep.subr.bf16.mxu0 0
    %6422 = vmatpush2.bf16.msra.mxu0 0
    %6423 = vmatprep.subr.bf16.mxu0 0
    %6424 = vmatpush2.bf16.msra.mxu0 0
    %6425 = vmatprep.subr.bf16.mxu0 0
    %6426 = vmatpush2.bf16.msra.mxu0 0
    %6427 = vmatprep.subr.bf16.mxu0 0
    %6428 = vmatpush2.bf16.msra.mxu0 0
    %6429 = vmatprep.subr.bf16.mxu0 0
    %6430 = vmatpush2.bf16.msra.mxu0 0
    %6431 = vmatprep.mubr.bf16.mxu0 0
    %6432 = vmatmul.mubr.bf16.gmra.mxu0 %v6326
    %v6433 = vpop.f32.mrf.mxu0
    %v6434 = vadd.f32 0.0, %v6433
    %v6435 = vpop.f32.mrf.mxu0
    %v6436 = vpop.f32.mrf.mxu0
    %v6437 = vadd.f32 0.0, %v6436
    %v6438 = vpop.f32.mrf.mxu0
    %6439 = vmatprep.mubr.bf16.mxu0 0
    %6440 = vmatmul.mubr.bf16.gmra.mxu0 %v6327
    %v6441 = vpop.f32.mrf.mxu0
    %v6442 = vadd.f32 0.0, %v6441
    %v6443 = vpop.f32.mrf.mxu0
    %v6444 = vpop.f32.mrf.mxu0
    %v6445 = vadd.f32 0.0, %v6444
    %v6446 = vpop.f32.mrf.mxu0
    %6447 = vmatprep.mubr.bf16.mxu0 0
    %6448 = vmatmul.mubr.bf16.gmra.mxu0 %v6328
    %v6449 = vpop.f32.mrf.mxu0
    %v6450 = vadd.f32 0.0, %v6449
    %v6451 = vpop.f32.mrf.mxu0
    %v6452 = vpop.f32.mrf.mxu0
    %v6453 = vadd.f32 0.0, %v6452
    %v6454 = vpop.f32.mrf.mxu0
    %6455 = vmatprep.mubr.bf16.mxu0 0
    %6456 = vmatmul.mubr.bf16.gmra.mxu0 %v6329
    %v6457 = vpop.f32.mrf.mxu0
    %v6458 = vadd.f32 0.0, %v6457
    %v6459 = vpop.f32.mrf.mxu0
    %v6460 = vpop.f32.mrf.mxu0
    %v6461 = vadd.f32 0.0, %v6460
    %v6462 = vpop.f32.mrf.mxu0
    %6463 = vmatprep.mubr.bf16.mxu0 0
    %6464 = vmatmul.mubr.bf16.gmra.mxu0 %v6330
    %v6465 = vpop.f32.mrf.mxu0
    %v6466 = vadd.f32 0.0, %v6465
    %v6467 = vpop.f32.mrf.mxu0
    %v6468 = vpop.f32.mrf.mxu0
    %v6469 = vadd.f32 0.0, %v6468
    %v6470 = vpop.f32.mrf.mxu0
    %6471 = vmatprep.mubr.bf16.mxu0 0
    %6472 = vmatmul.mubr.bf16.gmra.mxu0 %v6331
    %v6473 = vpop.f32.mrf.mxu0
    %v6474 = vadd.f32 0.0, %v6473
    %v6475 = vpop.f32.mrf.mxu0
    %v6476 = vpop.f32.mrf.mxu0
    %v6477 = vadd.f32 0.0, %v6476
    %v6478 = vpop.f32.mrf.mxu0
    %6479 = vmatprep.mubr.bf16.mxu0 0
    %6480 = vmatmul.mubr.bf16.gmra.mxu0 %v6332
    %v6481 = vpop.f32.mrf.mxu0
    %v6482 = vadd.f32 0.0, %v6481
    %v6483 = vpop.f32.mrf.mxu0
    %v6484 = vpop.f32.mrf.mxu0
    %v6485 = vadd.f32 0.0, %v6484
    %v6486 = vpop.f32.mrf.mxu0
    %6487 = vmatprep.mubr.bf16.mxu0 0
    %6488 = vmatmul.mubr.bf16.gmra.mxu0 %v6333
    %v6489 = vpop.f32.mrf.mxu0
    %v6490 = vadd.f32 0.0, %v6489
    %v6491 = vpop.f32.mrf.mxu0
    %v6492 = vpop.f32.mrf.mxu0
    %v6493 = vadd.f32 0.0, %v6492
    %v6494 = vpop.f32.mrf.mxu0
    %6495 = vdwg.mxu0
    %v6512 = vunpack.c.l.b16 %v6213
    %v6513 = vunpack.c.l.b16 %v6214
    %v6514 = vunpack.c.l.b16 %v6215
    %v6515 = vunpack.c.l.b16 %v6216
    %v6516 = vunpack.c.l.b16 %v6217
    %v6517 = vunpack.c.l.b16 %v6218
    %v6518 = vunpack.c.l.b16 %v6219
    %v6519 = vunpack.c.l.b16 %v6220
    %v6520 = vunpack.c.l.b16 %v6221
    %v6521 = vunpack.c.l.b16 %v6222
    %v6522 = vunpack.c.l.b16 %v6223
    %v6523 = vunpack.c.l.b16 %v6224
    %v6524 = vunpack.c.l.b16 %v6225
    %v6525 = vunpack.c.l.b16 %v6226
    %v6526 = vunpack.c.l.b16 %v6227
    %v6527 = vunpack.c.l.b16 %v6228
    %v6528 = vpack.c.b16 %v6513, %v6512
    %v6529 = vpack.c.b16 %v6515, %v6514
    %v6530 = vpack.c.b16 %v6517, %v6516
    %v6531 = vpack.c.b16 %v6519, %v6518
    %v6532 = vpack.c.b16 %v6521, %v6520
    %v6533 = vpack.c.b16 %v6523, %v6522
    %v6534 = vpack.c.b16 %v6525, %v6524
    %v6535 = vpack.c.b16 %v6527, %v6526
    %6544 = vmatprep.subr.bf16.mxu0 0
    %6545 = vmatpush1.bf16.msra.mxu0 %v6535
    %6546 = vmatprep.subr.bf16.mxu0 0
    %6547 = vmatpush1.bf16.msra.mxu0 %v6534
    %6548 = vmatprep.subr.bf16.mxu0 0
    %6549 = vmatpush1.bf16.msra.mxu0 %v6533
    %6550 = vmatprep.subr.bf16.mxu0 0
    %6551 = vmatpush1.bf16.msra.mxu0 %v6532
    %6552 = vmatprep.subr.bf16.mxu0 0
    %6553 = vmatpush1.bf16.msra.mxu0 %v6531
    %6554 = vmatprep.subr.bf16.mxu0 0
    %6555 = vmatpush1.bf16.msra.mxu0 %v6530
    %6556 = vmatprep.subr.bf16.mxu0 0
    %6557 = vmatpush1.bf16.msra.mxu0 %v6529
    %6558 = vmatprep.subr.bf16.mxu0 0
    %6559 = vmatpush1.bf16.msra.mxu0 %v6528
    %6560 = vmatprep.subr.bf16.mxu0 0
    %6561 = vmatpush2.bf16.msra.mxu0 0
    %6562 = vmatprep.subr.bf16.mxu0 0
    %6563 = vmatpush2.bf16.msra.mxu0 0
    %6564 = vmatprep.subr.bf16.mxu0 0
    %6565 = vmatpush2.bf16.msra.mxu0 0
    %6566 = vmatprep.subr.bf16.mxu0 0
    %6567 = vmatpush2.bf16.msra.mxu0 0
    %6568 = vmatprep.subr.bf16.mxu0 0
    %6569 = vmatpush2.bf16.msra.mxu0 0
    %6570 = vmatprep.subr.bf16.mxu0 0
    %6571 = vmatpush2.bf16.msra.mxu0 0
    %6572 = vmatprep.subr.bf16.mxu0 0
    %6573 = vmatpush2.bf16.msra.mxu0 0
    %6574 = vmatprep.subr.bf16.mxu0 0
    %6575 = vmatpush2.bf16.msra.mxu0 0
    %6576 = vmatprep.mubr.bf16.mxu0 0
    %6577 = vmatmul.mubr.bf16.gmra.mxu0 %v6205
    %v6578 = vpop.f32.mrf.mxu0
    %v6579 = vadd.f32 %v6434, %v6578
    %v6580 = vpop.f32.mrf.mxu0
    %v6581 = vpop.f32.mrf.mxu0
    %v6582 = vadd.f32 %v6437, %v6581
    %v6583 = vpop.f32.mrf.mxu0
    %6584 = vmatprep.mubr.bf16.mxu0 0
    %6585 = vmatmul.mubr.bf16.gmra.mxu0 %v6206
    %v6586 = vpop.f32.mrf.mxu0
    %v6587 = vadd.f32 %v6442, %v6586
    %v6588 = vpop.f32.mrf.mxu0
    %v6589 = vpop.f32.mrf.mxu0
    %v6590 = vadd.f32 %v6445, %v6589
    %v6591 = vpop.f32.mrf.mxu0
    %6592 = vmatprep.mubr.bf16.mxu0 0
    %6593 = vmatmul.mubr.bf16.gmra.mxu0 %v6207
    %v6594 = vpop.f32.mrf.mxu0
    %v6595 = vadd.f32 %v6450, %v6594
    %v6596 = vpop.f32.mrf.mxu0
    %v6597 = vpop.f32.mrf.mxu0
    %v6598 = vadd.f32 %v6453, %v6597
    %v6599 = vpop.f32.mrf.mxu0
    %6600 = vmatprep.mubr.bf16.mxu0 0
    %6601 = vmatmul.mubr.bf16.gmra.mxu0 %v6208
    %v6602 = vpop.f32.mrf.mxu0
    %v6603 = vadd.f32 %v6458, %v6602
    %v6604 = vpop.f32.mrf.mxu0
    %v6605 = vpop.f32.mrf.mxu0
    %v6606 = vadd.f32 %v6461, %v6605
    %v6607 = vpop.f32.mrf.mxu0
    %6608 = vmatprep.mubr.bf16.mxu0 0
    %6609 = vmatmul.mubr.bf16.gmra.mxu0 %v6209
    %v6610 = vpop.f32.mrf.mxu0
    %v6611 = vadd.f32 %v6466, %v6610
    %v6612 = vpop.f32.mrf.mxu0
    %v6613 = vpop.f32.mrf.mxu0
    %v6614 = vadd.f32 %v6469, %v6613
    %v6615 = vpop.f32.mrf.mxu0
    %6616 = vmatprep.mubr.bf16.mxu0 0
    %6617 = vmatmul.mubr.bf16.gmra.mxu0 %v6210
    %v6618 = vpop.f32.mrf.mxu0
    %v6619 = vadd.f32 %v6474, %v6618
    %v6620 = vpop.f32.mrf.mxu0
    %v6621 = vpop.f32.mrf.mxu0
    %v6622 = vadd.f32 %v6477, %v6621
    %v6623 = vpop.f32.mrf.mxu0
    %6624 = vmatprep.mubr.bf16.mxu0 0
    %6625 = vmatmul.mubr.bf16.gmra.mxu0 %v6211
    %v6626 = vpop.f32.mrf.mxu0
    %v6627 = vadd.f32 %v6482, %v6626
    %v6628 = vpop.f32.mrf.mxu0
    %v6629 = vpop.f32.mrf.mxu0
    %v6630 = vadd.f32 %v6485, %v6629
    %v6631 = vpop.f32.mrf.mxu0
    %6632 = vmatprep.mubr.bf16.mxu0 0
    %6633 = vmatmul.mubr.bf16.gmra.mxu0 %v6212
    %v6634 = vpop.f32.mrf.mxu0
    %v6635 = vadd.f32 %v6490, %v6634
    %v6636 = vpop.f32.mrf.mxu0
    %v6637 = vpop.f32.mrf.mxu0
    %v6638 = vadd.f32 %v6493, %v6637
    %v6639 = vpop.f32.mrf.mxu0
    %6640 = vdwg.mxu0
    %6641 = vmatprep.subr.bf16.mxu0 0
    %6642 = vmatpush1.bf16.msra.mxu0 %v6107
    %6643 = vmatprep.subr.bf16.mxu0 0
    %6644 = vmatpush1.bf16.msra.mxu0 %v6106
    %6645 = vmatprep.subr.bf16.mxu0 0
    %6646 = vmatpush1.bf16.msra.mxu0 %v6105
    %6647 = vmatprep.subr.bf16.mxu0 0
    %6648 = vmatpush1.bf16.msra.mxu0 %v6104
    %6649 = vmatprep.subr.bf16.mxu0 0
    %6650 = vmatpush1.bf16.msra.mxu0 %v6103
    %6651 = vmatprep.subr.bf16.mxu0 0
    %6652 = vmatpush1.bf16.msra.mxu0 %v6102
    %6653 = vmatprep.subr.bf16.mxu0 0
    %6654 = vmatpush1.bf16.msra.mxu0 %v6101
    %6655 = vmatprep.subr.bf16.mxu0 0
    %6656 = vmatpush1.bf16.msra.mxu0 %v6100
    %6657 = vmatprep.subr.bf16.mxu0 0
    %6658 = vmatpush2.bf16.msra.mxu0 0
    %6659 = vmatprep.subr.bf16.mxu0 0
    %6660 = vmatpush2.bf16.msra.mxu0 0
    %6661 = vmatprep.subr.bf16.mxu0 0
    %6662 = vmatpush2.bf16.msra.mxu0 0
    %6663 = vmatprep.subr.bf16.mxu0 0
    %6664 = vmatpush2.bf16.msra.mxu0 0
    %6665 = vmatprep.subr.bf16.mxu0 0
    %6666 = vmatpush2.bf16.msra.mxu0 0
    %6667 = vmatprep.subr.bf16.mxu0 0
    %6668 = vmatpush2.bf16.msra.mxu0 0
    %6669 = vmatprep.subr.bf16.mxu0 0
    %6670 = vmatpush2.bf16.msra.mxu0 0
    %6671 = vmatprep.subr.bf16.mxu0 0
    %6672 = vmatpush2.bf16.msra.mxu0 0
    %6673 = vmatprep.mubr.bf16.mxu0 0
    %6674 = vmatmul.mubr.bf16.gmra.mxu0 %v1097
    %v6675 = vpop.f32.mrf.mxu0
    %v6676 = vadd.f32 0.0, %v6675
    %v6677 = vpop.f32.mrf.mxu0
    %v6678 = vpop.f32.mrf.mxu0
    %v6679 = vadd.f32 0.0, %v6678
    %v6680 = vpop.f32.mrf.mxu0
    %6681 = vmatprep.mubr.bf16.mxu0 0
    %6682 = vmatmul.mubr.bf16.gmra.mxu0 %v1098
    %v6683 = vpop.f32.mrf.mxu0
    %v6684 = vadd.f32 0.0, %v6683
    %v6685 = vpop.f32.mrf.mxu0
    %v6686 = vpop.f32.mrf.mxu0
    %v6687 = vadd.f32 0.0, %v6686
    %v6688 = vpop.f32.mrf.mxu0
    %6689 = vmatprep.mubr.bf16.mxu0 0
    %6690 = vmatmul.mubr.bf16.gmra.mxu0 %v1099
    %v6691 = vpop.f32.mrf.mxu0
    %v6692 = vadd.f32 0.0, %v6691
    %v6693 = vpop.f32.mrf.mxu0
    %v6694 = vpop.f32.mrf.mxu0
    %v6695 = vadd.f32 0.0, %v6694
    %v6696 = vpop.f32.mrf.mxu0
    %6697 = vmatprep.mubr.bf16.mxu0 0
    %6698 = vmatmul.mubr.bf16.gmra.mxu0 %v1100
    %v6699 = vpop.f32.mrf.mxu0
    %v6700 = vadd.f32 0.0, %v6699
    %v6701 = vpop.f32.mrf.mxu0
    %v6702 = vpop.f32.mrf.mxu0
    %v6703 = vadd.f32 0.0, %v6702
    %v6704 = vpop.f32.mrf.mxu0
    %6705 = vmatprep.mubr.bf16.mxu0 0
    %6706 = vmatmul.mubr.bf16.gmra.mxu0 %v1101
    %v6707 = vpop.f32.mrf.mxu0
    %v6708 = vadd.f32 0.0, %v6707
    %v6709 = vpop.f32.mrf.mxu0
    %v6710 = vpop.f32.mrf.mxu0
    %v6711 = vadd.f32 0.0, %v6710
    %v6712 = vpop.f32.mrf.mxu0
    %6713 = vmatprep.mubr.bf16.mxu0 0
    %6714 = vmatmul.mubr.bf16.gmra.mxu0 %v1102
    %v6715 = vpop.f32.mrf.mxu0
    %v6716 = vadd.f32 0.0, %v6715
    %v6717 = vpop.f32.mrf.mxu0
    %v6718 = vpop.f32.mrf.mxu0
    %v6719 = vadd.f32 0.0, %v6718
    %v6720 = vpop.f32.mrf.mxu0
    %6721 = vmatprep.mubr.bf16.mxu0 0
    %6722 = vmatmul.mubr.bf16.gmra.mxu0 %v1103
    %v6723 = vpop.f32.mrf.mxu0
    %v6724 = vadd.f32 0.0, %v6723
    %v6725 = vpop.f32.mrf.mxu0
    %v6726 = vpop.f32.mrf.mxu0
    %v6727 = vadd.f32 0.0, %v6726
    %v6728 = vpop.f32.mrf.mxu0
    %6729 = vmatprep.mubr.bf16.mxu0 0
    %6730 = vmatmul.mubr.bf16.gmra.mxu0 %v1104
    %v6731 = vpop.f32.mrf.mxu0
    %v6732 = vadd.f32 0.0, %v6731
    %v6733 = vpop.f32.mrf.mxu0
    %v6734 = vpop.f32.mrf.mxu0
    %v6735 = vadd.f32 0.0, %v6734
    %v6736 = vpop.f32.mrf.mxu0
    %6737 = vdwg.mxu0
    %v6738 = vpack.c.bf16 %v6679, %v6676
    %v6739 = vpack.c.bf16 %v6687, %v6684
    %v6740 = vpack.c.bf16 %v6695, %v6692
    %v6741 = vpack.c.bf16 %v6703, %v6700
    %v6742 = vpack.c.bf16 %v6711, %v6708
    %v6743 = vpack.c.bf16 %v6719, %v6716
    %v6744 = vpack.c.bf16 %v6727, %v6724
    %v6745 = vpack.c.bf16 %v6735, %v6732
    %s6746 = scalar_lea.vmem %s8, 128
    %v6747 = vld [vmem:[%s6746] sm:$0xf]
    %v6748 = vld [vmem:[%s6746 + $0x4] sm:$0xf]
    %v6749 = vld [vmem:[%s6746 + $0x8] sm:$0xf]
    %v6750 = vld [vmem:[%s6746 + $0xc] sm:$0xf]
    %v6751 = vld [vmem:[%s6746 + $0x10] sm:$0xf]
    %v6752 = vld [vmem:[%s6746 + $0x14] sm:$0xf]
    %v6753 = vld [vmem:[%s6746 + $0x18] sm:$0xf]
    %v6754 = vld [vmem:[%s6746 + $0x1c] sm:$0xf]
    %v6755 = vld [vmem:[%s6746 + $0x20] sm:$0xf]
    %v6756 = vld [vmem:[%s6746 + $0x24] sm:$0xf]
    %v6757 = vld [vmem:[%s6746 + $0x28] sm:$0xf]
    %v6758 = vld [vmem:[%s6746 + $0x2c] sm:$0xf]
    %v6759 = vld [vmem:[%s6746 + $0x30] sm:$0xf]
    %v6760 = vld [vmem:[%s6746 + $0x34] sm:$0xf]
    %v6761 = vld [vmem:[%s6746 + $0x38] sm:$0xf]
    %v6762 = vld [vmem:[%s6746 + $0x3c] sm:$0xf]
    %v6779 = vunpack.c.l.b16 %v6747
    %v6780 = vunpack.c.l.b16 %v6748
    %v6781 = vunpack.c.l.b16 %v6749
    %v6782 = vunpack.c.l.b16 %v6750
    %v6783 = vunpack.c.l.b16 %v6751
    %v6784 = vunpack.c.l.b16 %v6752
    %v6785 = vunpack.c.l.b16 %v6753
    %v6786 = vunpack.c.l.b16 %v6754
    %v6787 = vunpack.c.l.b16 %v6755
    %v6788 = vunpack.c.l.b16 %v6756
    %v6789 = vunpack.c.l.b16 %v6757
    %v6790 = vunpack.c.l.b16 %v6758
    %v6791 = vunpack.c.l.b16 %v6759
    %v6792 = vunpack.c.l.b16 %v6760
    %v6793 = vunpack.c.l.b16 %v6761
    %v6794 = vunpack.c.l.b16 %v6762
    %v6795 = vpack.c.b16 %v6780, %v6779
    %v6796 = vpack.c.b16 %v6782, %v6781
    %v6797 = vpack.c.b16 %v6784, %v6783
    %v6798 = vpack.c.b16 %v6786, %v6785
    %v6799 = vpack.c.b16 %v6788, %v6787
    %v6800 = vpack.c.b16 %v6790, %v6789
    %v6801 = vpack.c.b16 %v6792, %v6791
    %v6802 = vpack.c.b16 %v6794, %v6793
    %6811 = vmatprep.subr.bf16.mxu0 0
    %6812 = vmatpush1.bf16.msra.mxu0 %v6802
    %6813 = vmatprep.subr.bf16.mxu0 0
    %6814 = vmatpush1.bf16.msra.mxu0 %v6801
    %6815 = vmatprep.subr.bf16.mxu0 0
    %6816 = vmatpush1.bf16.msra.mxu0 %v6800
    %6817 = vmatprep.subr.bf16.mxu0 0
    %6818 = vmatpush1.bf16.msra.mxu0 %v6799
    %6819 = vmatprep.subr.bf16.mxu0 0
    %6820 = vmatpush1.bf16.msra.mxu0 %v6798
    %6821 = vmatprep.subr.bf16.mxu0 0
    %6822 = vmatpush1.bf16.msra.mxu0 %v6797
    %6823 = vmatprep.subr.bf16.mxu0 0
    %6824 = vmatpush1.bf16.msra.mxu0 %v6796
    %6825 = vmatprep.subr.bf16.mxu0 0
    %6826 = vmatpush1.bf16.msra.mxu0 %v6795
    %6827 = vmatprep.subr.bf16.mxu0 0
    %6828 = vmatpush2.bf16.msra.mxu0 0
    %6829 = vmatprep.subr.bf16.mxu0 0
    %6830 = vmatpush2.bf16.msra.mxu0 0
    %6831 = vmatprep.subr.bf16.mxu0 0
    %6832 = vmatpush2.bf16.msra.mxu0 0
    %6833 = vmatprep.subr.bf16.mxu0 0
    %6834 = vmatpush2.bf16.msra.mxu0 0
    %6835 = vmatprep.subr.bf16.mxu0 0
    %6836 = vmatpush2.bf16.msra.mxu0 0
    %6837 = vmatprep.subr.bf16.mxu0 0
    %6838 = vmatpush2.bf16.msra.mxu0 0
    %6839 = vmatprep.subr.bf16.mxu0 0
    %6840 = vmatpush2.bf16.msra.mxu0 0
    %6841 = vmatprep.subr.bf16.mxu0 0
    %6842 = vmatpush2.bf16.msra.mxu0 0
    %6843 = vmatprep.mubr.bf16.mxu0 0
    %6844 = vmatmul.mubr.bf16.gmra.mxu0 %v6738
    %v6845 = vpop.f32.mrf.mxu0
    %v6846 = vadd.f32 0.0, %v6845
    %v6847 = vpop.f32.mrf.mxu0
    %v6848 = vpop.f32.mrf.mxu0
    %v6849 = vadd.f32 0.0, %v6848
    %v6850 = vpop.f32.mrf.mxu0
    %6851 = vmatprep.mubr.bf16.mxu0 0
    %6852 = vmatmul.mubr.bf16.gmra.mxu0 %v6739
    %v6853 = vpop.f32.mrf.mxu0
    %v6854 = vadd.f32 0.0, %v6853
    %v6855 = vpop.f32.mrf.mxu0
    %v6856 = vpop.f32.mrf.mxu0
    %v6857 = vadd.f32 0.0, %v6856
    %v6858 = vpop.f32.mrf.mxu0
    %6859 = vmatprep.mubr.bf16.mxu0 0
    %6860 = vmatmul.mubr.bf16.gmra.mxu0 %v6740
    %v6861 = vpop.f32.mrf.mxu0
    %v6862 = vadd.f32 0.0, %v6861
    %v6863 = vpop.f32.mrf.mxu0
    %v6864 = vpop.f32.mrf.mxu0
    %v6865 = vadd.f32 0.0, %v6864
    %v6866 = vpop.f32.mrf.mxu0
    %6867 = vmatprep.mubr.bf16.mxu0 0
    %6868 = vmatmul.mubr.bf16.gmra.mxu0 %v6741
    %v6869 = vpop.f32.mrf.mxu0
    %v6870 = vadd.f32 0.0, %v6869
    %v6871 = vpop.f32.mrf.mxu0
    %v6872 = vpop.f32.mrf.mxu0
    %v6873 = vadd.f32 0.0, %v6872
    %v6874 = vpop.f32.mrf.mxu0
    %6875 = vmatprep.mubr.bf16.mxu0 0
    %6876 = vmatmul.mubr.bf16.gmra.mxu0 %v6742
    %v6877 = vpop.f32.mrf.mxu0
    %v6878 = vadd.f32 0.0, %v6877
    %v6879 = vpop.f32.mrf.mxu0
    %v6880 = vpop.f32.mrf.mxu0
    %v6881 = vadd.f32 0.0, %v6880
    %v6882 = vpop.f32.mrf.mxu0
    %6883 = vmatprep.mubr.bf16.mxu0 0
    %6884 = vmatmul.mubr.bf16.gmra.mxu0 %v6743
    %v6885 = vpop.f32.mrf.mxu0
    %v6886 = vadd.f32 0.0, %v6885
    %v6887 = vpop.f32.mrf.mxu0
    %v6888 = vpop.f32.mrf.mxu0
    %v6889 = vadd.f32 0.0, %v6888
    %v6890 = vpop.f32.mrf.mxu0
    %6891 = vmatprep.mubr.bf16.mxu0 0
    %6892 = vmatmul.mubr.bf16.gmra.mxu0 %v6744
    %v6893 = vpop.f32.mrf.mxu0
    %v6894 = vadd.f32 0.0, %v6893
    %v6895 = vpop.f32.mrf.mxu0
    %v6896 = vpop.f32.mrf.mxu0
    %v6897 = vadd.f32 0.0, %v6896
    %v6898 = vpop.f32.mrf.mxu0
    %6899 = vmatprep.mubr.bf16.mxu0 0
    %6900 = vmatmul.mubr.bf16.gmra.mxu0 %v6745
    %v6901 = vpop.f32.mrf.mxu0
    %v6902 = vadd.f32 0.0, %v6901
    %v6903 = vpop.f32.mrf.mxu0
    %v6904 = vpop.f32.mrf.mxu0
    %v6905 = vadd.f32 0.0, %v6904
    %v6906 = vpop.f32.mrf.mxu0
    %6907 = vdwg.mxu0
    %v6908 = vadd.f32 %v6579, %v6846
    %v6909 = vadd.f32 %v6582, %v6849
    %v6910 = vadd.f32 %v6587, %v6854
    %v6911 = vadd.f32 %v6590, %v6857
    %v6912 = vadd.f32 %v6595, %v6862
    %v6913 = vadd.f32 %v6598, %v6865
    %v6914 = vadd.f32 %v6603, %v6870
    %v6915 = vadd.f32 %v6606, %v6873
    %v6916 = vadd.f32 %v6611, %v6878
    %v6917 = vadd.f32 %v6614, %v6881
    %v6918 = vadd.f32 %v6619, %v6886
    %v6919 = vadd.f32 %v6622, %v6889
    %v6920 = vadd.f32 %v6627, %v6894
    %v6921 = vadd.f32 %v6630, %v6897
    %v6922 = vadd.f32 %v6635, %v6902
    %v6923 = vadd.f32 %v6638, %v6905
    %6924 = vmatprep.subr.bf16.mxu0 0
    %6925 = vmatpush1.bf16.msra.mxu0 %v6107
    %6926 = vmatprep.subr.bf16.mxu0 0
    %6927 = vmatpush1.bf16.msra.mxu0 %v6106
    %6928 = vmatprep.subr.bf16.mxu0 0
    %6929 = vmatpush1.bf16.msra.mxu0 %v6105
    %6930 = vmatprep.subr.bf16.mxu0 0
    %6931 = vmatpush1.bf16.msra.mxu0 %v6104
    %6932 = vmatprep.subr.bf16.mxu0 0
    %6933 = vmatpush1.bf16.msra.mxu0 %v6103
    %6934 = vmatprep.subr.bf16.mxu0 0
    %6935 = vmatpush1.bf16.msra.mxu0 %v6102
    %6936 = vmatprep.subr.bf16.mxu0 0
    %6937 = vmatpush1.bf16.msra.mxu0 %v6101
    %6938 = vmatprep.subr.bf16.mxu0 0
    %6939 = vmatpush1.bf16.msra.mxu0 %v6100
    %6940 = vmatprep.subr.bf16.mxu0 0
    %6941 = vmatpush2.bf16.msra.mxu0 0
    %6942 = vmatprep.subr.bf16.mxu0 0
    %6943 = vmatpush2.bf16.msra.mxu0 0
    %6944 = vmatprep.subr.bf16.mxu0 0
    %6945 = vmatpush2.bf16.msra.mxu0 0
    %6946 = vmatprep.subr.bf16.mxu0 0
    %6947 = vmatpush2.bf16.msra.mxu0 0
    %6948 = vmatprep.subr.bf16.mxu0 0
    %6949 = vmatpush2.bf16.msra.mxu0 0
    %6950 = vmatprep.subr.bf16.mxu0 0
    %6951 = vmatpush2.bf16.msra.mxu0 0
    %6952 = vmatprep.subr.bf16.mxu0 0
    %6953 = vmatpush2.bf16.msra.mxu0 0
    %6954 = vmatprep.subr.bf16.mxu0 0
    %6955 = vmatpush2.bf16.msra.mxu0 0
    %6956 = vmatprep.mubr.bf16.mxu0 0
    %6957 = vmatmul.mubr.bf16.gmra.mxu0 %v1445
    %v6958 = vpop.f32.mrf.mxu0
    %v6959 = vadd.f32 0.0, %v6958
    %v6960 = vpop.f32.mrf.mxu0
    %v6961 = vpop.f32.mrf.mxu0
    %v6962 = vadd.f32 0.0, %v6961
    %v6963 = vpop.f32.mrf.mxu0
    %6964 = vmatprep.mubr.bf16.mxu0 0
    %6965 = vmatmul.mubr.bf16.gmra.mxu0 %v1446
    %v6966 = vpop.f32.mrf.mxu0
    %v6967 = vadd.f32 0.0, %v6966
    %v6968 = vpop.f32.mrf.mxu0
    %v6969 = vpop.f32.mrf.mxu0
    %v6970 = vadd.f32 0.0, %v6969
    %v6971 = vpop.f32.mrf.mxu0
    %6972 = vmatprep.mubr.bf16.mxu0 0
    %6973 = vmatmul.mubr.bf16.gmra.mxu0 %v1447
    %v6974 = vpop.f32.mrf.mxu0
    %v6975 = vadd.f32 0.0, %v6974
    %v6976 = vpop.f32.mrf.mxu0
    %v6977 = vpop.f32.mrf.mxu0
    %v6978 = vadd.f32 0.0, %v6977
    %v6979 = vpop.f32.mrf.mxu0
    %6980 = vmatprep.mubr.bf16.mxu0 0
    %6981 = vmatmul.mubr.bf16.gmra.mxu0 %v1448
    %v6982 = vpop.f32.mrf.mxu0
    %v6983 = vadd.f32 0.0, %v6982
    %v6984 = vpop.f32.mrf.mxu0
    %v6985 = vpop.f32.mrf.mxu0
    %v6986 = vadd.f32 0.0, %v6985
    %v6987 = vpop.f32.mrf.mxu0
    %6988 = vmatprep.mubr.bf16.mxu0 0
    %6989 = vmatmul.mubr.bf16.gmra.mxu0 %v1449
    %v6990 = vpop.f32.mrf.mxu0
    %v6991 = vadd.f32 0.0, %v6990
    %v6992 = vpop.f32.mrf.mxu0
    %v6993 = vpop.f32.mrf.mxu0
    %v6994 = vadd.f32 0.0, %v6993
    %v6995 = vpop.f32.mrf.mxu0
    %6996 = vmatprep.mubr.bf16.mxu0 0
    %6997 = vmatmul.mubr.bf16.gmra.mxu0 %v1450
    %v6998 = vpop.f32.mrf.mxu0
    %v6999 = vadd.f32 0.0, %v6998
    %v7000 = vpop.f32.mrf.mxu0
    %v7001 = vpop.f32.mrf.mxu0
    %v7002 = vadd.f32 0.0, %v7001
    %v7003 = vpop.f32.mrf.mxu0
    %7004 = vmatprep.mubr.bf16.mxu0 0
    %7005 = vmatmul.mubr.bf16.gmra.mxu0 %v1451
    %v7006 = vpop.f32.mrf.mxu0
    %v7007 = vadd.f32 0.0, %v7006
    %v7008 = vpop.f32.mrf.mxu0
    %v7009 = vpop.f32.mrf.mxu0
    %v7010 = vadd.f32 0.0, %v7009
    %v7011 = vpop.f32.mrf.mxu0
    %7012 = vmatprep.mubr.bf16.mxu0 0
    %7013 = vmatmul.mubr.bf16.gmra.mxu0 %v1452
    %v7014 = vpop.f32.mrf.mxu0
    %v7015 = vadd.f32 0.0, %v7014
    %v7016 = vpop.f32.mrf.mxu0
    %v7017 = vpop.f32.mrf.mxu0
    %v7018 = vadd.f32 0.0, %v7017
    %v7019 = vpop.f32.mrf.mxu0
    %7020 = vdwg.mxu0
    %v7021 = vpack.c.bf16 %v6962, %v6959
    %v7022 = vpack.c.bf16 %v6970, %v6967
    %v7023 = vpack.c.bf16 %v6978, %v6975
    %v7024 = vpack.c.bf16 %v6986, %v6983
    %v7025 = vpack.c.bf16 %v6994, %v6991
    %v7026 = vpack.c.bf16 %v7002, %v6999
    %v7027 = vpack.c.bf16 %v7010, %v7007
    %v7028 = vpack.c.bf16 %v7018, %v7015
    %s7029 = scalar_lea.vmem %s8, 192
    %v7030 = vld [vmem:[%s7029] sm:$0xf]
    %v7031 = vld [vmem:[%s7029 + $0x4] sm:$0xf]
    %v7032 = vld [vmem:[%s7029 + $0x8] sm:$0xf]
    %v7033 = vld [vmem:[%s7029 + $0xc] sm:$0xf]
    %v7034 = vld [vmem:[%s7029 + $0x10] sm:$0xf]
    %v7035 = vld [vmem:[%s7029 + $0x14] sm:$0xf]
    %v7036 = vld [vmem:[%s7029 + $0x18] sm:$0xf]
    %v7037 = vld [vmem:[%s7029 + $0x1c] sm:$0xf]
    %v7038 = vld [vmem:[%s7029 + $0x20] sm:$0xf]
    %v7039 = vld [vmem:[%s7029 + $0x24] sm:$0xf]
    %v7040 = vld [vmem:[%s7029 + $0x28] sm:$0xf]
    %v7041 = vld [vmem:[%s7029 + $0x2c] sm:$0xf]
    %v7042 = vld [vmem:[%s7029 + $0x30] sm:$0xf]
    %v7043 = vld [vmem:[%s7029 + $0x34] sm:$0xf]
    %v7044 = vld [vmem:[%s7029 + $0x38] sm:$0xf]
    %v7045 = vld [vmem:[%s7029 + $0x3c] sm:$0xf]
    %v7062 = vunpack.c.l.b16 %v7030
    %v7063 = vunpack.c.l.b16 %v7031
    %v7064 = vunpack.c.l.b16 %v7032
    %v7065 = vunpack.c.l.b16 %v7033
    %v7066 = vunpack.c.l.b16 %v7034
    %v7067 = vunpack.c.l.b16 %v7035
    %v7068 = vunpack.c.l.b16 %v7036
    %v7069 = vunpack.c.l.b16 %v7037
    %v7070 = vunpack.c.l.b16 %v7038
    %v7071 = vunpack.c.l.b16 %v7039
    %v7072 = vunpack.c.l.b16 %v7040
    %v7073 = vunpack.c.l.b16 %v7041
    %v7074 = vunpack.c.l.b16 %v7042
    %v7075 = vunpack.c.l.b16 %v7043
    %v7076 = vunpack.c.l.b16 %v7044
    %v7077 = vunpack.c.l.b16 %v7045
    %v7078 = vpack.c.b16 %v7063, %v7062
    %v7079 = vpack.c.b16 %v7065, %v7064
    %v7080 = vpack.c.b16 %v7067, %v7066
    %v7081 = vpack.c.b16 %v7069, %v7068
    %v7082 = vpack.c.b16 %v7071, %v7070
    %v7083 = vpack.c.b16 %v7073, %v7072
    %v7084 = vpack.c.b16 %v7075, %v7074
    %v7085 = vpack.c.b16 %v7077, %v7076
    %7094 = vmatprep.subr.bf16.mxu0 0
    %7095 = vmatpush1.bf16.msra.mxu0 %v7085
    %7096 = vmatprep.subr.bf16.mxu0 0
    %7097 = vmatpush1.bf16.msra.mxu0 %v7084
    %7098 = vmatprep.subr.bf16.mxu0 0
    %7099 = vmatpush1.bf16.msra.mxu0 %v7083
    %7100 = vmatprep.subr.bf16.mxu0 0
    %7101 = vmatpush1.bf16.msra.mxu0 %v7082
    %7102 = vmatprep.subr.bf16.mxu0 0
    %7103 = vmatpush1.bf16.msra.mxu0 %v7081
    %7104 = vmatprep.subr.bf16.mxu0 0
    %7105 = vmatpush1.bf16.msra.mxu0 %v7080
    %7106 = vmatprep.subr.bf16.mxu0 0
    %7107 = vmatpush1.bf16.msra.mxu0 %v7079
    %7108 = vmatprep.subr.bf16.mxu0 0
    %7109 = vmatpush1.bf16.msra.mxu0 %v7078
    %7110 = vmatprep.subr.bf16.mxu0 0
    %7111 = vmatpush2.bf16.msra.mxu0 0
    %7112 = vmatprep.subr.bf16.mxu0 0
    %7113 = vmatpush2.bf16.msra.mxu0 0
    %7114 = vmatprep.subr.bf16.mxu0 0
    %7115 = vmatpush2.bf16.msra.mxu0 0
    %7116 = vmatprep.subr.bf16.mxu0 0
    %7117 = vmatpush2.bf16.msra.mxu0 0
    %7118 = vmatprep.subr.bf16.mxu0 0
    %7119 = vmatpush2.bf16.msra.mxu0 0
    %7120 = vmatprep.subr.bf16.mxu0 0
    %7121 = vmatpush2.bf16.msra.mxu0 0
    %7122 = vmatprep.subr.bf16.mxu0 0
    %7123 = vmatpush2.bf16.msra.mxu0 0
    %7124 = vmatprep.subr.bf16.mxu0 0
    %7125 = vmatpush2.bf16.msra.mxu0 0
    %7126 = vmatprep.mubr.bf16.mxu0 0
    %7127 = vmatmul.mubr.bf16.gmra.mxu0 %v7021
    %v7128 = vpop.f32.mrf.mxu0
    %v7129 = vadd.f32 0.0, %v7128
    %v7130 = vpop.f32.mrf.mxu0
    %v7131 = vpop.f32.mrf.mxu0
    %v7132 = vadd.f32 0.0, %v7131
    %v7133 = vpop.f32.mrf.mxu0
    %7134 = vmatprep.mubr.bf16.mxu0 0
    %7135 = vmatmul.mubr.bf16.gmra.mxu0 %v7022
    %v7136 = vpop.f32.mrf.mxu0
    %v7137 = vadd.f32 0.0, %v7136
    %v7138 = vpop.f32.mrf.mxu0
    %v7139 = vpop.f32.mrf.mxu0
    %v7140 = vadd.f32 0.0, %v7139
    %v7141 = vpop.f32.mrf.mxu0
    %7142 = vmatprep.mubr.bf16.mxu0 0
    %7143 = vmatmul.mubr.bf16.gmra.mxu0 %v7023
    %v7144 = vpop.f32.mrf.mxu0
    %v7145 = vadd.f32 0.0, %v7144
    %v7146 = vpop.f32.mrf.mxu0
    %v7147 = vpop.f32.mrf.mxu0
    %v7148 = vadd.f32 0.0, %v7147
    %v7149 = vpop.f32.mrf.mxu0
    %7150 = vmatprep.mubr.bf16.mxu0 0
    %7151 = vmatmul.mubr.bf16.gmra.mxu0 %v7024
    %v7152 = vpop.f32.mrf.mxu0
    %v7153 = vadd.f32 0.0, %v7152
    %v7154 = vpop.f32.mrf.mxu0
    %v7155 = vpop.f32.mrf.mxu0
    %v7156 = vadd.f32 0.0, %v7155
    %v7157 = vpop.f32.mrf.mxu0
    %7158 = vmatprep.mubr.bf16.mxu0 0
    %7159 = vmatmul.mubr.bf16.gmra.mxu0 %v7025
    %v7160 = vpop.f32.mrf.mxu0
    %v7161 = vadd.f32 0.0, %v7160
    %v7162 = vpop.f32.mrf.mxu0
    %v7163 = vpop.f32.mrf.mxu0
    %v7164 = vadd.f32 0.0, %v7163
    %v7165 = vpop.f32.mrf.mxu0
    %7166 = vmatprep.mubr.bf16.mxu0 0
    %7167 = vmatmul.mubr.bf16.gmra.mxu0 %v7026
    %v7168 = vpop.f32.mrf.mxu0
    %v7169 = vadd.f32 0.0, %v7168
    %v7170 = vpop.f32.mrf.mxu0
    %v7171 = vpop.f32.mrf.mxu0
    %v7172 = vadd.f32 0.0, %v7171
    %v7173 = vpop.f32.mrf.mxu0
    %7174 = vmatprep.mubr.bf16.mxu0 0
    %7175 = vmatmul.mubr.bf16.gmra.mxu0 %v7027
    %v7176 = vpop.f32.mrf.mxu0
    %v7177 = vadd.f32 0.0, %v7176
    %v7178 = vpop.f32.mrf.mxu0
    %v7179 = vpop.f32.mrf.mxu0
    %v7180 = vadd.f32 0.0, %v7179
    %v7181 = vpop.f32.mrf.mxu0
    %7182 = vmatprep.mubr.bf16.mxu0 0
    %7183 = vmatmul.mubr.bf16.gmra.mxu0 %v7028
    %v7184 = vpop.f32.mrf.mxu0
    %v7185 = vadd.f32 0.0, %v7184
    %v7186 = vpop.f32.mrf.mxu0
    %v7187 = vpop.f32.mrf.mxu0
    %v7188 = vadd.f32 0.0, %v7187
    %v7189 = vpop.f32.mrf.mxu0
    %7190 = vdwg.mxu0
    %v7191 = vadd.f32 %v6908, %v7129
    %v7192 = vadd.f32 %v6909, %v7132
    %v7193 = vadd.f32 %v6910, %v7137
    %v7194 = vadd.f32 %v6911, %v7140
    %v7195 = vadd.f32 %v6912, %v7145
    %v7196 = vadd.f32 %v6913, %v7148
    %v7197 = vadd.f32 %v6914, %v7153
    %v7198 = vadd.f32 %v6915, %v7156
    %v7199 = vadd.f32 %v6916, %v7161
    %v7200 = vadd.f32 %v6917, %v7164
    %v7201 = vadd.f32 %v6918, %v7169
    %v7202 = vadd.f32 %v6919, %v7172
    %v7203 = vadd.f32 %v6920, %v7177
    %v7204 = vadd.f32 %v6921, %v7180
    %v7205 = vadd.f32 %v6922, %v7185
    %v7206 = vadd.f32 %v6923, %v7188
    %7207 = vmatprep.subr.bf16.mxu0 0
    %7208 = vmatpush1.bf16.msra.mxu0 %v6107
    %7209 = vmatprep.subr.bf16.mxu0 0
    %7210 = vmatpush1.bf16.msra.mxu0 %v6106
    %7211 = vmatprep.subr.bf16.mxu0 0
    %7212 = vmatpush1.bf16.msra.mxu0 %v6105
    %7213 = vmatprep.subr.bf16.mxu0 0
    %7214 = vmatpush1.bf16.msra.mxu0 %v6104
    %7215 = vmatprep.subr.bf16.mxu0 0
    %7216 = vmatpush1.bf16.msra.mxu0 %v6103
    %7217 = vmatprep.subr.bf16.mxu0 0
    %7218 = vmatpush1.bf16.msra.mxu0 %v6102
    %7219 = vmatprep.subr.bf16.mxu0 0
    %7220 = vmatpush1.bf16.msra.mxu0 %v6101
    %7221 = vmatprep.subr.bf16.mxu0 0
    %7222 = vmatpush1.bf16.msra.mxu0 %v6100
    %7223 = vmatprep.subr.bf16.mxu0 0
    %7224 = vmatpush2.bf16.msra.mxu0 0
    %7225 = vmatprep.subr.bf16.mxu0 0
    %7226 = vmatpush2.bf16.msra.mxu0 0
    %7227 = vmatprep.subr.bf16.mxu0 0
    %7228 = vmatpush2.bf16.msra.mxu0 0
    %7229 = vmatprep.subr.bf16.mxu0 0
    %7230 = vmatpush2.bf16.msra.mxu0 0
    %7231 = vmatprep.subr.bf16.mxu0 0
    %7232 = vmatpush2.bf16.msra.mxu0 0
    %7233 = vmatprep.subr.bf16.mxu0 0
    %7234 = vmatpush2.bf16.msra.mxu0 0
    %7235 = vmatprep.subr.bf16.mxu0 0
    %7236 = vmatpush2.bf16.msra.mxu0 0
    %7237 = vmatprep.subr.bf16.mxu0 0
    %7238 = vmatpush2.bf16.msra.mxu0 0
    %7239 = vmatprep.mubr.bf16.mxu0 0
    %7240 = vmatmul.mubr.bf16.gmra.mxu0 %v1793
    %v7241 = vpop.f32.mrf.mxu0
    %v7242 = vadd.f32 0.0, %v7241
    %v7243 = vpop.f32.mrf.mxu0
    %v7244 = vpop.f32.mrf.mxu0
    %v7245 = vadd.f32 0.0, %v7244
    %v7246 = vpop.f32.mrf.mxu0
    %7247 = vmatprep.mubr.bf16.mxu0 0
    %7248 = vmatmul.mubr.bf16.gmra.mxu0 %v1794
    %v7249 = vpop.f32.mrf.mxu0
    %v7250 = vadd.f32 0.0, %v7249
    %v7251 = vpop.f32.mrf.mxu0
    %v7252 = vpop.f32.mrf.mxu0
    %v7253 = vadd.f32 0.0, %v7252
    %v7254 = vpop.f32.mrf.mxu0
    %7255 = vmatprep.mubr.bf16.mxu0 0
    %7256 = vmatmul.mubr.bf16.gmra.mxu0 %v1795
    %v7257 = vpop.f32.mrf.mxu0
    %v7258 = vadd.f32 0.0, %v7257
    %v7259 = vpop.f32.mrf.mxu0
    %v7260 = vpop.f32.mrf.mxu0
    %v7261 = vadd.f32 0.0, %v7260
    %v7262 = vpop.f32.mrf.mxu0
    %7263 = vmatprep.mubr.bf16.mxu0 0
    %7264 = vmatmul.mubr.bf16.gmra.mxu0 %v1796
    %v7265 = vpop.f32.mrf.mxu0
    %v7266 = vadd.f32 0.0, %v7265
    %v7267 = vpop.f32.mrf.mxu0
    %v7268 = vpop.f32.mrf.mxu0
    %v7269 = vadd.f32 0.0, %v7268
    %v7270 = vpop.f32.mrf.mxu0
    %7271 = vmatprep.mubr.bf16.mxu0 0
    %7272 = vmatmul.mubr.bf16.gmra.mxu0 %v1797
    %v7273 = vpop.f32.mrf.mxu0
    %v7274 = vadd.f32 0.0, %v7273
    %v7275 = vpop.f32.mrf.mxu0
    %v7276 = vpop.f32.mrf.mxu0
    %v7277 = vadd.f32 0.0, %v7276
    %v7278 = vpop.f32.mrf.mxu0
    %7279 = vmatprep.mubr.bf16.mxu0 0
    %7280 = vmatmul.mubr.bf16.gmra.mxu0 %v1798
    %v7281 = vpop.f32.mrf.mxu0
    %v7282 = vadd.f32 0.0, %v7281
    %v7283 = vpop.f32.mrf.mxu0
    %v7284 = vpop.f32.mrf.mxu0
    %v7285 = vadd.f32 0.0, %v7284
    %v7286 = vpop.f32.mrf.mxu0
    %7287 = vmatprep.mubr.bf16.mxu0 0
    %7288 = vmatmul.mubr.bf16.gmra.mxu0 %v1799
    %v7289 = vpop.f32.mrf.mxu0
    %v7290 = vadd.f32 0.0, %v7289
    %v7291 = vpop.f32.mrf.mxu0
    %v7292 = vpop.f32.mrf.mxu0
    %v7293 = vadd.f32 0.0, %v7292
    %v7294 = vpop.f32.mrf.mxu0
    %7295 = vmatprep.mubr.bf16.mxu0 0
    %7296 = vmatmul.mubr.bf16.gmra.mxu0 %v1800
    %v7297 = vpop.f32.mrf.mxu0
    %v7298 = vadd.f32 0.0, %v7297
    %v7299 = vpop.f32.mrf.mxu0
    %v7300 = vpop.f32.mrf.mxu0
    %v7301 = vadd.f32 0.0, %v7300
    %v7302 = vpop.f32.mrf.mxu0
    %7303 = vdwg.mxu0
    %v7304 = vpack.c.bf16 %v7245, %v7242
    %v7305 = vpack.c.bf16 %v7253, %v7250
    %v7306 = vpack.c.bf16 %v7261, %v7258
    %v7307 = vpack.c.bf16 %v7269, %v7266
    %v7308 = vpack.c.bf16 %v7277, %v7274
    %v7309 = vpack.c.bf16 %v7285, %v7282
    %v7310 = vpack.c.bf16 %v7293, %v7290
    %v7311 = vpack.c.bf16 %v7301, %v7298
    %s7312 = scalar_lea.vmem %s8, 256
    %v7313 = vld [vmem:[%s7312] sm:$0xf]
    %v7314 = vld [vmem:[%s7312 + $0x4] sm:$0xf]
    %v7315 = vld [vmem:[%s7312 + $0x8] sm:$0xf]
    %v7316 = vld [vmem:[%s7312 + $0xc] sm:$0xf]
    %v7317 = vld [vmem:[%s7312 + $0x10] sm:$0xf]
    %v7318 = vld [vmem:[%s7312 + $0x14] sm:$0xf]
    %v7319 = vld [vmem:[%s7312 + $0x18] sm:$0xf]
    %v7320 = vld [vmem:[%s7312 + $0x1c] sm:$0xf]
    %v7321 = vld [vmem:[%s7312 + $0x20] sm:$0xf]
    %v7322 = vld [vmem:[%s7312 + $0x24] sm:$0xf]
    %v7323 = vld [vmem:[%s7312 + $0x28] sm:$0xf]
    %v7324 = vld [vmem:[%s7312 + $0x2c] sm:$0xf]
    %v7325 = vld [vmem:[%s7312 + $0x30] sm:$0xf]
    %v7326 = vld [vmem:[%s7312 + $0x34] sm:$0xf]
    %v7327 = vld [vmem:[%s7312 + $0x38] sm:$0xf]
    %v7328 = vld [vmem:[%s7312 + $0x3c] sm:$0xf]
    %v7345 = vunpack.c.l.b16 %v7313
    %v7346 = vunpack.c.l.b16 %v7314
    %v7347 = vunpack.c.l.b16 %v7315
    %v7348 = vunpack.c.l.b16 %v7316
    %v7349 = vunpack.c.l.b16 %v7317
    %v7350 = vunpack.c.l.b16 %v7318
    %v7351 = vunpack.c.l.b16 %v7319
    %v7352 = vunpack.c.l.b16 %v7320
    %v7353 = vunpack.c.l.b16 %v7321
    %v7354 = vunpack.c.l.b16 %v7322
    %v7355 = vunpack.c.l.b16 %v7323
    %v7356 = vunpack.c.l.b16 %v7324
    %v7357 = vunpack.c.l.b16 %v7325
    %v7358 = vunpack.c.l.b16 %v7326
    %v7359 = vunpack.c.l.b16 %v7327
    %v7360 = vunpack.c.l.b16 %v7328
    %v7361 = vpack.c.b16 %v7346, %v7345
    %v7362 = vpack.c.b16 %v7348, %v7347
    %v7363 = vpack.c.b16 %v7350, %v7349
    %v7364 = vpack.c.b16 %v7352, %v7351
    %v7365 = vpack.c.b16 %v7354, %v7353
    %v7366 = vpack.c.b16 %v7356, %v7355
    %v7367 = vpack.c.b16 %v7358, %v7357
    %v7368 = vpack.c.b16 %v7360, %v7359
    %7377 = vmatprep.subr.bf16.mxu0 0
    %7378 = vmatpush1.bf16.msra.mxu0 %v7368
    %7379 = vmatprep.subr.bf16.mxu0 0
    %7380 = vmatpush1.bf16.msra.mxu0 %v7367
    %7381 = vmatprep.subr.bf16.mxu0 0
    %7382 = vmatpush1.bf16.msra.mxu0 %v7366
    %7383 = vmatprep.subr.bf16.mxu0 0
    %7384 = vmatpush1.bf16.msra.mxu0 %v7365
    %7385 = vmatprep.subr.bf16.mxu0 0
    %7386 = vmatpush1.bf16.msra.mxu0 %v7364
    %7387 = vmatprep.subr.bf16.mxu0 0
    %7388 = vmatpush1.bf16.msra.mxu0 %v7363
    %7389 = vmatprep.subr.bf16.mxu0 0
    %7390 = vmatpush1.bf16.msra.mxu0 %v7362
    %7391 = vmatprep.subr.bf16.mxu0 0
    %7392 = vmatpush1.bf16.msra.mxu0 %v7361
    %7393 = vmatprep.subr.bf16.mxu0 0
    %7394 = vmatpush2.bf16.msra.mxu0 0
    %7395 = vmatprep.subr.bf16.mxu0 0
    %7396 = vmatpush2.bf16.msra.mxu0 0
    %7397 = vmatprep.subr.bf16.mxu0 0
    %7398 = vmatpush2.bf16.msra.mxu0 0
    %7399 = vmatprep.subr.bf16.mxu0 0
    %7400 = vmatpush2.bf16.msra.mxu0 0
    %7401 = vmatprep.subr.bf16.mxu0 0
    %7402 = vmatpush2.bf16.msra.mxu0 0
    %7403 = vmatprep.subr.bf16.mxu0 0
    %7404 = vmatpush2.bf16.msra.mxu0 0
    %7405 = vmatprep.subr.bf16.mxu0 0
    %7406 = vmatpush2.bf16.msra.mxu0 0
    %7407 = vmatprep.subr.bf16.mxu0 0
    %7408 = vmatpush2.bf16.msra.mxu0 0
    %7409 = vmatprep.mubr.bf16.mxu0 0
    %7410 = vmatmul.mubr.bf16.gmra.mxu0 %v7304
    %v7411 = vpop.f32.mrf.mxu0
    %v7412 = vadd.f32 0.0, %v7411
    %v7413 = vpop.f32.mrf.mxu0
    %v7414 = vpop.f32.mrf.mxu0
    %v7415 = vadd.f32 0.0, %v7414
    %v7416 = vpop.f32.mrf.mxu0
    %7417 = vmatprep.mubr.bf16.mxu0 0
    %7418 = vmatmul.mubr.bf16.gmra.mxu0 %v7305
    %v7419 = vpop.f32.mrf.mxu0
    %v7420 = vadd.f32 0.0, %v7419
    %v7421 = vpop.f32.mrf.mxu0
    %v7422 = vpop.f32.mrf.mxu0
    %v7423 = vadd.f32 0.0, %v7422
    %v7424 = vpop.f32.mrf.mxu0
    %7425 = vmatprep.mubr.bf16.mxu0 0
    %7426 = vmatmul.mubr.bf16.gmra.mxu0 %v7306
    %v7427 = vpop.f32.mrf.mxu0
    %v7428 = vadd.f32 0.0, %v7427
    %v7429 = vpop.f32.mrf.mxu0
    %v7430 = vpop.f32.mrf.mxu0
    %v7431 = vadd.f32 0.0, %v7430
    %v7432 = vpop.f32.mrf.mxu0
    %7433 = vmatprep.mubr.bf16.mxu0 0
    %7434 = vmatmul.mubr.bf16.gmra.mxu0 %v7307
    %v7435 = vpop.f32.mrf.mxu0
    %v7436 = vadd.f32 0.0, %v7435
    %v7437 = vpop.f32.mrf.mxu0
    %v7438 = vpop.f32.mrf.mxu0
    %v7439 = vadd.f32 0.0, %v7438
    %v7440 = vpop.f32.mrf.mxu0
    %7441 = vmatprep.mubr.bf16.mxu0 0
    %7442 = vmatmul.mubr.bf16.gmra.mxu0 %v7308
    %v7443 = vpop.f32.mrf.mxu0
    %v7444 = vadd.f32 0.0, %v7443
    %v7445 = vpop.f32.mrf.mxu0
    %v7446 = vpop.f32.mrf.mxu0
    %v7447 = vadd.f32 0.0, %v7446
    %v7448 = vpop.f32.mrf.mxu0
    %7449 = vmatprep.mubr.bf16.mxu0 0
    %7450 = vmatmul.mubr.bf16.gmra.mxu0 %v7309
    %v7451 = vpop.f32.mrf.mxu0
    %v7452 = vadd.f32 0.0, %v7451
    %v7453 = vpop.f32.mrf.mxu0
    %v7454 = vpop.f32.mrf.mxu0
    %v7455 = vadd.f32 0.0, %v7454
    %v7456 = vpop.f32.mrf.mxu0
    %7457 = vmatprep.mubr.bf16.mxu0 0
    %7458 = vmatmul.mubr.bf16.gmra.mxu0 %v7310
    %v7459 = vpop.f32.mrf.mxu0
    %v7460 = vadd.f32 0.0, %v7459
    %v7461 = vpop.f32.mrf.mxu0
    %v7462 = vpop.f32.mrf.mxu0
    %v7463 = vadd.f32 0.0, %v7462
    %v7464 = vpop.f32.mrf.mxu0
    %7465 = vmatprep.mubr.bf16.mxu0 0
    %7466 = vmatmul.mubr.bf16.gmra.mxu0 %v7311
    %v7467 = vpop.f32.mrf.mxu0
    %v7468 = vadd.f32 0.0, %v7467
    %v7469 = vpop.f32.mrf.mxu0
    %v7470 = vpop.f32.mrf.mxu0
    %v7471 = vadd.f32 0.0, %v7470
    %v7472 = vpop.f32.mrf.mxu0
    %7473 = vdwg.mxu0
    %v7474 = vadd.f32 %v7191, %v7412
    %v7475 = vadd.f32 %v7192, %v7415
    %v7476 = vadd.f32 %v7193, %v7420
    %v7477 = vadd.f32 %v7194, %v7423
    %v7478 = vadd.f32 %v7195, %v7428
    %v7479 = vadd.f32 %v7196, %v7431
    %v7480 = vadd.f32 %v7197, %v7436
    %v7481 = vadd.f32 %v7198, %v7439
    %v7482 = vadd.f32 %v7199, %v7444
    %v7483 = vadd.f32 %v7200, %v7447
    %v7484 = vadd.f32 %v7201, %v7452
    %v7485 = vadd.f32 %v7202, %v7455
    %v7486 = vadd.f32 %v7203, %v7460
    %v7487 = vadd.f32 %v7204, %v7463
    %v7488 = vadd.f32 %v7205, %v7468
    %v7489 = vadd.f32 %v7206, %v7471
    %7490 = vmatprep.subr.bf16.mxu0 0
    %7491 = vmatpush1.bf16.msra.mxu0 %v6107
    %7492 = vmatprep.subr.bf16.mxu0 0
    %7493 = vmatpush1.bf16.msra.mxu0 %v6106
    %7494 = vmatprep.subr.bf16.mxu0 0
    %7495 = vmatpush1.bf16.msra.mxu0 %v6105
    %7496 = vmatprep.subr.bf16.mxu0 0
    %7497 = vmatpush1.bf16.msra.mxu0 %v6104
    %7498 = vmatprep.subr.bf16.mxu0 0
    %7499 = vmatpush1.bf16.msra.mxu0 %v6103
    %7500 = vmatprep.subr.bf16.mxu0 0
    %7501 = vmatpush1.bf16.msra.mxu0 %v6102
    %7502 = vmatprep.subr.bf16.mxu0 0
    %7503 = vmatpush1.bf16.msra.mxu0 %v6101
    %7504 = vmatprep.subr.bf16.mxu0 0
    %7505 = vmatpush1.bf16.msra.mxu0 %v6100
    %7506 = vmatprep.subr.bf16.mxu0 0
    %7507 = vmatpush2.bf16.msra.mxu0 0
    %7508 = vmatprep.subr.bf16.mxu0 0
    %7509 = vmatpush2.bf16.msra.mxu0 0
    %7510 = vmatprep.subr.bf16.mxu0 0
    %7511 = vmatpush2.bf16.msra.mxu0 0
    %7512 = vmatprep.subr.bf16.mxu0 0
    %7513 = vmatpush2.bf16.msra.mxu0 0
    %7514 = vmatprep.subr.bf16.mxu0 0
    %7515 = vmatpush2.bf16.msra.mxu0 0
    %7516 = vmatprep.subr.bf16.mxu0 0
    %7517 = vmatpush2.bf16.msra.mxu0 0
    %7518 = vmatprep.subr.bf16.mxu0 0
    %7519 = vmatpush2.bf16.msra.mxu0 0
    %7520 = vmatprep.subr.bf16.mxu0 0
    %7521 = vmatpush2.bf16.msra.mxu0 0
    %7522 = vmatprep.mubr.bf16.mxu0 0
    %7523 = vmatmul.mubr.bf16.gmra.mxu0 %v2141
    %v7524 = vpop.f32.mrf.mxu0
    %v7525 = vadd.f32 0.0, %v7524
    %v7526 = vpop.f32.mrf.mxu0
    %v7527 = vpop.f32.mrf.mxu0
    %v7528 = vadd.f32 0.0, %v7527
    %v7529 = vpop.f32.mrf.mxu0
    %7530 = vmatprep.mubr.bf16.mxu0 0
    %7531 = vmatmul.mubr.bf16.gmra.mxu0 %v2142
    %v7532 = vpop.f32.mrf.mxu0
    %v7533 = vadd.f32 0.0, %v7532
    %v7534 = vpop.f32.mrf.mxu0
    %v7535 = vpop.f32.mrf.mxu0
    %v7536 = vadd.f32 0.0, %v7535
    %v7537 = vpop.f32.mrf.mxu0
    %7538 = vmatprep.mubr.bf16.mxu0 0
    %7539 = vmatmul.mubr.bf16.gmra.mxu0 %v2143
    %v7540 = vpop.f32.mrf.mxu0
    %v7541 = vadd.f32 0.0, %v7540
    %v7542 = vpop.f32.mrf.mxu0
    %v7543 = vpop.f32.mrf.mxu0
    %v7544 = vadd.f32 0.0, %v7543
    %v7545 = vpop.f32.mrf.mxu0
    %7546 = vmatprep.mubr.bf16.mxu0 0
    %7547 = vmatmul.mubr.bf16.gmra.mxu0 %v2144
    %v7548 = vpop.f32.mrf.mxu0
    %v7549 = vadd.f32 0.0, %v7548
    %v7550 = vpop.f32.mrf.mxu0
    %v7551 = vpop.f32.mrf.mxu0
    %v7552 = vadd.f32 0.0, %v7551
    %v7553 = vpop.f32.mrf.mxu0
    %7554 = vmatprep.mubr.bf16.mxu0 0
    %7555 = vmatmul.mubr.bf16.gmra.mxu0 %v2145
    %v7556 = vpop.f32.mrf.mxu0
    %v7557 = vadd.f32 0.0, %v7556
    %v7558 = vpop.f32.mrf.mxu0
    %v7559 = vpop.f32.mrf.mxu0
    %v7560 = vadd.f32 0.0, %v7559
    %v7561 = vpop.f32.mrf.mxu0
    %7562 = vmatprep.mubr.bf16.mxu0 0
    %7563 = vmatmul.mubr.bf16.gmra.mxu0 %v2146
    %v7564 = vpop.f32.mrf.mxu0
    %v7565 = vadd.f32 0.0, %v7564
    %v7566 = vpop.f32.mrf.mxu0
    %v7567 = vpop.f32.mrf.mxu0
    %v7568 = vadd.f32 0.0, %v7567
    %v7569 = vpop.f32.mrf.mxu0
    %7570 = vmatprep.mubr.bf16.mxu0 0
    %7571 = vmatmul.mubr.bf16.gmra.mxu0 %v2147
    %v7572 = vpop.f32.mrf.mxu0
    %v7573 = vadd.f32 0.0, %v7572
    %v7574 = vpop.f32.mrf.mxu0
    %v7575 = vpop.f32.mrf.mxu0
    %v7576 = vadd.f32 0.0, %v7575
    %v7577 = vpop.f32.mrf.mxu0
    %7578 = vmatprep.mubr.bf16.mxu0 0
    %7579 = vmatmul.mubr.bf16.gmra.mxu0 %v2148
    %v7580 = vpop.f32.mrf.mxu0
    %v7581 = vadd.f32 0.0, %v7580
    %v7582 = vpop.f32.mrf.mxu0
    %v7583 = vpop.f32.mrf.mxu0
    %v7584 = vadd.f32 0.0, %v7583
    %v7585 = vpop.f32.mrf.mxu0
    %7586 = vdwg.mxu0
    %v7587 = vpack.c.bf16 %v7528, %v7525
    %v7588 = vpack.c.bf16 %v7536, %v7533
    %v7589 = vpack.c.bf16 %v7544, %v7541
    %v7590 = vpack.c.bf16 %v7552, %v7549
    %v7591 = vpack.c.bf16 %v7560, %v7557
    %v7592 = vpack.c.bf16 %v7568, %v7565
    %v7593 = vpack.c.bf16 %v7576, %v7573
    %v7594 = vpack.c.bf16 %v7584, %v7581
    %s7595 = scalar_lea.vmem %s8, 320
    %v7596 = vld [vmem:[%s7595] sm:$0xf]
    %v7597 = vld [vmem:[%s7595 + $0x4] sm:$0xf]
    %v7598 = vld [vmem:[%s7595 + $0x8] sm:$0xf]
    %v7599 = vld [vmem:[%s7595 + $0xc] sm:$0xf]
    %v7600 = vld [vmem:[%s7595 + $0x10] sm:$0xf]
    %v7601 = vld [vmem:[%s7595 + $0x14] sm:$0xf]
    %v7602 = vld [vmem:[%s7595 + $0x18] sm:$0xf]
    %v7603 = vld [vmem:[%s7595 + $0x1c] sm:$0xf]
    %v7604 = vld [vmem:[%s7595 + $0x20] sm:$0xf]
    %v7605 = vld [vmem:[%s7595 + $0x24] sm:$0xf]
    %v7606 = vld [vmem:[%s7595 + $0x28] sm:$0xf]
    %v7607 = vld [vmem:[%s7595 + $0x2c] sm:$0xf]
    %v7608 = vld [vmem:[%s7595 + $0x30] sm:$0xf]
    %v7609 = vld [vmem:[%s7595 + $0x34] sm:$0xf]
    %v7610 = vld [vmem:[%s7595 + $0x38] sm:$0xf]
    %v7611 = vld [vmem:[%s7595 + $0x3c] sm:$0xf]
    %v7628 = vunpack.c.l.b16 %v7596
    %v7629 = vunpack.c.l.b16 %v7597
    %v7630 = vunpack.c.l.b16 %v7598
    %v7631 = vunpack.c.l.b16 %v7599
    %v7632 = vunpack.c.l.b16 %v7600
    %v7633 = vunpack.c.l.b16 %v7601
    %v7634 = vunpack.c.l.b16 %v7602
    %v7635 = vunpack.c.l.b16 %v7603
    %v7636 = vunpack.c.l.b16 %v7604
    %v7637 = vunpack.c.l.b16 %v7605
    %v7638 = vunpack.c.l.b16 %v7606
    %v7639 = vunpack.c.l.b16 %v7607
    %v7640 = vunpack.c.l.b16 %v7608
    %v7641 = vunpack.c.l.b16 %v7609
    %v7642 = vunpack.c.l.b16 %v7610
    %v7643 = vunpack.c.l.b16 %v7611
    %v7644 = vpack.c.b16 %v7629, %v7628
    %v7645 = vpack.c.b16 %v7631, %v7630
    %v7646 = vpack.c.b16 %v7633, %v7632
    %v7647 = vpack.c.b16 %v7635, %v7634
    %v7648 = vpack.c.b16 %v7637, %v7636
    %v7649 = vpack.c.b16 %v7639, %v7638
    %v7650 = vpack.c.b16 %v7641, %v7640
    %v7651 = vpack.c.b16 %v7643, %v7642
    %7660 = vmatprep.subr.bf16.mxu0 0
    %7661 = vmatpush1.bf16.msra.mxu0 %v7651
    %7662 = vmatprep.subr.bf16.mxu0 0
    %7663 = vmatpush1.bf16.msra.mxu0 %v7650
    %7664 = vmatprep.subr.bf16.mxu0 0
    %7665 = vmatpush1.bf16.msra.mxu0 %v7649
    %7666 = vmatprep.subr.bf16.mxu0 0
    %7667 = vmatpush1.bf16.msra.mxu0 %v7648
    %7668 = vmatprep.subr.bf16.mxu0 0
    %7669 = vmatpush1.bf16.msra.mxu0 %v7647
    %7670 = vmatprep.subr.bf16.mxu0 0
    %7671 = vmatpush1.bf16.msra.mxu0 %v7646
    %7672 = vmatprep.subr.bf16.mxu0 0
    %7673 = vmatpush1.bf16.msra.mxu0 %v7645
    %7674 = vmatprep.subr.bf16.mxu0 0
    %7675 = vmatpush1.bf16.msra.mxu0 %v7644
    %7676 = vmatprep.subr.bf16.mxu0 0
    %7677 = vmatpush2.bf16.msra.mxu0 0
    %7678 = vmatprep.subr.bf16.mxu0 0
    %7679 = vmatpush2.bf16.msra.mxu0 0
    %7680 = vmatprep.subr.bf16.mxu0 0
    %7681 = vmatpush2.bf16.msra.mxu0 0
    %7682 = vmatprep.subr.bf16.mxu0 0
    %7683 = vmatpush2.bf16.msra.mxu0 0
    %7684 = vmatprep.subr.bf16.mxu0 0
    %7685 = vmatpush2.bf16.msra.mxu0 0
    %7686 = vmatprep.subr.bf16.mxu0 0
    %7687 = vmatpush2.bf16.msra.mxu0 0
    %7688 = vmatprep.subr.bf16.mxu0 0
    %7689 = vmatpush2.bf16.msra.mxu0 0
    %7690 = vmatprep.subr.bf16.mxu0 0
    %7691 = vmatpush2.bf16.msra.mxu0 0
    %7692 = vmatprep.mubr.bf16.mxu0 0
    %7693 = vmatmul.mubr.bf16.gmra.mxu0 %v7587
    %v7694 = vpop.f32.mrf.mxu0
    %v7695 = vadd.f32 0.0, %v7694
    %v7696 = vpop.f32.mrf.mxu0
    %v7697 = vpop.f32.mrf.mxu0
    %v7698 = vadd.f32 0.0, %v7697
    %v7699 = vpop.f32.mrf.mxu0
    %7700 = vmatprep.mubr.bf16.mxu0 0
    %7701 = vmatmul.mubr.bf16.gmra.mxu0 %v7588
    %v7702 = vpop.f32.mrf.mxu0
    %v7703 = vadd.f32 0.0, %v7702
    %v7704 = vpop.f32.mrf.mxu0
    %v7705 = vpop.f32.mrf.mxu0
    %v7706 = vadd.f32 0.0, %v7705
    %v7707 = vpop.f32.mrf.mxu0
    %7708 = vmatprep.mubr.bf16.mxu0 0
    %7709 = vmatmul.mubr.bf16.gmra.mxu0 %v7589
    %v7710 = vpop.f32.mrf.mxu0
    %v7711 = vadd.f32 0.0, %v7710
    %v7712 = vpop.f32.mrf.mxu0
    %v7713 = vpop.f32.mrf.mxu0
    %v7714 = vadd.f32 0.0, %v7713
    %v7715 = vpop.f32.mrf.mxu0
    %7716 = vmatprep.mubr.bf16.mxu0 0
    %7717 = vmatmul.mubr.bf16.gmra.mxu0 %v7590
    %v7718 = vpop.f32.mrf.mxu0
    %v7719 = vadd.f32 0.0, %v7718
    %v7720 = vpop.f32.mrf.mxu0
    %v7721 = vpop.f32.mrf.mxu0
    %v7722 = vadd.f32 0.0, %v7721
    %v7723 = vpop.f32.mrf.mxu0
    %7724 = vmatprep.mubr.bf16.mxu0 0
    %7725 = vmatmul.mubr.bf16.gmra.mxu0 %v7591
    %v7726 = vpop.f32.mrf.mxu0
    %v7727 = vadd.f32 0.0, %v7726
    %v7728 = vpop.f32.mrf.mxu0
    %v7729 = vpop.f32.mrf.mxu0
    %v7730 = vadd.f32 0.0, %v7729
    %v7731 = vpop.f32.mrf.mxu0
    %7732 = vmatprep.mubr.bf16.mxu0 0
    %7733 = vmatmul.mubr.bf16.gmra.mxu0 %v7592
    %v7734 = vpop.f32.mrf.mxu0
    %v7735 = vadd.f32 0.0, %v7734
    %v7736 = vpop.f32.mrf.mxu0
    %v7737 = vpop.f32.mrf.mxu0
    %v7738 = vadd.f32 0.0, %v7737
    %v7739 = vpop.f32.mrf.mxu0
    %7740 = vmatprep.mubr.bf16.mxu0 0
    %7741 = vmatmul.mubr.bf16.gmra.mxu0 %v7593
    %v7742 = vpop.f32.mrf.mxu0
    %v7743 = vadd.f32 0.0, %v7742
    %v7744 = vpop.f32.mrf.mxu0
    %v7745 = vpop.f32.mrf.mxu0
    %v7746 = vadd.f32 0.0, %v7745
    %v7747 = vpop.f32.mrf.mxu0
    %7748 = vmatprep.mubr.bf16.mxu0 0
    %7749 = vmatmul.mubr.bf16.gmra.mxu0 %v7594
    %v7750 = vpop.f32.mrf.mxu0
    %v7751 = vadd.f32 0.0, %v7750
    %v7752 = vpop.f32.mrf.mxu0
    %v7753 = vpop.f32.mrf.mxu0
    %v7754 = vadd.f32 0.0, %v7753
    %v7755 = vpop.f32.mrf.mxu0
    %7756 = vdwg.mxu0
    %v7757 = vadd.f32 %v7474, %v7695
    %v7758 = vadd.f32 %v7475, %v7698
    %v7759 = vadd.f32 %v7476, %v7703
    %v7760 = vadd.f32 %v7477, %v7706
    %v7761 = vadd.f32 %v7478, %v7711
    %v7762 = vadd.f32 %v7479, %v7714
    %v7763 = vadd.f32 %v7480, %v7719
    %v7764 = vadd.f32 %v7481, %v7722
    %v7765 = vadd.f32 %v7482, %v7727
    %v7766 = vadd.f32 %v7483, %v7730
    %v7767 = vadd.f32 %v7484, %v7735
    %v7768 = vadd.f32 %v7485, %v7738
    %v7769 = vadd.f32 %v7486, %v7743
    %v7770 = vadd.f32 %v7487, %v7746
    %v7771 = vadd.f32 %v7488, %v7751
    %v7772 = vadd.f32 %v7489, %v7754
    %7773 = vmatprep.subr.bf16.mxu0 0
    %7774 = vmatpush1.bf16.msra.mxu0 %v6107
    %7775 = vmatprep.subr.bf16.mxu0 0
    %7776 = vmatpush1.bf16.msra.mxu0 %v6106
    %7777 = vmatprep.subr.bf16.mxu0 0
    %7778 = vmatpush1.bf16.msra.mxu0 %v6105
    %7779 = vmatprep.subr.bf16.mxu0 0
    %7780 = vmatpush1.bf16.msra.mxu0 %v6104
    %7781 = vmatprep.subr.bf16.mxu0 0
    %7782 = vmatpush1.bf16.msra.mxu0 %v6103
    %7783 = vmatprep.subr.bf16.mxu0 0
    %7784 = vmatpush1.bf16.msra.mxu0 %v6102
    %7785 = vmatprep.subr.bf16.mxu0 0
    %7786 = vmatpush1.bf16.msra.mxu0 %v6101
    %7787 = vmatprep.subr.bf16.mxu0 0
    %7788 = vmatpush1.bf16.msra.mxu0 %v6100
    %7789 = vmatprep.subr.bf16.mxu0 0
    %7790 = vmatpush2.bf16.msra.mxu0 0
    %7791 = vmatprep.subr.bf16.mxu0 0
    %7792 = vmatpush2.bf16.msra.mxu0 0
    %7793 = vmatprep.subr.bf16.mxu0 0
    %7794 = vmatpush2.bf16.msra.mxu0 0
    %7795 = vmatprep.subr.bf16.mxu0 0
    %7796 = vmatpush2.bf16.msra.mxu0 0
    %7797 = vmatprep.subr.bf16.mxu0 0
    %7798 = vmatpush2.bf16.msra.mxu0 0
    %7799 = vmatprep.subr.bf16.mxu0 0
    %7800 = vmatpush2.bf16.msra.mxu0 0
    %7801 = vmatprep.subr.bf16.mxu0 0
    %7802 = vmatpush2.bf16.msra.mxu0 0
    %7803 = vmatprep.subr.bf16.mxu0 0
    %7804 = vmatpush2.bf16.msra.mxu0 0
    %7805 = vmatprep.mubr.bf16.mxu0 0
    %7806 = vmatmul.mubr.bf16.gmra.mxu0 %v2489
    %v7807 = vpop.f32.mrf.mxu0
    %v7808 = vadd.f32 0.0, %v7807
    %v7809 = vpop.f32.mrf.mxu0
    %v7810 = vpop.f32.mrf.mxu0
    %v7811 = vadd.f32 0.0, %v7810
    %v7812 = vpop.f32.mrf.mxu0
    %7813 = vmatprep.mubr.bf16.mxu0 0
    %7814 = vmatmul.mubr.bf16.gmra.mxu0 %v2490
    %v7815 = vpop.f32.mrf.mxu0
    %v7816 = vadd.f32 0.0, %v7815
    %v7817 = vpop.f32.mrf.mxu0
    %v7818 = vpop.f32.mrf.mxu0
    %v7819 = vadd.f32 0.0, %v7818
    %v7820 = vpop.f32.mrf.mxu0
    %7821 = vmatprep.mubr.bf16.mxu0 0
    %7822 = vmatmul.mubr.bf16.gmra.mxu0 %v2491
    %v7823 = vpop.f32.mrf.mxu0
    %v7824 = vadd.f32 0.0, %v7823
    %v7825 = vpop.f32.mrf.mxu0
    %v7826 = vpop.f32.mrf.mxu0
    %v7827 = vadd.f32 0.0, %v7826
    %v7828 = vpop.f32.mrf.mxu0
    %7829 = vmatprep.mubr.bf16.mxu0 0
    %7830 = vmatmul.mubr.bf16.gmra.mxu0 %v2492
    %v7831 = vpop.f32.mrf.mxu0
    %v7832 = vadd.f32 0.0, %v7831
    %v7833 = vpop.f32.mrf.mxu0
    %v7834 = vpop.f32.mrf.mxu0
    %v7835 = vadd.f32 0.0, %v7834
    %v7836 = vpop.f32.mrf.mxu0
    %7837 = vmatprep.mubr.bf16.mxu0 0
    %7838 = vmatmul.mubr.bf16.gmra.mxu0 %v2493
    %v7839 = vpop.f32.mrf.mxu0
    %v7840 = vadd.f32 0.0, %v7839
    %v7841 = vpop.f32.mrf.mxu0
    %v7842 = vpop.f32.mrf.mxu0
    %v7843 = vadd.f32 0.0, %v7842
    %v7844 = vpop.f32.mrf.mxu0
    %7845 = vmatprep.mubr.bf16.mxu0 0
    %7846 = vmatmul.mubr.bf16.gmra.mxu0 %v2494
    %v7847 = vpop.f32.mrf.mxu0
    %v7848 = vadd.f32 0.0, %v7847
    %v7849 = vpop.f32.mrf.mxu0
    %v7850 = vpop.f32.mrf.mxu0
    %v7851 = vadd.f32 0.0, %v7850
    %v7852 = vpop.f32.mrf.mxu0
    %7853 = vmatprep.mubr.bf16.mxu0 0
    %7854 = vmatmul.mubr.bf16.gmra.mxu0 %v2495
    %v7855 = vpop.f32.mrf.mxu0
    %v7856 = vadd.f32 0.0, %v7855
    %v7857 = vpop.f32.mrf.mxu0
    %v7858 = vpop.f32.mrf.mxu0
    %v7859 = vadd.f32 0.0, %v7858
    %v7860 = vpop.f32.mrf.mxu0
    %7861 = vmatprep.mubr.bf16.mxu0 0
    %7862 = vmatmul.mubr.bf16.gmra.mxu0 %v2496
    %v7863 = vpop.f32.mrf.mxu0
    %v7864 = vadd.f32 0.0, %v7863
    %v7865 = vpop.f32.mrf.mxu0
    %v7866 = vpop.f32.mrf.mxu0
    %v7867 = vadd.f32 0.0, %v7866
    %v7868 = vpop.f32.mrf.mxu0
    %7869 = vdwg.mxu0
    %v7870 = vpack.c.bf16 %v7811, %v7808
    %v7871 = vpack.c.bf16 %v7819, %v7816
    %v7872 = vpack.c.bf16 %v7827, %v7824
    %v7873 = vpack.c.bf16 %v7835, %v7832
    %v7874 = vpack.c.bf16 %v7843, %v7840
    %v7875 = vpack.c.bf16 %v7851, %v7848
    %v7876 = vpack.c.bf16 %v7859, %v7856
    %v7877 = vpack.c.bf16 %v7867, %v7864
    %s7878 = scalar_lea.vmem %s8, 384
    %v7879 = vld [vmem:[%s7878] sm:$0xf]
    %v7880 = vld [vmem:[%s7878 + $0x4] sm:$0xf]
    %v7881 = vld [vmem:[%s7878 + $0x8] sm:$0xf]
    %v7882 = vld [vmem:[%s7878 + $0xc] sm:$0xf]
    %v7883 = vld [vmem:[%s7878 + $0x10] sm:$0xf]
    %v7884 = vld [vmem:[%s7878 + $0x14] sm:$0xf]
    %v7885 = vld [vmem:[%s7878 + $0x18] sm:$0xf]
    %v7886 = vld [vmem:[%s7878 + $0x1c] sm:$0xf]
    %v7887 = vld [vmem:[%s7878 + $0x20] sm:$0xf]
    %v7888 = vld [vmem:[%s7878 + $0x24] sm:$0xf]
    %v7889 = vld [vmem:[%s7878 + $0x28] sm:$0xf]
    %v7890 = vld [vmem:[%s7878 + $0x2c] sm:$0xf]
    %v7891 = vld [vmem:[%s7878 + $0x30] sm:$0xf]
    %v7892 = vld [vmem:[%s7878 + $0x34] sm:$0xf]
    %v7893 = vld [vmem:[%s7878 + $0x38] sm:$0xf]
    %v7894 = vld [vmem:[%s7878 + $0x3c] sm:$0xf]
    %v7911 = vunpack.c.l.b16 %v7879
    %v7912 = vunpack.c.l.b16 %v7880
    %v7913 = vunpack.c.l.b16 %v7881
    %v7914 = vunpack.c.l.b16 %v7882
    %v7915 = vunpack.c.l.b16 %v7883
    %v7916 = vunpack.c.l.b16 %v7884
    %v7917 = vunpack.c.l.b16 %v7885
    %v7918 = vunpack.c.l.b16 %v7886
    %v7919 = vunpack.c.l.b16 %v7887
    %v7920 = vunpack.c.l.b16 %v7888
    %v7921 = vunpack.c.l.b16 %v7889
    %v7922 = vunpack.c.l.b16 %v7890
    %v7923 = vunpack.c.l.b16 %v7891
    %v7924 = vunpack.c.l.b16 %v7892
    %v7925 = vunpack.c.l.b16 %v7893
    %v7926 = vunpack.c.l.b16 %v7894
    %v7927 = vpack.c.b16 %v7912, %v7911
    %v7928 = vpack.c.b16 %v7914, %v7913
    %v7929 = vpack.c.b16 %v7916, %v7915
    %v7930 = vpack.c.b16 %v7918, %v7917
    %v7931 = vpack.c.b16 %v7920, %v7919
    %v7932 = vpack.c.b16 %v7922, %v7921
    %v7933 = vpack.c.b16 %v7924, %v7923
    %v7934 = vpack.c.b16 %v7926, %v7925
    %7943 = vmatprep.subr.bf16.mxu0 0
    %7944 = vmatpush1.bf16.msra.mxu0 %v7934
    %7945 = vmatprep.subr.bf16.mxu0 0
    %7946 = vmatpush1.bf16.msra.mxu0 %v7933
    %7947 = vmatprep.subr.bf16.mxu0 0
    %7948 = vmatpush1.bf16.msra.mxu0 %v7932
    %7949 = vmatprep.subr.bf16.mxu0 0
    %7950 = vmatpush1.bf16.msra.mxu0 %v7931
    %7951 = vmatprep.subr.bf16.mxu0 0
    %7952 = vmatpush1.bf16.msra.mxu0 %v7930
    %7953 = vmatprep.subr.bf16.mxu0 0
    %7954 = vmatpush1.bf16.msra.mxu0 %v7929
    %7955 = vmatprep.subr.bf16.mxu0 0
    %7956 = vmatpush1.bf16.msra.mxu0 %v7928
    %7957 = vmatprep.subr.bf16.mxu0 0
    %7958 = vmatpush1.bf16.msra.mxu0 %v7927
    %7959 = vmatprep.subr.bf16.mxu0 0
    %7960 = vmatpush2.bf16.msra.mxu0 0
    %7961 = vmatprep.subr.bf16.mxu0 0
    %7962 = vmatpush2.bf16.msra.mxu0 0
    %7963 = vmatprep.subr.bf16.mxu0 0
    %7964 = vmatpush2.bf16.msra.mxu0 0
    %7965 = vmatprep.subr.bf16.mxu0 0
    %7966 = vmatpush2.bf16.msra.mxu0 0
    %7967 = vmatprep.subr.bf16.mxu0 0
    %7968 = vmatpush2.bf16.msra.mxu0 0
    %7969 = vmatprep.subr.bf16.mxu0 0
    %7970 = vmatpush2.bf16.msra.mxu0 0
    %7971 = vmatprep.subr.bf16.mxu0 0
    %7972 = vmatpush2.bf16.msra.mxu0 0
    %7973 = vmatprep.subr.bf16.mxu0 0
    %7974 = vmatpush2.bf16.msra.mxu0 0
    %7975 = vmatprep.mubr.bf16.mxu0 0
    %7976 = vmatmul.mubr.bf16.gmra.mxu0 %v7870
    %v7977 = vpop.f32.mrf.mxu0
    %v7978 = vadd.f32 0.0, %v7977
    %v7979 = vpop.f32.mrf.mxu0
    %v7980 = vpop.f32.mrf.mxu0
    %v7981 = vadd.f32 0.0, %v7980
    %v7982 = vpop.f32.mrf.mxu0
    %7983 = vmatprep.mubr.bf16.mxu0 0
    %7984 = vmatmul.mubr.bf16.gmra.mxu0 %v7871
    %v7985 = vpop.f32.mrf.mxu0
    %v7986 = vadd.f32 0.0, %v7985
    %v7987 = vpop.f32.mrf.mxu0
    %v7988 = vpop.f32.mrf.mxu0
    %v7989 = vadd.f32 0.0, %v7988
    %v7990 = vpop.f32.mrf.mxu0
    %7991 = vmatprep.mubr.bf16.mxu0 0
    %7992 = vmatmul.mubr.bf16.gmra.mxu0 %v7872
    %v7993 = vpop.f32.mrf.mxu0
    %v7994 = vadd.f32 0.0, %v7993
    %v7995 = vpop.f32.mrf.mxu0
    %v7996 = vpop.f32.mrf.mxu0
    %v7997 = vadd.f32 0.0, %v7996
    %v7998 = vpop.f32.mrf.mxu0
    %7999 = vmatprep.mubr.bf16.mxu0 0
    %8000 = vmatmul.mubr.bf16.gmra.mxu0 %v7873
    %v8001 = vpop.f32.mrf.mxu0
    %v8002 = vadd.f32 0.0, %v8001
    %v8003 = vpop.f32.mrf.mxu0
    %v8004 = vpop.f32.mrf.mxu0
    %v8005 = vadd.f32 0.0, %v8004
    %v8006 = vpop.f32.mrf.mxu0
    %8007 = vmatprep.mubr.bf16.mxu0 0
    %8008 = vmatmul.mubr.bf16.gmra.mxu0 %v7874
    %v8009 = vpop.f32.mrf.mxu0
    %v8010 = vadd.f32 0.0, %v8009
    %v8011 = vpop.f32.mrf.mxu0
    %v8012 = vpop.f32.mrf.mxu0
    %v8013 = vadd.f32 0.0, %v8012
    %v8014 = vpop.f32.mrf.mxu0
    %8015 = vmatprep.mubr.bf16.mxu0 0
    %8016 = vmatmul.mubr.bf16.gmra.mxu0 %v7875
    %v8017 = vpop.f32.mrf.mxu0
    %v8018 = vadd.f32 0.0, %v8017
    %v8019 = vpop.f32.mrf.mxu0
    %v8020 = vpop.f32.mrf.mxu0
    %v8021 = vadd.f32 0.0, %v8020
    %v8022 = vpop.f32.mrf.mxu0
    %8023 = vmatprep.mubr.bf16.mxu0 0
    %8024 = vmatmul.mubr.bf16.gmra.mxu0 %v7876
    %v8025 = vpop.f32.mrf.mxu0
    %v8026 = vadd.f32 0.0, %v8025
    %v8027 = vpop.f32.mrf.mxu0
    %v8028 = vpop.f32.mrf.mxu0
    %v8029 = vadd.f32 0.0, %v8028
    %v8030 = vpop.f32.mrf.mxu0
    %8031 = vmatprep.mubr.bf16.mxu0 0
    %8032 = vmatmul.mubr.bf16.gmra.mxu0 %v7877
    %v8033 = vpop.f32.mrf.mxu0
    %v8034 = vadd.f32 0.0, %v8033
    %v8035 = vpop.f32.mrf.mxu0
    %v8036 = vpop.f32.mrf.mxu0
    %v8037 = vadd.f32 0.0, %v8036
    %v8038 = vpop.f32.mrf.mxu0
    %8039 = vdwg.mxu0
    %v8040 = vadd.f32 %v7757, %v7978
    %v8041 = vadd.f32 %v7758, %v7981
    %v8042 = vadd.f32 %v7759, %v7986
    %v8043 = vadd.f32 %v7760, %v7989
    %v8044 = vadd.f32 %v7761, %v7994
    %v8045 = vadd.f32 %v7762, %v7997
    %v8046 = vadd.f32 %v7763, %v8002
    %v8047 = vadd.f32 %v7764, %v8005
    %v8048 = vadd.f32 %v7765, %v8010
    %v8049 = vadd.f32 %v7766, %v8013
    %v8050 = vadd.f32 %v7767, %v8018
    %v8051 = vadd.f32 %v7768, %v8021
    %v8052 = vadd.f32 %v7769, %v8026
    %v8053 = vadd.f32 %v7770, %v8029
    %v8054 = vadd.f32 %v7771, %v8034
    %v8055 = vadd.f32 %v7772, %v8037
    %8056 = vmatprep.subr.bf16.mxu0 0
    %8057 = vmatpush1.bf16.msra.mxu0 %v6107
    %8058 = vmatprep.subr.bf16.mxu0 0
    %8059 = vmatpush1.bf16.msra.mxu0 %v6106
    %8060 = vmatprep.subr.bf16.mxu0 0
    %8061 = vmatpush1.bf16.msra.mxu0 %v6105
    %8062 = vmatprep.subr.bf16.mxu0 0
    %8063 = vmatpush1.bf16.msra.mxu0 %v6104
    %8064 = vmatprep.subr.bf16.mxu0 0
    %8065 = vmatpush1.bf16.msra.mxu0 %v6103
    %8066 = vmatprep.subr.bf16.mxu0 0
    %8067 = vmatpush1.bf16.msra.mxu0 %v6102
    %8068 = vmatprep.subr.bf16.mxu0 0
    %8069 = vmatpush1.bf16.msra.mxu0 %v6101
    %8070 = vmatprep.subr.bf16.mxu0 0
    %8071 = vmatpush1.bf16.msra.mxu0 %v6100
    %8072 = vmatprep.subr.bf16.mxu0 0
    %8073 = vmatpush2.bf16.msra.mxu0 0
    %8074 = vmatprep.subr.bf16.mxu0 0
    %8075 = vmatpush2.bf16.msra.mxu0 0
    %8076 = vmatprep.subr.bf16.mxu0 0
    %8077 = vmatpush2.bf16.msra.mxu0 0
    %8078 = vmatprep.subr.bf16.mxu0 0
    %8079 = vmatpush2.bf16.msra.mxu0 0
    %8080 = vmatprep.subr.bf16.mxu0 0
    %8081 = vmatpush2.bf16.msra.mxu0 0
    %8082 = vmatprep.subr.bf16.mxu0 0
    %8083 = vmatpush2.bf16.msra.mxu0 0
    %8084 = vmatprep.subr.bf16.mxu0 0
    %8085 = vmatpush2.bf16.msra.mxu0 0
    %8086 = vmatprep.subr.bf16.mxu0 0
    %8087 = vmatpush2.bf16.msra.mxu0 0
    %8088 = vmatprep.mubr.bf16.mxu0 0
    %8089 = vmatmul.mubr.bf16.gmra.mxu0 %v2837
    %v8090 = vpop.f32.mrf.mxu0
    %v8091 = vadd.f32 0.0, %v8090
    %v8092 = vpop.f32.mrf.mxu0
    %v8093 = vpop.f32.mrf.mxu0
    %v8094 = vadd.f32 0.0, %v8093
    %v8095 = vpop.f32.mrf.mxu0
    %8096 = vmatprep.mubr.bf16.mxu0 0
    %8097 = vmatmul.mubr.bf16.gmra.mxu0 %v2838
    %v8098 = vpop.f32.mrf.mxu0
    %v8099 = vadd.f32 0.0, %v8098
    %v8100 = vpop.f32.mrf.mxu0
    %v8101 = vpop.f32.mrf.mxu0
    %v8102 = vadd.f32 0.0, %v8101
    %v8103 = vpop.f32.mrf.mxu0
    %8104 = vmatprep.mubr.bf16.mxu0 0
    %8105 = vmatmul.mubr.bf16.gmra.mxu0 %v2839
    %v8106 = vpop.f32.mrf.mxu0
    %v8107 = vadd.f32 0.0, %v8106
    %v8108 = vpop.f32.mrf.mxu0
    %v8109 = vpop.f32.mrf.mxu0
    %v8110 = vadd.f32 0.0, %v8109
    %v8111 = vpop.f32.mrf.mxu0
    %8112 = vmatprep.mubr.bf16.mxu0 0
    %8113 = vmatmul.mubr.bf16.gmra.mxu0 %v2840
    %v8114 = vpop.f32.mrf.mxu0
    %v8115 = vadd.f32 0.0, %v8114
    %v8116 = vpop.f32.mrf.mxu0
    %v8117 = vpop.f32.mrf.mxu0
    %v8118 = vadd.f32 0.0, %v8117
    %v8119 = vpop.f32.mrf.mxu0
    %8120 = vmatprep.mubr.bf16.mxu0 0
    %8121 = vmatmul.mubr.bf16.gmra.mxu0 %v2841
    %v8122 = vpop.f32.mrf.mxu0
    %v8123 = vadd.f32 0.0, %v8122
    %v8124 = vpop.f32.mrf.mxu0
    %v8125 = vpop.f32.mrf.mxu0
    %v8126 = vadd.f32 0.0, %v8125
    %v8127 = vpop.f32.mrf.mxu0
    %8128 = vmatprep.mubr.bf16.mxu0 0
    %8129 = vmatmul.mubr.bf16.gmra.mxu0 %v2842
    %v8130 = vpop.f32.mrf.mxu0
    %v8131 = vadd.f32 0.0, %v8130
    %v8132 = vpop.f32.mrf.mxu0
    %v8133 = vpop.f32.mrf.mxu0
    %v8134 = vadd.f32 0.0, %v8133
    %v8135 = vpop.f32.mrf.mxu0
    %8136 = vmatprep.mubr.bf16.mxu0 0
    %8137 = vmatmul.mubr.bf16.gmra.mxu0 %v2843
    %v8138 = vpop.f32.mrf.mxu0
    %v8139 = vadd.f32 0.0, %v8138
    %v8140 = vpop.f32.mrf.mxu0
    %v8141 = vpop.f32.mrf.mxu0
    %v8142 = vadd.f32 0.0, %v8141
    %v8143 = vpop.f32.mrf.mxu0
    %8144 = vmatprep.mubr.bf16.mxu0 0
    %8145 = vmatmul.mubr.bf16.gmra.mxu0 %v2844
    %v8146 = vpop.f32.mrf.mxu0
    %v8147 = vadd.f32 0.0, %v8146
    %v8148 = vpop.f32.mrf.mxu0
    %v8149 = vpop.f32.mrf.mxu0
    %v8150 = vadd.f32 0.0, %v8149
    %v8151 = vpop.f32.mrf.mxu0
    %8152 = vdwg.mxu0
    %v8153 = vpack.c.bf16 %v8094, %v8091
    %v8154 = vpack.c.bf16 %v8102, %v8099
    %v8155 = vpack.c.bf16 %v8110, %v8107
    %v8156 = vpack.c.bf16 %v8118, %v8115
    %v8157 = vpack.c.bf16 %v8126, %v8123
    %v8158 = vpack.c.bf16 %v8134, %v8131
    %v8159 = vpack.c.bf16 %v8142, %v8139
    %v8160 = vpack.c.bf16 %v8150, %v8147
    %s8161 = scalar_lea.vmem %s8, 448
    %v8162 = vld [vmem:[%s8161] sm:$0xf]
    %v8163 = vld [vmem:[%s8161 + $0x4] sm:$0xf]
    %v8164 = vld [vmem:[%s8161 + $0x8] sm:$0xf]
    %v8165 = vld [vmem:[%s8161 + $0xc] sm:$0xf]
    %v8166 = vld [vmem:[%s8161 + $0x10] sm:$0xf]
    %v8167 = vld [vmem:[%s8161 + $0x14] sm:$0xf]
    %v8168 = vld [vmem:[%s8161 + $0x18] sm:$0xf]
    %v8169 = vld [vmem:[%s8161 + $0x1c] sm:$0xf]
    %v8170 = vld [vmem:[%s8161 + $0x20] sm:$0xf]
    %v8171 = vld [vmem:[%s8161 + $0x24] sm:$0xf]
    %v8172 = vld [vmem:[%s8161 + $0x28] sm:$0xf]
    %v8173 = vld [vmem:[%s8161 + $0x2c] sm:$0xf]
    %v8174 = vld [vmem:[%s8161 + $0x30] sm:$0xf]
    %v8175 = vld [vmem:[%s8161 + $0x34] sm:$0xf]
    %v8176 = vld [vmem:[%s8161 + $0x38] sm:$0xf]
    %v8177 = vld [vmem:[%s8161 + $0x3c] sm:$0xf]
    %v8194 = vunpack.c.l.b16 %v8162
    %v8195 = vunpack.c.l.b16 %v8163
    %v8196 = vunpack.c.l.b16 %v8164
    %v8197 = vunpack.c.l.b16 %v8165
    %v8198 = vunpack.c.l.b16 %v8166
    %v8199 = vunpack.c.l.b16 %v8167
    %v8200 = vunpack.c.l.b16 %v8168
    %v8201 = vunpack.c.l.b16 %v8169
    %v8202 = vunpack.c.l.b16 %v8170
    %v8203 = vunpack.c.l.b16 %v8171
    %v8204 = vunpack.c.l.b16 %v8172
    %v8205 = vunpack.c.l.b16 %v8173
    %v8206 = vunpack.c.l.b16 %v8174
    %v8207 = vunpack.c.l.b16 %v8175
    %v8208 = vunpack.c.l.b16 %v8176
    %v8209 = vunpack.c.l.b16 %v8177
    %v8210 = vpack.c.b16 %v8195, %v8194
    %v8211 = vpack.c.b16 %v8197, %v8196
    %v8212 = vpack.c.b16 %v8199, %v8198
    %v8213 = vpack.c.b16 %v8201, %v8200
    %v8214 = vpack.c.b16 %v8203, %v8202
    %v8215 = vpack.c.b16 %v8205, %v8204
    %v8216 = vpack.c.b16 %v8207, %v8206
    %v8217 = vpack.c.b16 %v8209, %v8208
    %8226 = vmatprep.subr.bf16.mxu0 0
    %8227 = vmatpush1.bf16.msra.mxu0 %v8217
    %8228 = vmatprep.subr.bf16.mxu0 0
    %8229 = vmatpush1.bf16.msra.mxu0 %v8216
    %8230 = vmatprep.subr.bf16.mxu0 0
    %8231 = vmatpush1.bf16.msra.mxu0 %v8215
    %8232 = vmatprep.subr.bf16.mxu0 0
    %8233 = vmatpush1.bf16.msra.mxu0 %v8214
    %8234 = vmatprep.subr.bf16.mxu0 0
    %8235 = vmatpush1.bf16.msra.mxu0 %v8213
    %8236 = vmatprep.subr.bf16.mxu0 0
    %8237 = vmatpush1.bf16.msra.mxu0 %v8212
    %8238 = vmatprep.subr.bf16.mxu0 0
    %8239 = vmatpush1.bf16.msra.mxu0 %v8211
    %8240 = vmatprep.subr.bf16.mxu0 0
    %8241 = vmatpush1.bf16.msra.mxu0 %v8210
    %8242 = vmatprep.subr.bf16.mxu0 0
    %8243 = vmatpush2.bf16.msra.mxu0 0
    %8244 = vmatprep.subr.bf16.mxu0 0
    %8245 = vmatpush2.bf16.msra.mxu0 0
    %8246 = vmatprep.subr.bf16.mxu0 0
    %8247 = vmatpush2.bf16.msra.mxu0 0
    %8248 = vmatprep.subr.bf16.mxu0 0
    %8249 = vmatpush2.bf16.msra.mxu0 0
    %8250 = vmatprep.subr.bf16.mxu0 0
    %8251 = vmatpush2.bf16.msra.mxu0 0
    %8252 = vmatprep.subr.bf16.mxu0 0
    %8253 = vmatpush2.bf16.msra.mxu0 0
    %8254 = vmatprep.subr.bf16.mxu0 0
    %8255 = vmatpush2.bf16.msra.mxu0 0
    %8256 = vmatprep.subr.bf16.mxu0 0
    %8257 = vmatpush2.bf16.msra.mxu0 0
    %8258 = vmatprep.mubr.bf16.mxu0 0
    %8259 = vmatmul.mubr.bf16.gmra.mxu0 %v8153
    %v8260 = vpop.f32.mrf.mxu0
    %v8261 = vadd.f32 0.0, %v8260
    %v8262 = vpop.f32.mrf.mxu0
    %v8263 = vpop.f32.mrf.mxu0
    %v8264 = vadd.f32 0.0, %v8263
    %v8265 = vpop.f32.mrf.mxu0
    %8266 = vmatprep.mubr.bf16.mxu0 0
    %8267 = vmatmul.mubr.bf16.gmra.mxu0 %v8154
    %v8268 = vpop.f32.mrf.mxu0
    %v8269 = vadd.f32 0.0, %v8268
    %v8270 = vpop.f32.mrf.mxu0
    %v8271 = vpop.f32.mrf.mxu0
    %v8272 = vadd.f32 0.0, %v8271
    %v8273 = vpop.f32.mrf.mxu0
    %8274 = vmatprep.mubr.bf16.mxu0 0
    %8275 = vmatmul.mubr.bf16.gmra.mxu0 %v8155
    %v8276 = vpop.f32.mrf.mxu0
    %v8277 = vadd.f32 0.0, %v8276
    %v8278 = vpop.f32.mrf.mxu0
    %v8279 = vpop.f32.mrf.mxu0
    %v8280 = vadd.f32 0.0, %v8279
    %v8281 = vpop.f32.mrf.mxu0
    %8282 = vmatprep.mubr.bf16.mxu0 0
    %8283 = vmatmul.mubr.bf16.gmra.mxu0 %v8156
    %v8284 = vpop.f32.mrf.mxu0
    %v8285 = vadd.f32 0.0, %v8284
    %v8286 = vpop.f32.mrf.mxu0
    %v8287 = vpop.f32.mrf.mxu0
    %v8288 = vadd.f32 0.0, %v8287
    %v8289 = vpop.f32.mrf.mxu0
    %8290 = vmatprep.mubr.bf16.mxu0 0
    %8291 = vmatmul.mubr.bf16.gmra.mxu0 %v8157
    %v8292 = vpop.f32.mrf.mxu0
    %v8293 = vadd.f32 0.0, %v8292
    %v8294 = vpop.f32.mrf.mxu0
    %v8295 = vpop.f32.mrf.mxu0
    %v8296 = vadd.f32 0.0, %v8295
    %v8297 = vpop.f32.mrf.mxu0
    %8298 = vmatprep.mubr.bf16.mxu0 0
    %8299 = vmatmul.mubr.bf16.gmra.mxu0 %v8158
    %v8300 = vpop.f32.mrf.mxu0
    %v8301 = vadd.f32 0.0, %v8300
    %v8302 = vpop.f32.mrf.mxu0
    %v8303 = vpop.f32.mrf.mxu0
    %v8304 = vadd.f32 0.0, %v8303
    %v8305 = vpop.f32.mrf.mxu0
    %8306 = vmatprep.mubr.bf16.mxu0 0
    %8307 = vmatmul.mubr.bf16.gmra.mxu0 %v8159
    %v8308 = vpop.f32.mrf.mxu0
    %v8309 = vadd.f32 0.0, %v8308
    %v8310 = vpop.f32.mrf.mxu0
    %v8311 = vpop.f32.mrf.mxu0
    %v8312 = vadd.f32 0.0, %v8311
    %v8313 = vpop.f32.mrf.mxu0
    %8314 = vmatprep.mubr.bf16.mxu0 0
    %8315 = vmatmul.mubr.bf16.gmra.mxu0 %v8160
    %v8316 = vpop.f32.mrf.mxu0
    %v8317 = vadd.f32 0.0, %v8316
    %v8318 = vpop.f32.mrf.mxu0
    %v8319 = vpop.f32.mrf.mxu0
    %v8320 = vadd.f32 0.0, %v8319
    %v8321 = vpop.f32.mrf.mxu0
    %8322 = vdwg.mxu0
    %v8323 = vadd.f32 %v8040, %v8261
    %v8324 = vadd.f32 %v8041, %v8264
    %v8325 = vadd.f32 %v8042, %v8269
    %v8326 = vadd.f32 %v8043, %v8272
    %v8327 = vadd.f32 %v8044, %v8277
    %v8328 = vadd.f32 %v8045, %v8280
    %v8329 = vadd.f32 %v8046, %v8285
    %v8330 = vadd.f32 %v8047, %v8288
    %v8331 = vadd.f32 %v8048, %v8293
    %v8332 = vadd.f32 %v8049, %v8296
    %v8333 = vadd.f32 %v8050, %v8301
    %v8334 = vadd.f32 %v8051, %v8304
    %v8335 = vadd.f32 %v8052, %v8309
    %v8336 = vadd.f32 %v8053, %v8312
    %v8337 = vadd.f32 %v8054, %v8317
    %v8338 = vadd.f32 %v8055, %v8320
    %8339 = vmatprep.subr.bf16.mxu0 0
    %8340 = vmatpush1.bf16.msra.mxu0 %v6107
    %8341 = vmatprep.subr.bf16.mxu0 0
    %8342 = vmatpush1.bf16.msra.mxu0 %v6106
    %8343 = vmatprep.subr.bf16.mxu0 0
    %8344 = vmatpush1.bf16.msra.mxu0 %v6105
    %8345 = vmatprep.subr.bf16.mxu0 0
    %8346 = vmatpush1.bf16.msra.mxu0 %v6104
    %8347 = vmatprep.subr.bf16.mxu0 0
    %8348 = vmatpush1.bf16.msra.mxu0 %v6103
    %8349 = vmatprep.subr.bf16.mxu0 0
    %8350 = vmatpush1.bf16.msra.mxu0 %v6102
    %8351 = vmatprep.subr.bf16.mxu0 0
    %8352 = vmatpush1.bf16.msra.mxu0 %v6101
    %8353 = vmatprep.subr.bf16.mxu0 0
    %8354 = vmatpush1.bf16.msra.mxu0 %v6100
    %8355 = vmatprep.subr.bf16.mxu0 0
    %8356 = vmatpush2.bf16.msra.mxu0 0
    %8357 = vmatprep.subr.bf16.mxu0 0
    %8358 = vmatpush2.bf16.msra.mxu0 0
    %8359 = vmatprep.subr.bf16.mxu0 0
    %8360 = vmatpush2.bf16.msra.mxu0 0
    %8361 = vmatprep.subr.bf16.mxu0 0
    %8362 = vmatpush2.bf16.msra.mxu0 0
    %8363 = vmatprep.subr.bf16.mxu0 0
    %8364 = vmatpush2.bf16.msra.mxu0 0
    %8365 = vmatprep.subr.bf16.mxu0 0
    %8366 = vmatpush2.bf16.msra.mxu0 0
    %8367 = vmatprep.subr.bf16.mxu0 0
    %8368 = vmatpush2.bf16.msra.mxu0 0
    %8369 = vmatprep.subr.bf16.mxu0 0
    %8370 = vmatpush2.bf16.msra.mxu0 0
    %8371 = vmatprep.mubr.bf16.mxu0 0
    %8372 = vmatmul.mubr.bf16.gmra.mxu0 %v3185
    %v8373 = vpop.f32.mrf.mxu0
    %v8374 = vadd.f32 0.0, %v8373
    %v8375 = vpop.f32.mrf.mxu0
    %v8376 = vpop.f32.mrf.mxu0
    %v8377 = vadd.f32 0.0, %v8376
    %v8378 = vpop.f32.mrf.mxu0
    %8379 = vmatprep.mubr.bf16.mxu0 0
    %8380 = vmatmul.mubr.bf16.gmra.mxu0 %v3186
    %v8381 = vpop.f32.mrf.mxu0
    %v8382 = vadd.f32 0.0, %v8381
    %v8383 = vpop.f32.mrf.mxu0
    %v8384 = vpop.f32.mrf.mxu0
    %v8385 = vadd.f32 0.0, %v8384
    %v8386 = vpop.f32.mrf.mxu0
    %8387 = vmatprep.mubr.bf16.mxu0 0
    %8388 = vmatmul.mubr.bf16.gmra.mxu0 %v3187
    %v8389 = vpop.f32.mrf.mxu0
    %v8390 = vadd.f32 0.0, %v8389
    %v8391 = vpop.f32.mrf.mxu0
    %v8392 = vpop.f32.mrf.mxu0
    %v8393 = vadd.f32 0.0, %v8392
    %v8394 = vpop.f32.mrf.mxu0
    %8395 = vmatprep.mubr.bf16.mxu0 0
    %8396 = vmatmul.mubr.bf16.gmra.mxu0 %v3188
    %v8397 = vpop.f32.mrf.mxu0
    %v8398 = vadd.f32 0.0, %v8397
    %v8399 = vpop.f32.mrf.mxu0
    %v8400 = vpop.f32.mrf.mxu0
    %v8401 = vadd.f32 0.0, %v8400
    %v8402 = vpop.f32.mrf.mxu0
    %8403 = vmatprep.mubr.bf16.mxu0 0
    %8404 = vmatmul.mubr.bf16.gmra.mxu0 %v3189
    %v8405 = vpop.f32.mrf.mxu0
    %v8406 = vadd.f32 0.0, %v8405
    %v8407 = vpop.f32.mrf.mxu0
    %v8408 = vpop.f32.mrf.mxu0
    %v8409 = vadd.f32 0.0, %v8408
    %v8410 = vpop.f32.mrf.mxu0
    %8411 = vmatprep.mubr.bf16.mxu0 0
    %8412 = vmatmul.mubr.bf16.gmra.mxu0 %v3190
    %v8413 = vpop.f32.mrf.mxu0
    %v8414 = vadd.f32 0.0, %v8413
    %v8415 = vpop.f32.mrf.mxu0
    %v8416 = vpop.f32.mrf.mxu0
    %v8417 = vadd.f32 0.0, %v8416
    %v8418 = vpop.f32.mrf.mxu0
    %8419 = vmatprep.mubr.bf16.mxu0 0
    %8420 = vmatmul.mubr.bf16.gmra.mxu0 %v3191
    %v8421 = vpop.f32.mrf.mxu0
    %v8422 = vadd.f32 0.0, %v8421
    %v8423 = vpop.f32.mrf.mxu0
    %v8424 = vpop.f32.mrf.mxu0
    %v8425 = vadd.f32 0.0, %v8424
    %v8426 = vpop.f32.mrf.mxu0
    %8427 = vmatprep.mubr.bf16.mxu0 0
    %8428 = vmatmul.mubr.bf16.gmra.mxu0 %v3192
    %v8429 = vpop.f32.mrf.mxu0
    %v8430 = vadd.f32 0.0, %v8429
    %v8431 = vpop.f32.mrf.mxu0
    %v8432 = vpop.f32.mrf.mxu0
    %v8433 = vadd.f32 0.0, %v8432
    %v8434 = vpop.f32.mrf.mxu0
    %8435 = vdwg.mxu0
    %v8436 = vpack.c.bf16 %v8377, %v8374
    %v8437 = vpack.c.bf16 %v8385, %v8382
    %v8438 = vpack.c.bf16 %v8393, %v8390
    %v8439 = vpack.c.bf16 %v8401, %v8398
    %v8440 = vpack.c.bf16 %v8409, %v8406
    %v8441 = vpack.c.bf16 %v8417, %v8414
    %v8442 = vpack.c.bf16 %v8425, %v8422
    %v8443 = vpack.c.bf16 %v8433, %v8430
    %s8444 = scalar_lea.vmem %s8, 512
    %v8445 = vld [vmem:[%s8444] sm:$0xf]
    %v8446 = vld [vmem:[%s8444 + $0x4] sm:$0xf]
    %v8447 = vld [vmem:[%s8444 + $0x8] sm:$0xf]
    %v8448 = vld [vmem:[%s8444 + $0xc] sm:$0xf]
    %v8449 = vld [vmem:[%s8444 + $0x10] sm:$0xf]
    %v8450 = vld [vmem:[%s8444 + $0x14] sm:$0xf]
    %v8451 = vld [vmem:[%s8444 + $0x18] sm:$0xf]
    %v8452 = vld [vmem:[%s8444 + $0x1c] sm:$0xf]
    %v8453 = vld [vmem:[%s8444 + $0x20] sm:$0xf]
    %v8454 = vld [vmem:[%s8444 + $0x24] sm:$0xf]
    %v8455 = vld [vmem:[%s8444 + $0x28] sm:$0xf]
    %v8456 = vld [vmem:[%s8444 + $0x2c] sm:$0xf]
    %v8457 = vld [vmem:[%s8444 + $0x30] sm:$0xf]
    %v8458 = vld [vmem:[%s8444 + $0x34] sm:$0xf]
    %v8459 = vld [vmem:[%s8444 + $0x38] sm:$0xf]
    %v8460 = vld [vmem:[%s8444 + $0x3c] sm:$0xf]
    %v8477 = vunpack.c.l.b16 %v8445
    %v8478 = vunpack.c.l.b16 %v8446
    %v8479 = vunpack.c.l.b16 %v8447
    %v8480 = vunpack.c.l.b16 %v8448
    %v8481 = vunpack.c.l.b16 %v8449
    %v8482 = vunpack.c.l.b16 %v8450
    %v8483 = vunpack.c.l.b16 %v8451
    %v8484 = vunpack.c.l.b16 %v8452
    %v8485 = vunpack.c.l.b16 %v8453
    %v8486 = vunpack.c.l.b16 %v8454
    %v8487 = vunpack.c.l.b16 %v8455
    %v8488 = vunpack.c.l.b16 %v8456
    %v8489 = vunpack.c.l.b16 %v8457
    %v8490 = vunpack.c.l.b16 %v8458
    %v8491 = vunpack.c.l.b16 %v8459
    %v8492 = vunpack.c.l.b16 %v8460
    %v8493 = vpack.c.b16 %v8478, %v8477
    %v8494 = vpack.c.b16 %v8480, %v8479
    %v8495 = vpack.c.b16 %v8482, %v8481
    %v8496 = vpack.c.b16 %v8484, %v8483
    %v8497 = vpack.c.b16 %v8486, %v8485
    %v8498 = vpack.c.b16 %v8488, %v8487
    %v8499 = vpack.c.b16 %v8490, %v8489
    %v8500 = vpack.c.b16 %v8492, %v8491
    %8509 = vmatprep.subr.bf16.mxu0 0
    %8510 = vmatpush1.bf16.msra.mxu0 %v8500
    %8511 = vmatprep.subr.bf16.mxu0 0
    %8512 = vmatpush1.bf16.msra.mxu0 %v8499
    %8513 = vmatprep.subr.bf16.mxu0 0
    %8514 = vmatpush1.bf16.msra.mxu0 %v8498
    %8515 = vmatprep.subr.bf16.mxu0 0
    %8516 = vmatpush1.bf16.msra.mxu0 %v8497
    %8517 = vmatprep.subr.bf16.mxu0 0
    %8518 = vmatpush1.bf16.msra.mxu0 %v8496
    %8519 = vmatprep.subr.bf16.mxu0 0
    %8520 = vmatpush1.bf16.msra.mxu0 %v8495
    %8521 = vmatprep.subr.bf16.mxu0 0
    %8522 = vmatpush1.bf16.msra.mxu0 %v8494
    %8523 = vmatprep.subr.bf16.mxu0 0
    %8524 = vmatpush1.bf16.msra.mxu0 %v8493
    %8525 = vmatprep.subr.bf16.mxu0 0
    %8526 = vmatpush2.bf16.msra.mxu0 0
    %8527 = vmatprep.subr.bf16.mxu0 0
    %8528 = vmatpush2.bf16.msra.mxu0 0
    %8529 = vmatprep.subr.bf16.mxu0 0
    %8530 = vmatpush2.bf16.msra.mxu0 0
    %8531 = vmatprep.subr.bf16.mxu0 0
    %8532 = vmatpush2.bf16.msra.mxu0 0
    %8533 = vmatprep.subr.bf16.mxu0 0
    %8534 = vmatpush2.bf16.msra.mxu0 0
    %8535 = vmatprep.subr.bf16.mxu0 0
    %8536 = vmatpush2.bf16.msra.mxu0 0
    %8537 = vmatprep.subr.bf16.mxu0 0
    %8538 = vmatpush2.bf16.msra.mxu0 0
    %8539 = vmatprep.subr.bf16.mxu0 0
    %8540 = vmatpush2.bf16.msra.mxu0 0
    %8541 = vmatprep.mubr.bf16.mxu0 0
    %8542 = vmatmul.mubr.bf16.gmra.mxu0 %v8436
    %v8543 = vpop.f32.mrf.mxu0
    %v8544 = vadd.f32 0.0, %v8543
    %v8545 = vpop.f32.mrf.mxu0
    %v8546 = vpop.f32.mrf.mxu0
    %v8547 = vadd.f32 0.0, %v8546
    %v8548 = vpop.f32.mrf.mxu0
    %8549 = vmatprep.mubr.bf16.mxu0 0
    %8550 = vmatmul.mubr.bf16.gmra.mxu0 %v8437
    %v8551 = vpop.f32.mrf.mxu0
    %v8552 = vadd.f32 0.0, %v8551
    %v8553 = vpop.f32.mrf.mxu0
    %v8554 = vpop.f32.mrf.mxu0
    %v8555 = vadd.f32 0.0, %v8554
    %v8556 = vpop.f32.mrf.mxu0
    %8557 = vmatprep.mubr.bf16.mxu0 0
    %8558 = vmatmul.mubr.bf16.gmra.mxu0 %v8438
    %v8559 = vpop.f32.mrf.mxu0
    %v8560 = vadd.f32 0.0, %v8559
    %v8561 = vpop.f32.mrf.mxu0
    %v8562 = vpop.f32.mrf.mxu0
    %v8563 = vadd.f32 0.0, %v8562
    %v8564 = vpop.f32.mrf.mxu0
    %8565 = vmatprep.mubr.bf16.mxu0 0
    %8566 = vmatmul.mubr.bf16.gmra.mxu0 %v8439
    %v8567 = vpop.f32.mrf.mxu0
    %v8568 = vadd.f32 0.0, %v8567
    %v8569 = vpop.f32.mrf.mxu0
    %v8570 = vpop.f32.mrf.mxu0
    %v8571 = vadd.f32 0.0, %v8570
    %v8572 = vpop.f32.mrf.mxu0
    %8573 = vmatprep.mubr.bf16.mxu0 0
    %8574 = vmatmul.mubr.bf16.gmra.mxu0 %v8440
    %v8575 = vpop.f32.mrf.mxu0
    %v8576 = vadd.f32 0.0, %v8575
    %v8577 = vpop.f32.mrf.mxu0
    %v8578 = vpop.f32.mrf.mxu0
    %v8579 = vadd.f32 0.0, %v8578
    %v8580 = vpop.f32.mrf.mxu0
    %8581 = vmatprep.mubr.bf16.mxu0 0
    %8582 = vmatmul.mubr.bf16.gmra.mxu0 %v8441
    %v8583 = vpop.f32.mrf.mxu0
    %v8584 = vadd.f32 0.0, %v8583
    %v8585 = vpop.f32.mrf.mxu0
    %v8586 = vpop.f32.mrf.mxu0
    %v8587 = vadd.f32 0.0, %v8586
    %v8588 = vpop.f32.mrf.mxu0
    %8589 = vmatprep.mubr.bf16.mxu0 0
    %8590 = vmatmul.mubr.bf16.gmra.mxu0 %v8442
    %v8591 = vpop.f32.mrf.mxu0
    %v8592 = vadd.f32 0.0, %v8591
    %v8593 = vpop.f32.mrf.mxu0
    %v8594 = vpop.f32.mrf.mxu0
    %v8595 = vadd.f32 0.0, %v8594
    %v8596 = vpop.f32.mrf.mxu0
    %8597 = vmatprep.mubr.bf16.mxu0 0
    %8598 = vmatmul.mubr.bf16.gmra.mxu0 %v8443
    %v8599 = vpop.f32.mrf.mxu0
    %v8600 = vadd.f32 0.0, %v8599
    %v8601 = vpop.f32.mrf.mxu0
    %v8602 = vpop.f32.mrf.mxu0
    %v8603 = vadd.f32 0.0, %v8602
    %v8604 = vpop.f32.mrf.mxu0
    %8605 = vdwg.mxu0
    %v8606 = vadd.f32 %v8323, %v8544
    %v8607 = vadd.f32 %v8324, %v8547
    %v8608 = vadd.f32 %v8325, %v8552
    %v8609 = vadd.f32 %v8326, %v8555
    %v8610 = vadd.f32 %v8327, %v8560
    %v8611 = vadd.f32 %v8328, %v8563
    %v8612 = vadd.f32 %v8329, %v8568
    %v8613 = vadd.f32 %v8330, %v8571
    %v8614 = vadd.f32 %v8331, %v8576
    %v8615 = vadd.f32 %v8332, %v8579
    %v8616 = vadd.f32 %v8333, %v8584
    %v8617 = vadd.f32 %v8334, %v8587
    %v8618 = vadd.f32 %v8335, %v8592
    %v8619 = vadd.f32 %v8336, %v8595
    %v8620 = vadd.f32 %v8337, %v8600
    %v8621 = vadd.f32 %v8338, %v8603
    %v8622 = vld [vmem:[%s9] sm:$0x1]
    %v8624 = vlaneseq
    %v8625 = vshrl.u32 %v8624, 7
    %v8626 = vsub.s32 0, %v8625
    %v8627 = vrot.slane %v8622, %v8626
    %v8629 = vadd.f32 %v8606, %v8627
    %v8630 = vadd.f32 %v8607, %v8627
    %v8631 = vadd.f32 %v8608, %v8627
    %v8632 = vadd.f32 %v8609, %v8627
    %v8633 = vadd.f32 %v8610, %v8627
    %v8634 = vadd.f32 %v8611, %v8627
    %v8635 = vadd.f32 %v8612, %v8627
    %v8636 = vadd.f32 %v8613, %v8627
    %v8637 = vadd.f32 %v8614, %v8627
    %v8638 = vadd.f32 %v8615, %v8627
    %v8639 = vadd.f32 %v8616, %v8627
    %v8640 = vadd.f32 %v8617, %v8627
    %v8641 = vadd.f32 %v8618, %v8627
    %v8642 = vadd.f32 %v8619, %v8627
    %v8643 = vadd.f32 %v8620, %v8627
    %v8644 = vadd.f32 %v8621, %v8627
    %v8645 = vmax.f32 %v8629, 0.0
    %v8646 = vmax.f32 %v8630, 0.0
    %v8647 = vmax.f32 %v8631, 0.0
    %v8648 = vmax.f32 %v8632, 0.0
    %v8649 = vmax.f32 %v8633, 0.0
    %v8650 = vmax.f32 %v8634, 0.0
    %v8651 = vmax.f32 %v8635, 0.0
    %v8652 = vmax.f32 %v8636, 0.0
    %v8653 = vmax.f32 %v8637, 0.0
    %v8654 = vmax.f32 %v8638, 0.0
    %v8655 = vmax.f32 %v8639, 0.0
    %v8656 = vmax.f32 %v8640, 0.0
    %v8657 = vmax.f32 %v8641, 0.0
    %v8658 = vmax.f32 %v8642, 0.0
    %v8659 = vmax.f32 %v8643, 0.0
    %v8660 = vmax.f32 %v8644, 0.0
    %v8661 = vld [vmem:[%s10] sm:$0x3]
    %8662 = vmatprep.subr.mxu0 0.0
    %8663 = vmatpush1.msra.mxu0 %v8660
    %8664 = vmatprep.subr.mxu0 0.0
    %8665 = vmatpush1.msra.mxu0 %v8659
    %8666 = vmatprep.subr.mxu0 0.0
    %8667 = vmatpush1.msra.mxu0 %v8658
    %8668 = vmatprep.subr.mxu0 0.0
    %8669 = vmatpush1.msra.mxu0 %v8657
    %8670 = vmatprep.subr.mxu0 0.0
    %8671 = vmatpush1.msra.mxu0 %v8656
    %8672 = vmatprep.subr.mxu0 0.0
    %8673 = vmatpush1.msra.mxu0 %v8655
    %8674 = vmatprep.subr.mxu0 0.0
    %8675 = vmatpush1.msra.mxu0 %v8654
    %8676 = vmatprep.subr.mxu0 0.0
    %8677 = vmatpush1.msra.mxu0 %v8653
    %8678 = vmatprep.subr.mxu0 0.0
    %8679 = vmatpush1.msra.mxu0 %v8652
    %8680 = vmatprep.subr.mxu0 0.0
    %8681 = vmatpush1.msra.mxu0 %v8651
    %8682 = vmatprep.subr.mxu0 0.0
    %8683 = vmatpush1.msra.mxu0 %v8650
    %8684 = vmatprep.subr.mxu0 0.0
    %8685 = vmatpush1.msra.mxu0 %v8649
    %8686 = vmatprep.subr.mxu0 0.0
    %8687 = vmatpush1.msra.mxu0 %v8648
    %8688 = vmatprep.subr.mxu0 0.0
    %8689 = vmatpush1.msra.mxu0 %v8647
    %8690 = vmatprep.subr.mxu0 0.0
    %8691 = vmatpush1.msra.mxu0 %v8646
    %8692 = vmatprep.subr.mxu0 0.0
    %8693 = vmatpush1.msra.mxu0 %v8645
    %8694 = vmatprep.subr.mxu0 0.0
    %8695 = vmatpush2.msra.mxu0 0.0
    %8696 = vmatprep.subr.mxu0 0.0
    %8697 = vmatpush2.msra.mxu0 0.0
    %8698 = vmatprep.subr.mxu0 0.0
    %8699 = vmatpush2.msra.mxu0 0.0
    %8700 = vmatprep.subr.mxu0 0.0
    %8701 = vmatpush2.msra.mxu0 0.0
    %8702 = vmatprep.subr.mxu0 0.0
    %8703 = vmatpush2.msra.mxu0 0.0
    %8704 = vmatprep.subr.mxu0 0.0
    %8705 = vmatpush2.msra.mxu0 0.0
    %8706 = vmatprep.subr.mxu0 0.0
    %8707 = vmatpush2.msra.mxu0 0.0
    %8708 = vmatprep.subr.mxu0 0.0
    %8709 = vmatpush2.msra.mxu0 0.0
    %8710 = vmatprep.subr.mxu0 0.0
    %8711 = vmatpush2.msra.mxu0 0.0
    %8712 = vmatprep.subr.mxu0 0.0
    %8713 = vmatpush2.msra.mxu0 0.0
    %8714 = vmatprep.subr.mxu0 0.0
    %8715 = vmatpush2.msra.mxu0 0.0
    %8716 = vmatprep.subr.mxu0 0.0
    %8717 = vmatpush2.msra.mxu0 0.0
    %8718 = vmatprep.subr.mxu0 0.0
    %8719 = vmatpush2.msra.mxu0 0.0
    %8720 = vmatprep.subr.mxu0 0.0
    %8721 = vmatpush2.msra.mxu0 0.0
    %8722 = vmatprep.subr.mxu0 0.0
    %8723 = vmatpush2.msra.mxu0 0.0
    %8724 = vmatprep.subr.mxu0 0.0
    %8725 = vmatpush2.msra.mxu0 0.0
    %8726 = vmatprep.mubr.f32.mxu0 0.0
    %8727 = vmatmul.mubr.f32.gmra.mxu0 %v8661
    %v8728 = vpop.f32.mrf.mxu0
    %v8729 = vadd.f32 0.0, %v8728
    %v8730 = vpop.f32.mrf.mxu0
    %8731 = vdwg.mxu0
    %v8732 = vpack.c.bf16 %v8729, %v8729
    %v8733 = vld [vmem:[#allocation2] sm:$0xf]
    %v8734 = vld [vmem:[#allocation2 + $0x4] sm:$0xf]
    %v8735 = vld [vmem:[#allocation2 + $0x8] sm:$0xf]
    %v8736 = vld [vmem:[#allocation2 + $0xc] sm:$0xf]
    %v8737 = vld [vmem:[#allocation2 + $0x10] sm:$0xf]
    %v8738 = vld [vmem:[#allocation2 + $0x14] sm:$0xf]
    %v8739 = vld [vmem:[#allocation2 + $0x18] sm:$0xf]
    %v8740 = vld [vmem:[#allocation2 + $0x1c] sm:$0xf]
    %v8741 = vld [vmem:[#allocation2 + $0x20] sm:$0xf]
    %v8742 = vld [vmem:[#allocation2 + $0x24] sm:$0xf]
    %v8743 = vld [vmem:[#allocation2 + $0x28] sm:$0xf]
    %v8744 = vld [vmem:[#allocation2 + $0x2c] sm:$0xf]
    %v8745 = vld [vmem:[#allocation2 + $0x30] sm:$0xf]
    %v8746 = vld [vmem:[#allocation2 + $0x34] sm:$0xf]
    %v8747 = vld [vmem:[#allocation2 + $0x38] sm:$0xf]
    %v8748 = vld [vmem:[#allocation2 + $0x3c] sm:$0xf]
    %v8749 = vld [vmem:[%s12] sm:$0x1]
    %v8751 = vlaneseq
    %v8752 = vshrl.u32 %v8751, 7
    %v8753 = vsub.s32 0, %v8752
    %v8754 = vrot.slane %v8749, %v8753
    %v8772 = vunpack.c.l.b16 %v8733
    %v8773 = vunpack.c.l.b16 %v8734
    %v8774 = vunpack.c.l.b16 %v8735
    %v8775 = vunpack.c.l.b16 %v8736
    %v8776 = vunpack.c.l.b16 %v8737
    %v8777 = vunpack.c.l.b16 %v8738
    %v8778 = vunpack.c.l.b16 %v8739
    %v8779 = vunpack.c.l.b16 %v8740
    %v8780 = vunpack.c.l.b16 %v8741
    %v8781 = vunpack.c.l.b16 %v8742
    %v8782 = vunpack.c.l.b16 %v8743
    %v8783 = vunpack.c.l.b16 %v8744
    %v8784 = vunpack.c.l.b16 %v8745
    %v8785 = vunpack.c.l.b16 %v8746
    %v8786 = vunpack.c.l.b16 %v8747
    %v8787 = vunpack.c.l.b16 %v8748
    %v8788 = vpack.c.b16 %v8773, %v8772
    %v8789 = vpack.c.b16 %v8775, %v8774
    %v8790 = vpack.c.b16 %v8777, %v8776
    %v8791 = vpack.c.b16 %v8779, %v8778
    %v8792 = vpack.c.b16 %v8781, %v8780
    %v8793 = vpack.c.b16 %v8783, %v8782
    %v8794 = vpack.c.b16 %v8785, %v8784
    %v8795 = vpack.c.b16 %v8787, %v8786
    %8804 = vmatprep.subr.bf16.mxu0 0
    %8805 = vmatpush1.bf16.msra.mxu0 %v8795
    %8806 = vmatprep.subr.bf16.mxu0 0
    %8807 = vmatpush1.bf16.msra.mxu0 %v8794
    %8808 = vmatprep.subr.bf16.mxu0 0
    %8809 = vmatpush1.bf16.msra.mxu0 %v8793
    %8810 = vmatprep.subr.bf16.mxu0 0
    %8811 = vmatpush1.bf16.msra.mxu0 %v8792
    %8812 = vmatprep.subr.bf16.mxu0 0
    %8813 = vmatpush1.bf16.msra.mxu0 %v8791
    %8814 = vmatprep.subr.bf16.mxu0 0
    %8815 = vmatpush1.bf16.msra.mxu0 %v8790
    %8816 = vmatprep.subr.bf16.mxu0 0
    %8817 = vmatpush1.bf16.msra.mxu0 %v8789
    %8818 = vmatprep.subr.bf16.mxu0 0
    %8819 = vmatpush1.bf16.msra.mxu0 %v8788
    %8820 = vmatprep.subr.bf16.mxu0 0
    %8821 = vmatpush2.bf16.msra.mxu0 0
    %8822 = vmatprep.subr.bf16.mxu0 0
    %8823 = vmatpush2.bf16.msra.mxu0 0
    %8824 = vmatprep.subr.bf16.mxu0 0
    %8825 = vmatpush2.bf16.msra.mxu0 0
    %8826 = vmatprep.subr.bf16.mxu0 0
    %8827 = vmatpush2.bf16.msra.mxu0 0
    %8828 = vmatprep.subr.bf16.mxu0 0
    %8829 = vmatpush2.bf16.msra.mxu0 0
    %8830 = vmatprep.subr.bf16.mxu0 0
    %8831 = vmatpush2.bf16.msra.mxu0 0
    %8832 = vmatprep.subr.bf16.mxu0 0
    %8833 = vmatpush2.bf16.msra.mxu0 0
    %8834 = vmatprep.subr.bf16.mxu0 0
    %8835 = vmatpush2.bf16.msra.mxu0 0
    %8836 = vmatprep.mubr.bf16.mxu0 0
    %8837 = vmatmul.mubr.bf16.gmra.mxu0 %v8732
    %v8838 = vpop.f32.mrf.mxu0
    %v8839 = vadd.f32 %v8754, %v8838
    %v8840 = vpop.f32.mrf.mxu0
    %v8841 = vpop.f32.mrf.mxu0
    %v8842 = vpop.f32.mrf.mxu0
    %8843 = vdwg.mxu0
    %v8844 = vpack.c.bf16 %v8839, %v8839
    %v8845 = vld [vmem:[#allocation4] sm:$0xf]
    %v8846 = vld [vmem:[#allocation4 + $0x4] sm:$0xf]
    %v8847 = vld [vmem:[#allocation4 + $0x8] sm:$0xf]
    %v8848 = vld [vmem:[#allocation4 + $0xc] sm:$0xf]
    %v8849 = vld [vmem:[#allocation4 + $0x10] sm:$0xf]
    %v8850 = vld [vmem:[#allocation4 + $0x14] sm:$0xf]
    %v8851 = vld [vmem:[#allocation4 + $0x18] sm:$0xf]
    %v8852 = vld [vmem:[#allocation4 + $0x1c] sm:$0xf]
    %v8853 = vld [vmem:[#allocation4 + $0x20] sm:$0xf]
    %v8854 = vld [vmem:[#allocation4 + $0x24] sm:$0xf]
    %v8855 = vld [vmem:[#allocation4 + $0x28] sm:$0xf]
    %v8856 = vld [vmem:[#allocation4 + $0x2c] sm:$0xf]
    %v8857 = vld [vmem:[#allocation4 + $0x30] sm:$0xf]
    %v8858 = vld [vmem:[#allocation4 + $0x34] sm:$0xf]
    %v8859 = vld [vmem:[#allocation4 + $0x38] sm:$0xf]
    %v8860 = vld [vmem:[#allocation4 + $0x3c] sm:$0xf]
    %v8861 = vld [vmem:[%s14] sm:$0x1]
    %v8863 = vlaneseq
    %v8864 = vshrl.u32 %v8863, 7
    %v8865 = vsub.s32 0, %v8864
    %v8866 = vrot.slane %v8861, %v8865
    %v8884 = vunpack.c.l.b16 %v8845
    %v8885 = vunpack.c.l.b16 %v8846
    %v8886 = vunpack.c.l.b16 %v8847
    %v8887 = vunpack.c.l.b16 %v8848
    %v8888 = vunpack.c.l.b16 %v8849
    %v8889 = vunpack.c.l.b16 %v8850
    %v8890 = vunpack.c.l.b16 %v8851
    %v8891 = vunpack.c.l.b16 %v8852
    %v8892 = vunpack.c.l.b16 %v8853
    %v8893 = vunpack.c.l.b16 %v8854
    %v8894 = vunpack.c.l.b16 %v8855
    %v8895 = vunpack.c.l.b16 %v8856
    %v8896 = vunpack.c.l.b16 %v8857
    %v8897 = vunpack.c.l.b16 %v8858
    %v8898 = vunpack.c.l.b16 %v8859
    %v8899 = vunpack.c.l.b16 %v8860
    %v8900 = vpack.c.b16 %v8885, %v8884
    %v8901 = vpack.c.b16 %v8887, %v8886
    %v8902 = vpack.c.b16 %v8889, %v8888
    %v8903 = vpack.c.b16 %v8891, %v8890
    %v8904 = vpack.c.b16 %v8893, %v8892
    %v8905 = vpack.c.b16 %v8895, %v8894
    %v8906 = vpack.c.b16 %v8897, %v8896
    %v8907 = vpack.c.b16 %v8899, %v8898
    %8916 = vmatprep.subr.bf16.mxu0 0
    %8917 = vmatpush1.bf16.msra.mxu0 %v8907
    %8918 = vmatprep.subr.bf16.mxu0 0
    %8919 = vmatpush1.bf16.msra.mxu0 %v8906
    %8920 = vmatprep.subr.bf16.mxu0 0
    %8921 = vmatpush1.bf16.msra.mxu0 %v8905
    %8922 = vmatprep.subr.bf16.mxu0 0
    %8923 = vmatpush1.bf16.msra.mxu0 %v8904
    %8924 = vmatprep.subr.bf16.mxu0 0
    %8925 = vmatpush1.bf16.msra.mxu0 %v8903
    %8926 = vmatprep.subr.bf16.mxu0 0
    %8927 = vmatpush1.bf16.msra.mxu0 %v8902
    %8928 = vmatprep.subr.bf16.mxu0 0
    %8929 = vmatpush1.bf16.msra.mxu0 %v8901
    %8930 = vmatprep.subr.bf16.mxu0 0
    %8931 = vmatpush1.bf16.msra.mxu0 %v8900
    %8932 = vmatprep.subr.bf16.mxu0 0
    %8933 = vmatpush2.bf16.msra.mxu0 0
    %8934 = vmatprep.subr.bf16.mxu0 0
    %8935 = vmatpush2.bf16.msra.mxu0 0
    %8936 = vmatprep.subr.bf16.mxu0 0
    %8937 = vmatpush2.bf16.msra.mxu0 0
    %8938 = vmatprep.subr.bf16.mxu0 0
    %8939 = vmatpush2.bf16.msra.mxu0 0
    %8940 = vmatprep.subr.bf16.mxu0 0
    %8941 = vmatpush2.bf16.msra.mxu0 0
    %8942 = vmatprep.subr.bf16.mxu0 0
    %8943 = vmatpush2.bf16.msra.mxu0 0
    %8944 = vmatprep.subr.bf16.mxu0 0
    %8945 = vmatpush2.bf16.msra.mxu0 0
    %8946 = vmatprep.subr.bf16.mxu0 0
    %8947 = vmatpush2.bf16.msra.mxu0 0
    %8948 = vmatprep.mubr.bf16.mxu0 0
    %8949 = vmatmul.mubr.bf16.gmra.mxu0 %v8844
    %v8950 = vpop.f32.mrf.mxu0
    %v8951 = vadd.f32 %v8866, %v8950
    %v8952 = vpop.f32.mrf.mxu0
    %v8953 = vpop.f32.mrf.mxu0
    %v8954 = vpop.f32.mrf.mxu0
    %8955 = vdwg.mxu0
    %vm8956 = vcmp.gt.f32.partialorder %v8951, 0.0
    %v8957 = vmul.f32 %v8951, 0.2
    %v8958 = vsel %vm8956, %v8951, %v8957
    %v8959 = vpack.c.bf16 %v8958, %v8958
    %v8960 = vld [vmem:[%s15] sm:$0xff]
    %v8961 = vld [vmem:[%s15 + $0x8] sm:$0xff]
    %v8962 = vld [vmem:[%s15 + $0x10] sm:$0xff]
    %v8963 = vld [vmem:[%s15 + $0x18] sm:$0xff]
    %v8964 = vld [vmem:[%s15 + $0x20] sm:$0xff]
    %v8965 = vld [vmem:[%s15 + $0x28] sm:$0xff]
    %v8966 = vld [vmem:[%s15 + $0x30] sm:$0xff]
    %v8967 = vld [vmem:[%s15 + $0x38] sm:$0xff]
    %v8968 = vld [vmem:[%s15 + $0x40] sm:$0xff]
    %v8969 = vld [vmem:[%s15 + $0x48] sm:$0xff]
    %v8970 = vld [vmem:[%s15 + $0x50] sm:$0xff]
    %v8971 = vld [vmem:[%s15 + $0x58] sm:$0xff]
    %v8972 = vld [vmem:[%s15 + $0x60] sm:$0xff]
    %v8973 = vld [vmem:[%s15 + $0x68] sm:$0xff]
    %v8974 = vld [vmem:[%s15 + $0x70] sm:$0xff]
    %v8975 = vld [vmem:[%s15 + $0x78] sm:$0xff]
    %v8976 = vld [vmem:[%s16] sm:$0x3]
    %v8978 = vlaneseq
    %v8979 = vshrl.u32 %v8978, 7
    %v8980 = vsub.s32 0, %v8979
    %v8981 = vrot.slane %v8976, %v8980
    %v8982 = vlaneseq
    %v8983 = vshrl.u32 %v8982, 7
    %v8984 = vsub.s32 1, %v8983
    %v8985 = vrot.slane %v8976, %v8984
    %v9004 = vunpack.c.l.b16 %v8960
    %v9005 = vunpack.c.h.b16 %v8960
    %v9006 = vunpack.c.l.b16 %v8961
    %v9007 = vunpack.c.h.b16 %v8961
    %v9008 = vunpack.c.l.b16 %v8962
    %v9009 = vunpack.c.h.b16 %v8962
    %v9010 = vunpack.c.l.b16 %v8963
    %v9011 = vunpack.c.h.b16 %v8963
    %v9012 = vunpack.c.l.b16 %v8964
    %v9013 = vunpack.c.h.b16 %v8964
    %v9014 = vunpack.c.l.b16 %v8965
    %v9015 = vunpack.c.h.b16 %v8965
    %v9016 = vunpack.c.l.b16 %v8966
    %v9017 = vunpack.c.h.b16 %v8966
    %v9018 = vunpack.c.l.b16 %v8967
    %v9019 = vunpack.c.h.b16 %v8967
    %v9020 = vunpack.c.l.b16 %v8968
    %v9021 = vunpack.c.h.b16 %v8968
    %v9022 = vunpack.c.l.b16 %v8969
    %v9023 = vunpack.c.h.b16 %v8969
    %v9024 = vunpack.c.l.b16 %v8970
    %v9025 = vunpack.c.h.b16 %v8970
    %v9026 = vunpack.c.l.b16 %v8971
    %v9027 = vunpack.c.h.b16 %v8971
    %v9028 = vunpack.c.l.b16 %v8972
    %v9029 = vunpack.c.h.b16 %v8972
    %v9030 = vunpack.c.l.b16 %v8973
    %v9031 = vunpack.c.h.b16 %v8973
    %v9032 = vunpack.c.l.b16 %v8974
    %v9033 = vunpack.c.h.b16 %v8974
    %v9034 = vunpack.c.l.b16 %v8975
    %v9035 = vunpack.c.h.b16 %v8975
    %v9036 = vpack.c.b16 %v9006, %v9004
    %v9037 = vpack.c.b16 %v9007, %v9005
    %v9038 = vpack.c.b16 %v9010, %v9008
    %v9039 = vpack.c.b16 %v9011, %v9009
    %v9040 = vpack.c.b16 %v9014, %v9012
    %v9041 = vpack.c.b16 %v9015, %v9013
    %v9042 = vpack.c.b16 %v9018, %v9016
    %v9043 = vpack.c.b16 %v9019, %v9017
    %v9044 = vpack.c.b16 %v9022, %v9020
    %v9045 = vpack.c.b16 %v9023, %v9021
    %v9046 = vpack.c.b16 %v9026, %v9024
    %v9047 = vpack.c.b16 %v9027, %v9025
    %v9048 = vpack.c.b16 %v9030, %v9028
    %v9049 = vpack.c.b16 %v9031, %v9029
    %v9050 = vpack.c.b16 %v9034, %v9032
    %v9051 = vpack.c.b16 %v9035, %v9033
    %9068 = vmatprep.subr.bf16.mxu0 %v9051
    %9069 = vmatpush1.bf16.msra.mxu0 %v9050
    %9070 = vmatprep.subr.bf16.mxu0 %v9049
    %9071 = vmatpush1.bf16.msra.mxu0 %v9048
    %9072 = vmatprep.subr.bf16.mxu0 %v9047
    %9073 = vmatpush1.bf16.msra.mxu0 %v9046
    %9074 = vmatprep.subr.bf16.mxu0 %v9045
    %9075 = vmatpush1.bf16.msra.mxu0 %v9044
    %9076 = vmatprep.subr.bf16.mxu0 %v9043
    %9077 = vmatpush1.bf16.msra.mxu0 %v9042
    %9078 = vmatprep.subr.bf16.mxu0 %v9041
    %9079 = vmatpush1.bf16.msra.mxu0 %v9040
    %9080 = vmatprep.subr.bf16.mxu0 %v9039
    %9081 = vmatpush1.bf16.msra.mxu0 %v9038
    %9082 = vmatprep.subr.bf16.mxu0 %v9037
    %9083 = vmatpush1.bf16.msra.mxu0 %v9036
    %9084 = vmatprep.subr.bf16.mxu0 0
    %9085 = vmatpush2.bf16.msra.mxu0 0
    %9086 = vmatprep.subr.bf16.mxu0 0
    %9087 = vmatpush2.bf16.msra.mxu0 0
    %9088 = vmatprep.subr.bf16.mxu0 0
    %9089 = vmatpush2.bf16.msra.mxu0 0
    %9090 = vmatprep.subr.bf16.mxu0 0
    %9091 = vmatpush2.bf16.msra.mxu0 0
    %9092 = vmatprep.subr.bf16.mxu0 0
    %9093 = vmatpush2.bf16.msra.mxu0 0
    %9094 = vmatprep.subr.bf16.mxu0 0
    %9095 = vmatpush2.bf16.msra.mxu0 0
    %9096 = vmatprep.subr.bf16.mxu0 0
    %9097 = vmatpush2.bf16.msra.mxu0 0
    %9098 = vmatprep.subr.bf16.mxu0 0
    %9099 = vmatpush2.bf16.msra.mxu0 0
    %9100 = vmatprep.mubr.bf16.mxu0 0
    %9101 = vmatmul.mubr.bf16.gmra.mxu0 %v8959
    %v9102 = vpop.f32.mrf.mxu0
    %v9103 = vadd.f32 %v8981, %v9102
    %v9104 = vpop.f32.mrf.mxu0
    %v9105 = vadd.f32 %v8985, %v9104
    %v9106 = vpop.f32.mrf.mxu0
    %v9107 = vpop.f32.mrf.mxu0
    %9108 = vdwg.mxu0
    %v9109 = vpack.c.bf16 %v9103, %v9103
    %v9110 = vpack.c.bf16 %v9105, %v9105
    %v9111 = vld [vmem:[#allocation6] sm:$0xff]
    %v9112 = vld [vmem:[#allocation6 + $0x8] sm:$0xff]
    %v9113 = vld [vmem:[#allocation6 + $0x10] sm:$0xff]
    %v9114 = vld [vmem:[#allocation6 + $0x18] sm:$0xff]
    %v9115 = vld [vmem:[#allocation6 + $0x20] sm:$0xff]
    %v9116 = vld [vmem:[#allocation6 + $0x28] sm:$0xff]
    %v9117 = vld [vmem:[#allocation6 + $0x30] sm:$0xff]
    %v9118 = vld [vmem:[#allocation6 + $0x38] sm:$0xff]
    %v9119 = vld [vmem:[#allocation6 + $0x40] sm:$0xff]
    %v9120 = vld [vmem:[#allocation6 + $0x48] sm:$0xff]
    %v9121 = vld [vmem:[#allocation6 + $0x50] sm:$0xff]
    %v9122 = vld [vmem:[#allocation6 + $0x58] sm:$0xff]
    %v9123 = vld [vmem:[#allocation6 + $0x60] sm:$0xff]
    %v9124 = vld [vmem:[#allocation6 + $0x68] sm:$0xff]
    %v9125 = vld [vmem:[#allocation6 + $0x70] sm:$0xff]
    %v9126 = vld [vmem:[#allocation6 + $0x78] sm:$0xff]
    %v9127 = vld [vmem:[#allocation6 + $0x80] sm:$0xff]
    %v9128 = vld [vmem:[#allocation6 + $0x88] sm:$0xff]
    %v9129 = vld [vmem:[#allocation6 + $0x90] sm:$0xff]
    %v9130 = vld [vmem:[#allocation6 + $0x98] sm:$0xff]
    %v9131 = vld [vmem:[#allocation6 + $0xa0] sm:$0xff]
    %v9132 = vld [vmem:[#allocation6 + $0xa8] sm:$0xff]
    %v9133 = vld [vmem:[#allocation6 + $0xb0] sm:$0xff]
    %v9134 = vld [vmem:[#allocation6 + $0xb8] sm:$0xff]
    %v9135 = vld [vmem:[#allocation6 + $0xc0] sm:$0xff]
    %v9136 = vld [vmem:[#allocation6 + $0xc8] sm:$0xff]
    %v9137 = vld [vmem:[#allocation6 + $0xd0] sm:$0xff]
    %v9138 = vld [vmem:[#allocation6 + $0xd8] sm:$0xff]
    %v9139 = vld [vmem:[#allocation6 + $0xe0] sm:$0xff]
    %v9140 = vld [vmem:[#allocation6 + $0xe8] sm:$0xff]
    %v9141 = vld [vmem:[#allocation6 + $0xf0] sm:$0xff]
    %v9142 = vld [vmem:[#allocation6 + $0xf8] sm:$0xff]
    %v9143 = vld [vmem:[%s18] sm:$0x3]
    %v9145 = vlaneseq
    %v9146 = vshrl.u32 %v9145, 7
    %v9147 = vsub.s32 0, %v9146
    %v9148 = vrot.slane %v9143, %v9147
    %v9149 = vlaneseq
    %v9150 = vshrl.u32 %v9149, 7
    %v9151 = vsub.s32 1, %v9150
    %v9152 = vrot.slane %v9143, %v9151
    %v9187 = vunpack.c.l.b16 %v9111
    %v9188 = vunpack.c.h.b16 %v9111
    %v9189 = vunpack.c.l.b16 %v9112
    %v9190 = vunpack.c.h.b16 %v9112
    %v9191 = vunpack.c.l.b16 %v9113
    %v9192 = vunpack.c.h.b16 %v9113
    %v9193 = vunpack.c.l.b16 %v9114
    %v9194 = vunpack.c.h.b16 %v9114
    %v9195 = vunpack.c.l.b16 %v9115
    %v9196 = vunpack.c.h.b16 %v9115
    %v9197 = vunpack.c.l.b16 %v9116
    %v9198 = vunpack.c.h.b16 %v9116
    %v9199 = vunpack.c.l.b16 %v9117
    %v9200 = vunpack.c.h.b16 %v9117
    %v9201 = vunpack.c.l.b16 %v9118
    %v9202 = vunpack.c.h.b16 %v9118
    %v9203 = vunpack.c.l.b16 %v9119
    %v9204 = vunpack.c.h.b16 %v9119
    %v9205 = vunpack.c.l.b16 %v9120
    %v9206 = vunpack.c.h.b16 %v9120
    %v9207 = vunpack.c.l.b16 %v9121
    %v9208 = vunpack.c.h.b16 %v9121
    %v9209 = vunpack.c.l.b16 %v9122
    %v9210 = vunpack.c.h.b16 %v9122
    %v9211 = vunpack.c.l.b16 %v9123
    %v9212 = vunpack.c.h.b16 %v9123
    %v9213 = vunpack.c.l.b16 %v9124
    %v9214 = vunpack.c.h.b16 %v9124
    %v9215 = vunpack.c.l.b16 %v9125
    %v9216 = vunpack.c.h.b16 %v9125
    %v9217 = vunpack.c.l.b16 %v9126
    %v9218 = vunpack.c.h.b16 %v9126
    %v9219 = vunpack.c.l.b16 %v9127
    %v9220 = vunpack.c.h.b16 %v9127
    %v9221 = vunpack.c.l.b16 %v9128
    %v9222 = vunpack.c.h.b16 %v9128
    %v9223 = vunpack.c.l.b16 %v9129
    %v9224 = vunpack.c.h.b16 %v9129
    %v9225 = vunpack.c.l.b16 %v9130
    %v9226 = vunpack.c.h.b16 %v9130
    %v9227 = vunpack.c.l.b16 %v9131
    %v9228 = vunpack.c.h.b16 %v9131
    %v9229 = vunpack.c.l.b16 %v9132
    %v9230 = vunpack.c.h.b16 %v9132
    %v9231 = vunpack.c.l.b16 %v9133
    %v9232 = vunpack.c.h.b16 %v9133
    %v9233 = vunpack.c.l.b16 %v9134
    %v9234 = vunpack.c.h.b16 %v9134
    %v9235 = vunpack.c.l.b16 %v9135
    %v9236 = vunpack.c.h.b16 %v9135
    %v9237 = vunpack.c.l.b16 %v9136
    %v9238 = vunpack.c.h.b16 %v9136
    %v9239 = vunpack.c.l.b16 %v9137
    %v9240 = vunpack.c.h.b16 %v9137
    %v9241 = vunpack.c.l.b16 %v9138
    %v9242 = vunpack.c.h.b16 %v9138
    %v9243 = vunpack.c.l.b16 %v9139
    %v9244 = vunpack.c.h.b16 %v9139
    %v9245 = vunpack.c.l.b16 %v9140
    %v9246 = vunpack.c.h.b16 %v9140
    %v9247 = vunpack.c.l.b16 %v9141
    %v9248 = vunpack.c.h.b16 %v9141
    %v9249 = vunpack.c.l.b16 %v9142
    %v9250 = vunpack.c.h.b16 %v9142
    %v9251 = vpack.c.b16 %v9189, %v9187
    %v9252 = vpack.c.b16 %v9190, %v9188
    %v9253 = vpack.c.b16 %v9193, %v9191
    %v9254 = vpack.c.b16 %v9194, %v9192
    %v9255 = vpack.c.b16 %v9197, %v9195
    %v9256 = vpack.c.b16 %v9198, %v9196
    %v9257 = vpack.c.b16 %v9201, %v9199
    %v9258 = vpack.c.b16 %v9202, %v9200
    %v9259 = vpack.c.b16 %v9205, %v9203
    %v9260 = vpack.c.b16 %v9206, %v9204
    %v9261 = vpack.c.b16 %v9209, %v9207
    %v9262 = vpack.c.b16 %v9210, %v9208
    %v9263 = vpack.c.b16 %v9213, %v9211
    %v9264 = vpack.c.b16 %v9214, %v9212
    %v9265 = vpack.c.b16 %v9217, %v9215
    %v9266 = vpack.c.b16 %v9218, %v9216
    %v9267 = vpack.c.b16 %v9221, %v9219
    %v9268 = vpack.c.b16 %v9222, %v9220
    %v9269 = vpack.c.b16 %v9225, %v9223
    %v9270 = vpack.c.b16 %v9226, %v9224
    %v9271 = vpack.c.b16 %v9229, %v9227
    %v9272 = vpack.c.b16 %v9230, %v9228
    %v9273 = vpack.c.b16 %v9233, %v9231
    %v9274 = vpack.c.b16 %v9234, %v9232
    %v9275 = vpack.c.b16 %v9237, %v9235
    %v9276 = vpack.c.b16 %v9238, %v9236
    %v9277 = vpack.c.b16 %v9241, %v9239
    %v9278 = vpack.c.b16 %v9242, %v9240
    %v9279 = vpack.c.b16 %v9245, %v9243
    %v9280 = vpack.c.b16 %v9246, %v9244
    %v9281 = vpack.c.b16 %v9249, %v9247
    %v9282 = vpack.c.b16 %v9250, %v9248
    %9315 = vmatprep.subr.bf16.mxu0 %v9266
    %9316 = vmatpush1.bf16.msra.mxu0 %v9265
    %9317 = vmatprep.subr.bf16.mxu0 %v9264
    %9318 = vmatpush1.bf16.msra.mxu0 %v9263
    %9319 = vmatprep.subr.bf16.mxu0 %v9262
    %9320 = vmatpush1.bf16.msra.mxu0 %v9261
    %9321 = vmatprep.subr.bf16.mxu0 %v9260
    %9322 = vmatpush1.bf16.msra.mxu0 %v9259
    %9323 = vmatprep.subr.bf16.mxu0 %v9258
    %9324 = vmatpush1.bf16.msra.mxu0 %v9257
    %9325 = vmatprep.subr.bf16.mxu0 %v9256
    %9326 = vmatpush1.bf16.msra.mxu0 %v9255
    %9327 = vmatprep.subr.bf16.mxu0 %v9254
    %9328 = vmatpush1.bf16.msra.mxu0 %v9253
    %9329 = vmatprep.subr.bf16.mxu0 %v9252
    %9330 = vmatpush1.bf16.msra.mxu0 %v9251
    %9331 = vmatprep.subr.bf16.mxu0 %v9282
    %9332 = vmatpush2.bf16.msra.mxu0 %v9281
    %9333 = vmatprep.subr.bf16.mxu0 %v9280
    %9334 = vmatpush2.bf16.msra.mxu0 %v9279
    %9335 = vmatprep.subr.bf16.mxu0 %v9278
    %9336 = vmatpush2.bf16.msra.mxu0 %v9277
    %9337 = vmatprep.subr.bf16.mxu0 %v9276
    %9338 = vmatpush2.bf16.msra.mxu0 %v9275
    %9339 = vmatprep.subr.bf16.mxu0 %v9274
    %9340 = vmatpush2.bf16.msra.mxu0 %v9273
    %9341 = vmatprep.subr.bf16.mxu0 %v9272
    %9342 = vmatpush2.bf16.msra.mxu0 %v9271
    %9343 = vmatprep.subr.bf16.mxu0 %v9270
    %9344 = vmatpush2.bf16.msra.mxu0 %v9269
    %9345 = vmatprep.subr.bf16.mxu0 %v9268
    %9346 = vmatpush2.bf16.msra.mxu0 %v9267
    %9347 = vmatprep.mubr.bf16.mxu0 %v9110
    %9348 = vmatmul.mubr.bf16.gmra.mxu0 %v9109
    %v9349 = vpop.f32.mrf.mxu0
    %v9350 = vadd.f32 %v9148, %v9349
    %v9351 = vpop.f32.mrf.mxu0
    %v9352 = vadd.f32 %v9152, %v9351
    %v9353 = vpop.f32.mrf.mxu0
    %v9354 = vpop.f32.mrf.mxu0
    %9355 = vdwg.mxu0
    %vm9356 = vcmp.gt.f32.partialorder %v9350, 0.0
    %vm9357 = vcmp.gt.f32.partialorder %v9352, 0.0
    %v9358 = vmul.f32 %v9350, 0.2
    %v9359 = vmul.f32 %v9352, 0.2
    %v9360 = vsel %vm9356, %v9350, %v9358
    %v9361 = vsel %vm9357, %v9352, %v9359
    %v9362 = vpack.c.bf16 %v9360, %v9360
    %v9363 = vpack.c.bf16 %v9361, %v9361
    %v9364 = vld [vmem:[%s19] sm:$0xff]
    %v9365 = vld [vmem:[%s19 + $0x8] sm:$0xff]
    %v9366 = vld [vmem:[%s19 + $0x10] sm:$0xff]
    %v9367 = vld [vmem:[%s19 + $0x18] sm:$0xff]
    %v9368 = vld [vmem:[%s19 + $0x20] sm:$0xff]
    %v9369 = vld [vmem:[%s19 + $0x28] sm:$0xff]
    %v9370 = vld [vmem:[%s19 + $0x30] sm:$0xff]
    %v9371 = vld [vmem:[%s19 + $0x38] sm:$0xff]
    %v9372 = vld [vmem:[%s19 + $0x40] sm:$0xff]
    %v9373 = vld [vmem:[%s19 + $0x48] sm:$0xff]
    %v9374 = vld [vmem:[%s19 + $0x50] sm:$0xff]
    %v9375 = vld [vmem:[%s19 + $0x58] sm:$0xff]
    %v9376 = vld [vmem:[%s19 + $0x60] sm:$0xff]
    %v9377 = vld [vmem:[%s19 + $0x68] sm:$0xff]
    %v9378 = vld [vmem:[%s19 + $0x70] sm:$0xff]
    %v9379 = vld [vmem:[%s19 + $0x78] sm:$0xff]
    %v9380 = vld [vmem:[%s19 + $0x80] sm:$0xff]
    %v9381 = vld [vmem:[%s19 + $0x88] sm:$0xff]
    %v9382 = vld [vmem:[%s19 + $0x90] sm:$0xff]
    %v9383 = vld [vmem:[%s19 + $0x98] sm:$0xff]
    %v9384 = vld [vmem:[%s19 + $0xa0] sm:$0xff]
    %v9385 = vld [vmem:[%s19 + $0xa8] sm:$0xff]
    %v9386 = vld [vmem:[%s19 + $0xb0] sm:$0xff]
    %v9387 = vld [vmem:[%s19 + $0xb8] sm:$0xff]
    %v9388 = vld [vmem:[%s19 + $0xc0] sm:$0xff]
    %v9389 = vld [vmem:[%s19 + $0xc8] sm:$0xff]
    %v9390 = vld [vmem:[%s19 + $0xd0] sm:$0xff]
    %v9391 = vld [vmem:[%s19 + $0xd8] sm:$0xff]
    %v9392 = vld [vmem:[%s19 + $0xe0] sm:$0xff]
    %v9393 = vld [vmem:[%s19 + $0xe8] sm:$0xff]
    %v9394 = vld [vmem:[%s19 + $0xf0] sm:$0xff]
    %v9395 = vld [vmem:[%s19 + $0xf8] sm:$0xff]
    %v9396 = vld [vmem:[%s19 + $0x100] sm:$0xff]
    %v9397 = vld [vmem:[%s19 + $0x108] sm:$0xff]
    %v9398 = vld [vmem:[%s19 + $0x110] sm:$0xff]
    %v9399 = vld [vmem:[%s19 + $0x118] sm:$0xff]
    %v9400 = vld [vmem:[%s19 + $0x120] sm:$0xff]
    %v9401 = vld [vmem:[%s19 + $0x128] sm:$0xff]
    %v9402 = vld [vmem:[%s19 + $0x130] sm:$0xff]
    %v9403 = vld [vmem:[%s19 + $0x138] sm:$0xff]
    %v9404 = vld [vmem:[%s19 + $0x140] sm:$0xff]
    %v9405 = vld [vmem:[%s19 + $0x148] sm:$0xff]
    %v9406 = vld [vmem:[%s19 + $0x150] sm:$0xff]
    %v9407 = vld [vmem:[%s19 + $0x158] sm:$0xff]
    %v9408 = vld [vmem:[%s19 + $0x160] sm:$0xff]
    %v9409 = vld [vmem:[%s19 + $0x168] sm:$0xff]
    %v9410 = vld [vmem:[%s19 + $0x170] sm:$0xff]
    %v9411 = vld [vmem:[%s19 + $0x178] sm:$0xff]
    %v9412 = vld [vmem:[%s19 + $0x180] sm:$0xff]
    %v9413 = vld [vmem:[%s19 + $0x188] sm:$0xff]
    %v9414 = vld [vmem:[%s19 + $0x190] sm:$0xff]
    %v9415 = vld [vmem:[%s19 + $0x198] sm:$0xff]
    %v9416 = vld [vmem:[%s19 + $0x1a0] sm:$0xff]
    %v9417 = vld [vmem:[%s19 + $0x1a8] sm:$0xff]
    %v9418 = vld [vmem:[%s19 + $0x1b0] sm:$0xff]
    %v9419 = vld [vmem:[%s19 + $0x1b8] sm:$0xff]
    %v9420 = vld [vmem:[%s19 + $0x1c0] sm:$0xff]
    %v9421 = vld [vmem:[%s19 + $0x1c8] sm:$0xff]
    %v9422 = vld [vmem:[%s19 + $0x1d0] sm:$0xff]
    %v9423 = vld [vmem:[%s19 + $0x1d8] sm:$0xff]
    %v9424 = vld [vmem:[%s19 + $0x1e0] sm:$0xff]
    %v9425 = vld [vmem:[%s19 + $0x1e8] sm:$0xff]
    %v9426 = vld [vmem:[%s19 + $0x1f0] sm:$0xff]
    %v9427 = vld [vmem:[%s19 + $0x1f8] sm:$0xff]
    %v9428 = vld [vmem:[%s20] sm:$0xf]
    %v9430 = vlaneseq
    %v9431 = vshrl.u32 %v9430, 7
    %v9432 = vsub.s32 0, %v9431
    %v9433 = vrot.slane %v9428, %v9432
    %v9434 = vlaneseq
    %v9435 = vshrl.u32 %v9434, 7
    %v9436 = vsub.s32 1, %v9435
    %v9437 = vrot.slane %v9428, %v9436
    %v9438 = vlaneseq
    %v9439 = vshrl.u32 %v9438, 7
    %v9440 = vsub.s32 2, %v9439
    %v9441 = vrot.slane %v9428, %v9440
    %v9442 = vlaneseq
    %v9443 = vshrl.u32 %v9442, 7
    %v9444 = vsub.s32 3, %v9443
    %v9445 = vrot.slane %v9428, %v9444
    %v9514 = vunpack.c.l.b16 %v9364
    %v9515 = vunpack.c.h.b16 %v9364
    %v9516 = vunpack.c.l.b16 %v9365
    %v9517 = vunpack.c.h.b16 %v9365
    %v9518 = vunpack.c.l.b16 %v9366
    %v9519 = vunpack.c.h.b16 %v9366
    %v9520 = vunpack.c.l.b16 %v9367
    %v9521 = vunpack.c.h.b16 %v9367
    %v9522 = vunpack.c.l.b16 %v9368
    %v9523 = vunpack.c.h.b16 %v9368
    %v9524 = vunpack.c.l.b16 %v9369
    %v9525 = vunpack.c.h.b16 %v9369
    %v9526 = vunpack.c.l.b16 %v9370
    %v9527 = vunpack.c.h.b16 %v9370
    %v9528 = vunpack.c.l.b16 %v9371
    %v9529 = vunpack.c.h.b16 %v9371
    %v9530 = vunpack.c.l.b16 %v9372
    %v9531 = vunpack.c.h.b16 %v9372
    %v9532 = vunpack.c.l.b16 %v9373
    %v9533 = vunpack.c.h.b16 %v9373
    %v9534 = vunpack.c.l.b16 %v9374
    %v9535 = vunpack.c.h.b16 %v9374
    %v9536 = vunpack.c.l.b16 %v9375
    %v9537 = vunpack.c.h.b16 %v9375
    %v9538 = vunpack.c.l.b16 %v9376
    %v9539 = vunpack.c.h.b16 %v9376
    %v9540 = vunpack.c.l.b16 %v9377
    %v9541 = vunpack.c.h.b16 %v9377
    %v9542 = vunpack.c.l.b16 %v9378
    %v9543 = vunpack.c.h.b16 %v9378
    %v9544 = vunpack.c.l.b16 %v9379
    %v9545 = vunpack.c.h.b16 %v9379
    %v9546 = vunpack.c.l.b16 %v9380
    %v9547 = vunpack.c.h.b16 %v9380
    %v9548 = vunpack.c.l.b16 %v9381
    %v9549 = vunpack.c.h.b16 %v9381
    %v9550 = vunpack.c.l.b16 %v9382
    %v9551 = vunpack.c.h.b16 %v9382
    %v9552 = vunpack.c.l.b16 %v9383
    %v9553 = vunpack.c.h.b16 %v9383
    %v9554 = vunpack.c.l.b16 %v9384
    %v9555 = vunpack.c.h.b16 %v9384
    %v9556 = vunpack.c.l.b16 %v9385
    %v9557 = vunpack.c.h.b16 %v9385
    %v9558 = vunpack.c.l.b16 %v9386
    %v9559 = vunpack.c.h.b16 %v9386
    %v9560 = vunpack.c.l.b16 %v9387
    %v9561 = vunpack.c.h.b16 %v9387
    %v9562 = vunpack.c.l.b16 %v9388
    %v9563 = vunpack.c.h.b16 %v9388
    %v9564 = vunpack.c.l.b16 %v9389
    %v9565 = vunpack.c.h.b16 %v9389
    %v9566 = vunpack.c.l.b16 %v9390
    %v9567 = vunpack.c.h.b16 %v9390
    %v9568 = vunpack.c.l.b16 %v9391
    %v9569 = vunpack.c.h.b16 %v9391
    %v9570 = vunpack.c.l.b16 %v9392
    %v9571 = vunpack.c.h.b16 %v9392
    %v9572 = vunpack.c.l.b16 %v9393
    %v9573 = vunpack.c.h.b16 %v9393
    %v9574 = vunpack.c.l.b16 %v9394
    %v9575 = vunpack.c.h.b16 %v9394
    %v9576 = vunpack.c.l.b16 %v9395
    %v9577 = vunpack.c.h.b16 %v9395
    %v9578 = vunpack.c.l.b16 %v9396
    %v9579 = vunpack.c.h.b16 %v9396
    %v9580 = vunpack.c.l.b16 %v9397
    %v9581 = vunpack.c.h.b16 %v9397
    %v9582 = vunpack.c.l.b16 %v9398
    %v9583 = vunpack.c.h.b16 %v9398
    %v9584 = vunpack.c.l.b16 %v9399
    %v9585 = vunpack.c.h.b16 %v9399
    %v9586 = vunpack.c.l.b16 %v9400
    %v9587 = vunpack.c.h.b16 %v9400
    %v9588 = vunpack.c.l.b16 %v9401
    %v9589 = vunpack.c.h.b16 %v9401
    %v9590 = vunpack.c.l.b16 %v9402
    %v9591 = vunpack.c.h.b16 %v9402
    %v9592 = vunpack.c.l.b16 %v9403
    %v9593 = vunpack.c.h.b16 %v9403
    %v9594 = vunpack.c.l.b16 %v9404
    %v9595 = vunpack.c.h.b16 %v9404
    %v9596 = vunpack.c.l.b16 %v9405
    %v9597 = vunpack.c.h.b16 %v9405
    %v9598 = vunpack.c.l.b16 %v9406
    %v9599 = vunpack.c.h.b16 %v9406
    %v9600 = vunpack.c.l.b16 %v9407
    %v9601 = vunpack.c.h.b16 %v9407
    %v9602 = vunpack.c.l.b16 %v9408
    %v9603 = vunpack.c.h.b16 %v9408
    %v9604 = vunpack.c.l.b16 %v9409
    %v9605 = vunpack.c.h.b16 %v9409
    %v9606 = vunpack.c.l.b16 %v9410
    %v9607 = vunpack.c.h.b16 %v9410
    %v9608 = vunpack.c.l.b16 %v9411
    %v9609 = vunpack.c.h.b16 %v9411
    %v9610 = vunpack.c.l.b16 %v9412
    %v9611 = vunpack.c.h.b16 %v9412
    %v9612 = vunpack.c.l.b16 %v9413
    %v9613 = vunpack.c.h.b16 %v9413
    %v9614 = vunpack.c.l.b16 %v9414
    %v9615 = vunpack.c.h.b16 %v9414
    %v9616 = vunpack.c.l.b16 %v9415
    %v9617 = vunpack.c.h.b16 %v9415
    %v9618 = vunpack.c.l.b16 %v9416
    %v9619 = vunpack.c.h.b16 %v9416
    %v9620 = vunpack.c.l.b16 %v9417
    %v9621 = vunpack.c.h.b16 %v9417
    %v9622 = vunpack.c.l.b16 %v9418
    %v9623 = vunpack.c.h.b16 %v9418
    %v9624 = vunpack.c.l.b16 %v9419
    %v9625 = vunpack.c.h.b16 %v9419
    %v9626 = vunpack.c.l.b16 %v9420
    %v9627 = vunpack.c.h.b16 %v9420
    %v9628 = vunpack.c.l.b16 %v9421
    %v9629 = vunpack.c.h.b16 %v9421
    %v9630 = vunpack.c.l.b16 %v9422
    %v9631 = vunpack.c.h.b16 %v9422
    %v9632 = vunpack.c.l.b16 %v9423
    %v9633 = vunpack.c.h.b16 %v9423
    %v9634 = vunpack.c.l.b16 %v9424
    %v9635 = vunpack.c.h.b16 %v9424
    %v9636 = vunpack.c.l.b16 %v9425
    %v9637 = vunpack.c.h.b16 %v9425
    %v9638 = vunpack.c.l.b16 %v9426
    %v9639 = vunpack.c.h.b16 %v9426
    %v9640 = vunpack.c.l.b16 %v9427
    %v9641 = vunpack.c.h.b16 %v9427
    %v9642 = vpack.c.b16 %v9518, %v9514
    %v9643 = vpack.c.b16 %v9519, %v9515
    %v9644 = vpack.c.b16 %v9520, %v9516
    %v9645 = vpack.c.b16 %v9521, %v9517
    %v9646 = vpack.c.b16 %v9526, %v9522
    %v9647 = vpack.c.b16 %v9527, %v9523
    %v9648 = vpack.c.b16 %v9528, %v9524
    %v9649 = vpack.c.b16 %v9529, %v9525
    %v9650 = vpack.c.b16 %v9534, %v9530
    %v9651 = vpack.c.b16 %v9535, %v9531
    %v9652 = vpack.c.b16 %v9536, %v9532
    %v9653 = vpack.c.b16 %v9537, %v9533
    %v9654 = vpack.c.b16 %v9542, %v9538
    %v9655 = vpack.c.b16 %v9543, %v9539
    %v9656 = vpack.c.b16 %v9544, %v9540
    %v9657 = vpack.c.b16 %v9545, %v9541
    %v9658 = vpack.c.b16 %v9550, %v9546
    %v9659 = vpack.c.b16 %v9551, %v9547
    %v9660 = vpack.c.b16 %v9552, %v9548
    %v9661 = vpack.c.b16 %v9553, %v9549
    %v9662 = vpack.c.b16 %v9558, %v9554
    %v9663 = vpack.c.b16 %v9559, %v9555
    %v9664 = vpack.c.b16 %v9560, %v9556
    %v9665 = vpack.c.b16 %v9561, %v9557
    %v9666 = vpack.c.b16 %v9566, %v9562
    %v9667 = vpack.c.b16 %v9567, %v9563
    %v9668 = vpack.c.b16 %v9568, %v9564
    %v9669 = vpack.c.b16 %v9569, %v9565
    %v9670 = vpack.c.b16 %v9574, %v9570
    %v9671 = vpack.c.b16 %v9575, %v9571
    %v9672 = vpack.c.b16 %v9576, %v9572
    %v9673 = vpack.c.b16 %v9577, %v9573
    %v9674 = vpack.c.b16 %v9582, %v9578
    %v9675 = vpack.c.b16 %v9583, %v9579
    %v9676 = vpack.c.b16 %v9584, %v9580
    %v9677 = vpack.c.b16 %v9585, %v9581
    %v9678 = vpack.c.b16 %v9590, %v9586
    %v9679 = vpack.c.b16 %v9591, %v9587
    %v9680 = vpack.c.b16 %v9592, %v9588
    %v9681 = vpack.c.b16 %v9593, %v9589
    %v9682 = vpack.c.b16 %v9598, %v9594
    %v9683 = vpack.c.b16 %v9599, %v9595
    %v9684 = vpack.c.b16 %v9600, %v9596
    %v9685 = vpack.c.b16 %v9601, %v9597
    %v9686 = vpack.c.b16 %v9606, %v9602
    %v9687 = vpack.c.b16 %v9607, %v9603
    %v9688 = vpack.c.b16 %v9608, %v9604
    %v9689 = vpack.c.b16 %v9609, %v9605
    %v9690 = vpack.c.b16 %v9614, %v9610
    %v9691 = vpack.c.b16 %v9615, %v9611
    %v9692 = vpack.c.b16 %v9616, %v9612
    %v9693 = vpack.c.b16 %v9617, %v9613
    %v9694 = vpack.c.b16 %v9622, %v9618
    %v9695 = vpack.c.b16 %v9623, %v9619
    %v9696 = vpack.c.b16 %v9624, %v9620
    %v9697 = vpack.c.b16 %v9625, %v9621
    %v9698 = vpack.c.b16 %v9630, %v9626
    %v9699 = vpack.c.b16 %v9631, %v9627
    %v9700 = vpack.c.b16 %v9632, %v9628
    %v9701 = vpack.c.b16 %v9633, %v9629
    %v9702 = vpack.c.b16 %v9638, %v9634
    %v9703 = vpack.c.b16 %v9639, %v9635
    %v9704 = vpack.c.b16 %v9640, %v9636
    %v9705 = vpack.c.b16 %v9641, %v9637
    %9770 = vmatprep.subr.bf16.mxu0 %v9671
    %9771 = vmatpush1.bf16.msra.mxu0 %v9670
    %9772 = vmatprep.subr.bf16.mxu0 %v9667
    %9773 = vmatpush1.bf16.msra.mxu0 %v9666
    %9774 = vmatprep.subr.bf16.mxu0 %v9663
    %9775 = vmatpush1.bf16.msra.mxu0 %v9662
    %9776 = vmatprep.subr.bf16.mxu0 %v9659
    %9777 = vmatpush1.bf16.msra.mxu0 %v9658
    %9778 = vmatprep.subr.bf16.mxu0 %v9655
    %9779 = vmatpush1.bf16.msra.mxu0 %v9654
    %9780 = vmatprep.subr.bf16.mxu0 %v9651
    %9781 = vmatpush1.bf16.msra.mxu0 %v9650
    %9782 = vmatprep.subr.bf16.mxu0 %v9647
    %9783 = vmatpush1.bf16.msra.mxu0 %v9646
    %9784 = vmatprep.subr.bf16.mxu0 %v9643
    %9785 = vmatpush1.bf16.msra.mxu0 %v9642
    %9786 = vmatprep.subr.bf16.mxu0 %v9703
    %9787 = vmatpush2.bf16.msra.mxu0 %v9702
    %9788 = vmatprep.subr.bf16.mxu0 %v9699
    %9789 = vmatpush2.bf16.msra.mxu0 %v9698
    %9790 = vmatprep.subr.bf16.mxu0 %v9695
    %9791 = vmatpush2.bf16.msra.mxu0 %v9694
    %9792 = vmatprep.subr.bf16.mxu0 %v9691
    %9793 = vmatpush2.bf16.msra.mxu0 %v9690
    %9794 = vmatprep.subr.bf16.mxu0 %v9687
    %9795 = vmatpush2.bf16.msra.mxu0 %v9686
    %9796 = vmatprep.subr.bf16.mxu0 %v9683
    %9797 = vmatpush2.bf16.msra.mxu0 %v9682
    %9798 = vmatprep.subr.bf16.mxu0 %v9679
    %9799 = vmatpush2.bf16.msra.mxu0 %v9678
    %9800 = vmatprep.subr.bf16.mxu0 %v9675
    %9801 = vmatpush2.bf16.msra.mxu0 %v9674
    %9802 = vmatprep.mubr.bf16.mxu0 %v9363
    %9803 = vmatmul.mubr.bf16.gmra.mxu0 %v9362
    %v9804 = vpop.f32.mrf.mxu0
    %v9805 = vadd.f32 %v9433, %v9804
    %v9806 = vpop.f32.mrf.mxu0
    %v9807 = vadd.f32 %v9437, %v9806
    %v9808 = vpop.f32.mrf.mxu0
    %v9809 = vpop.f32.mrf.mxu0
    %9810 = vdwg.mxu0
    %9811 = vmatprep.subr.bf16.mxu0 %v9673
    %9812 = vmatpush1.bf16.msra.mxu0 %v9672
    %9813 = vmatprep.subr.bf16.mxu0 %v9669
    %9814 = vmatpush1.bf16.msra.mxu0 %v9668
    %9815 = vmatprep.subr.bf16.mxu0 %v9665
    %9816 = vmatpush1.bf16.msra.mxu0 %v9664
    %9817 = vmatprep.subr.bf16.mxu0 %v9661
    %9818 = vmatpush1.bf16.msra.mxu0 %v9660
    %9819 = vmatprep.subr.bf16.mxu0 %v9657
    %9820 = vmatpush1.bf16.msra.mxu0 %v9656
    %9821 = vmatprep.subr.bf16.mxu0 %v9653
    %9822 = vmatpush1.bf16.msra.mxu0 %v9652
    %9823 = vmatprep.subr.bf16.mxu0 %v9649
    %9824 = vmatpush1.bf16.msra.mxu0 %v9648
    %9825 = vmatprep.subr.bf16.mxu0 %v9645
    %9826 = vmatpush1.bf16.msra.mxu0 %v9644
    %9827 = vmatprep.subr.bf16.mxu0 %v9705
    %9828 = vmatpush2.bf16.msra.mxu0 %v9704
    %9829 = vmatprep.subr.bf16.mxu0 %v9701
    %9830 = vmatpush2.bf16.msra.mxu0 %v9700
    %9831 = vmatprep.subr.bf16.mxu0 %v9697
    %9832 = vmatpush2.bf16.msra.mxu0 %v9696
    %9833 = vmatprep.subr.bf16.mxu0 %v9693
    %9834 = vmatpush2.bf16.msra.mxu0 %v9692
    %9835 = vmatprep.subr.bf16.mxu0 %v9689
    %9836 = vmatpush2.bf16.msra.mxu0 %v9688
    %9837 = vmatprep.subr.bf16.mxu0 %v9685
    %9838 = vmatpush2.bf16.msra.mxu0 %v9684
    %9839 = vmatprep.subr.bf16.mxu0 %v9681
    %9840 = vmatpush2.bf16.msra.mxu0 %v9680
    %9841 = vmatprep.subr.bf16.mxu0 %v9677
    %9842 = vmatpush2.bf16.msra.mxu0 %v9676
    %9843 = vmatprep.mubr.bf16.mxu0 %v9363
    %9844 = vmatmul.mubr.bf16.gmra.mxu0 %v9362
    %v9845 = vpop.f32.mrf.mxu0
    %v9846 = vadd.f32 %v9441, %v9845
    %v9847 = vpop.f32.mrf.mxu0
    %v9848 = vadd.f32 %v9445, %v9847
    %v9849 = vpop.f32.mrf.mxu0
    %v9850 = vpop.f32.mrf.mxu0
    %9851 = vdwg.mxu0
    %v9852 = vpack.c.bf16 %v9805, %v9805
    %v9853 = vpack.c.bf16 %v9807, %v9807
    %v9854 = vpack.c.bf16 %v9846, %v9846
    %v9855 = vpack.c.bf16 %v9848, %v9848
    %v9856 = vld [vmem:[#allocation7] sm:$0xf]
    %v9857 = vld [vmem:[#allocation7 + $0x4] sm:$0xf]
    %v9858 = vld [vmem:[#allocation7 + $0x8] sm:$0xf]
    %v9859 = vld [vmem:[#allocation7 + $0xc] sm:$0xf]
    %v9860 = vld [vmem:[#allocation7 + $0x10] sm:$0xf]
    %v9861 = vld [vmem:[#allocation7 + $0x14] sm:$0xf]
    %v9862 = vld [vmem:[#allocation7 + $0x18] sm:$0xf]
    %v9863 = vld [vmem:[#allocation7 + $0x1c] sm:$0xf]
    %v9864 = vld [vmem:[#allocation7 + $0x20] sm:$0xf]
    %v9865 = vld [vmem:[#allocation7 + $0x24] sm:$0xf]
    %v9866 = vld [vmem:[#allocation7 + $0x28] sm:$0xf]
    %v9867 = vld [vmem:[#allocation7 + $0x2c] sm:$0xf]
    %v9868 = vld [vmem:[#allocation7 + $0x30] sm:$0xf]
    %v9869 = vld [vmem:[#allocation7 + $0x34] sm:$0xf]
    %v9870 = vld [vmem:[#allocation7 + $0x38] sm:$0xf]
    %v9871 = vld [vmem:[#allocation7 + $0x3c] sm:$0xf]
    %v9872 = vld [vmem:[#allocation7 + $0x40] sm:$0xf]
    %v9873 = vld [vmem:[#allocation7 + $0x44] sm:$0xf]
    %v9874 = vld [vmem:[#allocation7 + $0x48] sm:$0xf]
    %v9875 = vld [vmem:[#allocation7 + $0x4c] sm:$0xf]
    %v9876 = vld [vmem:[#allocation7 + $0x50] sm:$0xf]
    %v9877 = vld [vmem:[#allocation7 + $0x54] sm:$0xf]
    %v9878 = vld [vmem:[#allocation7 + $0x58] sm:$0xf]
    %v9879 = vld [vmem:[#allocation7 + $0x5c] sm:$0xf]
    %v9880 = vld [vmem:[#allocation7 + $0x60] sm:$0xf]
    %v9881 = vld [vmem:[#allocation7 + $0x64] sm:$0xf]
    %v9882 = vld [vmem:[#allocation7 + $0x68] sm:$0xf]
    %v9883 = vld [vmem:[#allocation7 + $0x6c] sm:$0xf]
    %v9884 = vld [vmem:[#allocation7 + $0x70] sm:$0xf]
    %v9885 = vld [vmem:[#allocation7 + $0x74] sm:$0xf]
    %v9886 = vld [vmem:[#allocation7 + $0x78] sm:$0xf]
    %v9887 = vld [vmem:[#allocation7 + $0x7c] sm:$0xf]
    %v9888 = vld [vmem:[#allocation7 + $0x80] sm:$0xf]
    %v9889 = vld [vmem:[#allocation7 + $0x84] sm:$0xf]
    %v9890 = vld [vmem:[#allocation7 + $0x88] sm:$0xf]
    %v9891 = vld [vmem:[#allocation7 + $0x8c] sm:$0xf]
    %v9892 = vld [vmem:[#allocation7 + $0x90] sm:$0xf]
    %v9893 = vld [vmem:[#allocation7 + $0x94] sm:$0xf]
    %v9894 = vld [vmem:[#allocation7 + $0x98] sm:$0xf]
    %v9895 = vld [vmem:[#allocation7 + $0x9c] sm:$0xf]
    %v9896 = vld [vmem:[#allocation7 + $0xa0] sm:$0xf]
    %v9897 = vld [vmem:[#allocation7 + $0xa4] sm:$0xf]
    %v9898 = vld [vmem:[#allocation7 + $0xa8] sm:$0xf]
    %v9899 = vld [vmem:[#allocation7 + $0xac] sm:$0xf]
    %v9900 = vld [vmem:[#allocation7 + $0xb0] sm:$0xf]
    %v9901 = vld [vmem:[#allocation7 + $0xb4] sm:$0xf]
    %v9902 = vld [vmem:[#allocation7 + $0xb8] sm:$0xf]
    %v9903 = vld [vmem:[#allocation7 + $0xbc] sm:$0xf]
    %v9904 = vld [vmem:[#allocation7 + $0xc0] sm:$0xf]
    %v9905 = vld [vmem:[#allocation7 + $0xc4] sm:$0xf]
    %v9906 = vld [vmem:[#allocation7 + $0xc8] sm:$0xf]
    %v9907 = vld [vmem:[#allocation7 + $0xcc] sm:$0xf]
    %v9908 = vld [vmem:[#allocation7 + $0xd0] sm:$0xf]
    %v9909 = vld [vmem:[#allocation7 + $0xd4] sm:$0xf]
    %v9910 = vld [vmem:[#allocation7 + $0xd8] sm:$0xf]
    %v9911 = vld [vmem:[#allocation7 + $0xdc] sm:$0xf]
    %v9912 = vld [vmem:[#allocation7 + $0xe0] sm:$0xf]
    %v9913 = vld [vmem:[#allocation7 + $0xe4] sm:$0xf]
    %v9914 = vld [vmem:[#allocation7 + $0xe8] sm:$0xf]
    %v9915 = vld [vmem:[#allocation7 + $0xec] sm:$0xf]
    %v9916 = vld [vmem:[#allocation7 + $0xf0] sm:$0xf]
    %v9917 = vld [vmem:[#allocation7 + $0xf4] sm:$0xf]
    %v9918 = vld [vmem:[#allocation7 + $0xf8] sm:$0xf]
    %v9919 = vld [vmem:[#allocation7 + $0xfc] sm:$0xf]
    %v9920 = vld [vmem:[%s22] sm:$0x1]
    %v9922 = vlaneseq
    %v9923 = vshrl.u32 %v9922, 7
    %v9924 = vsub.s32 0, %v9923
    %v9925 = vrot.slane %v9920, %v9924
    %v9991 = vunpack.c.l.b16 %v9856
    %v9992 = vunpack.c.l.b16 %v9857
    %v9993 = vunpack.c.l.b16 %v9858
    %v9994 = vunpack.c.l.b16 %v9859
    %v9995 = vunpack.c.l.b16 %v9860
    %v9996 = vunpack.c.l.b16 %v9861
    %v9997 = vunpack.c.l.b16 %v9862
    %v9998 = vunpack.c.l.b16 %v9863
    %v9999 = vunpack.c.l.b16 %v9864
    %v10000 = vunpack.c.l.b16 %v9865
    %v10001 = vunpack.c.l.b16 %v9866
    %v10002 = vunpack.c.l.b16 %v9867
    %v10003 = vunpack.c.l.b16 %v9868
    %v10004 = vunpack.c.l.b16 %v9869
    %v10005 = vunpack.c.l.b16 %v9870
    %v10006 = vunpack.c.l.b16 %v9871
    %v10007 = vunpack.c.l.b16 %v9872
    %v10008 = vunpack.c.l.b16 %v9873
    %v10009 = vunpack.c.l.b16 %v9874
    %v10010 = vunpack.c.l.b16 %v9875
    %v10011 = vunpack.c.l.b16 %v9876
    %v10012 = vunpack.c.l.b16 %v9877
    %v10013 = vunpack.c.l.b16 %v9878
    %v10014 = vunpack.c.l.b16 %v9879
    %v10015 = vunpack.c.l.b16 %v9880
    %v10016 = vunpack.c.l.b16 %v9881
    %v10017 = vunpack.c.l.b16 %v9882
    %v10018 = vunpack.c.l.b16 %v9883
    %v10019 = vunpack.c.l.b16 %v9884
    %v10020 = vunpack.c.l.b16 %v9885
    %v10021 = vunpack.c.l.b16 %v9886
    %v10022 = vunpack.c.l.b16 %v9887
    %v10023 = vunpack.c.l.b16 %v9888
    %v10024 = vunpack.c.l.b16 %v9889
    %v10025 = vunpack.c.l.b16 %v9890
    %v10026 = vunpack.c.l.b16 %v9891
    %v10027 = vunpack.c.l.b16 %v9892
    %v10028 = vunpack.c.l.b16 %v9893
    %v10029 = vunpack.c.l.b16 %v9894
    %v10030 = vunpack.c.l.b16 %v9895
    %v10031 = vunpack.c.l.b16 %v9896
    %v10032 = vunpack.c.l.b16 %v9897
    %v10033 = vunpack.c.l.b16 %v9898
    %v10034 = vunpack.c.l.b16 %v9899
    %v10035 = vunpack.c.l.b16 %v9900
    %v10036 = vunpack.c.l.b16 %v9901
    %v10037 = vunpack.c.l.b16 %v9902
    %v10038 = vunpack.c.l.b16 %v9903
    %v10039 = vunpack.c.l.b16 %v9904
    %v10040 = vunpack.c.l.b16 %v9905
    %v10041 = vunpack.c.l.b16 %v9906
    %v10042 = vunpack.c.l.b16 %v9907
    %v10043 = vunpack.c.l.b16 %v9908
    %v10044 = vunpack.c.l.b16 %v9909
    %v10045 = vunpack.c.l.b16 %v9910
    %v10046 = vunpack.c.l.b16 %v9911
    %v10047 = vunpack.c.l.b16 %v9912
    %v10048 = vunpack.c.l.b16 %v9913
    %v10049 = vunpack.c.l.b16 %v9914
    %v10050 = vunpack.c.l.b16 %v9915
    %v10051 = vunpack.c.l.b16 %v9916
    %v10052 = vunpack.c.l.b16 %v9917
    %v10053 = vunpack.c.l.b16 %v9918
    %v10054 = vunpack.c.l.b16 %v9919
    %v10055 = vpack.c.b16 %v9992, %v9991
    %v10056 = vpack.c.b16 %v9994, %v9993
    %v10057 = vpack.c.b16 %v9996, %v9995
    %v10058 = vpack.c.b16 %v9998, %v9997
    %v10059 = vpack.c.b16 %v10000, %v9999
    %v10060 = vpack.c.b16 %v10002, %v10001
    %v10061 = vpack.c.b16 %v10004, %v10003
    %v10062 = vpack.c.b16 %v10006, %v10005
    %v10063 = vpack.c.b16 %v10008, %v10007
    %v10064 = vpack.c.b16 %v10010, %v10009
    %v10065 = vpack.c.b16 %v10012, %v10011
    %v10066 = vpack.c.b16 %v10014, %v10013
    %v10067 = vpack.c.b16 %v10016, %v10015
    %v10068 = vpack.c.b16 %v10018, %v10017
    %v10069 = vpack.c.b16 %v10020, %v10019
    %v10070 = vpack.c.b16 %v10022, %v10021
    %v10071 = vpack.c.b16 %v10024, %v10023
    %v10072 = vpack.c.b16 %v10026, %v10025
    %v10073 = vpack.c.b16 %v10028, %v10027
    %v10074 = vpack.c.b16 %v10030, %v10029
    %v10075 = vpack.c.b16 %v10032, %v10031
    %v10076 = vpack.c.b16 %v10034, %v10033
    %v10077 = vpack.c.b16 %v10036, %v10035
    %v10078 = vpack.c.b16 %v10038, %v10037
    %v10079 = vpack.c.b16 %v10040, %v10039
    %v10080 = vpack.c.b16 %v10042, %v10041
    %v10081 = vpack.c.b16 %v10044, %v10043
    %v10082 = vpack.c.b16 %v10046, %v10045
    %v10083 = vpack.c.b16 %v10048, %v10047
    %v10084 = vpack.c.b16 %v10050, %v10049
    %v10085 = vpack.c.b16 %v10052, %v10051
    %v10086 = vpack.c.b16 %v10054, %v10053
    %10119 = vmatprep.subr.bf16.mxu0 0
    %10120 = vmatpush1.bf16.msra.mxu0 %v10062
    %10121 = vmatprep.subr.bf16.mxu0 0
    %10122 = vmatpush1.bf16.msra.mxu0 %v10061
    %10123 = vmatprep.subr.bf16.mxu0 0
    %10124 = vmatpush1.bf16.msra.mxu0 %v10060
    %10125 = vmatprep.subr.bf16.mxu0 0
    %10126 = vmatpush1.bf16.msra.mxu0 %v10059
    %10127 = vmatprep.subr.bf16.mxu0 0
    %10128 = vmatpush1.bf16.msra.mxu0 %v10058
    %10129 = vmatprep.subr.bf16.mxu0 0
    %10130 = vmatpush1.bf16.msra.mxu0 %v10057
    %10131 = vmatprep.subr.bf16.mxu0 0
    %10132 = vmatpush1.bf16.msra.mxu0 %v10056
    %10133 = vmatprep.subr.bf16.mxu0 0
    %10134 = vmatpush1.bf16.msra.mxu0 %v10055
    %10135 = vmatprep.subr.bf16.mxu0 0
    %10136 = vmatpush2.bf16.msra.mxu0 %v10070
    %10137 = vmatprep.subr.bf16.mxu0 0
    %10138 = vmatpush2.bf16.msra.mxu0 %v10069
    %10139 = vmatprep.subr.bf16.mxu0 0
    %10140 = vmatpush2.bf16.msra.mxu0 %v10068
    %10141 = vmatprep.subr.bf16.mxu0 0
    %10142 = vmatpush2.bf16.msra.mxu0 %v10067
    %10143 = vmatprep.subr.bf16.mxu0 0
    %10144 = vmatpush2.bf16.msra.mxu0 %v10066
    %10145 = vmatprep.subr.bf16.mxu0 0
    %10146 = vmatpush2.bf16.msra.mxu0 %v10065
    %10147 = vmatprep.subr.bf16.mxu0 0
    %10148 = vmatpush2.bf16.msra.mxu0 %v10064
    %10149 = vmatprep.subr.bf16.mxu0 0
    %10150 = vmatpush2.bf16.msra.mxu0 %v10063
    %10151 = vmatprep.mubr.bf16.mxu0 %v9853
    %10152 = vmatmul.mubr.bf16.gmra.mxu0 %v9852
    %v10153 = vpop.f32.mrf.mxu0
    %v10154 = vadd.f32 %v9925, %v10153
    %v10155 = vpop.f32.mrf.mxu0
    %v10156 = vpop.f32.mrf.mxu0
    %v10157 = vpop.f32.mrf.mxu0
    %10158 = vdwg.mxu0
    %10159 = vmatprep.subr.bf16.mxu0 0
    %10160 = vmatpush1.bf16.msra.mxu0 %v10078
    %10161 = vmatprep.subr.bf16.mxu0 0
    %10162 = vmatpush1.bf16.msra.mxu0 %v10077
    %10163 = vmatprep.subr.bf16.mxu0 0
    %10164 = vmatpush1.bf16.msra.mxu0 %v10076
    %10165 = vmatprep.subr.bf16.mxu0 0
    %10166 = vmatpush1.bf16.msra.mxu0 %v10075
    %10167 = vmatprep.subr.bf16.mxu0 0
    %10168 = vmatpush1.bf16.msra.mxu0 %v10074
    %10169 = vmatprep.subr.bf16.mxu0 0
    %10170 = vmatpush1.bf16.msra.mxu0 %v10073
    %10171 = vmatprep.subr.bf16.mxu0 0
    %10172 = vmatpush1.bf16.msra.mxu0 %v10072
    %10173 = vmatprep.subr.bf16.mxu0 0
    %10174 = vmatpush1.bf16.msra.mxu0 %v10071
    %10175 = vmatprep.subr.bf16.mxu0 0
    %10176 = vmatpush2.bf16.msra.mxu0 %v10086
    %10177 = vmatprep.subr.bf16.mxu0 0
    %10178 = vmatpush2.bf16.msra.mxu0 %v10085
    %10179 = vmatprep.subr.bf16.mxu0 0
    %10180 = vmatpush2.bf16.msra.mxu0 %v10084
    %10181 = vmatprep.subr.bf16.mxu0 0
    %10182 = vmatpush2.bf16.msra.mxu0 %v10083
    %10183 = vmatprep.subr.bf16.mxu0 0
    %10184 = vmatpush2.bf16.msra.mxu0 %v10082
    %10185 = vmatprep.subr.bf16.mxu0 0
    %10186 = vmatpush2.bf16.msra.mxu0 %v10081
    %10187 = vmatprep.subr.bf16.mxu0 0
    %10188 = vmatpush2.bf16.msra.mxu0 %v10080
    %10189 = vmatprep.subr.bf16.mxu0 0
    %10190 = vmatpush2.bf16.msra.mxu0 %v10079
    %10191 = vmatprep.mubr.bf16.mxu0 %v9855
    %10192 = vmatmul.mubr.bf16.gmra.mxu0 %v9854
    %v10193 = vpop.f32.mrf.mxu0
    %v10194 = vadd.f32 %v10154, %v10193
    %v10195 = vpop.f32.mrf.mxu0
    %v10196 = vpop.f32.mrf.mxu0
    %v10197 = vpop.f32.mrf.mxu0
    %10198 = vdwg.mxu0
    %10199 = vst [vmem:[%s23] sm:$0x3] %v10194
    // Predicated region
    $region110: #{coarse_net_forward.1} parent=1 // pred_check
      _
    $region111: #{coarse_net_forward.1} parent=1 // pred_check_branch
      %10201 = sbr.rel (0) target = $region113
    $region112: #{coarse_net_forward.1} parent=1 // pred_region
      _
    $region113: #{coarse_net_forward.1} parent=1 // pred_fallthru
      _
    // Predicated region
    $region114: #{coarse_net_forward.1} parent=1 // pred_check
      _
    $region115: #{coarse_net_forward.1} parent=1 // pred_check_branch
      %10203 = sbr.rel (0) target = $region117
    $region116: #{coarse_net_forward.1} parent=1 // pred_region
      _
    $region117: #{coarse_net_forward.1} parent=1 // pred_fallthru
      _
    %10204 = vsyncpa [#allocation3], 1
    %10205 = vsyncpa [#allocation5], 1
    %10206 = vsyncpa [#allocation8], 1

</llo_original>
